<compile_context>
chip_gen: v6e
topology: v6e:2x2x1
jax: 0.10.0
libtpu: 0.0.40
codegen_flags: <defaults>
</compile_context>

<pallas_src>
import functools

import jax
import jax.numpy as jnp
from jax.experimental import pallas as pl
from jax.experimental.pallas import tpu as pltpu


# -----------------------------------------------------------------------------
# Pallas kernel: one (fpn_level, image) segment per grid step.
# The segment's zero-padded NHWC feature map arrives row-flattened
# ((Hmax+3)*(Wmax+2), C) in bf16; the 3x3 "same" conv is 9 row-shifted MXU
# matmuls accumulated in registers per row chunk, followed by folded-BN affine
# + ReLU and the fused [cls|reg|0] (C,128) head, stored lane-dense per chunk.
# -----------------------------------------------------------------------------
def _rpn_head_kernel(xf_ref,      # (Rmax, C)    bf16 flattened padded features
                     w3_ref,      # (9, C, C)    bf16 3x3 conv weights (tap-major)
                     bn_s_ref,    # (1, C)       f32 folded BN scale
                     bn_b_ref,    # (1, C)       f32 folded BN bias (incl. conv bias)
                     wh_ref,      # (C, 128)     bf16 fused [cls | reg | 0] weight
                     bh_ref,      # (1, 128)     f32 fused head bias
                     out_ref,     # (Pmax, 128)  f32 fused head output
                     *, wp2, num_anchors, row_chunk):
    P = out_ref.shape[0]          # Hmax * (Wmax + 2) padded output rows
    A = num_anchors

    row = 0
    while row < P:                # static Python unroll over row chunks
        tm = min(row_chunk, P - row)

        # 3x3 conv (padding=1) as 9 row-shifted (tm, C) x (C, C) bf16 matmuls.
        # Tap 0's dot initializes the register accumulator (no zero-fill, no
        # VMEM accumulator round trip); taps 1..8 accumulate in registers.
        acc = jnp.dot(xf_ref[pl.ds(row, tm), :], w3_ref[0],
                      preferred_element_type=jnp.float32)
        for tap in range(1, 9):
            dh, dw = divmod(tap, 3)
            off = row + dh * wp2 + dw          # static Python int offset
            acc += jnp.dot(xf_ref[pl.ds(off, tm), :], w3_ref[tap],
                           preferred_element_type=jnp.float32)

        # conv bias + eval-mode BatchNorm folded into a per-channel affine,
        # then ReLU.  Epilogue in f32 (only MXU operands are bf16).
        inter = jnp.maximum(acc * bn_s_ref[...] + bn_b_ref[...], 0.0)

        # Fused classifier+regressor head: one (tm, C) x (C, 128) matmul,
        # sigmoid only on the first A lanes (classifier), one lane-dense store.
        head = jnp.dot(inter.astype(jnp.bfloat16), wh_ref[...],
                       preferred_element_type=jnp.float32) + bh_ref[...]
        lane = jax.lax.broadcasted_iota(jnp.int32, head.shape, 1)
        out_ref[pl.ds(row, tm), :] = jnp.where(lane < A,
                                               jax.nn.sigmoid(head), head)
        row += tm


# -----------------------------------------------------------------------------
# Wrapper: equivalent of RPNHead.forward (all FPN levels, NCHW in/out),
# fused into ONE pallas_call over (level, image) segments.
# -----------------------------------------------------------------------------
def _pad_flatten_level(feat_nchw, h_max, w_max):
    """NCHW -> bf16 NHWC, zero-pad to the shared (Hmax+3, Wmax+2) canvas,
    row-flatten to ((Hmax+3)*(Wmax+2), C) per image."""
    n, c, h, w = feat_nchw.shape
    x = jnp.transpose(feat_nchw, (0, 2, 3, 1)).astype(jnp.bfloat16)
    x = jnp.pad(x, ((0, 0), (1, h_max + 2 - h), (1, w_max + 1 - w), (0, 0)))
    return x.reshape(n, (h_max + 3) * (w_max + 2), c)


@functools.partial(jax.jit, static_argnums=(6,))
def _rpn_forward_impl(features, conv3_w9, bn_scale, bn_bias, head_w, head_b,
                      num_anchors):
    shapes = [f.shape for f in features]
    N, C = shapes[0][0], shapes[0][1]
    H_max = max(s[2] for s in shapes)
    W_max = max(s[3] for s in shapes)
    Wp2 = W_max + 2
    Rmax = (H_max + 3) * Wp2          # padded rows per segment (halo included)
    Pmax = H_max * Wp2                # output rows per segment (junk cols W..W+1)
    L = len(features)
    A = num_anchors
    HEAD_N = head_w.shape[1]          # 128 (lane-padded fused head width)

    # (L*N, Rmax, C) bf16: level-major stacking of (level, image) segments.
    x_all = jnp.concatenate(
        [_pad_flatten_level(f, H_max, W_max) for f in features], axis=0)

    out = pl.pallas_call(
        functools.partial(_rpn_head_kernel, wp2=Wp2, num_anchors=A,
                          row_chunk=128),
        out_shape=jax.ShapeDtypeStruct((L * N, Pmax, HEAD_N), jnp.float32),
        grid_spec=pltpu.PrefetchScalarGridSpec(
            num_scalar_prefetch=0,
            grid=(L * N,),
            in_specs=[
                pl.BlockSpec((None, Rmax, C), lambda s: (s, 0, 0)),
                # constant index_maps -> weights stay VMEM-resident over the grid
                pl.BlockSpec((9, C, C), lambda s: (0, 0, 0)),
                pl.BlockSpec((1, C), lambda s: (0, 0)),
                pl.BlockSpec((1, C), lambda s: (0, 0)),
                pl.BlockSpec((C, HEAD_N), lambda s: (0, 0)),
                pl.BlockSpec((1, HEAD_N), lambda s: (0, 0)),
            ],
            out_specs=pl.BlockSpec((None, Pmax, HEAD_N), lambda s: (s, 0, 0)),
        ),
        compiler_params=pltpu.CompilerParams(
            dimension_semantics=("parallel",)),
    )(x_all, conv3_w9, bn_scale, bn_bias, head_w, head_b)

    out = out.reshape(L, N, H_max, Wp2, HEAD_N)
    logits, regs = [], []
    for l, (_, _, H, W) in enumerate(shapes):
        o = out[l, :, :H, :W, :]                           # valid region only
        logits.append(jnp.transpose(o[..., :A], (0, 3, 1, 2)))        # (N,A,H,W)
        regs.append(jnp.transpose(o[..., A:5 * A], (0, 3, 1, 2)))     # (N,4A,H,W)
    return tuple(logits), tuple(regs)


def rpn_forward(feature_list, params):
    """Equivalent of RPNHead.forward: MultiApply(forward_single, X)."""
    logits, regs = _rpn_forward_impl(
        tuple(feature_list), params["conv3_w9"], params["bn_scale"],
        params["bn_bias"], params["head_w"], params["head_b"],
        int(params["num_anchors"]))
    return list(logits), list(regs)


# -----------------------------------------------------------------------------
# Deterministic parameter init (shapes from RPNHead.__init__, no checkpoint).
# -----------------------------------------------------------------------------
def init_params(key, in_channels=256, num_anchors=3):
    C, A = in_channels, num_anchors
    ks = jax.random.split(key, 10)
    eps = 1e-5

    conv3_w = jax.random.normal(ks[0], (3, 3, C, C), jnp.float32) * 0.01  # HWIO
    conv3_b = jax.random.normal(ks[1], (C,), jnp.float32) * 0.01
    gamma = 1.0 + 0.1 * jax.random.normal(ks[2], (C,), jnp.float32)
    beta = 0.1 * jax.random.normal(ks[3], (C,), jnp.float32)
    r_mean = 0.1 * jax.random.normal(ks[4], (C,), jnp.float32)
    r_var = jnp.abs(1.0 + 0.1 * jax.random.normal(ks[5], (C,), jnp.float32))
    cls_w = jax.random.normal(ks[6], (C, A), jnp.float32) * 0.01
    cls_b = 0.01 * jax.random.normal(ks[7], (A,), jnp.float32)
    reg_w = jax.random.normal(ks[8], (C, 4 * A), jnp.float32) * 0.01
    reg_b = 0.01 * jax.random.normal(ks[9], (4 * A,), jnp.float32)

    # Fold conv bias + eval-mode BN into per-channel affine applied post-matmul.
    bn_scale = gamma / jnp.sqrt(r_var + eps)
    bn_bias = beta + (conv3_b - r_mean) * bn_scale

    # Fused, lane-padded classifier|regressor head (5A -> 128 lanes).
    head_pad = 128
    head_w = jnp.zeros((C, head_pad), jnp.float32)
    head_w = head_w.at[:, :A].set(cls_w).at[:, A:5 * A].set(reg_w)
    head_b = jnp.zeros((head_pad,), jnp.float32)
    head_b = head_b.at[:A].set(cls_b).at[A:5 * A].set(reg_b)

    return {
        # kernel-side (folded / packed) params
        "conv3_w9": conv3_w.reshape(9, C, C).astype(jnp.bfloat16),
        "bn_scale": bn_scale.reshape(1, C),
        "bn_bias": bn_bias.reshape(1, C),
        "head_w": head_w.astype(jnp.bfloat16),
        "head_b": head_b.reshape(1, head_pad),
        "num_anchors": A,
        # raw params for the pure-JAX reference
        "conv3_w": conv3_w, "conv3_b": conv3_b,
        "gamma": gamma, "beta": beta, "r_mean": r_mean, "r_var": r_var,
        "cls_w": cls_w, "cls_b": cls_b, "reg_w": reg_w, "reg_b": reg_b,
        "eps": eps,
    }


# -----------------------------------------------------------------------------
# Pure-JAX f32 reference for correctness check (eval-mode BN semantics).
# -----------------------------------------------------------------------------
def reference_forward_single(feature_nchw, p):
    x = jnp.transpose(feature_nchw, (0, 2, 3, 1)).astype(jnp.float32)
    y = jax.lax.conv_general_dilated(
        x, p["conv3_w"], window_strides=(1, 1), padding="SAME",
        dimension_numbers=("NHWC", "HWIO", "NHWC"),
        precision=jax.lax.Precision.HIGHEST) + p["conv3_b"]
    y = (y - p["r_mean"]) / jnp.sqrt(p["r_var"] + p["eps"]) * p["gamma"] + p["beta"]
    y = jnp.maximum(y, 0.0)
    logit = jax.nn.sigmoid(
        jnp.einsum("nhwc,ca->nhwa", y, p["cls_w"],
                   precision=jax.lax.Precision.HIGHEST) + p["cls_b"])
    reg = jnp.einsum("nhwc,ca->nhwa", y, p["reg_w"],
                     precision=jax.lax.Precision.HIGHEST) + p["reg_b"]
    return (jnp.transpose(logit, (0, 3, 1, 2)),
            jnp.transpose(reg, (0, 3, 1, 2)))


if __name__ == "__main__":
    key = jax.random.PRNGKey(0)
    k_p, k_x0, k_x1 = jax.random.split(key, 3)

    in_channels, num_anchors, batch = 256, 3, 2
    params = init_params(k_p, in_channels, num_anchors)

    # X is a list of FPN feature maps (NCHW), small spatial sizes.
    X = [
        jax.random.normal(k_x0, (batch, in_channels, 16, 16), jnp.float32),
        jax.random.normal(k_x1, (batch, in_channels, 8, 8), jnp.float32),
    ]

    logits, bbox_regs = rpn_forward(X, params)
    jax.block_until_ready(logits)
    jax.block_until_ready(bbox_regs)

    # Sanity-check against a pure-JAX f32 reference.  The kernel uses bf16 MXU
    # operands (f32 accumulation + f32 epilogue), hence the bf16-level tolerance.
    for feat, lo, rg in zip(X, logits, bbox_regs):
        ref_lo, ref_rg = reference_forward_single(feat, params)
        assert lo.shape == (batch, num_anchors, feat.shape[2], feat.shape[3])
        assert rg.shape == (batch, 4 * num_anchors, feat.shape[2], feat.shape[3])
        assert jnp.allclose(lo, ref_lo, atol=5e-3, rtol=5e-3), "logits mismatch"
        assert jnp.allclose(rg, ref_rg, atol=5e-3, rtol=5e-3), "bbox_reg mismatch"

    print("KERNEL_OK")
</pallas_src>

<mosaic_0001>
module attributes {stable_mosaic.version = 11 : i64} {
  func.func @_rpn_head_kernel(%arg0: i32, %arg1: memref<1x342x256xbf16, #tpu.memory_space<vmem>>, %arg2: memref<9x256x256xbf16, #tpu.memory_space<vmem>>, %arg3: memref<1x256xf32, #tpu.memory_space<vmem>>, %arg4: memref<1x256xf32, #tpu.memory_space<vmem>>, %arg5: memref<256x128xbf16, #tpu.memory_space<vmem>>, %arg6: memref<1x128xf32, #tpu.memory_space<vmem>>, %arg7: memref<1x288x128xf32, #tpu.memory_space<vmem>>) attributes {dimension_semantics = [#tpu.dimension_semantics<parallel>], iteration_bounds = array<i64: 4>, scalar_prefetch = 0 : i64, scratch_operands = 0 : i64, tpu.core_type = #tpu.core_type<tc>, window_params = [{transform_indices = @transform_0, window_bounds = array<i64: 1, 342, 256>}, {pipeline_mode = #tpu.pipeline_mode<synchronous>, transform_indices = @transform_1, window_bounds = array<i64: 9, 256, 256>}, {pipeline_mode = #tpu.pipeline_mode<synchronous>, transform_indices = @transform_2, window_bounds = array<i64: 1, 256>}, {pipeline_mode = #tpu.pipeline_mode<synchronous>, transform_indices = @transform_3, window_bounds = array<i64: 1, 256>}, {pipeline_mode = #tpu.pipeline_mode<synchronous>, transform_indices = @transform_4, window_bounds = array<i64: 256, 128>}, {pipeline_mode = #tpu.pipeline_mode<synchronous>, transform_indices = @transform_5, window_bounds = array<i64: 1, 128>}, {transform_indices = @transform_6, window_bounds = array<i64: 1, 288, 128>}]} {
    %c0 = arith.constant 0 : index
    %c0_0 = arith.constant 0 : index
    %c0_1 = arith.constant 0 : index
    %0 = vector.load %arg1[%c0, %c0_0, %c0_1] : memref<1x342x256xbf16, #tpu.memory_space<vmem>>, vector<1x128x256xbf16>
    %1 = vector.shape_cast %0 : vector<1x128x256xbf16> to vector<128x256xbf16>
    %c0_2 = arith.constant 0 : index
    %c0_3 = arith.constant 0 : index
    %c0_4 = arith.constant 0 : index
    %2 = vector.load %arg2[%c0_2, %c0_3, %c0_4] : memref<9x256x256xbf16, #tpu.memory_space<vmem>>, vector<1x256x256xbf16>
    %3 = vector.shape_cast %2 : vector<1x256x256xbf16> to vector<256x256xbf16>
    %cst = arith.constant dense<0.000000e+00> : vector<128x256xf32>
    %4 = tpu.matmul %1, %3, %cst {dimension_numbers = #tpu.dot_dimension_numbers<[1], [0], [0], [1], [0, 0, 1, 1], [], []>} : vector<128x256xbf16>, vector<256x256xbf16>, vector<128x256xf32> -> vector<128x256xf32>
    %c0_5 = arith.constant 0 : index
    %c1 = arith.constant 1 : index
    %c0_6 = arith.constant 0 : index
    %5 = vector.load %arg1[%c0_5, %c1, %c0_6] : memref<1x342x256xbf16, #tpu.memory_space<vmem>>, vector<1x128x256xbf16>
    %6 = vector.shape_cast %5 : vector<1x128x256xbf16> to vector<128x256xbf16>
    %c1_7 = arith.constant 1 : index
    %c0_8 = arith.constant 0 : index
    %c0_9 = arith.constant 0 : index
    %7 = vector.load %arg2[%c1_7, %c0_8, %c0_9] : memref<9x256x256xbf16, #tpu.memory_space<vmem>>, vector<1x256x256xbf16>
    %8 = vector.shape_cast %7 : vector<1x256x256xbf16> to vector<256x256xbf16>
    %cst_10 = arith.constant dense<0.000000e+00> : vector<128x256xf32>
    %9 = tpu.matmul %6, %8, %cst_10 {dimension_numbers = #tpu.dot_dimension_numbers<[1], [0], [0], [1], [0, 0, 1, 1], [], []>} : vector<128x256xbf16>, vector<256x256xbf16>, vector<128x256xf32> -> vector<128x256xf32>
    %10 = arith.addf %4, %9 : vector<128x256xf32>
    %c0_11 = arith.constant 0 : index
    %c2 = arith.constant 2 : index
    %c0_12 = arith.constant 0 : index
    %11 = vector.load %arg1[%c0_11, %c2, %c0_12] : memref<1x342x256xbf16, #tpu.memory_space<vmem>>, vector<1x128x256xbf16>
    %12 = vector.shape_cast %11 : vector<1x128x256xbf16> to vector<128x256xbf16>
    %c2_13 = arith.constant 2 : index
    %c0_14 = arith.constant 0 : index
    %c0_15 = arith.constant 0 : index
    %13 = vector.load %arg2[%c2_13, %c0_14, %c0_15] : memref<9x256x256xbf16, #tpu.memory_space<vmem>>, vector<1x256x256xbf16>
    %14 = vector.shape_cast %13 : vector<1x256x256xbf16> to vector<256x256xbf16>
    %cst_16 = arith.constant dense<0.000000e+00> : vector<128x256xf32>
    %15 = tpu.matmul %12, %14, %cst_16 {dimension_numbers = #tpu.dot_dimension_numbers<[1], [0], [0], [1], [0, 0, 1, 1], [], []>} : vector<128x256xbf16>, vector<256x256xbf16>, vector<128x256xf32> -> vector<128x256xf32>
    %16 = arith.addf %10, %15 : vector<128x256xf32>
    %c0_17 = arith.constant 0 : index
    %c18 = arith.constant 18 : index
    %c0_18 = arith.constant 0 : index
    %17 = vector.load %arg1[%c0_17, %c18, %c0_18] : memref<1x342x256xbf16, #tpu.memory_space<vmem>>, vector<1x128x256xbf16>
    %18 = vector.shape_cast %17 : vector<1x128x256xbf16> to vector<128x256xbf16>
    %c3 = arith.constant 3 : index
    %c0_19 = arith.constant 0 : index
    %c0_20 = arith.constant 0 : index
    %19 = vector.load %arg2[%c3, %c0_19, %c0_20] : memref<9x256x256xbf16, #tpu.memory_space<vmem>>, vector<1x256x256xbf16>
    %20 = vector.shape_cast %19 : vector<1x256x256xbf16> to vector<256x256xbf16>
    %cst_21 = arith.constant dense<0.000000e+00> : vector<128x256xf32>
    %21 = tpu.matmul %18, %20, %cst_21 {dimension_numbers = #tpu.dot_dimension_numbers<[1], [0], [0], [1], [0, 0, 1, 1], [], []>} : vector<128x256xbf16>, vector<256x256xbf16>, vector<128x256xf32> -> vector<128x256xf32>
    %22 = arith.addf %16, %21 : vector<128x256xf32>
    %c0_22 = arith.constant 0 : index
    %c19 = arith.constant 19 : index
    %c0_23 = arith.constant 0 : index
    %23 = vector.load %arg1[%c0_22, %c19, %c0_23] : memref<1x342x256xbf16, #tpu.memory_space<vmem>>, vector<1x128x256xbf16>
    %24 = vector.shape_cast %23 : vector<1x128x256xbf16> to vector<128x256xbf16>
    %c4 = arith.constant 4 : index
    %c0_24 = arith.constant 0 : index
    %c0_25 = arith.constant 0 : index
    %25 = vector.load %arg2[%c4, %c0_24, %c0_25] : memref<9x256x256xbf16, #tpu.memory_space<vmem>>, vector<1x256x256xbf16>
    %26 = vector.shape_cast %25 : vector<1x256x256xbf16> to vector<256x256xbf16>
    %cst_26 = arith.constant dense<0.000000e+00> : vector<128x256xf32>
    %27 = tpu.matmul %24, %26, %cst_26 {dimension_numbers = #tpu.dot_dimension_numbers<[1], [0], [0], [1], [0, 0, 1, 1], [], []>} : vector<128x256xbf16>, vector<256x256xbf16>, vector<128x256xf32> -> vector<128x256xf32>
    %28 = arith.addf %22, %27 : vector<128x256xf32>
    %c0_27 = arith.constant 0 : index
    %c20 = arith.constant 20 : index
    %c0_28 = arith.constant 0 : index
    %29 = vector.load %arg1[%c0_27, %c20, %c0_28] : memref<1x342x256xbf16, #tpu.memory_space<vmem>>, vector<1x128x256xbf16>
    %30 = vector.shape_cast %29 : vector<1x128x256xbf16> to vector<128x256xbf16>
    %c5 = arith.constant 5 : index
    %c0_29 = arith.constant 0 : index
    %c0_30 = arith.constant 0 : index
    %31 = vector.load %arg2[%c5, %c0_29, %c0_30] : memref<9x256x256xbf16, #tpu.memory_space<vmem>>, vector<1x256x256xbf16>
    %32 = vector.shape_cast %31 : vector<1x256x256xbf16> to vector<256x256xbf16>
    %cst_31 = arith.constant dense<0.000000e+00> : vector<128x256xf32>
    %33 = tpu.matmul %30, %32, %cst_31 {dimension_numbers = #tpu.dot_dimension_numbers<[1], [0], [0], [1], [0, 0, 1, 1], [], []>} : vector<128x256xbf16>, vector<256x256xbf16>, vector<128x256xf32> -> vector<128x256xf32>
    %34 = arith.addf %28, %33 : vector<128x256xf32>
    %c0_32 = arith.constant 0 : index
    %c36 = arith.constant 36 : index
    %c0_33 = arith.constant 0 : index
    %35 = vector.load %arg1[%c0_32, %c36, %c0_33] : memref<1x342x256xbf16, #tpu.memory_space<vmem>>, vector<1x128x256xbf16>
    %36 = vector.shape_cast %35 : vector<1x128x256xbf16> to vector<128x256xbf16>
    %c6 = arith.constant 6 : index
    %c0_34 = arith.constant 0 : index
    %c0_35 = arith.constant 0 : index
    %37 = vector.load %arg2[%c6, %c0_34, %c0_35] : memref<9x256x256xbf16, #tpu.memory_space<vmem>>, vector<1x256x256xbf16>
    %38 = vector.shape_cast %37 : vector<1x256x256xbf16> to vector<256x256xbf16>
    %cst_36 = arith.constant dense<0.000000e+00> : vector<128x256xf32>
    %39 = tpu.matmul %36, %38, %cst_36 {dimension_numbers = #tpu.dot_dimension_numbers<[1], [0], [0], [1], [0, 0, 1, 1], [], []>} : vector<128x256xbf16>, vector<256x256xbf16>, vector<128x256xf32> -> vector<128x256xf32>
    %40 = arith.addf %34, %39 : vector<128x256xf32>
    %c0_37 = arith.constant 0 : index
    %c37 = arith.constant 37 : index
    %c0_38 = arith.constant 0 : index
    %41 = vector.load %arg1[%c0_37, %c37, %c0_38] : memref<1x342x256xbf16, #tpu.memory_space<vmem>>, vector<1x128x256xbf16>
    %42 = vector.shape_cast %41 : vector<1x128x256xbf16> to vector<128x256xbf16>
    %c7 = arith.constant 7 : index
    %c0_39 = arith.constant 0 : index
    %c0_40 = arith.constant 0 : index
    %43 = vector.load %arg2[%c7, %c0_39, %c0_40] : memref<9x256x256xbf16, #tpu.memory_space<vmem>>, vector<1x256x256xbf16>
    %44 = vector.shape_cast %43 : vector<1x256x256xbf16> to vector<256x256xbf16>
    %cst_41 = arith.constant dense<0.000000e+00> : vector<128x256xf32>
    %45 = tpu.matmul %42, %44, %cst_41 {dimension_numbers = #tpu.dot_dimension_numbers<[1], [0], [0], [1], [0, 0, 1, 1], [], []>} : vector<128x256xbf16>, vector<256x256xbf16>, vector<128x256xf32> -> vector<128x256xf32>
    %46 = arith.addf %40, %45 : vector<128x256xf32>
    %c0_42 = arith.constant 0 : index
    %c38 = arith.constant 38 : index
    %c0_43 = arith.constant 0 : index
    %47 = vector.load %arg1[%c0_42, %c38, %c0_43] : memref<1x342x256xbf16, #tpu.memory_space<vmem>>, vector<1x128x256xbf16>
    %48 = vector.shape_cast %47 : vector<1x128x256xbf16> to vector<128x256xbf16>
    %c8 = arith.constant 8 : index
    %c0_44 = arith.constant 0 : index
    %c0_45 = arith.constant 0 : index
    %49 = vector.load %arg2[%c8, %c0_44, %c0_45] : memref<9x256x256xbf16, #tpu.memory_space<vmem>>, vector<1x256x256xbf16>
    %50 = vector.shape_cast %49 : vector<1x256x256xbf16> to vector<256x256xbf16>
    %cst_46 = arith.constant dense<0.000000e+00> : vector<128x256xf32>
    %51 = tpu.matmul %48, %50, %cst_46 {dimension_numbers = #tpu.dot_dimension_numbers<[1], [0], [0], [1], [0, 0, 1, 1], [], []>} : vector<128x256xbf16>, vector<256x256xbf16>, vector<128x256xf32> -> vector<128x256xf32>
    %52 = arith.addf %46, %51 : vector<128x256xf32>
    %c0_47 = arith.constant 0 : index
    %c0_48 = arith.constant 0 : index
    %53 = vector.load %arg3[%c0_47, %c0_48] : memref<1x256xf32, #tpu.memory_space<vmem>>, vector<1x256xf32>
    %54 = vector.broadcast %53 : vector<1x256xf32> to vector<128x256xf32>
    %55 = arith.mulf %52, %54 : vector<128x256xf32>
    %c0_49 = arith.constant 0 : index
    %c0_50 = arith.constant 0 : index
    %56 = vector.load %arg4[%c0_49, %c0_50] : memref<1x256xf32, #tpu.memory_space<vmem>>, vector<1x256xf32>
    %57 = vector.broadcast %56 : vector<1x256xf32> to vector<128x256xf32>
    %58 = arith.addf %55, %57 : vector<128x256xf32>
    %cst_51 = arith.constant 0.000000e+00 : f32
    %59 = vector.broadcast %cst_51 : f32 to vector<128x256xf32>
    %60 = arith.maximumf %58, %59 : vector<128x256xf32>
    %61 = arith.truncf %60 : vector<128x256xf32> to vector<128x256xbf16>
    %c0_52 = arith.constant 0 : index
    %c0_53 = arith.constant 0 : index
    %62 = vector.load %arg5[%c0_52, %c0_53] : memref<256x128xbf16, #tpu.memory_space<vmem>>, vector<256x128xbf16>
    %cst_54 = arith.constant dense<0.000000e+00> : vector<128x128xf32>
    %63 = tpu.matmul %61, %62, %cst_54 {dimension_numbers = #tpu.dot_dimension_numbers<[1], [0], [0], [1], [0, 0, 1, 1], [], []>} : vector<128x256xbf16>, vector<256x128xbf16>, vector<128x128xf32> -> vector<128x128xf32>
    %c0_55 = arith.constant 0 : index
    %c0_56 = arith.constant 0 : index
    %64 = vector.load %arg6[%c0_55, %c0_56] : memref<1x128xf32, #tpu.memory_space<vmem>>, vector<1x128xf32>
    %65 = vector.broadcast %64 : vector<1x128xf32> to vector<128x128xf32>
    %66 = arith.addf %63, %65 : vector<128x128xf32>
    %67 = tpu.iota {dimensions = array<i32: 1>} : vector<128x128xi32>
    %c3_i32 = arith.constant 3 : i32
    %68 = vector.broadcast %c3_i32 : i32 to vector<128x128xi32>
    %69 = arith.cmpi slt, %67, %68 : vector<128x128xi32>
    %70 = arith.negf %66 : vector<128x128xf32>
    %71 = math.exp %70 : vector<128x128xf32>
    %cst_57 = arith.constant 1.000000e+00 : f32
    %72 = vector.broadcast %cst_57 : f32 to vector<128x128xf32>
    %73 = arith.addf %72, %71 : vector<128x128xf32>
    %74 = arith.divf %72, %73 : vector<128x128xf32>
    %75 = arith.select %69, %74, %66 : vector<128x128xi1>, vector<128x128xf32>
    %c0_58 = arith.constant 0 : index
    %c0_59 = arith.constant 0 : index
    %c0_60 = arith.constant 0 : index
    %76 = vector.load %arg7[%c0_58, %c0_59, %c0_60] : memref<1x288x128xf32, #tpu.memory_space<vmem>>, vector<1x128x128xf32>
    %77 = vector.shape_cast %76 : vector<1x128x128xf32> to vector<128x128xf32>
    %78 = vector.shape_cast %75 : vector<128x128xf32> to vector<1x128x128xf32>
    tpu.vector_store %arg7[%c0_58, %c0_59, %c0_60], %78 {strides = array<i32>} : memref<1x288x128xf32, #tpu.memory_space<vmem>>, vector<1x128x128xf32>,
    %c0_61 = arith.constant 0 : index
    %c128 = arith.constant 128 : index
    %c0_62 = arith.constant 0 : index
    %79 = vector.load %arg1[%c0_61, %c128, %c0_62] : memref<1x342x256xbf16, #tpu.memory_space<vmem>>, vector<1x128x256xbf16>
    %80 = vector.shape_cast %79 : vector<1x128x256xbf16> to vector<128x256xbf16>
    %c0_63 = arith.constant 0 : index
    %c0_64 = arith.constant 0 : index
    %c0_65 = arith.constant 0 : index
    %81 = vector.load %arg2[%c0_63, %c0_64, %c0_65] : memref<9x256x256xbf16, #tpu.memory_space<vmem>>, vector<1x256x256xbf16>
    %82 = vector.shape_cast %81 : vector<1x256x256xbf16> to vector<256x256xbf16>
    %cst_66 = arith.constant dense<0.000000e+00> : vector<128x256xf32>
    %83 = tpu.matmul %80, %82, %cst_66 {dimension_numbers = #tpu.dot_dimension_numbers<[1], [0], [0], [1], [0, 0, 1, 1], [], []>} : vector<128x256xbf16>, vector<256x256xbf16>, vector<128x256xf32> -> vector<128x256xf32>
    %c0_67 = arith.constant 0 : index
    %c129 = arith.constant 129 : index
    %c0_68 = arith.constant 0 : index
    %84 = vector.load %arg1[%c0_67, %c129, %c0_68] : memref<1x342x256xbf16, #tpu.memory_space<vmem>>, vector<1x128x256xbf16>
    %85 = vector.shape_cast %84 : vector<1x128x256xbf16> to vector<128x256xbf16>
    %c1_69 = arith.constant 1 : index
    %c0_70 = arith.constant 0 : index
    %c0_71 = arith.constant 0 : index
    %86 = vector.load %arg2[%c1_69, %c0_70, %c0_71] : memref<9x256x256xbf16, #tpu.memory_space<vmem>>, vector<1x256x256xbf16>
    %87 = vector.shape_cast %86 : vector<1x256x256xbf16> to vector<256x256xbf16>
    %cst_72 = arith.constant dense<0.000000e+00> : vector<128x256xf32>
    %88 = tpu.matmul %85, %87, %cst_72 {dimension_numbers = #tpu.dot_dimension_numbers<[1], [0], [0], [1], [0, 0, 1, 1], [], []>} : vector<128x256xbf16>, vector<256x256xbf16>, vector<128x256xf32> -> vector<128x256xf32>
    %89 = arith.addf %83, %88 : vector<128x256xf32>
    %c0_73 = arith.constant 0 : index
    %c130 = arith.constant 130 : index
    %c0_74 = arith.constant 0 : index
    %90 = vector.load %arg1[%c0_73, %c130, %c0_74] : memref<1x342x256xbf16, #tpu.memory_space<vmem>>, vector<1x128x256xbf16>
    %91 = vector.shape_cast %90 : vector<1x128x256xbf16> to vector<128x256xbf16>
    %c2_75 = arith.constant 2 : index
    %c0_76 = arith.constant 0 : index
    %c0_77 = arith.constant 0 : index
    %92 = vector.load %arg2[%c2_75, %c0_76, %c0_77] : memref<9x256x256xbf16, #tpu.memory_space<vmem>>, vector<1x256x256xbf16>
    %93 = vector.shape_cast %92 : vector<1x256x256xbf16> to vector<256x256xbf16>
    %cst_78 = arith.constant dense<0.000000e+00> : vector<128x256xf32>
    %94 = tpu.matmul %91, %93, %cst_78 {dimension_numbers = #tpu.dot_dimension_numbers<[1], [0], [0], [1], [0, 0, 1, 1], [], []>} : vector<128x256xbf16>, vector<256x256xbf16>, vector<128x256xf32> -> vector<128x256xf32>
    %95 = arith.addf %89, %94 : vector<128x256xf32>
    %c0_79 = arith.constant 0 : index
    %c146 = arith.constant 146 : index
    %c0_80 = arith.constant 0 : index
    %96 = vector.load %arg1[%c0_79, %c146, %c0_80] : memref<1x342x256xbf16, #tpu.memory_space<vmem>>, vector<1x128x256xbf16>
    %97 = vector.shape_cast %96 : vector<1x128x256xbf16> to vector<128x256xbf16>
    %c3_81 = arith.constant 3 : index
    %c0_82 = arith.constant 0 : index
    %c0_83 = arith.constant 0 : index
    %98 = vector.load %arg2[%c3_81, %c0_82, %c0_83] : memref<9x256x256xbf16, #tpu.memory_space<vmem>>, vector<1x256x256xbf16>
    %99 = vector.shape_cast %98 : vector<1x256x256xbf16> to vector<256x256xbf16>
    %cst_84 = arith.constant dense<0.000000e+00> : vector<128x256xf32>
    %100 = tpu.matmul %97, %99, %cst_84 {dimension_numbers = #tpu.dot_dimension_numbers<[1], [0], [0], [1], [0, 0, 1, 1], [], []>} : vector<128x256xbf16>, vector<256x256xbf16>, vector<128x256xf32> -> vector<128x256xf32>
    %101 = arith.addf %95, %100 : vector<128x256xf32>
    %c0_85 = arith.constant 0 : index
    %c147 = arith.constant 147 : index
    %c0_86 = arith.constant 0 : index
    %102 = vector.load %arg1[%c0_85, %c147, %c0_86] : memref<1x342x256xbf16, #tpu.memory_space<vmem>>, vector<1x128x256xbf16>
    %103 = vector.shape_cast %102 : vector<1x128x256xbf16> to vector<128x256xbf16>
    %c4_87 = arith.constant 4 : index
    %c0_88 = arith.constant 0 : index
    %c0_89 = arith.constant 0 : index
    %104 = vector.load %arg2[%c4_87, %c0_88, %c0_89] : memref<9x256x256xbf16, #tpu.memory_space<vmem>>, vector<1x256x256xbf16>
    %105 = vector.shape_cast %104 : vector<1x256x256xbf16> to vector<256x256xbf16>
    %cst_90 = arith.constant dense<0.000000e+00> : vector<128x256xf32>
    %106 = tpu.matmul %103, %105, %cst_90 {dimension_numbers = #tpu.dot_dimension_numbers<[1], [0], [0], [1], [0, 0, 1, 1], [], []>} : vector<128x256xbf16>, vector<256x256xbf16>, vector<128x256xf32> -> vector<128x256xf32>
    %107 = arith.addf %101, %106 : vector<128x256xf32>
    %c0_91 = arith.constant 0 : index
    %c148 = arith.constant 148 : index
    %c0_92 = arith.constant 0 : index
    %108 = vector.load %arg1[%c0_91, %c148, %c0_92] : memref<1x342x256xbf16, #tpu.memory_space<vmem>>, vector<1x128x256xbf16>
    %109 = vector.shape_cast %108 : vector<1x128x256xbf16> to vector<128x256xbf16>
    %c5_93 = arith.constant 5 : index
    %c0_94 = arith.constant 0 : index
    %c0_95 = arith.constant 0 : index
    %110 = vector.load %arg2[%c5_93, %c0_94, %c0_95] : memref<9x256x256xbf16, #tpu.memory_space<vmem>>, vector<1x256x256xbf16>
    %111 = vector.shape_cast %110 : vector<1x256x256xbf16> to vector<256x256xbf16>
    %cst_96 = arith.constant dense<0.000000e+00> : vector<128x256xf32>
    %112 = tpu.matmul %109, %111, %cst_96 {dimension_numbers = #tpu.dot_dimension_numbers<[1], [0], [0], [1], [0, 0, 1, 1], [], []>} : vector<128x256xbf16>, vector<256x256xbf16>, vector<128x256xf32> -> vector<128x256xf32>
    %113 = arith.addf %107, %112 : vector<128x256xf32>
    %c0_97 = arith.constant 0 : index
    %c164 = arith.constant 164 : index
    %c0_98 = arith.constant 0 : index
    %114 = vector.load %arg1[%c0_97, %c164, %c0_98] : memref<1x342x256xbf16, #tpu.memory_space<vmem>>, vector<1x128x256xbf16>
    %115 = vector.shape_cast %114 : vector<1x128x256xbf16> to vector<128x256xbf16>
    %c6_99 = arith.constant 6 : index
    %c0_100 = arith.constant 0 : index
    %c0_101 = arith.constant 0 : index
    %116 = vector.load %arg2[%c6_99, %c0_100, %c0_101] : memref<9x256x256xbf16, #tpu.memory_space<vmem>>, vector<1x256x256xbf16>
    %117 = vector.shape_cast %116 : vector<1x256x256xbf16> to vector<256x256xbf16>
    %cst_102 = arith.constant dense<0.000000e+00> : vector<128x256xf32>
    %118 = tpu.matmul %115, %117, %cst_102 {dimension_numbers = #tpu.dot_dimension_numbers<[1], [0], [0], [1], [0, 0, 1, 1], [], []>} : vector<128x256xbf16>, vector<256x256xbf16>, vector<128x256xf32> -> vector<128x256xf32>
    %119 = arith.addf %113, %118 : vector<128x256xf32>
    %c0_103 = arith.constant 0 : index
    %c165 = arith.constant 165 : index
    %c0_104 = arith.constant 0 : index
    %120 = vector.load %arg1[%c0_103, %c165, %c0_104] : memref<1x342x256xbf16, #tpu.memory_space<vmem>>, vector<1x128x256xbf16>
    %121 = vector.shape_cast %120 : vector<1x128x256xbf16> to vector<128x256xbf16>
    %c7_105 = arith.constant 7 : index
    %c0_106 = arith.constant 0 : index
    %c0_107 = arith.constant 0 : index
    %122 = vector.load %arg2[%c7_105, %c0_106, %c0_107] : memref<9x256x256xbf16, #tpu.memory_space<vmem>>, vector<1x256x256xbf16>
    %123 = vector.shape_cast %122 : vector<1x256x256xbf16> to vector<256x256xbf16>
    %cst_108 = arith.constant dense<0.000000e+00> : vector<128x256xf32>
    %124 = tpu.matmul %121, %123, %cst_108 {dimension_numbers = #tpu.dot_dimension_numbers<[1], [0], [0], [1], [0, 0, 1, 1], [], []>} : vector<128x256xbf16>, vector<256x256xbf16>, vector<128x256xf32> -> vector<128x256xf32>
    %125 = arith.addf %119, %124 : vector<128x256xf32>
    %c0_109 = arith.constant 0 : index
    %c166 = arith.constant 166 : index
    %c0_110 = arith.constant 0 : index
    %126 = vector.load %arg1[%c0_109, %c166, %c0_110] : memref<1x342x256xbf16, #tpu.memory_space<vmem>>, vector<1x128x256xbf16>
    %127 = vector.shape_cast %126 : vector<1x128x256xbf16> to vector<128x256xbf16>
    %c8_111 = arith.constant 8 : index
    %c0_112 = arith.constant 0 : index
    %c0_113 = arith.constant 0 : index
    %128 = vector.load %arg2[%c8_111, %c0_112, %c0_113] : memref<9x256x256xbf16, #tpu.memory_space<vmem>>, vector<1x256x256xbf16>
    %129 = vector.shape_cast %128 : vector<1x256x256xbf16> to vector<256x256xbf16>
    %cst_114 = arith.constant dense<0.000000e+00> : vector<128x256xf32>
    %130 = tpu.matmul %127, %129, %cst_114 {dimension_numbers = #tpu.dot_dimension_numbers<[1], [0], [0], [1], [0, 0, 1, 1], [], []>} : vector<128x256xbf16>, vector<256x256xbf16>, vector<128x256xf32> -> vector<128x256xf32>
    %131 = arith.addf %125, %130 : vector<128x256xf32>
    %c0_115 = arith.constant 0 : index
    %c0_116 = arith.constant 0 : index
    %132 = vector.load %arg3[%c0_115, %c0_116] : memref<1x256xf32, #tpu.memory_space<vmem>>, vector<1x256xf32>
    %133 = vector.broadcast %132 : vector<1x256xf32> to vector<128x256xf32>
    %134 = arith.mulf %131, %133 : vector<128x256xf32>
    %c0_117 = arith.constant 0 : index
    %c0_118 = arith.constant 0 : index
    %135 = vector.load %arg4[%c0_117, %c0_118] : memref<1x256xf32, #tpu.memory_space<vmem>>, vector<1x256xf32>
    %136 = vector.broadcast %135 : vector<1x256xf32> to vector<128x256xf32>
    %137 = arith.addf %134, %136 : vector<128x256xf32>
    %cst_119 = arith.constant 0.000000e+00 : f32
    %138 = vector.broadcast %cst_119 : f32 to vector<128x256xf32>
    %139 = arith.maximumf %137, %138 : vector<128x256xf32>
    %140 = arith.truncf %139 : vector<128x256xf32> to vector<128x256xbf16>
    %c0_120 = arith.constant 0 : index
    %c0_121 = arith.constant 0 : index
    %141 = vector.load %arg5[%c0_120, %c0_121] : memref<256x128xbf16, #tpu.memory_space<vmem>>, vector<256x128xbf16>
    %cst_122 = arith.constant dense<0.000000e+00> : vector<128x128xf32>
    %142 = tpu.matmul %140, %141, %cst_122 {dimension_numbers = #tpu.dot_dimension_numbers<[1], [0], [0], [1], [0, 0, 1, 1], [], []>} : vector<128x256xbf16>, vector<256x128xbf16>, vector<128x128xf32> -> vector<128x128xf32>
    %c0_123 = arith.constant 0 : index
    %c0_124 = arith.constant 0 : index
    %143 = vector.load %arg6[%c0_123, %c0_124] : memref<1x128xf32, #tpu.memory_space<vmem>>, vector<1x128xf32>
    %144 = vector.broadcast %143 : vector<1x128xf32> to vector<128x128xf32>
    %145 = arith.addf %142, %144 : vector<128x128xf32>
    %146 = tpu.iota {dimensions = array<i32: 1>} : vector<128x128xi32>
    %c3_i32_125 = arith.constant 3 : i32
    %147 = vector.broadcast %c3_i32_125 : i32 to vector<128x128xi32>
    %148 = arith.cmpi slt, %146, %147 : vector<128x128xi32>
    %149 = arith.negf %145 : vector<128x128xf32>
    %150 = math.exp %149 : vector<128x128xf32>
    %cst_126 = arith.constant 1.000000e+00 : f32
    %151 = vector.broadcast %cst_126 : f32 to vector<128x128xf32>
    %152 = arith.addf %151, %150 : vector<128x128xf32>
    %153 = arith.divf %151, %152 : vector<128x128xf32>
    %154 = arith.select %148, %153, %145 : vector<128x128xi1>, vector<128x128xf32>
    %c0_127 = arith.constant 0 : index
    %c128_128 = arith.constant 128 : index
    %c0_129 = arith.constant 0 : index
    %155 = vector.load %arg7[%c0_127, %c128_128, %c0_129] : memref<1x288x128xf32, #tpu.memory_space<vmem>>, vector<1x128x128xf32>
    %156 = vector.shape_cast %155 : vector<1x128x128xf32> to vector<128x128xf32>
    %157 = vector.shape_cast %154 : vector<128x128xf32> to vector<1x128x128xf32>
    tpu.vector_store %arg7[%c0_127, %c128_128, %c0_129], %157 {strides = array<i32>} : memref<1x288x128xf32, #tpu.memory_space<vmem>>, vector<1x128x128xf32>,
    %c0_130 = arith.constant 0 : index
    %c256 = arith.constant 256 : index
    %c0_131 = arith.constant 0 : index
    %158 = vector.load %arg1[%c0_130, %c256, %c0_131] : memref<1x342x256xbf16, #tpu.memory_space<vmem>>, vector<1x32x256xbf16>
    %159 = vector.shape_cast %158 : vector<1x32x256xbf16> to vector<32x256xbf16>
    %c0_132 = arith.constant 0 : index
    %c0_133 = arith.constant 0 : index
    %c0_134 = arith.constant 0 : index
    %160 = vector.load %arg2[%c0_132, %c0_133, %c0_134] : memref<9x256x256xbf16, #tpu.memory_space<vmem>>, vector<1x256x256xbf16>
    %161 = vector.shape_cast %160 : vector<1x256x256xbf16> to vector<256x256xbf16>
    %cst_135 = arith.constant dense<0.000000e+00> : vector<32x256xf32>
    %162 = tpu.matmul %159, %161, %cst_135 {dimension_numbers = #tpu.dot_dimension_numbers<[1], [0], [0], [1], [0, 0, 1, 1], [], []>} : vector<32x256xbf16>, vector<256x256xbf16>, vector<32x256xf32> -> vector<32x256xf32>
    %c0_136 = arith.constant 0 : index
    %c257 = arith.constant 257 : index
    %c0_137 = arith.constant 0 : index
    %163 = vector.load %arg1[%c0_136, %c257, %c0_137] : memref<1x342x256xbf16, #tpu.memory_space<vmem>>, vector<1x32x256xbf16>
    %164 = vector.shape_cast %163 : vector<1x32x256xbf16> to vector<32x256xbf16>
    %c1_138 = arith.constant 1 : index
    %c0_139 = arith.constant 0 : index
    %c0_140 = arith.constant 0 : index
    %165 = vector.load %arg2[%c1_138, %c0_139, %c0_140] : memref<9x256x256xbf16, #tpu.memory_space<vmem>>, vector<1x256x256xbf16>
    %166 = vector.shape_cast %165 : vector<1x256x256xbf16> to vector<256x256xbf16>
    %cst_141 = arith.constant dense<0.000000e+00> : vector<32x256xf32>
    %167 = tpu.matmul %164, %166, %cst_141 {dimension_numbers = #tpu.dot_dimension_numbers<[1], [0], [0], [1], [0, 0, 1, 1], [], []>} : vector<32x256xbf16>, vector<256x256xbf16>, vector<32x256xf32> -> vector<32x256xf32>
    %168 = arith.addf %162, %167 : vector<32x256xf32>
    %c0_142 = arith.constant 0 : index
    %c258 = arith.constant 258 : index
    %c0_143 = arith.constant 0 : index
    %169 = vector.load %arg1[%c0_142, %c258, %c0_143] : memref<1x342x256xbf16, #tpu.memory_space<vmem>>, vector<1x32x256xbf16>
    %170 = vector.shape_cast %169 : vector<1x32x256xbf16> to vector<32x256xbf16>
    %c2_144 = arith.constant 2 : index
    %c0_145 = arith.constant 0 : index
    %c0_146 = arith.constant 0 : index
    %171 = vector.load %arg2[%c2_144, %c0_145, %c0_146] : memref<9x256x256xbf16, #tpu.memory_space<vmem>>, vector<1x256x256xbf16>
    %172 = vector.shape_cast %171 : vector<1x256x256xbf16> to vector<256x256xbf16>
    %cst_147 = arith.constant dense<0.000000e+00> : vector<32x256xf32>
    %173 = tpu.matmul %170, %172, %cst_147 {dimension_numbers = #tpu.dot_dimension_numbers<[1], [0], [0], [1], [0, 0, 1, 1], [], []>} : vector<32x256xbf16>, vector<256x256xbf16>, vector<32x256xf32> -> vector<32x256xf32>
    %174 = arith.addf %168, %173 : vector<32x256xf32>
    %c0_148 = arith.constant 0 : index
    %c274 = arith.constant 274 : index
    %c0_149 = arith.constant 0 : index
    %175 = vector.load %arg1[%c0_148, %c274, %c0_149] : memref<1x342x256xbf16, #tpu.memory_space<vmem>>, vector<1x32x256xbf16>
    %176 = vector.shape_cast %175 : vector<1x32x256xbf16> to vector<32x256xbf16>
    %c3_150 = arith.constant 3 : index
    %c0_151 = arith.constant 0 : index
    %c0_152 = arith.constant 0 : index
    %177 = vector.load %arg2[%c3_150, %c0_151, %c0_152] : memref<9x256x256xbf16, #tpu.memory_space<vmem>>, vector<1x256x256xbf16>
    %178 = vector.shape_cast %177 : vector<1x256x256xbf16> to vector<256x256xbf16>
    %cst_153 = arith.constant dense<0.000000e+00> : vector<32x256xf32>
    %179 = tpu.matmul %176, %178, %cst_153 {dimension_numbers = #tpu.dot_dimension_numbers<[1], [0], [0], [1], [0, 0, 1, 1], [], []>} : vector<32x256xbf16>, vector<256x256xbf16>, vector<32x256xf32> -> vector<32x256xf32>
    %180 = arith.addf %174, %179 : vector<32x256xf32>
    %c0_154 = arith.constant 0 : index
    %c275 = arith.constant 275 : index
    %c0_155 = arith.constant 0 : index
    %181 = vector.load %arg1[%c0_154, %c275, %c0_155] : memref<1x342x256xbf16, #tpu.memory_space<vmem>>, vector<1x32x256xbf16>
    %182 = vector.shape_cast %181 : vector<1x32x256xbf16> to vector<32x256xbf16>
    %c4_156 = arith.constant 4 : index
    %c0_157 = arith.constant 0 : index
    %c0_158 = arith.constant 0 : index
    %183 = vector.load %arg2[%c4_156, %c0_157, %c0_158] : memref<9x256x256xbf16, #tpu.memory_space<vmem>>, vector<1x256x256xbf16>
    %184 = vector.shape_cast %183 : vector<1x256x256xbf16> to vector<256x256xbf16>
    %cst_159 = arith.constant dense<0.000000e+00> : vector<32x256xf32>
    %185 = tpu.matmul %182, %184, %cst_159 {dimension_numbers = #tpu.dot_dimension_numbers<[1], [0], [0], [1], [0, 0, 1, 1], [], []>} : vector<32x256xbf16>, vector<256x256xbf16>, vector<32x256xf32> -> vector<32x256xf32>
    %186 = arith.addf %180, %185 : vector<32x256xf32>
    %c0_160 = arith.constant 0 : index
    %c276 = arith.constant 276 : index
    %c0_161 = arith.constant 0 : index
    %187 = vector.load %arg1[%c0_160, %c276, %c0_161] : memref<1x342x256xbf16, #tpu.memory_space<vmem>>, vector<1x32x256xbf16>
    %188 = vector.shape_cast %187 : vector<1x32x256xbf16> to vector<32x256xbf16>
    %c5_162 = arith.constant 5 : index
    %c0_163 = arith.constant 0 : index
    %c0_164 = arith.constant 0 : index
    %189 = vector.load %arg2[%c5_162, %c0_163, %c0_164] : memref<9x256x256xbf16, #tpu.memory_space<vmem>>, vector<1x256x256xbf16>
    %190 = vector.shape_cast %189 : vector<1x256x256xbf16> to vector<256x256xbf16>
    %cst_165 = arith.constant dense<0.000000e+00> : vector<32x256xf32>
    %191 = tpu.matmul %188, %190, %cst_165 {dimension_numbers = #tpu.dot_dimension_numbers<[1], [0], [0], [1], [0, 0, 1, 1], [], []>} : vector<32x256xbf16>, vector<256x256xbf16>, vector<32x256xf32> -> vector<32x256xf32>
    %192 = arith.addf %186, %191 : vector<32x256xf32>
    %c0_166 = arith.constant 0 : index
    %c292 = arith.constant 292 : index
    %c0_167 = arith.constant 0 : index
    %193 = vector.load %arg1[%c0_166, %c292, %c0_167] : memref<1x342x256xbf16, #tpu.memory_space<vmem>>, vector<1x32x256xbf16>
    %194 = vector.shape_cast %193 : vector<1x32x256xbf16> to vector<32x256xbf16>
    %c6_168 = arith.constant 6 : index
    %c0_169 = arith.constant 0 : index
    %c0_170 = arith.constant 0 : index
    %195 = vector.load %arg2[%c6_168, %c0_169, %c0_170] : memref<9x256x256xbf16, #tpu.memory_space<vmem>>, vector<1x256x256xbf16>
    %196 = vector.shape_cast %195 : vector<1x256x256xbf16> to vector<256x256xbf16>
    %cst_171 = arith.constant dense<0.000000e+00> : vector<32x256xf32>
    %197 = tpu.matmul %194, %196, %cst_171 {dimension_numbers = #tpu.dot_dimension_numbers<[1], [0], [0], [1], [0, 0, 1, 1], [], []>} : vector<32x256xbf16>, vector<256x256xbf16>, vector<32x256xf32> -> vector<32x256xf32>
    %198 = arith.addf %192, %197 : vector<32x256xf32>
    %c0_172 = arith.constant 0 : index
    %c293 = arith.constant 293 : index
    %c0_173 = arith.constant 0 : index
    %199 = vector.load %arg1[%c0_172, %c293, %c0_173] : memref<1x342x256xbf16, #tpu.memory_space<vmem>>, vector<1x32x256xbf16>
    %200 = vector.shape_cast %199 : vector<1x32x256xbf16> to vector<32x256xbf16>
    %c7_174 = arith.constant 7 : index
    %c0_175 = arith.constant 0 : index
    %c0_176 = arith.constant 0 : index
    %201 = vector.load %arg2[%c7_174, %c0_175, %c0_176] : memref<9x256x256xbf16, #tpu.memory_space<vmem>>, vector<1x256x256xbf16>
    %202 = vector.shape_cast %201 : vector<1x256x256xbf16> to vector<256x256xbf16>
    %cst_177 = arith.constant dense<0.000000e+00> : vector<32x256xf32>
    %203 = tpu.matmul %200, %202, %cst_177 {dimension_numbers = #tpu.dot_dimension_numbers<[1], [0], [0], [1], [0, 0, 1, 1], [], []>} : vector<32x256xbf16>, vector<256x256xbf16>, vector<32x256xf32> -> vector<32x256xf32>
    %204 = arith.addf %198, %203 : vector<32x256xf32>
    %c0_178 = arith.constant 0 : index
    %c294 = arith.constant 294 : index
    %c0_179 = arith.constant 0 : index
    %205 = vector.load %arg1[%c0_178, %c294, %c0_179] : memref<1x342x256xbf16, #tpu.memory_space<vmem>>, vector<1x32x256xbf16>
    %206 = vector.shape_cast %205 : vector<1x32x256xbf16> to vector<32x256xbf16>
    %c8_180 = arith.constant 8 : index
    %c0_181 = arith.constant 0 : index
    %c0_182 = arith.constant 0 : index
    %207 = vector.load %arg2[%c8_180, %c0_181, %c0_182] : memref<9x256x256xbf16, #tpu.memory_space<vmem>>, vector<1x256x256xbf16>
    %208 = vector.shape_cast %207 : vector<1x256x256xbf16> to vector<256x256xbf16>
    %cst_183 = arith.constant dense<0.000000e+00> : vector<32x256xf32>
    %209 = tpu.matmul %206, %208, %cst_183 {dimension_numbers = #tpu.dot_dimension_numbers<[1], [0], [0], [1], [0, 0, 1, 1], [], []>} : vector<32x256xbf16>, vector<256x256xbf16>, vector<32x256xf32> -> vector<32x256xf32>
    %210 = arith.addf %204, %209 : vector<32x256xf32>
    %c0_184 = arith.constant 0 : index
    %c0_185 = arith.constant 0 : index
    %211 = vector.load %arg3[%c0_184, %c0_185] : memref<1x256xf32, #tpu.memory_space<vmem>>, vector<1x256xf32>
    %212 = vector.broadcast %211 : vector<1x256xf32> to vector<32x256xf32>
    %213 = arith.mulf %210, %212 : vector<32x256xf32>
    %c0_186 = arith.constant 0 : index
    %c0_187 = arith.constant 0 : index
    %214 = vector.load %arg4[%c0_186, %c0_187] : memref<1x256xf32, #tpu.memory_space<vmem>>, vector<1x256xf32>
    %215 = vector.broadcast %214 : vector<1x256xf32> to vector<32x256xf32>
    %216 = arith.addf %213, %215 : vector<32x256xf32>
    %cst_188 = arith.constant 0.000000e+00 : f32
    %217 = vector.broadcast %cst_188 : f32 to vector<32x256xf32>
    %218 = arith.maximumf %216, %217 : vector<32x256xf32>
    %219 = arith.truncf %218 : vector<32x256xf32> to vector<32x256xbf16>
    %c0_189 = arith.constant 0 : index
    %c0_190 = arith.constant 0 : index
    %220 = vector.load %arg5[%c0_189, %c0_190] : memref<256x128xbf16, #tpu.memory_space<vmem>>, vector<256x128xbf16>
    %cst_191 = arith.constant dense<0.000000e+00> : vector<32x128xf32>
    %221 = tpu.matmul %219, %220, %cst_191 {dimension_numbers = #tpu.dot_dimension_numbers<[1], [0], [0], [1], [0, 0, 1, 1], [], []>} : vector<32x256xbf16>, vector<256x128xbf16>, vector<32x128xf32> -> vector<32x128xf32>
    %c0_192 = arith.constant 0 : index
    %c0_193 = arith.constant 0 : index
    %222 = vector.load %arg6[%c0_192, %c0_193] : memref<1x128xf32, #tpu.memory_space<vmem>>, vector<1x128xf32>
    %223 = vector.broadcast %222 : vector<1x128xf32> to vector<32x128xf32>
    %224 = arith.addf %221, %223 : vector<32x128xf32>
    %225 = tpu.iota {dimensions = array<i32: 1>} : vector<32x128xi32>
    %c3_i32_194 = arith.constant 3 : i32
    %226 = vector.broadcast %c3_i32_194 : i32 to vector<32x128xi32>
    %227 = arith.cmpi slt, %225, %226 : vector<32x128xi32>
    %228 = arith.negf %224 : vector<32x128xf32>
    %229 = math.exp %228 : vector<32x128xf32>
    %cst_195 = arith.constant 1.000000e+00 : f32
    %230 = vector.broadcast %cst_195 : f32 to vector<32x128xf32>
    %231 = arith.addf %230, %229 : vector<32x128xf32>
    %232 = arith.divf %230, %231 : vector<32x128xf32>
    %233 = arith.select %227, %232, %224 : vector<32x128xi1>, vector<32x128xf32>
    %c0_196 = arith.constant 0 : index
    %c256_197 = arith.constant 256 : index
    %c0_198 = arith.constant 0 : index
    %234 = vector.load %arg7[%c0_196, %c256_197, %c0_198] : memref<1x288x128xf32, #tpu.memory_space<vmem>>, vector<1x32x128xf32>
    %235 = vector.shape_cast %234 : vector<1x32x128xf32> to vector<32x128xf32>
    %236 = vector.shape_cast %233 : vector<32x128xf32> to vector<1x32x128xf32>
    tpu.vector_store %arg7[%c0_196, %c256_197, %c0_198], %236 {strides = array<i32>} : memref<1x288x128xf32, #tpu.memory_space<vmem>>, vector<1x32x128xf32>,
    return
  }
  func.func @transform_0(%arg0: i32) -> (i32, i32, i32) {
    %c0_i32 = arith.constant 0 : i32
    %c0_i32_0 = arith.constant 0 : i32
    %c0_i32_1 = arith.constant 0 : i32
    return %arg0, %c0_i32, %c0_i32_0 : i32, i32, i32
  }
  func.func @transform_1(%arg0: i32) -> (i32, i32, i32) {
    %c0_i32 = arith.constant 0 : i32
    %c0_i32_0 = arith.constant 0 : i32
    %c0_i32_1 = arith.constant 0 : i32
    %c0_i32_2 = arith.constant 0 : i32
    return %c0_i32, %c0_i32_0, %c0_i32_1 : i32, i32, i32
  }
  func.func @transform_2(%arg0: i32) -> (i32, i32) {
    %c0_i32 = arith.constant 0 : i32
    %c0_i32_0 = arith.constant 0 : i32
    %c0_i32_1 = arith.constant 0 : i32
    return %c0_i32, %c0_i32_0 : i32, i32
  }
  func.func @transform_3(%arg0: i32) -> (i32, i32) {
    %c0_i32 = arith.constant 0 : i32
    %c0_i32_0 = arith.constant 0 : i32
    %c0_i32_1 = arith.constant 0 : i32
    return %c0_i32, %c0_i32_0 : i32, i32
  }
  func.func @transform_4(%arg0: i32) -> (i32, i32) {
    %c0_i32 = arith.constant 0 : i32
    %c0_i32_0 = arith.constant 0 : i32
    %c0_i32_1 = arith.constant 0 : i32
    return %c0_i32, %c0_i32_0 : i32, i32
  }
  func.func @transform_5(%arg0: i32) -> (i32, i32) {
    %c0_i32 = arith.constant 0 : i32
    %c0_i32_0 = arith.constant 0 : i32
    %c0_i32_1 = arith.constant 0 : i32
    return %c0_i32, %c0_i32_0 : i32, i32
  }
  func.func @transform_6(%arg0: i32) -> (i32, i32, i32) {
    %c0_i32 = arith.constant 0 : i32
    %c0_i32_0 = arith.constant 0 : i32
    %c0_i32_1 = arith.constant 0 : i32
    return %arg0, %c0_i32, %c0_i32_0 : i32, i32, i32
  }
}

</mosaic_0001>

<llo_original>
// kernel: _rpn_forward_impl.1
$region0: #{_rpn_forward_impl.1}
  #allocation0 [shape = 'u32[]', space=smem, size = 0x4, offset = 0x4, fixed_abs, tag = 'smem constant byte address 0x4 - core index']
  #allocation1 [shape = 'u32[144,128]{1,0:T(1,128)}', space=vmem, size = 0x12000, scoped, tag = 'internal scratch']
  %s0 = inlined_call_operand.vmem [shape: bf16[4,342,256], index: 0, kind: input, shape index: {}]
  %s1 = inlined_call_operand.vmem [shape: bf16[9,256,256], index: 1, kind: input, shape index: {}]
  %s2 = inlined_call_operand.vmem [shape: f32[1,256], index: 2, kind: input, shape index: {}]
  %s3 = inlined_call_operand.vmem [shape: f32[1,256], index: 3, kind: input, shape index: {}]
  %s4 = inlined_call_operand.vmem [shape: bf16[256,128], index: 4, kind: input, shape index: {}]
  %s5 = inlined_call_operand.vmem [shape: f32[1,128], index: 5, kind: input, shape index: {}]
  %s6 = inlined_call_operand.vmem [shape: f32[4,288,128], index: 6, kind: output, shape index: {}]
  %s7 = sld [smem:[#allocation0]]
  $region57: #{_rpn_forward_impl.1} parent=0
    _
  %s9 = ssub.s32 1, %s7
  %s10 = scalar_select 0, %s9, %s7
  loop: start=0, step=1, limit=6
  $region2: #{_rpn_forward_impl.1} parent=0 // loop_pre_header
    _
  $region3: #{_rpn_forward_impl.1} parent=0 // loop_header
    %s12 = sphi 0, %s16
    %p13 = scmp.ge.s32.totalorder %s12, 6
    %s22 = sphi 0, %s24
    %s25 = sphi 0, %s22
    %s26 = sphi 0, %s25
    %s42 = sphi 0, %s26
    %s46 = sphi 0, %s46
    %s48 = sphi 0, %s46
    %s49 = sphi 0, %s48
    %s63 = sphi 0, %s49
    %s67 = sphi 0, %s67
    %s69 = sphi 0, %s67
    %s70 = sphi 0, %s69
    %s84 = sphi 0, %s70
    %s88 = sphi 0, %s88
    %s90 = sphi 0, %s88
    %s91 = sphi 0, %s90
    %s105 = sphi 0, %s91
    %s109 = sphi 0, %s109
    %s111 = sphi 0, %s109
    %s112 = sphi 0, %s111
    %s126 = sphi 0, %s112
    %s130 = sphi 0, %s130
    %s132 = sphi 0, %s130
    %s133 = sphi 0, %s132
    %s147 = sphi 0, %s133
    %s153 = sphi 0, %s155
    %s156 = sphi 0, %s153
    %s157 = sphi 0, %s156
    %s173 = sphi 0, %s157
  $region4: #{_rpn_forward_impl.1} parent=0 // loop_header_branch
    %15 = sbr.rel (%p13) target = $region8
  $region5: #{_rpn_forward_impl.1} parent=0 // loop_body
    %s17 = ssub.s32 %s12, 1
    %s18 = ssub.s32 %s12, 2
    %s19 = sadd.s32 %s12, 1
    %s20 = ssub.s32 %s12, %s19
    %p21 = scmp.eq.s32.totalorder %s20, 0
    %s23 = sadd.s32 %s22, 1
    %s24 = scalar_select %p21, %s22, %s23
    %p27 = pneg %p21
    %p28 = scmp.eq.s32.totalorder %s12, 3
    %p29 = por %p27, %p28
    %p30 = scmp.ne.s32.totalorder %s22, %s25
    %p31 = scmp.eq.s32.totalorder %s12, 0
    %p32 = por %p30, %p31
    %p33 = scmp.ne.s32.totalorder %s22, %s25
    %p34 = scmp.eq.s32.totalorder %s17, 3
    %p35 = por %p33, %p34
    %p36 = scmp.ne.s32.totalorder %s25, %s26
    %p37 = scmp.eq.s32.totalorder %s17, 0
    %p38 = por %p36, %p37
    %p39 = scmp.ne.s32.totalorder %s25, %s26
    %p40 = scmp.eq.s32.totalorder %s18, 3
    %p41 = por %p39, %p40
    %p43 = scmp.ne.s32.totalorder %s26, %s42
    %p44 = scmp.eq.s32.totalorder %s18, 0
    %p45 = por %p43, %p44
    %s47 = sadd.s32 %s46, 1
    %p50 = scmp.eq.s32.totalorder %s12, 3
    %p51 = scmp.ne.s32.totalorder %s46, %s48
    %p52 = scmp.eq.s32.totalorder %s12, 0
    %p53 = por %p51, %p52
    %p54 = scmp.ne.s32.totalorder %s46, %s48
    %p55 = scmp.eq.s32.totalorder %s17, 3
    %p56 = por %p54, %p55
    %p57 = scmp.ne.s32.totalorder %s48, %s49
    %p58 = scmp.eq.s32.totalorder %s17, 0
    %p59 = por %p57, %p58
    %p60 = scmp.ne.s32.totalorder %s48, %s49
    %p61 = scmp.eq.s32.totalorder %s18, 3
    %p62 = por %p60, %p61
    %p64 = scmp.ne.s32.totalorder %s49, %s63
    %p65 = scmp.eq.s32.totalorder %s18, 0
    %p66 = por %p64, %p65
    %s68 = sadd.s32 %s67, 1
    %p71 = scmp.eq.s32.totalorder %s12, 3
    %p72 = scmp.ne.s32.totalorder %s67, %s69
    %p73 = scmp.eq.s32.totalorder %s12, 0
    %p74 = por %p72, %p73
    %p75 = scmp.ne.s32.totalorder %s67, %s69
    %p76 = scmp.eq.s32.totalorder %s17, 3
    %p77 = por %p75, %p76
    %p78 = scmp.ne.s32.totalorder %s69, %s70
    %p79 = scmp.eq.s32.totalorder %s17, 0
    %p80 = por %p78, %p79
    %p81 = scmp.ne.s32.totalorder %s69, %s70
    %p82 = scmp.eq.s32.totalorder %s18, 3
    %p83 = por %p81, %p82
    %p85 = scmp.ne.s32.totalorder %s70, %s84
    %p86 = scmp.eq.s32.totalorder %s18, 0
    %p87 = por %p85, %p86
    %s89 = sadd.s32 %s88, 1
    %p92 = scmp.eq.s32.totalorder %s12, 3
    %p93 = scmp.ne.s32.totalorder %s88, %s90
    %p94 = scmp.eq.s32.totalorder %s12, 0
    %p95 = por %p93, %p94
    %p96 = scmp.ne.s32.totalorder %s88, %s90
    %p97 = scmp.eq.s32.totalorder %s17, 3
    %p98 = por %p96, %p97
    %p99 = scmp.ne.s32.totalorder %s90, %s91
    %p100 = scmp.eq.s32.totalorder %s17, 0
    %p101 = por %p99, %p100
    %p102 = scmp.ne.s32.totalorder %s90, %s91
    %p103 = scmp.eq.s32.totalorder %s18, 3
    %p104 = por %p102, %p103
    %p106 = scmp.ne.s32.totalorder %s91, %s105
    %p107 = scmp.eq.s32.totalorder %s18, 0
    %p108 = por %p106, %p107
    %s110 = sadd.s32 %s109, 1
    %p113 = scmp.eq.s32.totalorder %s12, 3
    %p114 = scmp.ne.s32.totalorder %s109, %s111
    %p115 = scmp.eq.s32.totalorder %s12, 0
    %p116 = por %p114, %p115
    %p117 = scmp.ne.s32.totalorder %s109, %s111
    %p118 = scmp.eq.s32.totalorder %s17, 3
    %p119 = por %p117, %p118
    %p120 = scmp.ne.s32.totalorder %s111, %s112
    %p121 = scmp.eq.s32.totalorder %s17, 0
    %p122 = por %p120, %p121
    %p123 = scmp.ne.s32.totalorder %s111, %s112
    %p124 = scmp.eq.s32.totalorder %s18, 3
    %p125 = por %p123, %p124
    %p127 = scmp.ne.s32.totalorder %s112, %s126
    %p128 = scmp.eq.s32.totalorder %s18, 0
    %p129 = por %p127, %p128
    %s131 = sadd.s32 %s130, 1
    %p134 = scmp.eq.s32.totalorder %s12, 3
    %p135 = scmp.ne.s32.totalorder %s130, %s132
    %p136 = scmp.eq.s32.totalorder %s12, 0
    %p137 = por %p135, %p136
    %p138 = scmp.ne.s32.totalorder %s130, %s132
    %p139 = scmp.eq.s32.totalorder %s17, 3
    %p140 = por %p138, %p139
    %p141 = scmp.ne.s32.totalorder %s132, %s133
    %p142 = scmp.eq.s32.totalorder %s17, 0
    %p143 = por %p141, %p142
    %p144 = scmp.ne.s32.totalorder %s132, %s133
    %p145 = scmp.eq.s32.totalorder %s18, 3
    %p146 = por %p144, %p145
    %p148 = scmp.ne.s32.totalorder %s133, %s147
    %p149 = scmp.eq.s32.totalorder %s18, 0
    %p150 = por %p148, %p149
    %s151 = ssub.s32 %s12, %s19
    %p152 = scmp.eq.s32.totalorder %s151, 0
    %s154 = sadd.s32 %s153, 1
    %s155 = scalar_select %p152, %s153, %s154
    %p158 = pneg %p152
    %p159 = scmp.eq.s32.totalorder %s12, 3
    %p160 = por %p158, %p159
    %p161 = scmp.ne.s32.totalorder %s153, %s156
    %p162 = scmp.eq.s32.totalorder %s12, 0
    %p163 = por %p161, %p162
    %p164 = scmp.ne.s32.totalorder %s153, %s156
    %p165 = scmp.eq.s32.totalorder %s17, 3
    %p166 = por %p164, %p165
    %p167 = scmp.ne.s32.totalorder %s156, %s157
    %p168 = scmp.eq.s32.totalorder %s17, 0
    %p169 = por %p167, %p168
    %p170 = scmp.ne.s32.totalorder %s156, %s157
    %p171 = scmp.eq.s32.totalorder %s18, 3
    %p172 = por %p170, %p171
    %p174 = scmp.ne.s32.totalorder %s157, %s173
    %p175 = scmp.eq.s32.totalorder %s18, 0
    %p176 = por %p174, %p175
    %p177 = scmp.le.s32.totalorder 1, %s12
    %p178 = scmp.lt.s32.totalorder %s12, 5
    %p179 = pnand %p177, %p178
    %p180 = pneg %p179
    // Predicated region
    $region9: #{_rpn_forward_impl.1} parent=5 // pred_check
      _
    $region10: #{_rpn_forward_impl.1} parent=5 // pred_check_branch
      %182 = sbr.rel (%p179) target = $region12
    $region11: #{_rpn_forward_impl.1} parent=5 // pred_region
      %s183 = ssub.s32 %s12, 1
      // Predicated region
      $region13: #{_rpn_forward_impl.1} parent=11 // pred_check
        %p184 = pneg %p59
      $region14: #{_rpn_forward_impl.1} parent=11 // pred_check_branch
        %186 = sbr.rel (%p184) target = $region16
      $region15: #{_rpn_forward_impl.1} parent=11 // pred_region
        _
      $region16: #{_rpn_forward_impl.1} parent=11 // pred_fallthru
        _
      // Predicated region
      $region17: #{_rpn_forward_impl.1} parent=11 // pred_check
        %p187 = pneg %p80
      $region18: #{_rpn_forward_impl.1} parent=11 // pred_check_branch
        %189 = sbr.rel (%p187) target = $region20
      $region19: #{_rpn_forward_impl.1} parent=11 // pred_region
        _
      $region20: #{_rpn_forward_impl.1} parent=11 // pred_fallthru
        _
      // Predicated region
      $region21: #{_rpn_forward_impl.1} parent=11 // pred_check
        %p190 = pneg %p101
      $region22: #{_rpn_forward_impl.1} parent=11 // pred_check_branch
        %192 = sbr.rel (%p190) target = $region24
      $region23: #{_rpn_forward_impl.1} parent=11 // pred_region
        _
      $region24: #{_rpn_forward_impl.1} parent=11 // pred_fallthru
        _
      // Predicated region
      $region25: #{_rpn_forward_impl.1} parent=11 // pred_check
        %p193 = pneg %p122
      $region26: #{_rpn_forward_impl.1} parent=11 // pred_check_branch
        %195 = sbr.rel (%p193) target = $region28
      $region27: #{_rpn_forward_impl.1} parent=11 // pred_region
        _
      $region28: #{_rpn_forward_impl.1} parent=11 // pred_fallthru
        _
      // Predicated region
      $region29: #{_rpn_forward_impl.1} parent=11 // pred_check
        %p196 = pneg %p143
      $region30: #{_rpn_forward_impl.1} parent=11 // pred_check_branch
        %198 = sbr.rel (%p196) target = $region32
      $region31: #{_rpn_forward_impl.1} parent=11 // pred_region
        _
      $region32: #{_rpn_forward_impl.1} parent=11 // pred_fallthru
        _
    $region12: #{_rpn_forward_impl.1} parent=5 // pred_fallthru
      _
    %p199 = scmp.lt.s32.totalorder %s12, 4
    // Predicated region
    $region33: #{_rpn_forward_impl.1} parent=5 // pred_check
      %p200 = pneg %p199
    $region34: #{_rpn_forward_impl.1} parent=5 // pred_check_branch
      %202 = sbr.rel (%p200) target = $region36
    $region35: #{_rpn_forward_impl.1} parent=5 // pred_region
      // Predicated region
      $region37: #{_rpn_forward_impl.1} parent=35 // pred_check
        %p203 = pneg %p32
      $region38: #{_rpn_forward_impl.1} parent=35 // pred_check_branch
        %205 = sbr.rel (%p203) target = $region40
      $region39: #{_rpn_forward_impl.1} parent=35 // pred_region
        %p206 = scmp.lt.s32.totalorder %s12, 3
        %s207 = scalar_select %p206, %s12, 3
        %s208 = smul.addr %s207, 86
        %s209 = smul.addr %s208, 4
        %s210 = scalar_lea.vmem %s0, %s209
      $region40: #{_rpn_forward_impl.1} parent=35 // pred_fallthru
        _
    $region36: #{_rpn_forward_impl.1} parent=5 // pred_fallthru
      _
    %p211 = scmp.le.s32.totalorder 1, %s12
    %p212 = scmp.lt.s32.totalorder %s12, 5
    %p213 = pnand %p211, %p212
    %p214 = pneg %p213
    // Predicated region
    $region41: #{_rpn_forward_impl.1} parent=5 // pred_check
      _
    $region42: #{_rpn_forward_impl.1} parent=5 // pred_check_branch
      %216 = sbr.rel (%p213) target = $region44
    $region43: #{_rpn_forward_impl.1} parent=5 // pred_region
      %s217 = ssub.s32 %s12, 1
      %p218 = scmp.lt.s32.totalorder %s17, 3
      %s219 = scalar_select %p218, %s17, 3
      %s220 = smul.addr %s219, 86
      %s221 = smul.addr %s220, 4
      %s222 = scalar_lea.vmem %s0, %s221
      %p223 = pneg %p38
      %p224 = pneg %p35
      %p225 = pneg %p59
      %p226 = pneg %p56
      %p227 = pneg %p80
      %p228 = pneg %p77
      %p229 = pneg %p101
      %p230 = pneg %p98
      %p231 = pneg %p122
      %p232 = pneg %p119
      %p233 = pneg %p143
      %p234 = pneg %p140
      %p235 = pneg %p169
      %p236 = pneg %p166
      %p237 = scmp.lt.s32.totalorder %s17, 3
      %s238 = scalar_select %p237, %s17, 3
      %s239 = smul.addr %s238, 36
      %s240 = smul.addr %s239, 8
      %s241 = scalar_lea.vmem %s6, %s240
      %p242 = scmp.lt.s32.totalorder %s17, 3
      %s243 = scalar_select %p242, %s17, 3
      %s244 = smul.addr %s243, 86
      %s245 = smul.addr %s244, 4
      %s246 = scalar_lea.vmem %s0, %s245
      %p247 = scmp.lt.s32.totalorder %s17, 3
      %s248 = scalar_select %p247, %s17, 3
      %s249 = smul.addr %s248, 36
      %s250 = smul.addr %s249, 8
      %s251 = scalar_lea.vmem %s6, %s250
      %v253 = vld [vmem:[%s246] sm:$0xff]
      %v254 = vld [vmem:[%s246 + $0x8] sm:$0xff]
      %v255 = vld [vmem:[%s246 + $0x10] sm:$0xff]
      %v256 = vld [vmem:[%s246 + $0x18] sm:$0xff]
      %v257 = vld [vmem:[%s246 + $0x20] sm:$0xff]
      %v258 = vld [vmem:[%s246 + $0x28] sm:$0xff]
      %v259 = vld [vmem:[%s246 + $0x30] sm:$0xff]
      %v260 = vld [vmem:[%s246 + $0x38] sm:$0xff]
      %v261 = vld [vmem:[%s246 + $0x40] sm:$0xff]
      %v262 = vld [vmem:[%s246 + $0x48] sm:$0xff]
      %v263 = vld [vmem:[%s246 + $0x50] sm:$0xff]
      %v264 = vld [vmem:[%s246 + $0x58] sm:$0xff]
      %v265 = vld [vmem:[%s246 + $0x60] sm:$0xff]
      %v266 = vld [vmem:[%s246 + $0x68] sm:$0xff]
      %v267 = vld [vmem:[%s246 + $0x70] sm:$0xff]
      %v268 = vld [vmem:[%s246 + $0x78] sm:$0xff]
      %v269 = vld [vmem:[%s1] sm:$0xff]
      %v270 = vld [vmem:[%s1 + $0x8] sm:$0xff]
      %v271 = vld [vmem:[%s1 + $0x10] sm:$0xff]
      %v272 = vld [vmem:[%s1 + $0x18] sm:$0xff]
      %v273 = vld [vmem:[%s1 + $0x20] sm:$0xff]
      %v274 = vld [vmem:[%s1 + $0x28] sm:$0xff]
      %v275 = vld [vmem:[%s1 + $0x30] sm:$0xff]
      %v276 = vld [vmem:[%s1 + $0x38] sm:$0xff]
      %v277 = vld [vmem:[%s1 + $0x40] sm:$0xff]
      %v278 = vld [vmem:[%s1 + $0x48] sm:$0xff]
      %v279 = vld [vmem:[%s1 + $0x50] sm:$0xff]
      %v280 = vld [vmem:[%s1 + $0x58] sm:$0xff]
      %v281 = vld [vmem:[%s1 + $0x60] sm:$0xff]
      %v282 = vld [vmem:[%s1 + $0x68] sm:$0xff]
      %v283 = vld [vmem:[%s1 + $0x70] sm:$0xff]
      %v284 = vld [vmem:[%s1 + $0x78] sm:$0xff]
      %v285 = vld [vmem:[%s1 + $0x80] sm:$0xff]
      %v286 = vld [vmem:[%s1 + $0x88] sm:$0xff]
      %v287 = vld [vmem:[%s1 + $0x90] sm:$0xff]
      %v288 = vld [vmem:[%s1 + $0x98] sm:$0xff]
      %v289 = vld [vmem:[%s1 + $0xa0] sm:$0xff]
      %v290 = vld [vmem:[%s1 + $0xa8] sm:$0xff]
      %v291 = vld [vmem:[%s1 + $0xb0] sm:$0xff]
      %v292 = vld [vmem:[%s1 + $0xb8] sm:$0xff]
      %v293 = vld [vmem:[%s1 + $0xc0] sm:$0xff]
      %v294 = vld [vmem:[%s1 + $0xc8] sm:$0xff]
      %v295 = vld [vmem:[%s1 + $0xd0] sm:$0xff]
      %v296 = vld [vmem:[%s1 + $0xd8] sm:$0xff]
      %v297 = vld [vmem:[%s1 + $0xe0] sm:$0xff]
      %v298 = vld [vmem:[%s1 + $0xe8] sm:$0xff]
      %v299 = vld [vmem:[%s1 + $0xf0] sm:$0xff]
      %v300 = vld [vmem:[%s1 + $0xf8] sm:$0xff]
      %v301 = vld [vmem:[%s246 + $0x80] sm:$0x11]
      %s302 = scalar_lea.vmem %s1, 256
      %v303 = vld [vmem:[%s302] sm:$0xff]
      %v304 = vld [vmem:[%s302 + $0x8] sm:$0xff]
      %v305 = vld [vmem:[%s302 + $0x10] sm:$0xff]
      %v306 = vld [vmem:[%s302 + $0x18] sm:$0xff]
      %v307 = vld [vmem:[%s302 + $0x20] sm:$0xff]
      %v308 = vld [vmem:[%s302 + $0x28] sm:$0xff]
      %v309 = vld [vmem:[%s302 + $0x30] sm:$0xff]
      %v310 = vld [vmem:[%s302 + $0x38] sm:$0xff]
      %v311 = vld [vmem:[%s302 + $0x40] sm:$0xff]
      %v312 = vld [vmem:[%s302 + $0x48] sm:$0xff]
      %v313 = vld [vmem:[%s302 + $0x50] sm:$0xff]
      %v314 = vld [vmem:[%s302 + $0x58] sm:$0xff]
      %v315 = vld [vmem:[%s302 + $0x60] sm:$0xff]
      %v316 = vld [vmem:[%s302 + $0x68] sm:$0xff]
      %v317 = vld [vmem:[%s302 + $0x70] sm:$0xff]
      %v318 = vld [vmem:[%s302 + $0x78] sm:$0xff]
      %v319 = vld [vmem:[%s302 + $0x80] sm:$0xff]
      %v320 = vld [vmem:[%s302 + $0x88] sm:$0xff]
      %v321 = vld [vmem:[%s302 + $0x90] sm:$0xff]
      %v322 = vld [vmem:[%s302 + $0x98] sm:$0xff]
      %v323 = vld [vmem:[%s302 + $0xa0] sm:$0xff]
      %v324 = vld [vmem:[%s302 + $0xa8] sm:$0xff]
      %v325 = vld [vmem:[%s302 + $0xb0] sm:$0xff]
      %v326 = vld [vmem:[%s302 + $0xb8] sm:$0xff]
      %v327 = vld [vmem:[%s302 + $0xc0] sm:$0xff]
      %v328 = vld [vmem:[%s302 + $0xc8] sm:$0xff]
      %v329 = vld [vmem:[%s302 + $0xd0] sm:$0xff]
      %v330 = vld [vmem:[%s302 + $0xd8] sm:$0xff]
      %v331 = vld [vmem:[%s302 + $0xe0] sm:$0xff]
      %v332 = vld [vmem:[%s302 + $0xe8] sm:$0xff]
      %v333 = vld [vmem:[%s302 + $0xf0] sm:$0xff]
      %v334 = vld [vmem:[%s302 + $0xf8] sm:$0xff]
      %v352 = vunpack.c.l.b16 %v253
      %v353 = vunpack.c.h.b16 %v253
      %v354 = vunpack.c.l.b16 %v254
      %v355 = vunpack.c.h.b16 %v254
      %v356 = vunpack.c.l.b16 %v255
      %v357 = vunpack.c.h.b16 %v255
      %v358 = vunpack.c.l.b16 %v256
      %v359 = vunpack.c.h.b16 %v256
      %v360 = vunpack.c.l.b16 %v257
      %v361 = vunpack.c.h.b16 %v257
      %v362 = vunpack.c.l.b16 %v258
      %v363 = vunpack.c.h.b16 %v258
      %v364 = vunpack.c.l.b16 %v259
      %v365 = vunpack.c.h.b16 %v259
      %v366 = vunpack.c.l.b16 %v260
      %v367 = vunpack.c.h.b16 %v260
      %v368 = vunpack.c.l.b16 %v261
      %v369 = vunpack.c.h.b16 %v261
      %v370 = vunpack.c.l.b16 %v262
      %v371 = vunpack.c.h.b16 %v262
      %v372 = vunpack.c.l.b16 %v263
      %v373 = vunpack.c.h.b16 %v263
      %v374 = vunpack.c.l.b16 %v264
      %v375 = vunpack.c.h.b16 %v264
      %v376 = vunpack.c.l.b16 %v265
      %v377 = vunpack.c.h.b16 %v265
      %v378 = vunpack.c.l.b16 %v266
      %v379 = vunpack.c.h.b16 %v266
      %v380 = vunpack.c.l.b16 %v267
      %v381 = vunpack.c.h.b16 %v267
      %v382 = vunpack.c.l.b16 %v268
      %v383 = vunpack.c.h.b16 %v268
      %v384 = vunpack.c.l.b16 %v301
      %v385 = vunpack.c.h.b16 %v301
      %v386 = vpack.c.b16 %v354, %v352
      %v387 = vpack.c.b16 %v355, %v353
      %v388 = vpack.c.b16 %v358, %v356
      %v389 = vpack.c.b16 %v359, %v357
      %v390 = vpack.c.b16 %v362, %v360
      %v391 = vpack.c.b16 %v363, %v361
      %v392 = vpack.c.b16 %v366, %v364
      %v393 = vpack.c.b16 %v367, %v365
      %v394 = vpack.c.b16 %v370, %v368
      %v395 = vpack.c.b16 %v371, %v369
      %v396 = vpack.c.b16 %v374, %v372
      %v397 = vpack.c.b16 %v375, %v373
      %v398 = vpack.c.b16 %v378, %v376
      %v399 = vpack.c.b16 %v379, %v377
      %v400 = vpack.c.b16 %v382, %v380
      %v401 = vpack.c.b16 %v383, %v381
      %v402 = vpack.c.b16 %v384, %v384
      %v403 = vpack.c.b16 %v385, %v385
      %vm404 = vsmask.f32 7424
      %v406 = vshrl.u32 %v386, 16
      %v408 = vshll.u32 %v386, 16
      %v410 = vrot.slane %v408, 1
      %v411 = vor.u32 %v406, %v410
      %v413 = vshll.u32 %v388, 16
      %v415 = vrot.slane %v413, 1
      %v416 = vsel %vm404, %v411, %v415
      %v418 = vshrl.u32 %v387, 16
      %v420 = vshll.u32 %v387, 16
      %v422 = vrot.slane %v420, 1
      %v423 = vor.u32 %v418, %v422
      %v425 = vshll.u32 %v389, 16
      %v427 = vrot.slane %v425, 1
      %v428 = vsel %vm404, %v423, %v427
      %v429 = vshrl.u32 %v388, 16
      %v431 = vor.u32 %v429, %v415
      %v433 = vshll.u32 %v390, 16
      %v435 = vrot.slane %v433, 1
      %v436 = vsel %vm404, %v431, %v435
      %v437 = vshrl.u32 %v389, 16
      %v439 = vor.u32 %v437, %v427
      %v441 = vshll.u32 %v391, 16
      %v443 = vrot.slane %v441, 1
      %v444 = vsel %vm404, %v439, %v443
      %v445 = vshrl.u32 %v390, 16
      %v447 = vor.u32 %v445, %v435
      %v449 = vshll.u32 %v392, 16
      %v451 = vrot.slane %v449, 1
      %v452 = vsel %vm404, %v447, %v451
      %v453 = vshrl.u32 %v391, 16
      %v455 = vor.u32 %v453, %v443
      %v457 = vshll.u32 %v393, 16
      %v459 = vrot.slane %v457, 1
      %v460 = vsel %vm404, %v455, %v459
      %v461 = vshrl.u32 %v392, 16
      %v463 = vor.u32 %v461, %v451
      %v465 = vshll.u32 %v394, 16
      %v467 = vrot.slane %v465, 1
      %v468 = vsel %vm404, %v463, %v467
      %v469 = vshrl.u32 %v393, 16
      %v471 = vor.u32 %v469, %v459
      %v473 = vshll.u32 %v395, 16
      %v475 = vrot.slane %v473, 1
      %v476 = vsel %vm404, %v471, %v475
      %v477 = vshrl.u32 %v394, 16
      %v479 = vor.u32 %v477, %v467
      %v481 = vshll.u32 %v396, 16
      %v483 = vrot.slane %v481, 1
      %v484 = vsel %vm404, %v479, %v483
      %v485 = vshrl.u32 %v395, 16
      %v487 = vor.u32 %v485, %v475
      %v489 = vshll.u32 %v397, 16
      %v491 = vrot.slane %v489, 1
      %v492 = vsel %vm404, %v487, %v491
      %v493 = vshrl.u32 %v396, 16
      %v495 = vor.u32 %v493, %v483
      %v497 = vshll.u32 %v398, 16
      %v499 = vrot.slane %v497, 1
      %v500 = vsel %vm404, %v495, %v499
      %v501 = vshrl.u32 %v397, 16
      %v503 = vor.u32 %v501, %v491
      %v505 = vshll.u32 %v399, 16
      %v507 = vrot.slane %v505, 1
      %v508 = vsel %vm404, %v503, %v507
      %v509 = vshrl.u32 %v398, 16
      %v511 = vor.u32 %v509, %v499
      %v513 = vshll.u32 %v400, 16
      %v515 = vrot.slane %v513, 1
      %v516 = vsel %vm404, %v511, %v515
      %v517 = vshrl.u32 %v399, 16
      %v519 = vor.u32 %v517, %v507
      %v521 = vshll.u32 %v401, 16
      %v523 = vrot.slane %v521, 1
      %v524 = vsel %vm404, %v519, %v523
      %v525 = vshrl.u32 %v400, 16
      %v527 = vor.u32 %v525, %v515
      %v529 = vshll.u32 %v402, 16
      %v531 = vrot.slane %v529, 1
      %v532 = vsel %vm404, %v527, %v531
      %v533 = vshrl.u32 %v401, 16
      %v535 = vor.u32 %v533, %v523
      %v537 = vshll.u32 %v403, 16
      %v539 = vrot.slane %v537, 1
      %v540 = vsel %vm404, %v535, %v539
      %v589 = vunpack.c.l.b16 %v303
      %v590 = vunpack.c.h.b16 %v303
      %v591 = vunpack.c.l.b16 %v304
      %v592 = vunpack.c.h.b16 %v304
      %v593 = vunpack.c.l.b16 %v305
      %v594 = vunpack.c.h.b16 %v305
      %v595 = vunpack.c.l.b16 %v306
      %v596 = vunpack.c.h.b16 %v306
      %v597 = vunpack.c.l.b16 %v307
      %v598 = vunpack.c.h.b16 %v307
      %v599 = vunpack.c.l.b16 %v308
      %v600 = vunpack.c.h.b16 %v308
      %v601 = vunpack.c.l.b16 %v309
      %v602 = vunpack.c.h.b16 %v309
      %v603 = vunpack.c.l.b16 %v310
      %v604 = vunpack.c.h.b16 %v310
      %v605 = vunpack.c.l.b16 %v311
      %v606 = vunpack.c.h.b16 %v311
      %v607 = vunpack.c.l.b16 %v312
      %v608 = vunpack.c.h.b16 %v312
      %v609 = vunpack.c.l.b16 %v313
      %v610 = vunpack.c.h.b16 %v313
      %v611 = vunpack.c.l.b16 %v314
      %v612 = vunpack.c.h.b16 %v314
      %v613 = vunpack.c.l.b16 %v315
      %v614 = vunpack.c.h.b16 %v315
      %v615 = vunpack.c.l.b16 %v316
      %v616 = vunpack.c.h.b16 %v316
      %v617 = vunpack.c.l.b16 %v317
      %v618 = vunpack.c.h.b16 %v317
      %v619 = vunpack.c.l.b16 %v318
      %v620 = vunpack.c.h.b16 %v318
      %v621 = vunpack.c.l.b16 %v319
      %v622 = vunpack.c.h.b16 %v319
      %v623 = vunpack.c.l.b16 %v320
      %v624 = vunpack.c.h.b16 %v320
      %v625 = vunpack.c.l.b16 %v321
      %v626 = vunpack.c.h.b16 %v321
      %v627 = vunpack.c.l.b16 %v322
      %v628 = vunpack.c.h.b16 %v322
      %v629 = vunpack.c.l.b16 %v323
      %v630 = vunpack.c.h.b16 %v323
      %v631 = vunpack.c.l.b16 %v324
      %v632 = vunpack.c.h.b16 %v324
      %v633 = vunpack.c.l.b16 %v325
      %v634 = vunpack.c.h.b16 %v325
      %v635 = vunpack.c.l.b16 %v326
      %v636 = vunpack.c.h.b16 %v326
      %v637 = vunpack.c.l.b16 %v327
      %v638 = vunpack.c.h.b16 %v327
      %v639 = vunpack.c.l.b16 %v328
      %v640 = vunpack.c.h.b16 %v328
      %v641 = vunpack.c.l.b16 %v329
      %v642 = vunpack.c.h.b16 %v329
      %v643 = vunpack.c.l.b16 %v330
      %v644 = vunpack.c.h.b16 %v330
      %v645 = vunpack.c.l.b16 %v331
      %v646 = vunpack.c.h.b16 %v331
      %v647 = vunpack.c.l.b16 %v332
      %v648 = vunpack.c.h.b16 %v332
      %v649 = vunpack.c.l.b16 %v333
      %v650 = vunpack.c.h.b16 %v333
      %v651 = vunpack.c.l.b16 %v334
      %v652 = vunpack.c.h.b16 %v334
      %v653 = vpack.c.b16 %v591, %v589
      %v654 = vpack.c.b16 %v592, %v590
      %v655 = vpack.c.b16 %v595, %v593
      %v656 = vpack.c.b16 %v596, %v594
      %v657 = vpack.c.b16 %v599, %v597
      %v658 = vpack.c.b16 %v600, %v598
      %v659 = vpack.c.b16 %v603, %v601
      %v660 = vpack.c.b16 %v604, %v602
      %v661 = vpack.c.b16 %v607, %v605
      %v662 = vpack.c.b16 %v608, %v606
      %v663 = vpack.c.b16 %v611, %v609
      %v664 = vpack.c.b16 %v612, %v610
      %v665 = vpack.c.b16 %v615, %v613
      %v666 = vpack.c.b16 %v616, %v614
      %v667 = vpack.c.b16 %v619, %v617
      %v668 = vpack.c.b16 %v620, %v618
      %v669 = vpack.c.b16 %v623, %v621
      %v670 = vpack.c.b16 %v624, %v622
      %v671 = vpack.c.b16 %v627, %v625
      %v672 = vpack.c.b16 %v628, %v626
      %v673 = vpack.c.b16 %v631, %v629
      %v674 = vpack.c.b16 %v632, %v630
      %v675 = vpack.c.b16 %v635, %v633
      %v676 = vpack.c.b16 %v636, %v634
      %v677 = vpack.c.b16 %v639, %v637
      %v678 = vpack.c.b16 %v640, %v638
      %v679 = vpack.c.b16 %v643, %v641
      %v680 = vpack.c.b16 %v644, %v642
      %v681 = vpack.c.b16 %v647, %v645
      %v682 = vpack.c.b16 %v648, %v646
      %v683 = vpack.c.b16 %v651, %v649
      %v684 = vpack.c.b16 %v652, %v650
      %717 = vmatprep.subr.bf16.mxu0 %v668
      %718 = vmatpush1.bf16.msra.mxu0 %v667
      %719 = vmatprep.subr.bf16.mxu0 %v666
      %720 = vmatpush1.bf16.msra.mxu0 %v665
      %721 = vmatprep.subr.bf16.mxu0 %v664
      %722 = vmatpush1.bf16.msra.mxu0 %v663
      %723 = vmatprep.subr.bf16.mxu0 %v662
      %724 = vmatpush1.bf16.msra.mxu0 %v661
      %725 = vmatprep.subr.bf16.mxu0 %v660
      %726 = vmatpush1.bf16.msra.mxu0 %v659
      %727 = vmatprep.subr.bf16.mxu0 %v658
      %728 = vmatpush1.bf16.msra.mxu0 %v657
      %729 = vmatprep.subr.bf16.mxu0 %v656
      %730 = vmatpush1.bf16.msra.mxu0 %v655
      %731 = vmatprep.subr.bf16.mxu0 %v654
      %732 = vmatpush1.bf16.msra.mxu0 %v653
      %733 = vmatprep.subr.bf16.mxu0 %v684
      %734 = vmatpush2.bf16.msra.mxu0 %v683
      %735 = vmatprep.subr.bf16.mxu0 %v682
      %736 = vmatpush2.bf16.msra.mxu0 %v681
      %737 = vmatprep.subr.bf16.mxu0 %v680
      %738 = vmatpush2.bf16.msra.mxu0 %v679
      %739 = vmatprep.subr.bf16.mxu0 %v678
      %740 = vmatpush2.bf16.msra.mxu0 %v677
      %741 = vmatprep.subr.bf16.mxu0 %v676
      %742 = vmatpush2.bf16.msra.mxu0 %v675
      %743 = vmatprep.subr.bf16.mxu0 %v674
      %744 = vmatpush2.bf16.msra.mxu0 %v673
      %745 = vmatprep.subr.bf16.mxu0 %v672
      %746 = vmatpush2.bf16.msra.mxu0 %v671
      %747 = vmatprep.subr.bf16.mxu0 %v670
      %748 = vmatpush2.bf16.msra.mxu0 %v669
      %749 = vmatprep.mubr.bf16.mxu0 %v428
      %750 = vmatmul.mubr.bf16.gmra.mxu0 %v416
      %v751 = vpop.f32.mrf.mxu0
      %v752 = vadd.f32 0.0, %v751
      %v753 = vpop.f32.mrf.mxu0
      %v754 = vadd.f32 0.0, %v753
      %v755 = vpop.f32.mrf.mxu0
      %v756 = vadd.f32 0.0, %v755
      %v757 = vpop.f32.mrf.mxu0
      %v758 = vadd.f32 0.0, %v757
      %759 = vmatprep.mubr.bf16.mxu0 %v444
      %760 = vmatmul.mubr.bf16.gmra.mxu0 %v436
      %v761 = vpop.f32.mrf.mxu0
      %v762 = vadd.f32 0.0, %v761
      %v763 = vpop.f32.mrf.mxu0
      %v764 = vadd.f32 0.0, %v763
      %v765 = vpop.f32.mrf.mxu0
      %v766 = vadd.f32 0.0, %v765
      %v767 = vpop.f32.mrf.mxu0
      %v768 = vadd.f32 0.0, %v767
      %769 = vmatprep.mubr.bf16.mxu0 %v460
      %770 = vmatmul.mubr.bf16.gmra.mxu0 %v452
      %v771 = vpop.f32.mrf.mxu0
      %v772 = vadd.f32 0.0, %v771
      %v773 = vpop.f32.mrf.mxu0
      %v774 = vadd.f32 0.0, %v773
      %v775 = vpop.f32.mrf.mxu0
      %v776 = vadd.f32 0.0, %v775
      %v777 = vpop.f32.mrf.mxu0
      %v778 = vadd.f32 0.0, %v777
      %779 = vmatprep.mubr.bf16.mxu0 %v476
      %780 = vmatmul.mubr.bf16.gmra.mxu0 %v468
      %v781 = vpop.f32.mrf.mxu0
      %v782 = vadd.f32 0.0, %v781
      %v783 = vpop.f32.mrf.mxu0
      %v784 = vadd.f32 0.0, %v783
      %v785 = vpop.f32.mrf.mxu0
      %v786 = vadd.f32 0.0, %v785
      %v787 = vpop.f32.mrf.mxu0
      %v788 = vadd.f32 0.0, %v787
      %789 = vmatprep.mubr.bf16.mxu0 %v492
      %790 = vmatmul.mubr.bf16.gmra.mxu0 %v484
      %v791 = vpop.f32.mrf.mxu0
      %v792 = vadd.f32 0.0, %v791
      %v793 = vpop.f32.mrf.mxu0
      %v794 = vadd.f32 0.0, %v793
      %v795 = vpop.f32.mrf.mxu0
      %v796 = vadd.f32 0.0, %v795
      %v797 = vpop.f32.mrf.mxu0
      %v798 = vadd.f32 0.0, %v797
      %799 = vmatprep.mubr.bf16.mxu0 %v508
      %800 = vmatmul.mubr.bf16.gmra.mxu0 %v500
      %v801 = vpop.f32.mrf.mxu0
      %v802 = vadd.f32 0.0, %v801
      %v803 = vpop.f32.mrf.mxu0
      %v804 = vadd.f32 0.0, %v803
      %v805 = vpop.f32.mrf.mxu0
      %v806 = vadd.f32 0.0, %v805
      %v807 = vpop.f32.mrf.mxu0
      %v808 = vadd.f32 0.0, %v807
      %809 = vmatprep.mubr.bf16.mxu0 %v524
      %810 = vmatmul.mubr.bf16.gmra.mxu0 %v516
      %v811 = vpop.f32.mrf.mxu0
      %v812 = vadd.f32 0.0, %v811
      %v813 = vpop.f32.mrf.mxu0
      %v814 = vadd.f32 0.0, %v813
      %v815 = vpop.f32.mrf.mxu0
      %v816 = vadd.f32 0.0, %v815
      %v817 = vpop.f32.mrf.mxu0
      %v818 = vadd.f32 0.0, %v817
      %819 = vmatprep.mubr.bf16.mxu0 %v540
      %820 = vmatmul.mubr.bf16.gmra.mxu0 %v532
      %v821 = vpop.f32.mrf.mxu0
      %v822 = vadd.f32 0.0, %v821
      %v823 = vpop.f32.mrf.mxu0
      %v824 = vadd.f32 0.0, %v823
      %v825 = vpop.f32.mrf.mxu0
      %v826 = vadd.f32 0.0, %v825
      %v827 = vpop.f32.mrf.mxu0
      %v828 = vadd.f32 0.0, %v827
      %829 = vdwg.mxu0
      %v878 = vunpack.c.l.b16 %v269
      %v879 = vunpack.c.h.b16 %v269
      %v880 = vunpack.c.l.b16 %v270
      %v881 = vunpack.c.h.b16 %v270
      %v882 = vunpack.c.l.b16 %v271
      %v883 = vunpack.c.h.b16 %v271
      %v884 = vunpack.c.l.b16 %v272
      %v885 = vunpack.c.h.b16 %v272
      %v886 = vunpack.c.l.b16 %v273
      %v887 = vunpack.c.h.b16 %v273
      %v888 = vunpack.c.l.b16 %v274
      %v889 = vunpack.c.h.b16 %v274
      %v890 = vunpack.c.l.b16 %v275
      %v891 = vunpack.c.h.b16 %v275
      %v892 = vunpack.c.l.b16 %v276
      %v893 = vunpack.c.h.b16 %v276
      %v894 = vunpack.c.l.b16 %v277
      %v895 = vunpack.c.h.b16 %v277
      %v896 = vunpack.c.l.b16 %v278
      %v897 = vunpack.c.h.b16 %v278
      %v898 = vunpack.c.l.b16 %v279
      %v899 = vunpack.c.h.b16 %v279
      %v900 = vunpack.c.l.b16 %v280
      %v901 = vunpack.c.h.b16 %v280
      %v902 = vunpack.c.l.b16 %v281
      %v903 = vunpack.c.h.b16 %v281
      %v904 = vunpack.c.l.b16 %v282
      %v905 = vunpack.c.h.b16 %v282
      %v906 = vunpack.c.l.b16 %v283
      %v907 = vunpack.c.h.b16 %v283
      %v908 = vunpack.c.l.b16 %v284
      %v909 = vunpack.c.h.b16 %v284
      %v910 = vunpack.c.l.b16 %v285
      %v911 = vunpack.c.h.b16 %v285
      %v912 = vunpack.c.l.b16 %v286
      %v913 = vunpack.c.h.b16 %v286
      %v914 = vunpack.c.l.b16 %v287
      %v915 = vunpack.c.h.b16 %v287
      %v916 = vunpack.c.l.b16 %v288
      %v917 = vunpack.c.h.b16 %v288
      %v918 = vunpack.c.l.b16 %v289
      %v919 = vunpack.c.h.b16 %v289
      %v920 = vunpack.c.l.b16 %v290
      %v921 = vunpack.c.h.b16 %v290
      %v922 = vunpack.c.l.b16 %v291
      %v923 = vunpack.c.h.b16 %v291
      %v924 = vunpack.c.l.b16 %v292
      %v925 = vunpack.c.h.b16 %v292
      %v926 = vunpack.c.l.b16 %v293
      %v927 = vunpack.c.h.b16 %v293
      %v928 = vunpack.c.l.b16 %v294
      %v929 = vunpack.c.h.b16 %v294
      %v930 = vunpack.c.l.b16 %v295
      %v931 = vunpack.c.h.b16 %v295
      %v932 = vunpack.c.l.b16 %v296
      %v933 = vunpack.c.h.b16 %v296
      %v934 = vunpack.c.l.b16 %v297
      %v935 = vunpack.c.h.b16 %v297
      %v936 = vunpack.c.l.b16 %v298
      %v937 = vunpack.c.h.b16 %v298
      %v938 = vunpack.c.l.b16 %v299
      %v939 = vunpack.c.h.b16 %v299
      %v940 = vunpack.c.l.b16 %v300
      %v941 = vunpack.c.h.b16 %v300
      %v942 = vpack.c.b16 %v880, %v878
      %v943 = vpack.c.b16 %v881, %v879
      %v944 = vpack.c.b16 %v884, %v882
      %v945 = vpack.c.b16 %v885, %v883
      %v946 = vpack.c.b16 %v888, %v886
      %v947 = vpack.c.b16 %v889, %v887
      %v948 = vpack.c.b16 %v892, %v890
      %v949 = vpack.c.b16 %v893, %v891
      %v950 = vpack.c.b16 %v896, %v894
      %v951 = vpack.c.b16 %v897, %v895
      %v952 = vpack.c.b16 %v900, %v898
      %v953 = vpack.c.b16 %v901, %v899
      %v954 = vpack.c.b16 %v904, %v902
      %v955 = vpack.c.b16 %v905, %v903
      %v956 = vpack.c.b16 %v908, %v906
      %v957 = vpack.c.b16 %v909, %v907
      %v958 = vpack.c.b16 %v912, %v910
      %v959 = vpack.c.b16 %v913, %v911
      %v960 = vpack.c.b16 %v916, %v914
      %v961 = vpack.c.b16 %v917, %v915
      %v962 = vpack.c.b16 %v920, %v918
      %v963 = vpack.c.b16 %v921, %v919
      %v964 = vpack.c.b16 %v924, %v922
      %v965 = vpack.c.b16 %v925, %v923
      %v966 = vpack.c.b16 %v928, %v926
      %v967 = vpack.c.b16 %v929, %v927
      %v968 = vpack.c.b16 %v932, %v930
      %v969 = vpack.c.b16 %v933, %v931
      %v970 = vpack.c.b16 %v936, %v934
      %v971 = vpack.c.b16 %v937, %v935
      %v972 = vpack.c.b16 %v940, %v938
      %v973 = vpack.c.b16 %v941, %v939
      %1006 = vmatprep.subr.bf16.mxu0 %v957
      %1007 = vmatpush1.bf16.msra.mxu0 %v956
      %1008 = vmatprep.subr.bf16.mxu0 %v955
      %1009 = vmatpush1.bf16.msra.mxu0 %v954
      %1010 = vmatprep.subr.bf16.mxu0 %v953
      %1011 = vmatpush1.bf16.msra.mxu0 %v952
      %1012 = vmatprep.subr.bf16.mxu0 %v951
      %1013 = vmatpush1.bf16.msra.mxu0 %v950
      %1014 = vmatprep.subr.bf16.mxu0 %v949
      %1015 = vmatpush1.bf16.msra.mxu0 %v948
      %1016 = vmatprep.subr.bf16.mxu0 %v947
      %1017 = vmatpush1.bf16.msra.mxu0 %v946
      %1018 = vmatprep.subr.bf16.mxu0 %v945
      %1019 = vmatpush1.bf16.msra.mxu0 %v944
      %1020 = vmatprep.subr.bf16.mxu0 %v943
      %1021 = vmatpush1.bf16.msra.mxu0 %v942
      %1022 = vmatprep.subr.bf16.mxu0 %v973
      %1023 = vmatpush2.bf16.msra.mxu0 %v972
      %1024 = vmatprep.subr.bf16.mxu0 %v971
      %1025 = vmatpush2.bf16.msra.mxu0 %v970
      %1026 = vmatprep.subr.bf16.mxu0 %v969
      %1027 = vmatpush2.bf16.msra.mxu0 %v968
      %1028 = vmatprep.subr.bf16.mxu0 %v967
      %1029 = vmatpush2.bf16.msra.mxu0 %v966
      %1030 = vmatprep.subr.bf16.mxu0 %v965
      %1031 = vmatpush2.bf16.msra.mxu0 %v964
      %1032 = vmatprep.subr.bf16.mxu0 %v963
      %1033 = vmatpush2.bf16.msra.mxu0 %v962
      %1034 = vmatprep.subr.bf16.mxu0 %v961
      %1035 = vmatpush2.bf16.msra.mxu0 %v960
      %1036 = vmatprep.subr.bf16.mxu0 %v959
      %1037 = vmatpush2.bf16.msra.mxu0 %v958
      %1038 = vmatprep.mubr.bf16.mxu0 %v387
      %1039 = vmatmul.mubr.bf16.gmra.mxu0 %v386
      %v1040 = vpop.f32.mrf.mxu0
      %v1041 = vadd.f32 %v752, %v1040
      %v1042 = vpop.f32.mrf.mxu0
      %v1043 = vadd.f32 %v754, %v1042
      %v1044 = vpop.f32.mrf.mxu0
      %v1045 = vadd.f32 %v756, %v1044
      %v1046 = vpop.f32.mrf.mxu0
      %v1047 = vadd.f32 %v758, %v1046
      %1048 = vmatprep.mubr.bf16.mxu0 %v389
      %1049 = vmatmul.mubr.bf16.gmra.mxu0 %v388
      %v1050 = vpop.f32.mrf.mxu0
      %v1051 = vadd.f32 %v762, %v1050
      %v1052 = vpop.f32.mrf.mxu0
      %v1053 = vadd.f32 %v764, %v1052
      %v1054 = vpop.f32.mrf.mxu0
      %v1055 = vadd.f32 %v766, %v1054
      %v1056 = vpop.f32.mrf.mxu0
      %v1057 = vadd.f32 %v768, %v1056
      %1058 = vmatprep.mubr.bf16.mxu0 %v391
      %1059 = vmatmul.mubr.bf16.gmra.mxu0 %v390
      %v1060 = vpop.f32.mrf.mxu0
      %v1061 = vadd.f32 %v772, %v1060
      %v1062 = vpop.f32.mrf.mxu0
      %v1063 = vadd.f32 %v774, %v1062
      %v1064 = vpop.f32.mrf.mxu0
      %v1065 = vadd.f32 %v776, %v1064
      %v1066 = vpop.f32.mrf.mxu0
      %v1067 = vadd.f32 %v778, %v1066
      %1068 = vmatprep.mubr.bf16.mxu0 %v393
      %1069 = vmatmul.mubr.bf16.gmra.mxu0 %v392
      %v1070 = vpop.f32.mrf.mxu0
      %v1071 = vadd.f32 %v782, %v1070
      %v1072 = vpop.f32.mrf.mxu0
      %v1073 = vadd.f32 %v784, %v1072
      %v1074 = vpop.f32.mrf.mxu0
      %v1075 = vadd.f32 %v786, %v1074
      %v1076 = vpop.f32.mrf.mxu0
      %v1077 = vadd.f32 %v788, %v1076
      %1078 = vmatprep.mubr.bf16.mxu0 %v395
      %1079 = vmatmul.mubr.bf16.gmra.mxu0 %v394
      %v1080 = vpop.f32.mrf.mxu0
      %v1081 = vadd.f32 %v792, %v1080
      %v1082 = vpop.f32.mrf.mxu0
      %v1083 = vadd.f32 %v794, %v1082
      %v1084 = vpop.f32.mrf.mxu0
      %v1085 = vadd.f32 %v796, %v1084
      %v1086 = vpop.f32.mrf.mxu0
      %v1087 = vadd.f32 %v798, %v1086
      %1088 = vmatprep.mubr.bf16.mxu0 %v397
      %1089 = vmatmul.mubr.bf16.gmra.mxu0 %v396
      %v1090 = vpop.f32.mrf.mxu0
      %v1091 = vadd.f32 %v802, %v1090
      %v1092 = vpop.f32.mrf.mxu0
      %v1093 = vadd.f32 %v804, %v1092
      %v1094 = vpop.f32.mrf.mxu0
      %v1095 = vadd.f32 %v806, %v1094
      %v1096 = vpop.f32.mrf.mxu0
      %v1097 = vadd.f32 %v808, %v1096
      %1098 = vmatprep.mubr.bf16.mxu0 %v399
      %1099 = vmatmul.mubr.bf16.gmra.mxu0 %v398
      %v1100 = vpop.f32.mrf.mxu0
      %v1101 = vadd.f32 %v812, %v1100
      %v1102 = vpop.f32.mrf.mxu0
      %v1103 = vadd.f32 %v814, %v1102
      %v1104 = vpop.f32.mrf.mxu0
      %v1105 = vadd.f32 %v816, %v1104
      %v1106 = vpop.f32.mrf.mxu0
      %v1107 = vadd.f32 %v818, %v1106
      %1108 = vmatprep.mubr.bf16.mxu0 %v401
      %1109 = vmatmul.mubr.bf16.gmra.mxu0 %v400
      %v1110 = vpop.f32.mrf.mxu0
      %v1111 = vadd.f32 %v822, %v1110
      %v1112 = vpop.f32.mrf.mxu0
      %v1113 = vadd.f32 %v824, %v1112
      %v1114 = vpop.f32.mrf.mxu0
      %v1115 = vadd.f32 %v826, %v1114
      %v1116 = vpop.f32.mrf.mxu0
      %v1117 = vadd.f32 %v828, %v1116
      %1118 = vdwg.mxu0
      %v1119 = vld [vmem:[%s246] sm:$0xee]
      %s1120 = scalar_lea.vmem %s1, 512
      %v1121 = vld [vmem:[%s1120] sm:$0xff]
      %v1122 = vld [vmem:[%s1120 + $0x8] sm:$0xff]
      %v1123 = vld [vmem:[%s1120 + $0x10] sm:$0xff]
      %v1124 = vld [vmem:[%s1120 + $0x18] sm:$0xff]
      %v1125 = vld [vmem:[%s1120 + $0x20] sm:$0xff]
      %v1126 = vld [vmem:[%s1120 + $0x28] sm:$0xff]
      %v1127 = vld [vmem:[%s1120 + $0x30] sm:$0xff]
      %v1128 = vld [vmem:[%s1120 + $0x38] sm:$0xff]
      %v1129 = vld [vmem:[%s1120 + $0x40] sm:$0xff]
      %v1130 = vld [vmem:[%s1120 + $0x48] sm:$0xff]
      %v1131 = vld [vmem:[%s1120 + $0x50] sm:$0xff]
      %v1132 = vld [vmem:[%s1120 + $0x58] sm:$0xff]
      %v1133 = vld [vmem:[%s1120 + $0x60] sm:$0xff]
      %v1134 = vld [vmem:[%s1120 + $0x68] sm:$0xff]
      %v1135 = vld [vmem:[%s1120 + $0x70] sm:$0xff]
      %v1136 = vld [vmem:[%s1120 + $0x78] sm:$0xff]
      %v1137 = vld [vmem:[%s1120 + $0x80] sm:$0xff]
      %v1138 = vld [vmem:[%s1120 + $0x88] sm:$0xff]
      %v1139 = vld [vmem:[%s1120 + $0x90] sm:$0xff]
      %v1140 = vld [vmem:[%s1120 + $0x98] sm:$0xff]
      %v1141 = vld [vmem:[%s1120 + $0xa0] sm:$0xff]
      %v1142 = vld [vmem:[%s1120 + $0xa8] sm:$0xff]
      %v1143 = vld [vmem:[%s1120 + $0xb0] sm:$0xff]
      %v1144 = vld [vmem:[%s1120 + $0xb8] sm:$0xff]
      %v1145 = vld [vmem:[%s1120 + $0xc0] sm:$0xff]
      %v1146 = vld [vmem:[%s1120 + $0xc8] sm:$0xff]
      %v1147 = vld [vmem:[%s1120 + $0xd0] sm:$0xff]
      %v1148 = vld [vmem:[%s1120 + $0xd8] sm:$0xff]
      %v1149 = vld [vmem:[%s1120 + $0xe0] sm:$0xff]
      %v1150 = vld [vmem:[%s1120 + $0xe8] sm:$0xff]
      %v1151 = vld [vmem:[%s1120 + $0xf0] sm:$0xff]
      %v1152 = vld [vmem:[%s1120 + $0xf8] sm:$0xff]
      %v1154 = vunpack.c.l.b16 %v1119
      %v1155 = vunpack.c.h.b16 %v1119
      %v1156 = vpack.c.b16 %v354, %v1154
      %v1157 = vpack.c.b16 %v355, %v1155
      %vm1158 = vcmask 1046528
      %v1159 = vrot.slane %v1156, 1
      %v1160 = vrot.slane %v388, 1
      %v1161 = vsel %vm1158, %v1159, %v1160
      %v1162 = vrot.slane %v1157, 1
      %v1163 = vrot.slane %v389, 1
      %v1164 = vsel %vm1158, %v1162, %v1163
      %v1165 = vrot.slane %v390, 1
      %v1166 = vsel %vm1158, %v1160, %v1165
      %v1167 = vrot.slane %v391, 1
      %v1168 = vsel %vm1158, %v1163, %v1167
      %v1169 = vrot.slane %v392, 1
      %v1170 = vsel %vm1158, %v1165, %v1169
      %v1171 = vrot.slane %v393, 1
      %v1172 = vsel %vm1158, %v1167, %v1171
      %v1173 = vrot.slane %v394, 1
      %v1174 = vsel %vm1158, %v1169, %v1173
      %v1175 = vrot.slane %v395, 1
      %v1176 = vsel %vm1158, %v1171, %v1175
      %v1177 = vrot.slane %v396, 1
      %v1178 = vsel %vm1158, %v1173, %v1177
      %v1179 = vrot.slane %v397, 1
      %v1180 = vsel %vm1158, %v1175, %v1179
      %v1181 = vrot.slane %v398, 1
      %v1182 = vsel %vm1158, %v1177, %v1181
      %v1183 = vrot.slane %v399, 1
      %v1184 = vsel %vm1158, %v1179, %v1183
      %v1185 = vrot.slane %v400, 1
      %v1186 = vsel %vm1158, %v1181, %v1185
      %v1187 = vrot.slane %v401, 1
      %v1188 = vsel %vm1158, %v1183, %v1187
      %v1189 = vrot.slane %v402, 1
      %v1190 = vsel %vm1158, %v1185, %v1189
      %v1191 = vrot.slane %v403, 1
      %v1192 = vsel %vm1158, %v1187, %v1191
      %v1241 = vunpack.c.l.b16 %v1121
      %v1242 = vunpack.c.h.b16 %v1121
      %v1243 = vunpack.c.l.b16 %v1122
      %v1244 = vunpack.c.h.b16 %v1122
      %v1245 = vunpack.c.l.b16 %v1123
      %v1246 = vunpack.c.h.b16 %v1123
      %v1247 = vunpack.c.l.b16 %v1124
      %v1248 = vunpack.c.h.b16 %v1124
      %v1249 = vunpack.c.l.b16 %v1125
      %v1250 = vunpack.c.h.b16 %v1125
      %v1251 = vunpack.c.l.b16 %v1126
      %v1252 = vunpack.c.h.b16 %v1126
      %v1253 = vunpack.c.l.b16 %v1127
      %v1254 = vunpack.c.h.b16 %v1127
      %v1255 = vunpack.c.l.b16 %v1128
      %v1256 = vunpack.c.h.b16 %v1128
      %v1257 = vunpack.c.l.b16 %v1129
      %v1258 = vunpack.c.h.b16 %v1129
      %v1259 = vunpack.c.l.b16 %v1130
      %v1260 = vunpack.c.h.b16 %v1130
      %v1261 = vunpack.c.l.b16 %v1131
      %v1262 = vunpack.c.h.b16 %v1131
      %v1263 = vunpack.c.l.b16 %v1132
      %v1264 = vunpack.c.h.b16 %v1132
      %v1265 = vunpack.c.l.b16 %v1133
      %v1266 = vunpack.c.h.b16 %v1133
      %v1267 = vunpack.c.l.b16 %v1134
      %v1268 = vunpack.c.h.b16 %v1134
      %v1269 = vunpack.c.l.b16 %v1135
      %v1270 = vunpack.c.h.b16 %v1135
      %v1271 = vunpack.c.l.b16 %v1136
      %v1272 = vunpack.c.h.b16 %v1136
      %v1273 = vunpack.c.l.b16 %v1137
      %v1274 = vunpack.c.h.b16 %v1137
      %v1275 = vunpack.c.l.b16 %v1138
      %v1276 = vunpack.c.h.b16 %v1138
      %v1277 = vunpack.c.l.b16 %v1139
      %v1278 = vunpack.c.h.b16 %v1139
      %v1279 = vunpack.c.l.b16 %v1140
      %v1280 = vunpack.c.h.b16 %v1140
      %v1281 = vunpack.c.l.b16 %v1141
      %v1282 = vunpack.c.h.b16 %v1141
      %v1283 = vunpack.c.l.b16 %v1142
      %v1284 = vunpack.c.h.b16 %v1142
      %v1285 = vunpack.c.l.b16 %v1143
      %v1286 = vunpack.c.h.b16 %v1143
      %v1287 = vunpack.c.l.b16 %v1144
      %v1288 = vunpack.c.h.b16 %v1144
      %v1289 = vunpack.c.l.b16 %v1145
      %v1290 = vunpack.c.h.b16 %v1145
      %v1291 = vunpack.c.l.b16 %v1146
      %v1292 = vunpack.c.h.b16 %v1146
      %v1293 = vunpack.c.l.b16 %v1147
      %v1294 = vunpack.c.h.b16 %v1147
      %v1295 = vunpack.c.l.b16 %v1148
      %v1296 = vunpack.c.h.b16 %v1148
      %v1297 = vunpack.c.l.b16 %v1149
      %v1298 = vunpack.c.h.b16 %v1149
      %v1299 = vunpack.c.l.b16 %v1150
      %v1300 = vunpack.c.h.b16 %v1150
      %v1301 = vunpack.c.l.b16 %v1151
      %v1302 = vunpack.c.h.b16 %v1151
      %v1303 = vunpack.c.l.b16 %v1152
      %v1304 = vunpack.c.h.b16 %v1152
      %v1305 = vpack.c.b16 %v1243, %v1241
      %v1306 = vpack.c.b16 %v1244, %v1242
      %v1307 = vpack.c.b16 %v1247, %v1245
      %v1308 = vpack.c.b16 %v1248, %v1246
      %v1309 = vpack.c.b16 %v1251, %v1249
      %v1310 = vpack.c.b16 %v1252, %v1250
      %v1311 = vpack.c.b16 %v1255, %v1253
      %v1312 = vpack.c.b16 %v1256, %v1254
      %v1313 = vpack.c.b16 %v1259, %v1257
      %v1314 = vpack.c.b16 %v1260, %v1258
      %v1315 = vpack.c.b16 %v1263, %v1261
      %v1316 = vpack.c.b16 %v1264, %v1262
      %v1317 = vpack.c.b16 %v1267, %v1265
      %v1318 = vpack.c.b16 %v1268, %v1266
      %v1319 = vpack.c.b16 %v1271, %v1269
      %v1320 = vpack.c.b16 %v1272, %v1270
      %v1321 = vpack.c.b16 %v1275, %v1273
      %v1322 = vpack.c.b16 %v1276, %v1274
      %v1323 = vpack.c.b16 %v1279, %v1277
      %v1324 = vpack.c.b16 %v1280, %v1278
      %v1325 = vpack.c.b16 %v1283, %v1281
      %v1326 = vpack.c.b16 %v1284, %v1282
      %v1327 = vpack.c.b16 %v1287, %v1285
      %v1328 = vpack.c.b16 %v1288, %v1286
      %v1329 = vpack.c.b16 %v1291, %v1289
      %v1330 = vpack.c.b16 %v1292, %v1290
      %v1331 = vpack.c.b16 %v1295, %v1293
      %v1332 = vpack.c.b16 %v1296, %v1294
      %v1333 = vpack.c.b16 %v1299, %v1297
      %v1334 = vpack.c.b16 %v1300, %v1298
      %v1335 = vpack.c.b16 %v1303, %v1301
      %v1336 = vpack.c.b16 %v1304, %v1302
      %1369 = vmatprep.subr.bf16.mxu0 %v1320
      %1370 = vmatpush1.bf16.msra.mxu0 %v1319
      %1371 = vmatprep.subr.bf16.mxu0 %v1318
      %1372 = vmatpush1.bf16.msra.mxu0 %v1317
      %1373 = vmatprep.subr.bf16.mxu0 %v1316
      %1374 = vmatpush1.bf16.msra.mxu0 %v1315
      %1375 = vmatprep.subr.bf16.mxu0 %v1314
      %1376 = vmatpush1.bf16.msra.mxu0 %v1313
      %1377 = vmatprep.subr.bf16.mxu0 %v1312
      %1378 = vmatpush1.bf16.msra.mxu0 %v1311
      %1379 = vmatprep.subr.bf16.mxu0 %v1310
      %1380 = vmatpush1.bf16.msra.mxu0 %v1309
      %1381 = vmatprep.subr.bf16.mxu0 %v1308
      %1382 = vmatpush1.bf16.msra.mxu0 %v1307
      %1383 = vmatprep.subr.bf16.mxu0 %v1306
      %1384 = vmatpush1.bf16.msra.mxu0 %v1305
      %1385 = vmatprep.subr.bf16.mxu0 %v1336
      %1386 = vmatpush2.bf16.msra.mxu0 %v1335
      %1387 = vmatprep.subr.bf16.mxu0 %v1334
      %1388 = vmatpush2.bf16.msra.mxu0 %v1333
      %1389 = vmatprep.subr.bf16.mxu0 %v1332
      %1390 = vmatpush2.bf16.msra.mxu0 %v1331
      %1391 = vmatprep.subr.bf16.mxu0 %v1330
      %1392 = vmatpush2.bf16.msra.mxu0 %v1329
      %1393 = vmatprep.subr.bf16.mxu0 %v1328
      %1394 = vmatpush2.bf16.msra.mxu0 %v1327
      %1395 = vmatprep.subr.bf16.mxu0 %v1326
      %1396 = vmatpush2.bf16.msra.mxu0 %v1325
      %1397 = vmatprep.subr.bf16.mxu0 %v1324
      %1398 = vmatpush2.bf16.msra.mxu0 %v1323
      %1399 = vmatprep.subr.bf16.mxu0 %v1322
      %1400 = vmatpush2.bf16.msra.mxu0 %v1321
      %1401 = vmatprep.mubr.bf16.mxu0 %v1164
      %1402 = vmatmul.mubr.bf16.gmra.mxu0 %v1161
      %v1403 = vpop.f32.mrf.mxu0
      %v1404 = vadd.f32 0.0, %v1403
      %v1405 = vpop.f32.mrf.mxu0
      %v1406 = vadd.f32 0.0, %v1405
      %v1407 = vpop.f32.mrf.mxu0
      %v1408 = vadd.f32 0.0, %v1407
      %v1409 = vpop.f32.mrf.mxu0
      %v1410 = vadd.f32 0.0, %v1409
      %1411 = vmatprep.mubr.bf16.mxu0 %v1168
      %1412 = vmatmul.mubr.bf16.gmra.mxu0 %v1166
      %v1413 = vpop.f32.mrf.mxu0
      %v1414 = vadd.f32 0.0, %v1413
      %v1415 = vpop.f32.mrf.mxu0
      %v1416 = vadd.f32 0.0, %v1415
      %v1417 = vpop.f32.mrf.mxu0
      %v1418 = vadd.f32 0.0, %v1417
      %v1419 = vpop.f32.mrf.mxu0
      %v1420 = vadd.f32 0.0, %v1419
      %1421 = vmatprep.mubr.bf16.mxu0 %v1172
      %1422 = vmatmul.mubr.bf16.gmra.mxu0 %v1170
      %v1423 = vpop.f32.mrf.mxu0
      %v1424 = vadd.f32 0.0, %v1423
      %v1425 = vpop.f32.mrf.mxu0
      %v1426 = vadd.f32 0.0, %v1425
      %v1427 = vpop.f32.mrf.mxu0
      %v1428 = vadd.f32 0.0, %v1427
      %v1429 = vpop.f32.mrf.mxu0
      %v1430 = vadd.f32 0.0, %v1429
      %1431 = vmatprep.mubr.bf16.mxu0 %v1176
      %1432 = vmatmul.mubr.bf16.gmra.mxu0 %v1174
      %v1433 = vpop.f32.mrf.mxu0
      %v1434 = vadd.f32 0.0, %v1433
      %v1435 = vpop.f32.mrf.mxu0
      %v1436 = vadd.f32 0.0, %v1435
      %v1437 = vpop.f32.mrf.mxu0
      %v1438 = vadd.f32 0.0, %v1437
      %v1439 = vpop.f32.mrf.mxu0
      %v1440 = vadd.f32 0.0, %v1439
      %1441 = vmatprep.mubr.bf16.mxu0 %v1180
      %1442 = vmatmul.mubr.bf16.gmra.mxu0 %v1178
      %v1443 = vpop.f32.mrf.mxu0
      %v1444 = vadd.f32 0.0, %v1443
      %v1445 = vpop.f32.mrf.mxu0
      %v1446 = vadd.f32 0.0, %v1445
      %v1447 = vpop.f32.mrf.mxu0
      %v1448 = vadd.f32 0.0, %v1447
      %v1449 = vpop.f32.mrf.mxu0
      %v1450 = vadd.f32 0.0, %v1449
      %1451 = vmatprep.mubr.bf16.mxu0 %v1184
      %1452 = vmatmul.mubr.bf16.gmra.mxu0 %v1182
      %v1453 = vpop.f32.mrf.mxu0
      %v1454 = vadd.f32 0.0, %v1453
      %v1455 = vpop.f32.mrf.mxu0
      %v1456 = vadd.f32 0.0, %v1455
      %v1457 = vpop.f32.mrf.mxu0
      %v1458 = vadd.f32 0.0, %v1457
      %v1459 = vpop.f32.mrf.mxu0
      %v1460 = vadd.f32 0.0, %v1459
      %1461 = vmatprep.mubr.bf16.mxu0 %v1188
      %1462 = vmatmul.mubr.bf16.gmra.mxu0 %v1186
      %v1463 = vpop.f32.mrf.mxu0
      %v1464 = vadd.f32 0.0, %v1463
      %v1465 = vpop.f32.mrf.mxu0
      %v1466 = vadd.f32 0.0, %v1465
      %v1467 = vpop.f32.mrf.mxu0
      %v1468 = vadd.f32 0.0, %v1467
      %v1469 = vpop.f32.mrf.mxu0
      %v1470 = vadd.f32 0.0, %v1469
      %1471 = vmatprep.mubr.bf16.mxu0 %v1192
      %1472 = vmatmul.mubr.bf16.gmra.mxu0 %v1190
      %v1473 = vpop.f32.mrf.mxu0
      %v1474 = vadd.f32 0.0, %v1473
      %v1475 = vpop.f32.mrf.mxu0
      %v1476 = vadd.f32 0.0, %v1475
      %v1477 = vpop.f32.mrf.mxu0
      %v1478 = vadd.f32 0.0, %v1477
      %v1479 = vpop.f32.mrf.mxu0
      %v1480 = vadd.f32 0.0, %v1479
      %1481 = vdwg.mxu0
      %v1482 = vadd.f32 %v1041, %v1404
      %v1483 = vadd.f32 %v1043, %v1406
      %v1484 = vadd.f32 %v1045, %v1408
      %v1485 = vadd.f32 %v1047, %v1410
      %v1486 = vadd.f32 %v1051, %v1414
      %v1487 = vadd.f32 %v1053, %v1416
      %v1488 = vadd.f32 %v1055, %v1418
      %v1489 = vadd.f32 %v1057, %v1420
      %v1490 = vadd.f32 %v1061, %v1424
      %v1491 = vadd.f32 %v1063, %v1426
      %v1492 = vadd.f32 %v1065, %v1428
      %v1493 = vadd.f32 %v1067, %v1430
      %v1494 = vadd.f32 %v1071, %v1434
      %v1495 = vadd.f32 %v1073, %v1436
      %v1496 = vadd.f32 %v1075, %v1438
      %v1497 = vadd.f32 %v1077, %v1440
      %v1498 = vadd.f32 %v1081, %v1444
      %v1499 = vadd.f32 %v1083, %v1446
      %v1500 = vadd.f32 %v1085, %v1448
      %v1501 = vadd.f32 %v1087, %v1450
      %v1502 = vadd.f32 %v1091, %v1454
      %v1503 = vadd.f32 %v1093, %v1456
      %v1504 = vadd.f32 %v1095, %v1458
      %v1505 = vadd.f32 %v1097, %v1460
      %v1506 = vadd.f32 %v1101, %v1464
      %v1507 = vadd.f32 %v1103, %v1466
      %v1508 = vadd.f32 %v1105, %v1468
      %v1509 = vadd.f32 %v1107, %v1470
      %v1510 = vadd.f32 %v1111, %v1474
      %v1511 = vadd.f32 %v1113, %v1476
      %v1512 = vadd.f32 %v1115, %v1478
      %v1513 = vadd.f32 %v1117, %v1480
      %v1514 = vld [vmem:[%s246 + $0x10] sm:$0xee]
      %v1515 = vld [vmem:[%s246 + $0x18] sm:$0xff]
      %v1516 = vld [vmem:[%s246 + $0x20] sm:$0xff]
      %v1517 = vld [vmem:[%s246 + $0x28] sm:$0xff]
      %v1518 = vld [vmem:[%s246 + $0x30] sm:$0xff]
      %v1519 = vld [vmem:[%s246 + $0x38] sm:$0xff]
      %v1520 = vld [vmem:[%s246 + $0x40] sm:$0xff]
      %v1521 = vld [vmem:[%s246 + $0x48] sm:$0xff]
      %v1522 = vld [vmem:[%s246 + $0x50] sm:$0xff]
      %v1523 = vld [vmem:[%s246 + $0x58] sm:$0xff]
      %v1524 = vld [vmem:[%s246 + $0x60] sm:$0xff]
      %v1525 = vld [vmem:[%s246 + $0x68] sm:$0xff]
      %v1526 = vld [vmem:[%s246 + $0x70] sm:$0xff]
      %v1527 = vld [vmem:[%s246 + $0x78] sm:$0xff]
      %v1528 = vld [vmem:[%s246 + $0x80] sm:$0xff]
      %v1529 = vld [vmem:[%s246 + $0x88] sm:$0xff]
      %v1530 = vld [vmem:[%s246 + $0x90] sm:$0x11]
      %s1531 = scalar_lea.vmem %s1, 768
      %v1532 = vld [vmem:[%s1531] sm:$0xff]
      %v1533 = vld [vmem:[%s1531 + $0x8] sm:$0xff]
      %v1534 = vld [vmem:[%s1531 + $0x10] sm:$0xff]
      %v1535 = vld [vmem:[%s1531 + $0x18] sm:$0xff]
      %v1536 = vld [vmem:[%s1531 + $0x20] sm:$0xff]
      %v1537 = vld [vmem:[%s1531 + $0x28] sm:$0xff]
      %v1538 = vld [vmem:[%s1531 + $0x30] sm:$0xff]
      %v1539 = vld [vmem:[%s1531 + $0x38] sm:$0xff]
      %v1540 = vld [vmem:[%s1531 + $0x40] sm:$0xff]
      %v1541 = vld [vmem:[%s1531 + $0x48] sm:$0xff]
      %v1542 = vld [vmem:[%s1531 + $0x50] sm:$0xff]
      %v1543 = vld [vmem:[%s1531 + $0x58] sm:$0xff]
      %v1544 = vld [vmem:[%s1531 + $0x60] sm:$0xff]
      %v1545 = vld [vmem:[%s1531 + $0x68] sm:$0xff]
      %v1546 = vld [vmem:[%s1531 + $0x70] sm:$0xff]
      %v1547 = vld [vmem:[%s1531 + $0x78] sm:$0xff]
      %v1548 = vld [vmem:[%s1531 + $0x80] sm:$0xff]
      %v1549 = vld [vmem:[%s1531 + $0x88] sm:$0xff]
      %v1550 = vld [vmem:[%s1531 + $0x90] sm:$0xff]
      %v1551 = vld [vmem:[%s1531 + $0x98] sm:$0xff]
      %v1552 = vld [vmem:[%s1531 + $0xa0] sm:$0xff]
      %v1553 = vld [vmem:[%s1531 + $0xa8] sm:$0xff]
      %v1554 = vld [vmem:[%s1531 + $0xb0] sm:$0xff]
      %v1555 = vld [vmem:[%s1531 + $0xb8] sm:$0xff]
      %v1556 = vld [vmem:[%s1531 + $0xc0] sm:$0xff]
      %v1557 = vld [vmem:[%s1531 + $0xc8] sm:$0xff]
      %v1558 = vld [vmem:[%s1531 + $0xd0] sm:$0xff]
      %v1559 = vld [vmem:[%s1531 + $0xd8] sm:$0xff]
      %v1560 = vld [vmem:[%s1531 + $0xe0] sm:$0xff]
      %v1561 = vld [vmem:[%s1531 + $0xe8] sm:$0xff]
      %v1562 = vld [vmem:[%s1531 + $0xf0] sm:$0xff]
      %v1563 = vld [vmem:[%s1531 + $0xf8] sm:$0xff]
      %v1581 = vunpack.c.l.b16 %v1514
      %v1582 = vunpack.c.h.b16 %v1514
      %v1583 = vunpack.c.l.b16 %v1515
      %v1584 = vunpack.c.h.b16 %v1515
      %v1585 = vunpack.c.l.b16 %v1516
      %v1586 = vunpack.c.h.b16 %v1516
      %v1587 = vunpack.c.l.b16 %v1517
      %v1588 = vunpack.c.h.b16 %v1517
      %v1589 = vunpack.c.l.b16 %v1518
      %v1590 = vunpack.c.h.b16 %v1518
      %v1591 = vunpack.c.l.b16 %v1519
      %v1592 = vunpack.c.h.b16 %v1519
      %v1593 = vunpack.c.l.b16 %v1520
      %v1594 = vunpack.c.h.b16 %v1520
      %v1595 = vunpack.c.l.b16 %v1521
      %v1596 = vunpack.c.h.b16 %v1521
      %v1597 = vunpack.c.l.b16 %v1522
      %v1598 = vunpack.c.h.b16 %v1522
      %v1599 = vunpack.c.l.b16 %v1523
      %v1600 = vunpack.c.h.b16 %v1523
      %v1601 = vunpack.c.l.b16 %v1524
      %v1602 = vunpack.c.h.b16 %v1524
      %v1603 = vunpack.c.l.b16 %v1525
      %v1604 = vunpack.c.h.b16 %v1525
      %v1605 = vunpack.c.l.b16 %v1526
      %v1606 = vunpack.c.h.b16 %v1526
      %v1607 = vunpack.c.l.b16 %v1527
      %v1608 = vunpack.c.h.b16 %v1527
      %v1609 = vunpack.c.l.b16 %v1528
      %v1610 = vunpack.c.h.b16 %v1528
      %v1611 = vunpack.c.l.b16 %v1529
      %v1612 = vunpack.c.h.b16 %v1529
      %v1613 = vunpack.c.l.b16 %v1530
      %v1614 = vunpack.c.h.b16 %v1530
      %v1615 = vpack.c.b16 %v1583, %v1581
      %v1616 = vpack.c.b16 %v1584, %v1582
      %v1617 = vpack.c.b16 %v1587, %v1585
      %v1618 = vpack.c.b16 %v1588, %v1586
      %v1619 = vpack.c.b16 %v1591, %v1589
      %v1620 = vpack.c.b16 %v1592, %v1590
      %v1621 = vpack.c.b16 %v1595, %v1593
      %v1622 = vpack.c.b16 %v1596, %v1594
      %v1623 = vpack.c.b16 %v1599, %v1597
      %v1624 = vpack.c.b16 %v1600, %v1598
      %v1625 = vpack.c.b16 %v1603, %v1601
      %v1626 = vpack.c.b16 %v1604, %v1602
      %v1627 = vpack.c.b16 %v1607, %v1605
      %v1628 = vpack.c.b16 %v1608, %v1606
      %v1629 = vpack.c.b16 %v1611, %v1609
      %v1630 = vpack.c.b16 %v1612, %v1610
      %v1631 = vpack.c.b16 %v1613, %v1613
      %v1632 = vpack.c.b16 %v1614, %v1614
      %v1633 = vrot.slane %v1615, 1
      %v1634 = vrot.slane %v1617, 1
      %v1635 = vsel %vm1158, %v1633, %v1634
      %v1636 = vrot.slane %v1616, 1
      %v1637 = vrot.slane %v1618, 1
      %v1638 = vsel %vm1158, %v1636, %v1637
      %v1639 = vrot.slane %v1619, 1
      %v1640 = vsel %vm1158, %v1634, %v1639
      %v1641 = vrot.slane %v1620, 1
      %v1642 = vsel %vm1158, %v1637, %v1641
      %v1643 = vrot.slane %v1621, 1
      %v1644 = vsel %vm1158, %v1639, %v1643
      %v1645 = vrot.slane %v1622, 1
      %v1646 = vsel %vm1158, %v1641, %v1645
      %v1647 = vrot.slane %v1623, 1
      %v1648 = vsel %vm1158, %v1643, %v1647
      %v1649 = vrot.slane %v1624, 1
      %v1650 = vsel %vm1158, %v1645, %v1649
      %v1651 = vrot.slane %v1625, 1
      %v1652 = vsel %vm1158, %v1647, %v1651
      %v1653 = vrot.slane %v1626, 1
      %v1654 = vsel %vm1158, %v1649, %v1653
      %v1655 = vrot.slane %v1627, 1
      %v1656 = vsel %vm1158, %v1651, %v1655
      %v1657 = vrot.slane %v1628, 1
      %v1658 = vsel %vm1158, %v1653, %v1657
      %v1659 = vrot.slane %v1629, 1
      %v1660 = vsel %vm1158, %v1655, %v1659
      %v1661 = vrot.slane %v1630, 1
      %v1662 = vsel %vm1158, %v1657, %v1661
      %v1663 = vrot.slane %v1631, 1
      %v1664 = vsel %vm1158, %v1659, %v1663
      %v1665 = vrot.slane %v1632, 1
      %v1666 = vsel %vm1158, %v1661, %v1665
      %v1715 = vunpack.c.l.b16 %v1532
      %v1716 = vunpack.c.h.b16 %v1532
      %v1717 = vunpack.c.l.b16 %v1533
      %v1718 = vunpack.c.h.b16 %v1533
      %v1719 = vunpack.c.l.b16 %v1534
      %v1720 = vunpack.c.h.b16 %v1534
      %v1721 = vunpack.c.l.b16 %v1535
      %v1722 = vunpack.c.h.b16 %v1535
      %v1723 = vunpack.c.l.b16 %v1536
      %v1724 = vunpack.c.h.b16 %v1536
      %v1725 = vunpack.c.l.b16 %v1537
      %v1726 = vunpack.c.h.b16 %v1537
      %v1727 = vunpack.c.l.b16 %v1538
      %v1728 = vunpack.c.h.b16 %v1538
      %v1729 = vunpack.c.l.b16 %v1539
      %v1730 = vunpack.c.h.b16 %v1539
      %v1731 = vunpack.c.l.b16 %v1540
      %v1732 = vunpack.c.h.b16 %v1540
      %v1733 = vunpack.c.l.b16 %v1541
      %v1734 = vunpack.c.h.b16 %v1541
      %v1735 = vunpack.c.l.b16 %v1542
      %v1736 = vunpack.c.h.b16 %v1542
      %v1737 = vunpack.c.l.b16 %v1543
      %v1738 = vunpack.c.h.b16 %v1543
      %v1739 = vunpack.c.l.b16 %v1544
      %v1740 = vunpack.c.h.b16 %v1544
      %v1741 = vunpack.c.l.b16 %v1545
      %v1742 = vunpack.c.h.b16 %v1545
      %v1743 = vunpack.c.l.b16 %v1546
      %v1744 = vunpack.c.h.b16 %v1546
      %v1745 = vunpack.c.l.b16 %v1547
      %v1746 = vunpack.c.h.b16 %v1547
      %v1747 = vunpack.c.l.b16 %v1548
      %v1748 = vunpack.c.h.b16 %v1548
      %v1749 = vunpack.c.l.b16 %v1549
      %v1750 = vunpack.c.h.b16 %v1549
      %v1751 = vunpack.c.l.b16 %v1550
      %v1752 = vunpack.c.h.b16 %v1550
      %v1753 = vunpack.c.l.b16 %v1551
      %v1754 = vunpack.c.h.b16 %v1551
      %v1755 = vunpack.c.l.b16 %v1552
      %v1756 = vunpack.c.h.b16 %v1552
      %v1757 = vunpack.c.l.b16 %v1553
      %v1758 = vunpack.c.h.b16 %v1553
      %v1759 = vunpack.c.l.b16 %v1554
      %v1760 = vunpack.c.h.b16 %v1554
      %v1761 = vunpack.c.l.b16 %v1555
      %v1762 = vunpack.c.h.b16 %v1555
      %v1763 = vunpack.c.l.b16 %v1556
      %v1764 = vunpack.c.h.b16 %v1556
      %v1765 = vunpack.c.l.b16 %v1557
      %v1766 = vunpack.c.h.b16 %v1557
      %v1767 = vunpack.c.l.b16 %v1558
      %v1768 = vunpack.c.h.b16 %v1558
      %v1769 = vunpack.c.l.b16 %v1559
      %v1770 = vunpack.c.h.b16 %v1559
      %v1771 = vunpack.c.l.b16 %v1560
      %v1772 = vunpack.c.h.b16 %v1560
      %v1773 = vunpack.c.l.b16 %v1561
      %v1774 = vunpack.c.h.b16 %v1561
      %v1775 = vunpack.c.l.b16 %v1562
      %v1776 = vunpack.c.h.b16 %v1562
      %v1777 = vunpack.c.l.b16 %v1563
      %v1778 = vunpack.c.h.b16 %v1563
      %v1779 = vpack.c.b16 %v1717, %v1715
      %v1780 = vpack.c.b16 %v1718, %v1716
      %v1781 = vpack.c.b16 %v1721, %v1719
      %v1782 = vpack.c.b16 %v1722, %v1720
      %v1783 = vpack.c.b16 %v1725, %v1723
      %v1784 = vpack.c.b16 %v1726, %v1724
      %v1785 = vpack.c.b16 %v1729, %v1727
      %v1786 = vpack.c.b16 %v1730, %v1728
      %v1787 = vpack.c.b16 %v1733, %v1731
      %v1788 = vpack.c.b16 %v1734, %v1732
      %v1789 = vpack.c.b16 %v1737, %v1735
      %v1790 = vpack.c.b16 %v1738, %v1736
      %v1791 = vpack.c.b16 %v1741, %v1739
      %v1792 = vpack.c.b16 %v1742, %v1740
      %v1793 = vpack.c.b16 %v1745, %v1743
      %v1794 = vpack.c.b16 %v1746, %v1744
      %v1795 = vpack.c.b16 %v1749, %v1747
      %v1796 = vpack.c.b16 %v1750, %v1748
      %v1797 = vpack.c.b16 %v1753, %v1751
      %v1798 = vpack.c.b16 %v1754, %v1752
      %v1799 = vpack.c.b16 %v1757, %v1755
      %v1800 = vpack.c.b16 %v1758, %v1756
      %v1801 = vpack.c.b16 %v1761, %v1759
      %v1802 = vpack.c.b16 %v1762, %v1760
      %v1803 = vpack.c.b16 %v1765, %v1763
      %v1804 = vpack.c.b16 %v1766, %v1764
      %v1805 = vpack.c.b16 %v1769, %v1767
      %v1806 = vpack.c.b16 %v1770, %v1768
      %v1807 = vpack.c.b16 %v1773, %v1771
      %v1808 = vpack.c.b16 %v1774, %v1772
      %v1809 = vpack.c.b16 %v1777, %v1775
      %v1810 = vpack.c.b16 %v1778, %v1776
      %1843 = vmatprep.subr.bf16.mxu0 %v1794
      %1844 = vmatpush1.bf16.msra.mxu0 %v1793
      %1845 = vmatprep.subr.bf16.mxu0 %v1792
      %1846 = vmatpush1.bf16.msra.mxu0 %v1791
      %1847 = vmatprep.subr.bf16.mxu0 %v1790
      %1848 = vmatpush1.bf16.msra.mxu0 %v1789
      %1849 = vmatprep.subr.bf16.mxu0 %v1788
      %1850 = vmatpush1.bf16.msra.mxu0 %v1787
      %1851 = vmatprep.subr.bf16.mxu0 %v1786
      %1852 = vmatpush1.bf16.msra.mxu0 %v1785
      %1853 = vmatprep.subr.bf16.mxu0 %v1784
      %1854 = vmatpush1.bf16.msra.mxu0 %v1783
      %1855 = vmatprep.subr.bf16.mxu0 %v1782
      %1856 = vmatpush1.bf16.msra.mxu0 %v1781
      %1857 = vmatprep.subr.bf16.mxu0 %v1780
      %1858 = vmatpush1.bf16.msra.mxu0 %v1779
      %1859 = vmatprep.subr.bf16.mxu0 %v1810
      %1860 = vmatpush2.bf16.msra.mxu0 %v1809
      %1861 = vmatprep.subr.bf16.mxu0 %v1808
      %1862 = vmatpush2.bf16.msra.mxu0 %v1807
      %1863 = vmatprep.subr.bf16.mxu0 %v1806
      %1864 = vmatpush2.bf16.msra.mxu0 %v1805
      %1865 = vmatprep.subr.bf16.mxu0 %v1804
      %1866 = vmatpush2.bf16.msra.mxu0 %v1803
      %1867 = vmatprep.subr.bf16.mxu0 %v1802
      %1868 = vmatpush2.bf16.msra.mxu0 %v1801
      %1869 = vmatprep.subr.bf16.mxu0 %v1800
      %1870 = vmatpush2.bf16.msra.mxu0 %v1799
      %1871 = vmatprep.subr.bf16.mxu0 %v1798
      %1872 = vmatpush2.bf16.msra.mxu0 %v1797
      %1873 = vmatprep.subr.bf16.mxu0 %v1796
      %1874 = vmatpush2.bf16.msra.mxu0 %v1795
      %1875 = vmatprep.mubr.bf16.mxu0 %v1638
      %1876 = vmatmul.mubr.bf16.gmra.mxu0 %v1635
      %v1877 = vpop.f32.mrf.mxu0
      %v1878 = vadd.f32 0.0, %v1877
      %v1879 = vpop.f32.mrf.mxu0
      %v1880 = vadd.f32 0.0, %v1879
      %v1881 = vpop.f32.mrf.mxu0
      %v1882 = vadd.f32 0.0, %v1881
      %v1883 = vpop.f32.mrf.mxu0
      %v1884 = vadd.f32 0.0, %v1883
      %1885 = vmatprep.mubr.bf16.mxu0 %v1642
      %1886 = vmatmul.mubr.bf16.gmra.mxu0 %v1640
      %v1887 = vpop.f32.mrf.mxu0
      %v1888 = vadd.f32 0.0, %v1887
      %v1889 = vpop.f32.mrf.mxu0
      %v1890 = vadd.f32 0.0, %v1889
      %v1891 = vpop.f32.mrf.mxu0
      %v1892 = vadd.f32 0.0, %v1891
      %v1893 = vpop.f32.mrf.mxu0
      %v1894 = vadd.f32 0.0, %v1893
      %1895 = vmatprep.mubr.bf16.mxu0 %v1646
      %1896 = vmatmul.mubr.bf16.gmra.mxu0 %v1644
      %v1897 = vpop.f32.mrf.mxu0
      %v1898 = vadd.f32 0.0, %v1897
      %v1899 = vpop.f32.mrf.mxu0
      %v1900 = vadd.f32 0.0, %v1899
      %v1901 = vpop.f32.mrf.mxu0
      %v1902 = vadd.f32 0.0, %v1901
      %v1903 = vpop.f32.mrf.mxu0
      %v1904 = vadd.f32 0.0, %v1903
      %1905 = vmatprep.mubr.bf16.mxu0 %v1650
      %1906 = vmatmul.mubr.bf16.gmra.mxu0 %v1648
      %v1907 = vpop.f32.mrf.mxu0
      %v1908 = vadd.f32 0.0, %v1907
      %v1909 = vpop.f32.mrf.mxu0
      %v1910 = vadd.f32 0.0, %v1909
      %v1911 = vpop.f32.mrf.mxu0
      %v1912 = vadd.f32 0.0, %v1911
      %v1913 = vpop.f32.mrf.mxu0
      %v1914 = vadd.f32 0.0, %v1913
      %1915 = vmatprep.mubr.bf16.mxu0 %v1654
      %1916 = vmatmul.mubr.bf16.gmra.mxu0 %v1652
      %v1917 = vpop.f32.mrf.mxu0
      %v1918 = vadd.f32 0.0, %v1917
      %v1919 = vpop.f32.mrf.mxu0
      %v1920 = vadd.f32 0.0, %v1919
      %v1921 = vpop.f32.mrf.mxu0
      %v1922 = vadd.f32 0.0, %v1921
      %v1923 = vpop.f32.mrf.mxu0
      %v1924 = vadd.f32 0.0, %v1923
      %1925 = vmatprep.mubr.bf16.mxu0 %v1658
      %1926 = vmatmul.mubr.bf16.gmra.mxu0 %v1656
      %v1927 = vpop.f32.mrf.mxu0
      %v1928 = vadd.f32 0.0, %v1927
      %v1929 = vpop.f32.mrf.mxu0
      %v1930 = vadd.f32 0.0, %v1929
      %v1931 = vpop.f32.mrf.mxu0
      %v1932 = vadd.f32 0.0, %v1931
      %v1933 = vpop.f32.mrf.mxu0
      %v1934 = vadd.f32 0.0, %v1933
      %1935 = vmatprep.mubr.bf16.mxu0 %v1662
      %1936 = vmatmul.mubr.bf16.gmra.mxu0 %v1660
      %v1937 = vpop.f32.mrf.mxu0
      %v1938 = vadd.f32 0.0, %v1937
      %v1939 = vpop.f32.mrf.mxu0
      %v1940 = vadd.f32 0.0, %v1939
      %v1941 = vpop.f32.mrf.mxu0
      %v1942 = vadd.f32 0.0, %v1941
      %v1943 = vpop.f32.mrf.mxu0
      %v1944 = vadd.f32 0.0, %v1943
      %1945 = vmatprep.mubr.bf16.mxu0 %v1666
      %1946 = vmatmul.mubr.bf16.gmra.mxu0 %v1664
      %v1947 = vpop.f32.mrf.mxu0
      %v1948 = vadd.f32 0.0, %v1947
      %v1949 = vpop.f32.mrf.mxu0
      %v1950 = vadd.f32 0.0, %v1949
      %v1951 = vpop.f32.mrf.mxu0
      %v1952 = vadd.f32 0.0, %v1951
      %v1953 = vpop.f32.mrf.mxu0
      %v1954 = vadd.f32 0.0, %v1953
      %1955 = vdwg.mxu0
      %v1956 = vadd.f32 %v1482, %v1878
      %v1957 = vadd.f32 %v1483, %v1880
      %v1958 = vadd.f32 %v1484, %v1882
      %v1959 = vadd.f32 %v1485, %v1884
      %v1960 = vadd.f32 %v1486, %v1888
      %v1961 = vadd.f32 %v1487, %v1890
      %v1962 = vadd.f32 %v1488, %v1892
      %v1963 = vadd.f32 %v1489, %v1894
      %v1964 = vadd.f32 %v1490, %v1898
      %v1965 = vadd.f32 %v1491, %v1900
      %v1966 = vadd.f32 %v1492, %v1902
      %v1967 = vadd.f32 %v1493, %v1904
      %v1968 = vadd.f32 %v1494, %v1908
      %v1969 = vadd.f32 %v1495, %v1910
      %v1970 = vadd.f32 %v1496, %v1912
      %v1971 = vadd.f32 %v1497, %v1914
      %v1972 = vadd.f32 %v1498, %v1918
      %v1973 = vadd.f32 %v1499, %v1920
      %v1974 = vadd.f32 %v1500, %v1922
      %v1975 = vadd.f32 %v1501, %v1924
      %v1976 = vadd.f32 %v1502, %v1928
      %v1977 = vadd.f32 %v1503, %v1930
      %v1978 = vadd.f32 %v1504, %v1932
      %v1979 = vadd.f32 %v1505, %v1934
      %v1980 = vadd.f32 %v1506, %v1938
      %v1981 = vadd.f32 %v1507, %v1940
      %v1982 = vadd.f32 %v1508, %v1942
      %v1983 = vadd.f32 %v1509, %v1944
      %v1984 = vadd.f32 %v1510, %v1948
      %v1985 = vadd.f32 %v1511, %v1950
      %v1986 = vadd.f32 %v1512, %v1952
      %v1987 = vadd.f32 %v1513, %v1954
      %v1988 = vld [vmem:[%s246 + $0x90] sm:$0x33]
      %s1989 = scalar_lea.vmem %s1, 1024
      %v1990 = vld [vmem:[%s1989] sm:$0xff]
      %v1991 = vld [vmem:[%s1989 + $0x8] sm:$0xff]
      %v1992 = vld [vmem:[%s1989 + $0x10] sm:$0xff]
      %v1993 = vld [vmem:[%s1989 + $0x18] sm:$0xff]
      %v1994 = vld [vmem:[%s1989 + $0x20] sm:$0xff]
      %v1995 = vld [vmem:[%s1989 + $0x28] sm:$0xff]
      %v1996 = vld [vmem:[%s1989 + $0x30] sm:$0xff]
      %v1997 = vld [vmem:[%s1989 + $0x38] sm:$0xff]
      %v1998 = vld [vmem:[%s1989 + $0x40] sm:$0xff]
      %v1999 = vld [vmem:[%s1989 + $0x48] sm:$0xff]
      %v2000 = vld [vmem:[%s1989 + $0x50] sm:$0xff]
      %v2001 = vld [vmem:[%s1989 + $0x58] sm:$0xff]
      %v2002 = vld [vmem:[%s1989 + $0x60] sm:$0xff]
      %v2003 = vld [vmem:[%s1989 + $0x68] sm:$0xff]
      %v2004 = vld [vmem:[%s1989 + $0x70] sm:$0xff]
      %v2005 = vld [vmem:[%s1989 + $0x78] sm:$0xff]
      %v2006 = vld [vmem:[%s1989 + $0x80] sm:$0xff]
      %v2007 = vld [vmem:[%s1989 + $0x88] sm:$0xff]
      %v2008 = vld [vmem:[%s1989 + $0x90] sm:$0xff]
      %v2009 = vld [vmem:[%s1989 + $0x98] sm:$0xff]
      %v2010 = vld [vmem:[%s1989 + $0xa0] sm:$0xff]
      %v2011 = vld [vmem:[%s1989 + $0xa8] sm:$0xff]
      %v2012 = vld [vmem:[%s1989 + $0xb0] sm:$0xff]
      %v2013 = vld [vmem:[%s1989 + $0xb8] sm:$0xff]
      %v2014 = vld [vmem:[%s1989 + $0xc0] sm:$0xff]
      %v2015 = vld [vmem:[%s1989 + $0xc8] sm:$0xff]
      %v2016 = vld [vmem:[%s1989 + $0xd0] sm:$0xff]
      %v2017 = vld [vmem:[%s1989 + $0xd8] sm:$0xff]
      %v2018 = vld [vmem:[%s1989 + $0xe0] sm:$0xff]
      %v2019 = vld [vmem:[%s1989 + $0xe8] sm:$0xff]
      %v2020 = vld [vmem:[%s1989 + $0xf0] sm:$0xff]
      %v2021 = vld [vmem:[%s1989 + $0xf8] sm:$0xff]
      %v2023 = vunpack.c.l.b16 %v1988
      %v2024 = vunpack.c.h.b16 %v1988
      %v2025 = vpack.c.b16 %v2023, %v2023
      %v2026 = vpack.c.b16 %v2024, %v2024
      %vm2027 = vsmask.f32 6400
      %v2029 = vshrl.u32 %v1615, 16
      %v2031 = vrot.slane %v2029, 1
      %v2032 = vshll.u32 %v1615, 16
      %v2034 = vrot.slane %v2032, 2
      %v2035 = vor.u32 %v2031, %v2034
      %v2037 = vshrl.u32 %v1617, 16
      %v2039 = vrot.slane %v2037, 1
      %v2040 = vshll.u32 %v1617, 16
      %v2042 = vrot.slane %v2040, 2
      %v2043 = vor.u32 %v2039, %v2042
      %v2044 = vsel %vm2027, %v2035, %v2043
      %v2046 = vshrl.u32 %v1616, 16
      %v2048 = vrot.slane %v2046, 1
      %v2049 = vshll.u32 %v1616, 16
      %v2051 = vrot.slane %v2049, 2
      %v2052 = vor.u32 %v2048, %v2051
      %v2054 = vshrl.u32 %v1618, 16
      %v2056 = vrot.slane %v2054, 1
      %v2057 = vshll.u32 %v1618, 16
      %v2059 = vrot.slane %v2057, 2
      %v2060 = vor.u32 %v2056, %v2059
      %v2061 = vsel %vm2027, %v2052, %v2060
      %v2063 = vshrl.u32 %v1619, 16
      %v2065 = vrot.slane %v2063, 1
      %v2066 = vshll.u32 %v1619, 16
      %v2068 = vrot.slane %v2066, 2
      %v2069 = vor.u32 %v2065, %v2068
      %v2070 = vsel %vm2027, %v2043, %v2069
      %v2072 = vshrl.u32 %v1620, 16
      %v2074 = vrot.slane %v2072, 1
      %v2075 = vshll.u32 %v1620, 16
      %v2077 = vrot.slane %v2075, 2
      %v2078 = vor.u32 %v2074, %v2077
      %v2079 = vsel %vm2027, %v2060, %v2078
      %v2081 = vshrl.u32 %v1621, 16
      %v2083 = vrot.slane %v2081, 1
      %v2084 = vshll.u32 %v1621, 16
      %v2086 = vrot.slane %v2084, 2
      %v2087 = vor.u32 %v2083, %v2086
      %v2088 = vsel %vm2027, %v2069, %v2087
      %v2090 = vshrl.u32 %v1622, 16
      %v2092 = vrot.slane %v2090, 1
      %v2093 = vshll.u32 %v1622, 16
      %v2095 = vrot.slane %v2093, 2
      %v2096 = vor.u32 %v2092, %v2095
      %v2097 = vsel %vm2027, %v2078, %v2096
      %v2099 = vshrl.u32 %v1623, 16
      %v2101 = vrot.slane %v2099, 1
      %v2102 = vshll.u32 %v1623, 16
      %v2104 = vrot.slane %v2102, 2
      %v2105 = vor.u32 %v2101, %v2104
      %v2106 = vsel %vm2027, %v2087, %v2105
      %v2108 = vshrl.u32 %v1624, 16
      %v2110 = vrot.slane %v2108, 1
      %v2111 = vshll.u32 %v1624, 16
      %v2113 = vrot.slane %v2111, 2
      %v2114 = vor.u32 %v2110, %v2113
      %v2115 = vsel %vm2027, %v2096, %v2114
      %v2117 = vshrl.u32 %v1625, 16
      %v2119 = vrot.slane %v2117, 1
      %v2120 = vshll.u32 %v1625, 16
      %v2122 = vrot.slane %v2120, 2
      %v2123 = vor.u32 %v2119, %v2122
      %v2124 = vsel %vm2027, %v2105, %v2123
      %v2126 = vshrl.u32 %v1626, 16
      %v2128 = vrot.slane %v2126, 1
      %v2129 = vshll.u32 %v1626, 16
      %v2131 = vrot.slane %v2129, 2
      %v2132 = vor.u32 %v2128, %v2131
      %v2133 = vsel %vm2027, %v2114, %v2132
      %v2135 = vshrl.u32 %v1627, 16
      %v2137 = vrot.slane %v2135, 1
      %v2138 = vshll.u32 %v1627, 16
      %v2140 = vrot.slane %v2138, 2
      %v2141 = vor.u32 %v2137, %v2140
      %v2142 = vsel %vm2027, %v2123, %v2141
      %v2144 = vshrl.u32 %v1628, 16
      %v2146 = vrot.slane %v2144, 1
      %v2147 = vshll.u32 %v1628, 16
      %v2149 = vrot.slane %v2147, 2
      %v2150 = vor.u32 %v2146, %v2149
      %v2151 = vsel %vm2027, %v2132, %v2150
      %v2153 = vshrl.u32 %v1629, 16
      %v2155 = vrot.slane %v2153, 1
      %v2156 = vshll.u32 %v1629, 16
      %v2158 = vrot.slane %v2156, 2
      %v2159 = vor.u32 %v2155, %v2158
      %v2160 = vsel %vm2027, %v2141, %v2159
      %v2162 = vshrl.u32 %v1630, 16
      %v2164 = vrot.slane %v2162, 1
      %v2165 = vshll.u32 %v1630, 16
      %v2167 = vrot.slane %v2165, 2
      %v2168 = vor.u32 %v2164, %v2167
      %v2169 = vsel %vm2027, %v2150, %v2168
      %v2171 = vshrl.u32 %v2025, 16
      %v2173 = vrot.slane %v2171, 1
      %v2174 = vshll.u32 %v2025, 16
      %v2176 = vrot.slane %v2174, 2
      %v2177 = vor.u32 %v2173, %v2176
      %v2178 = vsel %vm2027, %v2159, %v2177
      %v2180 = vshrl.u32 %v2026, 16
      %v2182 = vrot.slane %v2180, 1
      %v2183 = vshll.u32 %v2026, 16
      %v2185 = vrot.slane %v2183, 2
      %v2186 = vor.u32 %v2182, %v2185
      %v2187 = vsel %vm2027, %v2168, %v2186
      %v2236 = vunpack.c.l.b16 %v1990
      %v2237 = vunpack.c.h.b16 %v1990
      %v2238 = vunpack.c.l.b16 %v1991
      %v2239 = vunpack.c.h.b16 %v1991
      %v2240 = vunpack.c.l.b16 %v1992
      %v2241 = vunpack.c.h.b16 %v1992
      %v2242 = vunpack.c.l.b16 %v1993
      %v2243 = vunpack.c.h.b16 %v1993
      %v2244 = vunpack.c.l.b16 %v1994
      %v2245 = vunpack.c.h.b16 %v1994
      %v2246 = vunpack.c.l.b16 %v1995
      %v2247 = vunpack.c.h.b16 %v1995
      %v2248 = vunpack.c.l.b16 %v1996
      %v2249 = vunpack.c.h.b16 %v1996
      %v2250 = vunpack.c.l.b16 %v1997
      %v2251 = vunpack.c.h.b16 %v1997
      %v2252 = vunpack.c.l.b16 %v1998
      %v2253 = vunpack.c.h.b16 %v1998
      %v2254 = vunpack.c.l.b16 %v1999
      %v2255 = vunpack.c.h.b16 %v1999
      %v2256 = vunpack.c.l.b16 %v2000
      %v2257 = vunpack.c.h.b16 %v2000
      %v2258 = vunpack.c.l.b16 %v2001
      %v2259 = vunpack.c.h.b16 %v2001
      %v2260 = vunpack.c.l.b16 %v2002
      %v2261 = vunpack.c.h.b16 %v2002
      %v2262 = vunpack.c.l.b16 %v2003
      %v2263 = vunpack.c.h.b16 %v2003
      %v2264 = vunpack.c.l.b16 %v2004
      %v2265 = vunpack.c.h.b16 %v2004
      %v2266 = vunpack.c.l.b16 %v2005
      %v2267 = vunpack.c.h.b16 %v2005
      %v2268 = vunpack.c.l.b16 %v2006
      %v2269 = vunpack.c.h.b16 %v2006
      %v2270 = vunpack.c.l.b16 %v2007
      %v2271 = vunpack.c.h.b16 %v2007
      %v2272 = vunpack.c.l.b16 %v2008
      %v2273 = vunpack.c.h.b16 %v2008
      %v2274 = vunpack.c.l.b16 %v2009
      %v2275 = vunpack.c.h.b16 %v2009
      %v2276 = vunpack.c.l.b16 %v2010
      %v2277 = vunpack.c.h.b16 %v2010
      %v2278 = vunpack.c.l.b16 %v2011
      %v2279 = vunpack.c.h.b16 %v2011
      %v2280 = vunpack.c.l.b16 %v2012
      %v2281 = vunpack.c.h.b16 %v2012
      %v2282 = vunpack.c.l.b16 %v2013
      %v2283 = vunpack.c.h.b16 %v2013
      %v2284 = vunpack.c.l.b16 %v2014
      %v2285 = vunpack.c.h.b16 %v2014
      %v2286 = vunpack.c.l.b16 %v2015
      %v2287 = vunpack.c.h.b16 %v2015
      %v2288 = vunpack.c.l.b16 %v2016
      %v2289 = vunpack.c.h.b16 %v2016
      %v2290 = vunpack.c.l.b16 %v2017
      %v2291 = vunpack.c.h.b16 %v2017
      %v2292 = vunpack.c.l.b16 %v2018
      %v2293 = vunpack.c.h.b16 %v2018
      %v2294 = vunpack.c.l.b16 %v2019
      %v2295 = vunpack.c.h.b16 %v2019
      %v2296 = vunpack.c.l.b16 %v2020
      %v2297 = vunpack.c.h.b16 %v2020
      %v2298 = vunpack.c.l.b16 %v2021
      %v2299 = vunpack.c.h.b16 %v2021
      %v2300 = vpack.c.b16 %v2238, %v2236
      %v2301 = vpack.c.b16 %v2239, %v2237
      %v2302 = vpack.c.b16 %v2242, %v2240
      %v2303 = vpack.c.b16 %v2243, %v2241
      %v2304 = vpack.c.b16 %v2246, %v2244
      %v2305 = vpack.c.b16 %v2247, %v2245
      %v2306 = vpack.c.b16 %v2250, %v2248
      %v2307 = vpack.c.b16 %v2251, %v2249
      %v2308 = vpack.c.b16 %v2254, %v2252
      %v2309 = vpack.c.b16 %v2255, %v2253
      %v2310 = vpack.c.b16 %v2258, %v2256
      %v2311 = vpack.c.b16 %v2259, %v2257
      %v2312 = vpack.c.b16 %v2262, %v2260
      %v2313 = vpack.c.b16 %v2263, %v2261
      %v2314 = vpack.c.b16 %v2266, %v2264
      %v2315 = vpack.c.b16 %v2267, %v2265
      %v2316 = vpack.c.b16 %v2270, %v2268
      %v2317 = vpack.c.b16 %v2271, %v2269
      %v2318 = vpack.c.b16 %v2274, %v2272
      %v2319 = vpack.c.b16 %v2275, %v2273
      %v2320 = vpack.c.b16 %v2278, %v2276
      %v2321 = vpack.c.b16 %v2279, %v2277
      %v2322 = vpack.c.b16 %v2282, %v2280
      %v2323 = vpack.c.b16 %v2283, %v2281
      %v2324 = vpack.c.b16 %v2286, %v2284
      %v2325 = vpack.c.b16 %v2287, %v2285
      %v2326 = vpack.c.b16 %v2290, %v2288
      %v2327 = vpack.c.b16 %v2291, %v2289
      %v2328 = vpack.c.b16 %v2294, %v2292
      %v2329 = vpack.c.b16 %v2295, %v2293
      %v2330 = vpack.c.b16 %v2298, %v2296
      %v2331 = vpack.c.b16 %v2299, %v2297
      %2364 = vmatprep.subr.bf16.mxu0 %v2315
      %2365 = vmatpush1.bf16.msra.mxu0 %v2314
      %2366 = vmatprep.subr.bf16.mxu0 %v2313
      %2367 = vmatpush1.bf16.msra.mxu0 %v2312
      %2368 = vmatprep.subr.bf16.mxu0 %v2311
      %2369 = vmatpush1.bf16.msra.mxu0 %v2310
      %2370 = vmatprep.subr.bf16.mxu0 %v2309
      %2371 = vmatpush1.bf16.msra.mxu0 %v2308
      %2372 = vmatprep.subr.bf16.mxu0 %v2307
      %2373 = vmatpush1.bf16.msra.mxu0 %v2306
      %2374 = vmatprep.subr.bf16.mxu0 %v2305
      %2375 = vmatpush1.bf16.msra.mxu0 %v2304
      %2376 = vmatprep.subr.bf16.mxu0 %v2303
      %2377 = vmatpush1.bf16.msra.mxu0 %v2302
      %2378 = vmatprep.subr.bf16.mxu0 %v2301
      %2379 = vmatpush1.bf16.msra.mxu0 %v2300
      %2380 = vmatprep.subr.bf16.mxu0 %v2331
      %2381 = vmatpush2.bf16.msra.mxu0 %v2330
      %2382 = vmatprep.subr.bf16.mxu0 %v2329
      %2383 = vmatpush2.bf16.msra.mxu0 %v2328
      %2384 = vmatprep.subr.bf16.mxu0 %v2327
      %2385 = vmatpush2.bf16.msra.mxu0 %v2326
      %2386 = vmatprep.subr.bf16.mxu0 %v2325
      %2387 = vmatpush2.bf16.msra.mxu0 %v2324
      %2388 = vmatprep.subr.bf16.mxu0 %v2323
      %2389 = vmatpush2.bf16.msra.mxu0 %v2322
      %2390 = vmatprep.subr.bf16.mxu0 %v2321
      %2391 = vmatpush2.bf16.msra.mxu0 %v2320
      %2392 = vmatprep.subr.bf16.mxu0 %v2319
      %2393 = vmatpush2.bf16.msra.mxu0 %v2318
      %2394 = vmatprep.subr.bf16.mxu0 %v2317
      %2395 = vmatpush2.bf16.msra.mxu0 %v2316
      %2396 = vmatprep.mubr.bf16.mxu0 %v2061
      %2397 = vmatmul.mubr.bf16.gmra.mxu0 %v2044
      %v2398 = vpop.f32.mrf.mxu0
      %v2399 = vadd.f32 0.0, %v2398
      %v2400 = vpop.f32.mrf.mxu0
      %v2401 = vadd.f32 0.0, %v2400
      %v2402 = vpop.f32.mrf.mxu0
      %v2403 = vadd.f32 0.0, %v2402
      %v2404 = vpop.f32.mrf.mxu0
      %v2405 = vadd.f32 0.0, %v2404
      %2406 = vmatprep.mubr.bf16.mxu0 %v2079
      %2407 = vmatmul.mubr.bf16.gmra.mxu0 %v2070
      %v2408 = vpop.f32.mrf.mxu0
      %v2409 = vadd.f32 0.0, %v2408
      %v2410 = vpop.f32.mrf.mxu0
      %v2411 = vadd.f32 0.0, %v2410
      %v2412 = vpop.f32.mrf.mxu0
      %v2413 = vadd.f32 0.0, %v2412
      %v2414 = vpop.f32.mrf.mxu0
      %v2415 = vadd.f32 0.0, %v2414
      %2416 = vmatprep.mubr.bf16.mxu0 %v2097
      %2417 = vmatmul.mubr.bf16.gmra.mxu0 %v2088
      %v2418 = vpop.f32.mrf.mxu0
      %v2419 = vadd.f32 0.0, %v2418
      %v2420 = vpop.f32.mrf.mxu0
      %v2421 = vadd.f32 0.0, %v2420
      %v2422 = vpop.f32.mrf.mxu0
      %v2423 = vadd.f32 0.0, %v2422
      %v2424 = vpop.f32.mrf.mxu0
      %v2425 = vadd.f32 0.0, %v2424
      %2426 = vmatprep.mubr.bf16.mxu0 %v2115
      %2427 = vmatmul.mubr.bf16.gmra.mxu0 %v2106
      %v2428 = vpop.f32.mrf.mxu0
      %v2429 = vadd.f32 0.0, %v2428
      %v2430 = vpop.f32.mrf.mxu0
      %v2431 = vadd.f32 0.0, %v2430
      %v2432 = vpop.f32.mrf.mxu0
      %v2433 = vadd.f32 0.0, %v2432
      %v2434 = vpop.f32.mrf.mxu0
      %v2435 = vadd.f32 0.0, %v2434
      %2436 = vmatprep.mubr.bf16.mxu0 %v2133
      %2437 = vmatmul.mubr.bf16.gmra.mxu0 %v2124
      %v2438 = vpop.f32.mrf.mxu0
      %v2439 = vadd.f32 0.0, %v2438
      %v2440 = vpop.f32.mrf.mxu0
      %v2441 = vadd.f32 0.0, %v2440
      %v2442 = vpop.f32.mrf.mxu0
      %v2443 = vadd.f32 0.0, %v2442
      %v2444 = vpop.f32.mrf.mxu0
      %v2445 = vadd.f32 0.0, %v2444
      %2446 = vmatprep.mubr.bf16.mxu0 %v2151
      %2447 = vmatmul.mubr.bf16.gmra.mxu0 %v2142
      %v2448 = vpop.f32.mrf.mxu0
      %v2449 = vadd.f32 0.0, %v2448
      %v2450 = vpop.f32.mrf.mxu0
      %v2451 = vadd.f32 0.0, %v2450
      %v2452 = vpop.f32.mrf.mxu0
      %v2453 = vadd.f32 0.0, %v2452
      %v2454 = vpop.f32.mrf.mxu0
      %v2455 = vadd.f32 0.0, %v2454
      %2456 = vmatprep.mubr.bf16.mxu0 %v2169
      %2457 = vmatmul.mubr.bf16.gmra.mxu0 %v2160
      %v2458 = vpop.f32.mrf.mxu0
      %v2459 = vadd.f32 0.0, %v2458
      %v2460 = vpop.f32.mrf.mxu0
      %v2461 = vadd.f32 0.0, %v2460
      %v2462 = vpop.f32.mrf.mxu0
      %v2463 = vadd.f32 0.0, %v2462
      %v2464 = vpop.f32.mrf.mxu0
      %v2465 = vadd.f32 0.0, %v2464
      %2466 = vmatprep.mubr.bf16.mxu0 %v2187
      %2467 = vmatmul.mubr.bf16.gmra.mxu0 %v2178
      %v2468 = vpop.f32.mrf.mxu0
      %v2469 = vadd.f32 0.0, %v2468
      %v2470 = vpop.f32.mrf.mxu0
      %v2471 = vadd.f32 0.0, %v2470
      %v2472 = vpop.f32.mrf.mxu0
      %v2473 = vadd.f32 0.0, %v2472
      %v2474 = vpop.f32.mrf.mxu0
      %v2475 = vadd.f32 0.0, %v2474
      %2476 = vdwg.mxu0
      %v2477 = vadd.f32 %v1956, %v2399
      %v2478 = vadd.f32 %v1957, %v2401
      %v2479 = vadd.f32 %v1958, %v2403
      %v2480 = vadd.f32 %v1959, %v2405
      %v2481 = vadd.f32 %v1960, %v2409
      %v2482 = vadd.f32 %v1961, %v2411
      %v2483 = vadd.f32 %v1962, %v2413
      %v2484 = vadd.f32 %v1963, %v2415
      %v2485 = vadd.f32 %v1964, %v2419
      %v2486 = vadd.f32 %v1965, %v2421
      %v2487 = vadd.f32 %v1966, %v2423
      %v2488 = vadd.f32 %v1967, %v2425
      %v2489 = vadd.f32 %v1968, %v2429
      %v2490 = vadd.f32 %v1969, %v2431
      %v2491 = vadd.f32 %v1970, %v2433
      %v2492 = vadd.f32 %v1971, %v2435
      %v2493 = vadd.f32 %v1972, %v2439
      %v2494 = vadd.f32 %v1973, %v2441
      %v2495 = vadd.f32 %v1974, %v2443
      %v2496 = vadd.f32 %v1975, %v2445
      %v2497 = vadd.f32 %v1976, %v2449
      %v2498 = vadd.f32 %v1977, %v2451
      %v2499 = vadd.f32 %v1978, %v2453
      %v2500 = vadd.f32 %v1979, %v2455
      %v2501 = vadd.f32 %v1980, %v2459
      %v2502 = vadd.f32 %v1981, %v2461
      %v2503 = vadd.f32 %v1982, %v2463
      %v2504 = vadd.f32 %v1983, %v2465
      %v2505 = vadd.f32 %v1984, %v2469
      %v2506 = vadd.f32 %v1985, %v2471
      %v2507 = vadd.f32 %v1986, %v2473
      %v2508 = vadd.f32 %v1987, %v2475
      %v2509 = vld [vmem:[%s246 + $0x10] sm:$0xcc]
      %s2510 = scalar_lea.vmem %s1, 1280
      %v2511 = vld [vmem:[%s2510] sm:$0xff]
      %v2512 = vld [vmem:[%s2510 + $0x8] sm:$0xff]
      %v2513 = vld [vmem:[%s2510 + $0x10] sm:$0xff]
      %v2514 = vld [vmem:[%s2510 + $0x18] sm:$0xff]
      %v2515 = vld [vmem:[%s2510 + $0x20] sm:$0xff]
      %v2516 = vld [vmem:[%s2510 + $0x28] sm:$0xff]
      %v2517 = vld [vmem:[%s2510 + $0x30] sm:$0xff]
      %v2518 = vld [vmem:[%s2510 + $0x38] sm:$0xff]
      %v2519 = vld [vmem:[%s2510 + $0x40] sm:$0xff]
      %v2520 = vld [vmem:[%s2510 + $0x48] sm:$0xff]
      %v2521 = vld [vmem:[%s2510 + $0x50] sm:$0xff]
      %v2522 = vld [vmem:[%s2510 + $0x58] sm:$0xff]
      %v2523 = vld [vmem:[%s2510 + $0x60] sm:$0xff]
      %v2524 = vld [vmem:[%s2510 + $0x68] sm:$0xff]
      %v2525 = vld [vmem:[%s2510 + $0x70] sm:$0xff]
      %v2526 = vld [vmem:[%s2510 + $0x78] sm:$0xff]
      %v2527 = vld [vmem:[%s2510 + $0x80] sm:$0xff]
      %v2528 = vld [vmem:[%s2510 + $0x88] sm:$0xff]
      %v2529 = vld [vmem:[%s2510 + $0x90] sm:$0xff]
      %v2530 = vld [vmem:[%s2510 + $0x98] sm:$0xff]
      %v2531 = vld [vmem:[%s2510 + $0xa0] sm:$0xff]
      %v2532 = vld [vmem:[%s2510 + $0xa8] sm:$0xff]
      %v2533 = vld [vmem:[%s2510 + $0xb0] sm:$0xff]
      %v2534 = vld [vmem:[%s2510 + $0xb8] sm:$0xff]
      %v2535 = vld [vmem:[%s2510 + $0xc0] sm:$0xff]
      %v2536 = vld [vmem:[%s2510 + $0xc8] sm:$0xff]
      %v2537 = vld [vmem:[%s2510 + $0xd0] sm:$0xff]
      %v2538 = vld [vmem:[%s2510 + $0xd8] sm:$0xff]
      %v2539 = vld [vmem:[%s2510 + $0xe0] sm:$0xff]
      %v2540 = vld [vmem:[%s2510 + $0xe8] sm:$0xff]
      %v2541 = vld [vmem:[%s2510 + $0xf0] sm:$0xff]
      %v2542 = vld [vmem:[%s2510 + $0xf8] sm:$0xff]
      %v2544 = vunpack.c.l.b16 %v2509
      %v2545 = vunpack.c.h.b16 %v2509
      %v2546 = vpack.c.b16 %v1583, %v2544
      %v2547 = vpack.c.b16 %v1584, %v2545
      %vm2548 = vcmask 1045504
      %v2549 = vrot.slane %v2546, 2
      %v2550 = vrot.slane %v1617, 2
      %v2551 = vsel %vm2548, %v2549, %v2550
      %v2552 = vrot.slane %v2547, 2
      %v2553 = vrot.slane %v1618, 2
      %v2554 = vsel %vm2548, %v2552, %v2553
      %v2555 = vrot.slane %v1619, 2
      %v2556 = vsel %vm2548, %v2550, %v2555
      %v2557 = vrot.slane %v1620, 2
      %v2558 = vsel %vm2548, %v2553, %v2557
      %v2559 = vrot.slane %v1621, 2
      %v2560 = vsel %vm2548, %v2555, %v2559
      %v2561 = vrot.slane %v1622, 2
      %v2562 = vsel %vm2548, %v2557, %v2561
      %v2563 = vrot.slane %v1623, 2
      %v2564 = vsel %vm2548, %v2559, %v2563
      %v2565 = vrot.slane %v1624, 2
      %v2566 = vsel %vm2548, %v2561, %v2565
      %v2567 = vrot.slane %v1625, 2
      %v2568 = vsel %vm2548, %v2563, %v2567
      %v2569 = vrot.slane %v1626, 2
      %v2570 = vsel %vm2548, %v2565, %v2569
      %v2571 = vrot.slane %v1627, 2
      %v2572 = vsel %vm2548, %v2567, %v2571
      %v2573 = vrot.slane %v1628, 2
      %v2574 = vsel %vm2548, %v2569, %v2573
      %v2575 = vrot.slane %v1629, 2
      %v2576 = vsel %vm2548, %v2571, %v2575
      %v2577 = vrot.slane %v1630, 2
      %v2578 = vsel %vm2548, %v2573, %v2577
      %v2579 = vrot.slane %v2025, 2
      %v2580 = vsel %vm2548, %v2575, %v2579
      %v2581 = vrot.slane %v2026, 2
      %v2582 = vsel %vm2548, %v2577, %v2581
      %v2631 = vunpack.c.l.b16 %v2511
      %v2632 = vunpack.c.h.b16 %v2511
      %v2633 = vunpack.c.l.b16 %v2512
      %v2634 = vunpack.c.h.b16 %v2512
      %v2635 = vunpack.c.l.b16 %v2513
      %v2636 = vunpack.c.h.b16 %v2513
      %v2637 = vunpack.c.l.b16 %v2514
      %v2638 = vunpack.c.h.b16 %v2514
      %v2639 = vunpack.c.l.b16 %v2515
      %v2640 = vunpack.c.h.b16 %v2515
      %v2641 = vunpack.c.l.b16 %v2516
      %v2642 = vunpack.c.h.b16 %v2516
      %v2643 = vunpack.c.l.b16 %v2517
      %v2644 = vunpack.c.h.b16 %v2517
      %v2645 = vunpack.c.l.b16 %v2518
      %v2646 = vunpack.c.h.b16 %v2518
      %v2647 = vunpack.c.l.b16 %v2519
      %v2648 = vunpack.c.h.b16 %v2519
      %v2649 = vunpack.c.l.b16 %v2520
      %v2650 = vunpack.c.h.b16 %v2520
      %v2651 = vunpack.c.l.b16 %v2521
      %v2652 = vunpack.c.h.b16 %v2521
      %v2653 = vunpack.c.l.b16 %v2522
      %v2654 = vunpack.c.h.b16 %v2522
      %v2655 = vunpack.c.l.b16 %v2523
      %v2656 = vunpack.c.h.b16 %v2523
      %v2657 = vunpack.c.l.b16 %v2524
      %v2658 = vunpack.c.h.b16 %v2524
      %v2659 = vunpack.c.l.b16 %v2525
      %v2660 = vunpack.c.h.b16 %v2525
      %v2661 = vunpack.c.l.b16 %v2526
      %v2662 = vunpack.c.h.b16 %v2526
      %v2663 = vunpack.c.l.b16 %v2527
      %v2664 = vunpack.c.h.b16 %v2527
      %v2665 = vunpack.c.l.b16 %v2528
      %v2666 = vunpack.c.h.b16 %v2528
      %v2667 = vunpack.c.l.b16 %v2529
      %v2668 = vunpack.c.h.b16 %v2529
      %v2669 = vunpack.c.l.b16 %v2530
      %v2670 = vunpack.c.h.b16 %v2530
      %v2671 = vunpack.c.l.b16 %v2531
      %v2672 = vunpack.c.h.b16 %v2531
      %v2673 = vunpack.c.l.b16 %v2532
      %v2674 = vunpack.c.h.b16 %v2532
      %v2675 = vunpack.c.l.b16 %v2533
      %v2676 = vunpack.c.h.b16 %v2533
      %v2677 = vunpack.c.l.b16 %v2534
      %v2678 = vunpack.c.h.b16 %v2534
      %v2679 = vunpack.c.l.b16 %v2535
      %v2680 = vunpack.c.h.b16 %v2535
      %v2681 = vunpack.c.l.b16 %v2536
      %v2682 = vunpack.c.h.b16 %v2536
      %v2683 = vunpack.c.l.b16 %v2537
      %v2684 = vunpack.c.h.b16 %v2537
      %v2685 = vunpack.c.l.b16 %v2538
      %v2686 = vunpack.c.h.b16 %v2538
      %v2687 = vunpack.c.l.b16 %v2539
      %v2688 = vunpack.c.h.b16 %v2539
      %v2689 = vunpack.c.l.b16 %v2540
      %v2690 = vunpack.c.h.b16 %v2540
      %v2691 = vunpack.c.l.b16 %v2541
      %v2692 = vunpack.c.h.b16 %v2541
      %v2693 = vunpack.c.l.b16 %v2542
      %v2694 = vunpack.c.h.b16 %v2542
      %v2695 = vpack.c.b16 %v2633, %v2631
      %v2696 = vpack.c.b16 %v2634, %v2632
      %v2697 = vpack.c.b16 %v2637, %v2635
      %v2698 = vpack.c.b16 %v2638, %v2636
      %v2699 = vpack.c.b16 %v2641, %v2639
      %v2700 = vpack.c.b16 %v2642, %v2640
      %v2701 = vpack.c.b16 %v2645, %v2643
      %v2702 = vpack.c.b16 %v2646, %v2644
      %v2703 = vpack.c.b16 %v2649, %v2647
      %v2704 = vpack.c.b16 %v2650, %v2648
      %v2705 = vpack.c.b16 %v2653, %v2651
      %v2706 = vpack.c.b16 %v2654, %v2652
      %v2707 = vpack.c.b16 %v2657, %v2655
      %v2708 = vpack.c.b16 %v2658, %v2656
      %v2709 = vpack.c.b16 %v2661, %v2659
      %v2710 = vpack.c.b16 %v2662, %v2660
      %v2711 = vpack.c.b16 %v2665, %v2663
      %v2712 = vpack.c.b16 %v2666, %v2664
      %v2713 = vpack.c.b16 %v2669, %v2667
      %v2714 = vpack.c.b16 %v2670, %v2668
      %v2715 = vpack.c.b16 %v2673, %v2671
      %v2716 = vpack.c.b16 %v2674, %v2672
      %v2717 = vpack.c.b16 %v2677, %v2675
      %v2718 = vpack.c.b16 %v2678, %v2676
      %v2719 = vpack.c.b16 %v2681, %v2679
      %v2720 = vpack.c.b16 %v2682, %v2680
      %v2721 = vpack.c.b16 %v2685, %v2683
      %v2722 = vpack.c.b16 %v2686, %v2684
      %v2723 = vpack.c.b16 %v2689, %v2687
      %v2724 = vpack.c.b16 %v2690, %v2688
      %v2725 = vpack.c.b16 %v2693, %v2691
      %v2726 = vpack.c.b16 %v2694, %v2692
      %2759 = vmatprep.subr.bf16.mxu0 %v2710
      %2760 = vmatpush1.bf16.msra.mxu0 %v2709
      %2761 = vmatprep.subr.bf16.mxu0 %v2708
      %2762 = vmatpush1.bf16.msra.mxu0 %v2707
      %2763 = vmatprep.subr.bf16.mxu0 %v2706
      %2764 = vmatpush1.bf16.msra.mxu0 %v2705
      %2765 = vmatprep.subr.bf16.mxu0 %v2704
      %2766 = vmatpush1.bf16.msra.mxu0 %v2703
      %2767 = vmatprep.subr.bf16.mxu0 %v2702
      %2768 = vmatpush1.bf16.msra.mxu0 %v2701
      %2769 = vmatprep.subr.bf16.mxu0 %v2700
      %2770 = vmatpush1.bf16.msra.mxu0 %v2699
      %2771 = vmatprep.subr.bf16.mxu0 %v2698
      %2772 = vmatpush1.bf16.msra.mxu0 %v2697
      %2773 = vmatprep.subr.bf16.mxu0 %v2696
      %2774 = vmatpush1.bf16.msra.mxu0 %v2695
      %2775 = vmatprep.subr.bf16.mxu0 %v2726
      %2776 = vmatpush2.bf16.msra.mxu0 %v2725
      %2777 = vmatprep.subr.bf16.mxu0 %v2724
      %2778 = vmatpush2.bf16.msra.mxu0 %v2723
      %2779 = vmatprep.subr.bf16.mxu0 %v2722
      %2780 = vmatpush2.bf16.msra.mxu0 %v2721
      %2781 = vmatprep.subr.bf16.mxu0 %v2720
      %2782 = vmatpush2.bf16.msra.mxu0 %v2719
      %2783 = vmatprep.subr.bf16.mxu0 %v2718
      %2784 = vmatpush2.bf16.msra.mxu0 %v2717
      %2785 = vmatprep.subr.bf16.mxu0 %v2716
      %2786 = vmatpush2.bf16.msra.mxu0 %v2715
      %2787 = vmatprep.subr.bf16.mxu0 %v2714
      %2788 = vmatpush2.bf16.msra.mxu0 %v2713
      %2789 = vmatprep.subr.bf16.mxu0 %v2712
      %2790 = vmatpush2.bf16.msra.mxu0 %v2711
      %2791 = vmatprep.mubr.bf16.mxu0 %v2554
      %2792 = vmatmul.mubr.bf16.gmra.mxu0 %v2551
      %v2793 = vpop.f32.mrf.mxu0
      %v2794 = vadd.f32 0.0, %v2793
      %v2795 = vpop.f32.mrf.mxu0
      %v2796 = vadd.f32 0.0, %v2795
      %v2797 = vpop.f32.mrf.mxu0
      %v2798 = vadd.f32 0.0, %v2797
      %v2799 = vpop.f32.mrf.mxu0
      %v2800 = vadd.f32 0.0, %v2799
      %2801 = vmatprep.mubr.bf16.mxu0 %v2558
      %2802 = vmatmul.mubr.bf16.gmra.mxu0 %v2556
      %v2803 = vpop.f32.mrf.mxu0
      %v2804 = vadd.f32 0.0, %v2803
      %v2805 = vpop.f32.mrf.mxu0
      %v2806 = vadd.f32 0.0, %v2805
      %v2807 = vpop.f32.mrf.mxu0
      %v2808 = vadd.f32 0.0, %v2807
      %v2809 = vpop.f32.mrf.mxu0
      %v2810 = vadd.f32 0.0, %v2809
      %2811 = vmatprep.mubr.bf16.mxu0 %v2562
      %2812 = vmatmul.mubr.bf16.gmra.mxu0 %v2560
      %v2813 = vpop.f32.mrf.mxu0
      %v2814 = vadd.f32 0.0, %v2813
      %v2815 = vpop.f32.mrf.mxu0
      %v2816 = vadd.f32 0.0, %v2815
      %v2817 = vpop.f32.mrf.mxu0
      %v2818 = vadd.f32 0.0, %v2817
      %v2819 = vpop.f32.mrf.mxu0
      %v2820 = vadd.f32 0.0, %v2819
      %2821 = vmatprep.mubr.bf16.mxu0 %v2566
      %2822 = vmatmul.mubr.bf16.gmra.mxu0 %v2564
      %v2823 = vpop.f32.mrf.mxu0
      %v2824 = vadd.f32 0.0, %v2823
      %v2825 = vpop.f32.mrf.mxu0
      %v2826 = vadd.f32 0.0, %v2825
      %v2827 = vpop.f32.mrf.mxu0
      %v2828 = vadd.f32 0.0, %v2827
      %v2829 = vpop.f32.mrf.mxu0
      %v2830 = vadd.f32 0.0, %v2829
      %2831 = vmatprep.mubr.bf16.mxu0 %v2570
      %2832 = vmatmul.mubr.bf16.gmra.mxu0 %v2568
      %v2833 = vpop.f32.mrf.mxu0
      %v2834 = vadd.f32 0.0, %v2833
      %v2835 = vpop.f32.mrf.mxu0
      %v2836 = vadd.f32 0.0, %v2835
      %v2837 = vpop.f32.mrf.mxu0
      %v2838 = vadd.f32 0.0, %v2837
      %v2839 = vpop.f32.mrf.mxu0
      %v2840 = vadd.f32 0.0, %v2839
      %2841 = vmatprep.mubr.bf16.mxu0 %v2574
      %2842 = vmatmul.mubr.bf16.gmra.mxu0 %v2572
      %v2843 = vpop.f32.mrf.mxu0
      %v2844 = vadd.f32 0.0, %v2843
      %v2845 = vpop.f32.mrf.mxu0
      %v2846 = vadd.f32 0.0, %v2845
      %v2847 = vpop.f32.mrf.mxu0
      %v2848 = vadd.f32 0.0, %v2847
      %v2849 = vpop.f32.mrf.mxu0
      %v2850 = vadd.f32 0.0, %v2849
      %2851 = vmatprep.mubr.bf16.mxu0 %v2578
      %2852 = vmatmul.mubr.bf16.gmra.mxu0 %v2576
      %v2853 = vpop.f32.mrf.mxu0
      %v2854 = vadd.f32 0.0, %v2853
      %v2855 = vpop.f32.mrf.mxu0
      %v2856 = vadd.f32 0.0, %v2855
      %v2857 = vpop.f32.mrf.mxu0
      %v2858 = vadd.f32 0.0, %v2857
      %v2859 = vpop.f32.mrf.mxu0
      %v2860 = vadd.f32 0.0, %v2859
      %2861 = vmatprep.mubr.bf16.mxu0 %v2582
      %2862 = vmatmul.mubr.bf16.gmra.mxu0 %v2580
      %v2863 = vpop.f32.mrf.mxu0
      %v2864 = vadd.f32 0.0, %v2863
      %v2865 = vpop.f32.mrf.mxu0
      %v2866 = vadd.f32 0.0, %v2865
      %v2867 = vpop.f32.mrf.mxu0
      %v2868 = vadd.f32 0.0, %v2867
      %v2869 = vpop.f32.mrf.mxu0
      %v2870 = vadd.f32 0.0, %v2869
      %2871 = vdwg.mxu0
      %v2872 = vadd.f32 %v2477, %v2794
      %v2873 = vadd.f32 %v2478, %v2796
      %v2874 = vadd.f32 %v2479, %v2798
      %v2875 = vadd.f32 %v2480, %v2800
      %v2876 = vadd.f32 %v2481, %v2804
      %v2877 = vadd.f32 %v2482, %v2806
      %v2878 = vadd.f32 %v2483, %v2808
      %v2879 = vadd.f32 %v2484, %v2810
      %v2880 = vadd.f32 %v2485, %v2814
      %v2881 = vadd.f32 %v2486, %v2816
      %v2882 = vadd.f32 %v2487, %v2818
      %v2883 = vadd.f32 %v2488, %v2820
      %v2884 = vadd.f32 %v2489, %v2824
      %v2885 = vadd.f32 %v2490, %v2826
      %v2886 = vadd.f32 %v2491, %v2828
      %v2887 = vadd.f32 %v2492, %v2830
      %v2888 = vadd.f32 %v2493, %v2834
      %v2889 = vadd.f32 %v2494, %v2836
      %v2890 = vadd.f32 %v2495, %v2838
      %v2891 = vadd.f32 %v2496, %v2840
      %v2892 = vadd.f32 %v2497, %v2844
      %v2893 = vadd.f32 %v2498, %v2846
      %v2894 = vadd.f32 %v2499, %v2848
      %v2895 = vadd.f32 %v2500, %v2850
      %v2896 = vadd.f32 %v2501, %v2854
      %v2897 = vadd.f32 %v2502, %v2856
      %v2898 = vadd.f32 %v2503, %v2858
      %v2899 = vadd.f32 %v2504, %v2860
      %v2900 = vadd.f32 %v2505, %v2864
      %v2901 = vadd.f32 %v2506, %v2866
      %v2902 = vadd.f32 %v2507, %v2868
      %v2903 = vadd.f32 %v2508, %v2870
      %v2904 = vld [vmem:[%s246 + $0x20] sm:$0xcc]
      %v2905 = vld [vmem:[%s246 + $0x28] sm:$0xff]
      %v2906 = vld [vmem:[%s246 + $0x30] sm:$0xff]
      %v2907 = vld [vmem:[%s246 + $0x38] sm:$0xff]
      %v2908 = vld [vmem:[%s246 + $0x40] sm:$0xff]
      %v2909 = vld [vmem:[%s246 + $0x48] sm:$0xff]
      %v2910 = vld [vmem:[%s246 + $0x50] sm:$0xff]
      %v2911 = vld [vmem:[%s246 + $0x58] sm:$0xff]
      %v2912 = vld [vmem:[%s246 + $0x60] sm:$0xff]
      %v2913 = vld [vmem:[%s246 + $0x68] sm:$0xff]
      %v2914 = vld [vmem:[%s246 + $0x70] sm:$0xff]
      %v2915 = vld [vmem:[%s246 + $0x78] sm:$0xff]
      %v2916 = vld [vmem:[%s246 + $0x80] sm:$0xff]
      %v2917 = vld [vmem:[%s246 + $0x88] sm:$0xff]
      %v2918 = vld [vmem:[%s246 + $0x90] sm:$0xff]
      %v2919 = vld [vmem:[%s246 + $0x98] sm:$0xff]
      %v2920 = vld [vmem:[%s246 + $0xa0] sm:$0x33]
      %s2921 = scalar_lea.vmem %s1, 1536
      %v2922 = vld [vmem:[%s2921] sm:$0xff]
      %v2923 = vld [vmem:[%s2921 + $0x8] sm:$0xff]
      %v2924 = vld [vmem:[%s2921 + $0x10] sm:$0xff]
      %v2925 = vld [vmem:[%s2921 + $0x18] sm:$0xff]
      %v2926 = vld [vmem:[%s2921 + $0x20] sm:$0xff]
      %v2927 = vld [vmem:[%s2921 + $0x28] sm:$0xff]
      %v2928 = vld [vmem:[%s2921 + $0x30] sm:$0xff]
      %v2929 = vld [vmem:[%s2921 + $0x38] sm:$0xff]
      %v2930 = vld [vmem:[%s2921 + $0x40] sm:$0xff]
      %v2931 = vld [vmem:[%s2921 + $0x48] sm:$0xff]
      %v2932 = vld [vmem:[%s2921 + $0x50] sm:$0xff]
      %v2933 = vld [vmem:[%s2921 + $0x58] sm:$0xff]
      %v2934 = vld [vmem:[%s2921 + $0x60] sm:$0xff]
      %v2935 = vld [vmem:[%s2921 + $0x68] sm:$0xff]
      %v2936 = vld [vmem:[%s2921 + $0x70] sm:$0xff]
      %v2937 = vld [vmem:[%s2921 + $0x78] sm:$0xff]
      %v2938 = vld [vmem:[%s2921 + $0x80] sm:$0xff]
      %v2939 = vld [vmem:[%s2921 + $0x88] sm:$0xff]
      %v2940 = vld [vmem:[%s2921 + $0x90] sm:$0xff]
      %v2941 = vld [vmem:[%s2921 + $0x98] sm:$0xff]
      %v2942 = vld [vmem:[%s2921 + $0xa0] sm:$0xff]
      %v2943 = vld [vmem:[%s2921 + $0xa8] sm:$0xff]
      %v2944 = vld [vmem:[%s2921 + $0xb0] sm:$0xff]
      %v2945 = vld [vmem:[%s2921 + $0xb8] sm:$0xff]
      %v2946 = vld [vmem:[%s2921 + $0xc0] sm:$0xff]
      %v2947 = vld [vmem:[%s2921 + $0xc8] sm:$0xff]
      %v2948 = vld [vmem:[%s2921 + $0xd0] sm:$0xff]
      %v2949 = vld [vmem:[%s2921 + $0xd8] sm:$0xff]
      %v2950 = vld [vmem:[%s2921 + $0xe0] sm:$0xff]
      %v2951 = vld [vmem:[%s2921 + $0xe8] sm:$0xff]
      %v2952 = vld [vmem:[%s2921 + $0xf0] sm:$0xff]
      %v2953 = vld [vmem:[%s2921 + $0xf8] sm:$0xff]
      %v2971 = vunpack.c.l.b16 %v2904
      %v2972 = vunpack.c.h.b16 %v2904
      %v2973 = vunpack.c.l.b16 %v2905
      %v2974 = vunpack.c.h.b16 %v2905
      %v2975 = vunpack.c.l.b16 %v2906
      %v2976 = vunpack.c.h.b16 %v2906
      %v2977 = vunpack.c.l.b16 %v2907
      %v2978 = vunpack.c.h.b16 %v2907
      %v2979 = vunpack.c.l.b16 %v2908
      %v2980 = vunpack.c.h.b16 %v2908
      %v2981 = vunpack.c.l.b16 %v2909
      %v2982 = vunpack.c.h.b16 %v2909
      %v2983 = vunpack.c.l.b16 %v2910
      %v2984 = vunpack.c.h.b16 %v2910
      %v2985 = vunpack.c.l.b16 %v2911
      %v2986 = vunpack.c.h.b16 %v2911
      %v2987 = vunpack.c.l.b16 %v2912
      %v2988 = vunpack.c.h.b16 %v2912
      %v2989 = vunpack.c.l.b16 %v2913
      %v2990 = vunpack.c.h.b16 %v2913
      %v2991 = vunpack.c.l.b16 %v2914
      %v2992 = vunpack.c.h.b16 %v2914
      %v2993 = vunpack.c.l.b16 %v2915
      %v2994 = vunpack.c.h.b16 %v2915
      %v2995 = vunpack.c.l.b16 %v2916
      %v2996 = vunpack.c.h.b16 %v2916
      %v2997 = vunpack.c.l.b16 %v2917
      %v2998 = vunpack.c.h.b16 %v2917
      %v2999 = vunpack.c.l.b16 %v2918
      %v3000 = vunpack.c.h.b16 %v2918
      %v3001 = vunpack.c.l.b16 %v2919
      %v3002 = vunpack.c.h.b16 %v2919
      %v3003 = vunpack.c.l.b16 %v2920
      %v3004 = vunpack.c.h.b16 %v2920
      %v3005 = vpack.c.b16 %v2973, %v2971
      %v3006 = vpack.c.b16 %v2974, %v2972
      %v3007 = vpack.c.b16 %v2977, %v2975
      %v3008 = vpack.c.b16 %v2978, %v2976
      %v3009 = vpack.c.b16 %v2981, %v2979
      %v3010 = vpack.c.b16 %v2982, %v2980
      %v3011 = vpack.c.b16 %v2985, %v2983
      %v3012 = vpack.c.b16 %v2986, %v2984
      %v3013 = vpack.c.b16 %v2989, %v2987
      %v3014 = vpack.c.b16 %v2990, %v2988
      %v3015 = vpack.c.b16 %v2993, %v2991
      %v3016 = vpack.c.b16 %v2994, %v2992
      %v3017 = vpack.c.b16 %v2997, %v2995
      %v3018 = vpack.c.b16 %v2998, %v2996
      %v3019 = vpack.c.b16 %v3001, %v2999
      %v3020 = vpack.c.b16 %v3002, %v3000
      %v3021 = vpack.c.b16 %v3003, %v3003
      %v3022 = vpack.c.b16 %v3004, %v3004
      %v3023 = vrot.slane %v3005, 2
      %v3024 = vrot.slane %v3007, 2
      %v3025 = vsel %vm2548, %v3023, %v3024
      %v3026 = vrot.slane %v3006, 2
      %v3027 = vrot.slane %v3008, 2
      %v3028 = vsel %vm2548, %v3026, %v3027
      %v3029 = vrot.slane %v3009, 2
      %v3030 = vsel %vm2548, %v3024, %v3029
      %v3031 = vrot.slane %v3010, 2
      %v3032 = vsel %vm2548, %v3027, %v3031
      %v3033 = vrot.slane %v3011, 2
      %v3034 = vsel %vm2548, %v3029, %v3033
      %v3035 = vrot.slane %v3012, 2
      %v3036 = vsel %vm2548, %v3031, %v3035
      %v3037 = vrot.slane %v3013, 2
      %v3038 = vsel %vm2548, %v3033, %v3037
      %v3039 = vrot.slane %v3014, 2
      %v3040 = vsel %vm2548, %v3035, %v3039
      %v3041 = vrot.slane %v3015, 2
      %v3042 = vsel %vm2548, %v3037, %v3041
      %v3043 = vrot.slane %v3016, 2
      %v3044 = vsel %vm2548, %v3039, %v3043
      %v3045 = vrot.slane %v3017, 2
      %v3046 = vsel %vm2548, %v3041, %v3045
      %v3047 = vrot.slane %v3018, 2
      %v3048 = vsel %vm2548, %v3043, %v3047
      %v3049 = vrot.slane %v3019, 2
      %v3050 = vsel %vm2548, %v3045, %v3049
      %v3051 = vrot.slane %v3020, 2
      %v3052 = vsel %vm2548, %v3047, %v3051
      %v3053 = vrot.slane %v3021, 2
      %v3054 = vsel %vm2548, %v3049, %v3053
      %v3055 = vrot.slane %v3022, 2
      %v3056 = vsel %vm2548, %v3051, %v3055
      %v3105 = vunpack.c.l.b16 %v2922
      %v3106 = vunpack.c.h.b16 %v2922
      %v3107 = vunpack.c.l.b16 %v2923
      %v3108 = vunpack.c.h.b16 %v2923
      %v3109 = vunpack.c.l.b16 %v2924
      %v3110 = vunpack.c.h.b16 %v2924
      %v3111 = vunpack.c.l.b16 %v2925
      %v3112 = vunpack.c.h.b16 %v2925
      %v3113 = vunpack.c.l.b16 %v2926
      %v3114 = vunpack.c.h.b16 %v2926
      %v3115 = vunpack.c.l.b16 %v2927
      %v3116 = vunpack.c.h.b16 %v2927
      %v3117 = vunpack.c.l.b16 %v2928
      %v3118 = vunpack.c.h.b16 %v2928
      %v3119 = vunpack.c.l.b16 %v2929
      %v3120 = vunpack.c.h.b16 %v2929
      %v3121 = vunpack.c.l.b16 %v2930
      %v3122 = vunpack.c.h.b16 %v2930
      %v3123 = vunpack.c.l.b16 %v2931
      %v3124 = vunpack.c.h.b16 %v2931
      %v3125 = vunpack.c.l.b16 %v2932
      %v3126 = vunpack.c.h.b16 %v2932
      %v3127 = vunpack.c.l.b16 %v2933
      %v3128 = vunpack.c.h.b16 %v2933
      %v3129 = vunpack.c.l.b16 %v2934
      %v3130 = vunpack.c.h.b16 %v2934
      %v3131 = vunpack.c.l.b16 %v2935
      %v3132 = vunpack.c.h.b16 %v2935
      %v3133 = vunpack.c.l.b16 %v2936
      %v3134 = vunpack.c.h.b16 %v2936
      %v3135 = vunpack.c.l.b16 %v2937
      %v3136 = vunpack.c.h.b16 %v2937
      %v3137 = vunpack.c.l.b16 %v2938
      %v3138 = vunpack.c.h.b16 %v2938
      %v3139 = vunpack.c.l.b16 %v2939
      %v3140 = vunpack.c.h.b16 %v2939
      %v3141 = vunpack.c.l.b16 %v2940
      %v3142 = vunpack.c.h.b16 %v2940
      %v3143 = vunpack.c.l.b16 %v2941
      %v3144 = vunpack.c.h.b16 %v2941
      %v3145 = vunpack.c.l.b16 %v2942
      %v3146 = vunpack.c.h.b16 %v2942
      %v3147 = vunpack.c.l.b16 %v2943
      %v3148 = vunpack.c.h.b16 %v2943
      %v3149 = vunpack.c.l.b16 %v2944
      %v3150 = vunpack.c.h.b16 %v2944
      %v3151 = vunpack.c.l.b16 %v2945
      %v3152 = vunpack.c.h.b16 %v2945
      %v3153 = vunpack.c.l.b16 %v2946
      %v3154 = vunpack.c.h.b16 %v2946
      %v3155 = vunpack.c.l.b16 %v2947
      %v3156 = vunpack.c.h.b16 %v2947
      %v3157 = vunpack.c.l.b16 %v2948
      %v3158 = vunpack.c.h.b16 %v2948
      %v3159 = vunpack.c.l.b16 %v2949
      %v3160 = vunpack.c.h.b16 %v2949
      %v3161 = vunpack.c.l.b16 %v2950
      %v3162 = vunpack.c.h.b16 %v2950
      %v3163 = vunpack.c.l.b16 %v2951
      %v3164 = vunpack.c.h.b16 %v2951
      %v3165 = vunpack.c.l.b16 %v2952
      %v3166 = vunpack.c.h.b16 %v2952
      %v3167 = vunpack.c.l.b16 %v2953
      %v3168 = vunpack.c.h.b16 %v2953
      %v3169 = vpack.c.b16 %v3107, %v3105
      %v3170 = vpack.c.b16 %v3108, %v3106
      %v3171 = vpack.c.b16 %v3111, %v3109
      %v3172 = vpack.c.b16 %v3112, %v3110
      %v3173 = vpack.c.b16 %v3115, %v3113
      %v3174 = vpack.c.b16 %v3116, %v3114
      %v3175 = vpack.c.b16 %v3119, %v3117
      %v3176 = vpack.c.b16 %v3120, %v3118
      %v3177 = vpack.c.b16 %v3123, %v3121
      %v3178 = vpack.c.b16 %v3124, %v3122
      %v3179 = vpack.c.b16 %v3127, %v3125
      %v3180 = vpack.c.b16 %v3128, %v3126
      %v3181 = vpack.c.b16 %v3131, %v3129
      %v3182 = vpack.c.b16 %v3132, %v3130
      %v3183 = vpack.c.b16 %v3135, %v3133
      %v3184 = vpack.c.b16 %v3136, %v3134
      %v3185 = vpack.c.b16 %v3139, %v3137
      %v3186 = vpack.c.b16 %v3140, %v3138
      %v3187 = vpack.c.b16 %v3143, %v3141
      %v3188 = vpack.c.b16 %v3144, %v3142
      %v3189 = vpack.c.b16 %v3147, %v3145
      %v3190 = vpack.c.b16 %v3148, %v3146
      %v3191 = vpack.c.b16 %v3151, %v3149
      %v3192 = vpack.c.b16 %v3152, %v3150
      %v3193 = vpack.c.b16 %v3155, %v3153
      %v3194 = vpack.c.b16 %v3156, %v3154
      %v3195 = vpack.c.b16 %v3159, %v3157
      %v3196 = vpack.c.b16 %v3160, %v3158
      %v3197 = vpack.c.b16 %v3163, %v3161
      %v3198 = vpack.c.b16 %v3164, %v3162
      %v3199 = vpack.c.b16 %v3167, %v3165
      %v3200 = vpack.c.b16 %v3168, %v3166
      %3233 = vmatprep.subr.bf16.mxu0 %v3184
      %3234 = vmatpush1.bf16.msra.mxu0 %v3183
      %3235 = vmatprep.subr.bf16.mxu0 %v3182
      %3236 = vmatpush1.bf16.msra.mxu0 %v3181
      %3237 = vmatprep.subr.bf16.mxu0 %v3180
      %3238 = vmatpush1.bf16.msra.mxu0 %v3179
      %3239 = vmatprep.subr.bf16.mxu0 %v3178
      %3240 = vmatpush1.bf16.msra.mxu0 %v3177
      %3241 = vmatprep.subr.bf16.mxu0 %v3176
      %3242 = vmatpush1.bf16.msra.mxu0 %v3175
      %3243 = vmatprep.subr.bf16.mxu0 %v3174
      %3244 = vmatpush1.bf16.msra.mxu0 %v3173
      %3245 = vmatprep.subr.bf16.mxu0 %v3172
      %3246 = vmatpush1.bf16.msra.mxu0 %v3171
      %3247 = vmatprep.subr.bf16.mxu0 %v3170
      %3248 = vmatpush1.bf16.msra.mxu0 %v3169
      %3249 = vmatprep.subr.bf16.mxu0 %v3200
      %3250 = vmatpush2.bf16.msra.mxu0 %v3199
      %3251 = vmatprep.subr.bf16.mxu0 %v3198
      %3252 = vmatpush2.bf16.msra.mxu0 %v3197
      %3253 = vmatprep.subr.bf16.mxu0 %v3196
      %3254 = vmatpush2.bf16.msra.mxu0 %v3195
      %3255 = vmatprep.subr.bf16.mxu0 %v3194
      %3256 = vmatpush2.bf16.msra.mxu0 %v3193
      %3257 = vmatprep.subr.bf16.mxu0 %v3192
      %3258 = vmatpush2.bf16.msra.mxu0 %v3191
      %3259 = vmatprep.subr.bf16.mxu0 %v3190
      %3260 = vmatpush2.bf16.msra.mxu0 %v3189
      %3261 = vmatprep.subr.bf16.mxu0 %v3188
      %3262 = vmatpush2.bf16.msra.mxu0 %v3187
      %3263 = vmatprep.subr.bf16.mxu0 %v3186
      %3264 = vmatpush2.bf16.msra.mxu0 %v3185
      %3265 = vmatprep.mubr.bf16.mxu0 %v3028
      %3266 = vmatmul.mubr.bf16.gmra.mxu0 %v3025
      %v3267 = vpop.f32.mrf.mxu0
      %v3268 = vadd.f32 0.0, %v3267
      %v3269 = vpop.f32.mrf.mxu0
      %v3270 = vadd.f32 0.0, %v3269
      %v3271 = vpop.f32.mrf.mxu0
      %v3272 = vadd.f32 0.0, %v3271
      %v3273 = vpop.f32.mrf.mxu0
      %v3274 = vadd.f32 0.0, %v3273
      %3275 = vmatprep.mubr.bf16.mxu0 %v3032
      %3276 = vmatmul.mubr.bf16.gmra.mxu0 %v3030
      %v3277 = vpop.f32.mrf.mxu0
      %v3278 = vadd.f32 0.0, %v3277
      %v3279 = vpop.f32.mrf.mxu0
      %v3280 = vadd.f32 0.0, %v3279
      %v3281 = vpop.f32.mrf.mxu0
      %v3282 = vadd.f32 0.0, %v3281
      %v3283 = vpop.f32.mrf.mxu0
      %v3284 = vadd.f32 0.0, %v3283
      %3285 = vmatprep.mubr.bf16.mxu0 %v3036
      %3286 = vmatmul.mubr.bf16.gmra.mxu0 %v3034
      %v3287 = vpop.f32.mrf.mxu0
      %v3288 = vadd.f32 0.0, %v3287
      %v3289 = vpop.f32.mrf.mxu0
      %v3290 = vadd.f32 0.0, %v3289
      %v3291 = vpop.f32.mrf.mxu0
      %v3292 = vadd.f32 0.0, %v3291
      %v3293 = vpop.f32.mrf.mxu0
      %v3294 = vadd.f32 0.0, %v3293
      %3295 = vmatprep.mubr.bf16.mxu0 %v3040
      %3296 = vmatmul.mubr.bf16.gmra.mxu0 %v3038
      %v3297 = vpop.f32.mrf.mxu0
      %v3298 = vadd.f32 0.0, %v3297
      %v3299 = vpop.f32.mrf.mxu0
      %v3300 = vadd.f32 0.0, %v3299
      %v3301 = vpop.f32.mrf.mxu0
      %v3302 = vadd.f32 0.0, %v3301
      %v3303 = vpop.f32.mrf.mxu0
      %v3304 = vadd.f32 0.0, %v3303
      %3305 = vmatprep.mubr.bf16.mxu0 %v3044
      %3306 = vmatmul.mubr.bf16.gmra.mxu0 %v3042
      %v3307 = vpop.f32.mrf.mxu0
      %v3308 = vadd.f32 0.0, %v3307
      %v3309 = vpop.f32.mrf.mxu0
      %v3310 = vadd.f32 0.0, %v3309
      %v3311 = vpop.f32.mrf.mxu0
      %v3312 = vadd.f32 0.0, %v3311
      %v3313 = vpop.f32.mrf.mxu0
      %v3314 = vadd.f32 0.0, %v3313
      %3315 = vmatprep.mubr.bf16.mxu0 %v3048
      %3316 = vmatmul.mubr.bf16.gmra.mxu0 %v3046
      %v3317 = vpop.f32.mrf.mxu0
      %v3318 = vadd.f32 0.0, %v3317
      %v3319 = vpop.f32.mrf.mxu0
      %v3320 = vadd.f32 0.0, %v3319
      %v3321 = vpop.f32.mrf.mxu0
      %v3322 = vadd.f32 0.0, %v3321
      %v3323 = vpop.f32.mrf.mxu0
      %v3324 = vadd.f32 0.0, %v3323
      %3325 = vmatprep.mubr.bf16.mxu0 %v3052
      %3326 = vmatmul.mubr.bf16.gmra.mxu0 %v3050
      %v3327 = vpop.f32.mrf.mxu0
      %v3328 = vadd.f32 0.0, %v3327
      %v3329 = vpop.f32.mrf.mxu0
      %v3330 = vadd.f32 0.0, %v3329
      %v3331 = vpop.f32.mrf.mxu0
      %v3332 = vadd.f32 0.0, %v3331
      %v3333 = vpop.f32.mrf.mxu0
      %v3334 = vadd.f32 0.0, %v3333
      %3335 = vmatprep.mubr.bf16.mxu0 %v3056
      %3336 = vmatmul.mubr.bf16.gmra.mxu0 %v3054
      %v3337 = vpop.f32.mrf.mxu0
      %v3338 = vadd.f32 0.0, %v3337
      %v3339 = vpop.f32.mrf.mxu0
      %v3340 = vadd.f32 0.0, %v3339
      %v3341 = vpop.f32.mrf.mxu0
      %v3342 = vadd.f32 0.0, %v3341
      %v3343 = vpop.f32.mrf.mxu0
      %v3344 = vadd.f32 0.0, %v3343
      %3345 = vdwg.mxu0
      %v3346 = vadd.f32 %v2872, %v3268
      %v3347 = vadd.f32 %v2873, %v3270
      %v3348 = vadd.f32 %v2874, %v3272
      %v3349 = vadd.f32 %v2875, %v3274
      %v3350 = vadd.f32 %v2876, %v3278
      %v3351 = vadd.f32 %v2877, %v3280
      %v3352 = vadd.f32 %v2878, %v3282
      %v3353 = vadd.f32 %v2879, %v3284
      %v3354 = vadd.f32 %v2880, %v3288
      %v3355 = vadd.f32 %v2881, %v3290
      %v3356 = vadd.f32 %v2882, %v3292
      %v3357 = vadd.f32 %v2883, %v3294
      %v3358 = vadd.f32 %v2884, %v3298
      %v3359 = vadd.f32 %v2885, %v3300
      %v3360 = vadd.f32 %v2886, %v3302
      %v3361 = vadd.f32 %v2887, %v3304
      %v3362 = vadd.f32 %v2888, %v3308
      %v3363 = vadd.f32 %v2889, %v3310
      %v3364 = vadd.f32 %v2890, %v3312
      %v3365 = vadd.f32 %v2891, %v3314
      %v3366 = vadd.f32 %v2892, %v3318
      %v3367 = vadd.f32 %v2893, %v3320
      %v3368 = vadd.f32 %v2894, %v3322
      %v3369 = vadd.f32 %v2895, %v3324
      %v3370 = vadd.f32 %v2896, %v3328
      %v3371 = vadd.f32 %v2897, %v3330
      %v3372 = vadd.f32 %v2898, %v3332
      %v3373 = vadd.f32 %v2899, %v3334
      %v3374 = vadd.f32 %v2900, %v3338
      %v3375 = vadd.f32 %v2901, %v3340
      %v3376 = vadd.f32 %v2902, %v3342
      %v3377 = vadd.f32 %v2903, %v3344
      %v3378 = vld [vmem:[%s246 + $0xa0] sm:$0x77]
      %s3379 = scalar_lea.vmem %s1, 1792
      %v3380 = vld [vmem:[%s3379] sm:$0xff]
      %v3381 = vld [vmem:[%s3379 + $0x8] sm:$0xff]
      %v3382 = vld [vmem:[%s3379 + $0x10] sm:$0xff]
      %v3383 = vld [vmem:[%s3379 + $0x18] sm:$0xff]
      %v3384 = vld [vmem:[%s3379 + $0x20] sm:$0xff]
      %v3385 = vld [vmem:[%s3379 + $0x28] sm:$0xff]
      %v3386 = vld [vmem:[%s3379 + $0x30] sm:$0xff]
      %v3387 = vld [vmem:[%s3379 + $0x38] sm:$0xff]
      %v3388 = vld [vmem:[%s3379 + $0x40] sm:$0xff]
      %v3389 = vld [vmem:[%s3379 + $0x48] sm:$0xff]
      %v3390 = vld [vmem:[%s3379 + $0x50] sm:$0xff]
      %v3391 = vld [vmem:[%s3379 + $0x58] sm:$0xff]
      %v3392 = vld [vmem:[%s3379 + $0x60] sm:$0xff]
      %v3393 = vld [vmem:[%s3379 + $0x68] sm:$0xff]
      %v3394 = vld [vmem:[%s3379 + $0x70] sm:$0xff]
      %v3395 = vld [vmem:[%s3379 + $0x78] sm:$0xff]
      %v3396 = vld [vmem:[%s3379 + $0x80] sm:$0xff]
      %v3397 = vld [vmem:[%s3379 + $0x88] sm:$0xff]
      %v3398 = vld [vmem:[%s3379 + $0x90] sm:$0xff]
      %v3399 = vld [vmem:[%s3379 + $0x98] sm:$0xff]
      %v3400 = vld [vmem:[%s3379 + $0xa0] sm:$0xff]
      %v3401 = vld [vmem:[%s3379 + $0xa8] sm:$0xff]
      %v3402 = vld [vmem:[%s3379 + $0xb0] sm:$0xff]
      %v3403 = vld [vmem:[%s3379 + $0xb8] sm:$0xff]
      %v3404 = vld [vmem:[%s3379 + $0xc0] sm:$0xff]
      %v3405 = vld [vmem:[%s3379 + $0xc8] sm:$0xff]
      %v3406 = vld [vmem:[%s3379 + $0xd0] sm:$0xff]
      %v3407 = vld [vmem:[%s3379 + $0xd8] sm:$0xff]
      %v3408 = vld [vmem:[%s3379 + $0xe0] sm:$0xff]
      %v3409 = vld [vmem:[%s3379 + $0xe8] sm:$0xff]
      %v3410 = vld [vmem:[%s3379 + $0xf0] sm:$0xff]
      %v3411 = vld [vmem:[%s3379 + $0xf8] sm:$0xff]
      %v3413 = vunpack.c.l.b16 %v3378
      %v3414 = vunpack.c.h.b16 %v3378
      %v3415 = vpack.c.b16 %v3413, %v3413
      %v3416 = vpack.c.b16 %v3414, %v3414
      %vm3417 = vsmask.f32 5376
      %v3419 = vshrl.u32 %v3005, 16
      %v3421 = vrot.slane %v3419, 2
      %v3422 = vshll.u32 %v3005, 16
      %v3424 = vrot.slane %v3422, 3
      %v3425 = vor.u32 %v3421, %v3424
      %v3427 = vshrl.u32 %v3007, 16
      %v3429 = vrot.slane %v3427, 2
      %v3430 = vshll.u32 %v3007, 16
      %v3432 = vrot.slane %v3430, 3
      %v3433 = vor.u32 %v3429, %v3432
      %v3434 = vsel %vm3417, %v3425, %v3433
      %v3436 = vshrl.u32 %v3006, 16
      %v3438 = vrot.slane %v3436, 2
      %v3439 = vshll.u32 %v3006, 16
      %v3441 = vrot.slane %v3439, 3
      %v3442 = vor.u32 %v3438, %v3441
      %v3444 = vshrl.u32 %v3008, 16
      %v3446 = vrot.slane %v3444, 2
      %v3447 = vshll.u32 %v3008, 16
      %v3449 = vrot.slane %v3447, 3
      %v3450 = vor.u32 %v3446, %v3449
      %v3451 = vsel %vm3417, %v3442, %v3450
      %v3453 = vshrl.u32 %v3009, 16
      %v3455 = vrot.slane %v3453, 2
      %v3456 = vshll.u32 %v3009, 16
      %v3458 = vrot.slane %v3456, 3
      %v3459 = vor.u32 %v3455, %v3458
      %v3460 = vsel %vm3417, %v3433, %v3459
      %v3462 = vshrl.u32 %v3010, 16
      %v3464 = vrot.slane %v3462, 2
      %v3465 = vshll.u32 %v3010, 16
      %v3467 = vrot.slane %v3465, 3
      %v3468 = vor.u32 %v3464, %v3467
      %v3469 = vsel %vm3417, %v3450, %v3468
      %v3471 = vshrl.u32 %v3011, 16
      %v3473 = vrot.slane %v3471, 2
      %v3474 = vshll.u32 %v3011, 16
      %v3476 = vrot.slane %v3474, 3
      %v3477 = vor.u32 %v3473, %v3476
      %v3478 = vsel %vm3417, %v3459, %v3477
      %v3480 = vshrl.u32 %v3012, 16
      %v3482 = vrot.slane %v3480, 2
      %v3483 = vshll.u32 %v3012, 16
      %v3485 = vrot.slane %v3483, 3
      %v3486 = vor.u32 %v3482, %v3485
      %v3487 = vsel %vm3417, %v3468, %v3486
      %v3489 = vshrl.u32 %v3013, 16
      %v3491 = vrot.slane %v3489, 2
      %v3492 = vshll.u32 %v3013, 16
      %v3494 = vrot.slane %v3492, 3
      %v3495 = vor.u32 %v3491, %v3494
      %v3496 = vsel %vm3417, %v3477, %v3495
      %v3498 = vshrl.u32 %v3014, 16
      %v3500 = vrot.slane %v3498, 2
      %v3501 = vshll.u32 %v3014, 16
      %v3503 = vrot.slane %v3501, 3
      %v3504 = vor.u32 %v3500, %v3503
      %v3505 = vsel %vm3417, %v3486, %v3504
      %v3507 = vshrl.u32 %v3015, 16
      %v3509 = vrot.slane %v3507, 2
      %v3510 = vshll.u32 %v3015, 16
      %v3512 = vrot.slane %v3510, 3
      %v3513 = vor.u32 %v3509, %v3512
      %v3514 = vsel %vm3417, %v3495, %v3513
      %v3516 = vshrl.u32 %v3016, 16
      %v3518 = vrot.slane %v3516, 2
      %v3519 = vshll.u32 %v3016, 16
      %v3521 = vrot.slane %v3519, 3
      %v3522 = vor.u32 %v3518, %v3521
      %v3523 = vsel %vm3417, %v3504, %v3522
      %v3525 = vshrl.u32 %v3017, 16
      %v3527 = vrot.slane %v3525, 2
      %v3528 = vshll.u32 %v3017, 16
      %v3530 = vrot.slane %v3528, 3
      %v3531 = vor.u32 %v3527, %v3530
      %v3532 = vsel %vm3417, %v3513, %v3531
      %v3534 = vshrl.u32 %v3018, 16
      %v3536 = vrot.slane %v3534, 2
      %v3537 = vshll.u32 %v3018, 16
      %v3539 = vrot.slane %v3537, 3
      %v3540 = vor.u32 %v3536, %v3539
      %v3541 = vsel %vm3417, %v3522, %v3540
      %v3543 = vshrl.u32 %v3019, 16
      %v3545 = vrot.slane %v3543, 2
      %v3546 = vshll.u32 %v3019, 16
      %v3548 = vrot.slane %v3546, 3
      %v3549 = vor.u32 %v3545, %v3548
      %v3550 = vsel %vm3417, %v3531, %v3549
      %v3552 = vshrl.u32 %v3020, 16
      %v3554 = vrot.slane %v3552, 2
      %v3555 = vshll.u32 %v3020, 16
      %v3557 = vrot.slane %v3555, 3
      %v3558 = vor.u32 %v3554, %v3557
      %v3559 = vsel %vm3417, %v3540, %v3558
      %v3561 = vshrl.u32 %v3415, 16
      %v3563 = vrot.slane %v3561, 2
      %v3564 = vshll.u32 %v3415, 16
      %v3566 = vrot.slane %v3564, 3
      %v3567 = vor.u32 %v3563, %v3566
      %v3568 = vsel %vm3417, %v3549, %v3567
      %v3570 = vshrl.u32 %v3416, 16
      %v3572 = vrot.slane %v3570, 2
      %v3573 = vshll.u32 %v3416, 16
      %v3575 = vrot.slane %v3573, 3
      %v3576 = vor.u32 %v3572, %v3575
      %v3577 = vsel %vm3417, %v3558, %v3576
      %v3626 = vunpack.c.l.b16 %v3380
      %v3627 = vunpack.c.h.b16 %v3380
      %v3628 = vunpack.c.l.b16 %v3381
      %v3629 = vunpack.c.h.b16 %v3381
      %v3630 = vunpack.c.l.b16 %v3382
      %v3631 = vunpack.c.h.b16 %v3382
      %v3632 = vunpack.c.l.b16 %v3383
      %v3633 = vunpack.c.h.b16 %v3383
      %v3634 = vunpack.c.l.b16 %v3384
      %v3635 = vunpack.c.h.b16 %v3384
      %v3636 = vunpack.c.l.b16 %v3385
      %v3637 = vunpack.c.h.b16 %v3385
      %v3638 = vunpack.c.l.b16 %v3386
      %v3639 = vunpack.c.h.b16 %v3386
      %v3640 = vunpack.c.l.b16 %v3387
      %v3641 = vunpack.c.h.b16 %v3387
      %v3642 = vunpack.c.l.b16 %v3388
      %v3643 = vunpack.c.h.b16 %v3388
      %v3644 = vunpack.c.l.b16 %v3389
      %v3645 = vunpack.c.h.b16 %v3389
      %v3646 = vunpack.c.l.b16 %v3390
      %v3647 = vunpack.c.h.b16 %v3390
      %v3648 = vunpack.c.l.b16 %v3391
      %v3649 = vunpack.c.h.b16 %v3391
      %v3650 = vunpack.c.l.b16 %v3392
      %v3651 = vunpack.c.h.b16 %v3392
      %v3652 = vunpack.c.l.b16 %v3393
      %v3653 = vunpack.c.h.b16 %v3393
      %v3654 = vunpack.c.l.b16 %v3394
      %v3655 = vunpack.c.h.b16 %v3394
      %v3656 = vunpack.c.l.b16 %v3395
      %v3657 = vunpack.c.h.b16 %v3395
      %v3658 = vunpack.c.l.b16 %v3396
      %v3659 = vunpack.c.h.b16 %v3396
      %v3660 = vunpack.c.l.b16 %v3397
      %v3661 = vunpack.c.h.b16 %v3397
      %v3662 = vunpack.c.l.b16 %v3398
      %v3663 = vunpack.c.h.b16 %v3398
      %v3664 = vunpack.c.l.b16 %v3399
      %v3665 = vunpack.c.h.b16 %v3399
      %v3666 = vunpack.c.l.b16 %v3400
      %v3667 = vunpack.c.h.b16 %v3400
      %v3668 = vunpack.c.l.b16 %v3401
      %v3669 = vunpack.c.h.b16 %v3401
      %v3670 = vunpack.c.l.b16 %v3402
      %v3671 = vunpack.c.h.b16 %v3402
      %v3672 = vunpack.c.l.b16 %v3403
      %v3673 = vunpack.c.h.b16 %v3403
      %v3674 = vunpack.c.l.b16 %v3404
      %v3675 = vunpack.c.h.b16 %v3404
      %v3676 = vunpack.c.l.b16 %v3405
      %v3677 = vunpack.c.h.b16 %v3405
      %v3678 = vunpack.c.l.b16 %v3406
      %v3679 = vunpack.c.h.b16 %v3406
      %v3680 = vunpack.c.l.b16 %v3407
      %v3681 = vunpack.c.h.b16 %v3407
      %v3682 = vunpack.c.l.b16 %v3408
      %v3683 = vunpack.c.h.b16 %v3408
      %v3684 = vunpack.c.l.b16 %v3409
      %v3685 = vunpack.c.h.b16 %v3409
      %v3686 = vunpack.c.l.b16 %v3410
      %v3687 = vunpack.c.h.b16 %v3410
      %v3688 = vunpack.c.l.b16 %v3411
      %v3689 = vunpack.c.h.b16 %v3411
      %v3690 = vpack.c.b16 %v3628, %v3626
      %v3691 = vpack.c.b16 %v3629, %v3627
      %v3692 = vpack.c.b16 %v3632, %v3630
      %v3693 = vpack.c.b16 %v3633, %v3631
      %v3694 = vpack.c.b16 %v3636, %v3634
      %v3695 = vpack.c.b16 %v3637, %v3635
      %v3696 = vpack.c.b16 %v3640, %v3638
      %v3697 = vpack.c.b16 %v3641, %v3639
      %v3698 = vpack.c.b16 %v3644, %v3642
      %v3699 = vpack.c.b16 %v3645, %v3643
      %v3700 = vpack.c.b16 %v3648, %v3646
      %v3701 = vpack.c.b16 %v3649, %v3647
      %v3702 = vpack.c.b16 %v3652, %v3650
      %v3703 = vpack.c.b16 %v3653, %v3651
      %v3704 = vpack.c.b16 %v3656, %v3654
      %v3705 = vpack.c.b16 %v3657, %v3655
      %v3706 = vpack.c.b16 %v3660, %v3658
      %v3707 = vpack.c.b16 %v3661, %v3659
      %v3708 = vpack.c.b16 %v3664, %v3662
      %v3709 = vpack.c.b16 %v3665, %v3663
      %v3710 = vpack.c.b16 %v3668, %v3666
      %v3711 = vpack.c.b16 %v3669, %v3667
      %v3712 = vpack.c.b16 %v3672, %v3670
      %v3713 = vpack.c.b16 %v3673, %v3671
      %v3714 = vpack.c.b16 %v3676, %v3674
      %v3715 = vpack.c.b16 %v3677, %v3675
      %v3716 = vpack.c.b16 %v3680, %v3678
      %v3717 = vpack.c.b16 %v3681, %v3679
      %v3718 = vpack.c.b16 %v3684, %v3682
      %v3719 = vpack.c.b16 %v3685, %v3683
      %v3720 = vpack.c.b16 %v3688, %v3686
      %v3721 = vpack.c.b16 %v3689, %v3687
      %3754 = vmatprep.subr.bf16.mxu0 %v3705
      %3755 = vmatpush1.bf16.msra.mxu0 %v3704
      %3756 = vmatprep.subr.bf16.mxu0 %v3703
      %3757 = vmatpush1.bf16.msra.mxu0 %v3702
      %3758 = vmatprep.subr.bf16.mxu0 %v3701
      %3759 = vmatpush1.bf16.msra.mxu0 %v3700
      %3760 = vmatprep.subr.bf16.mxu0 %v3699
      %3761 = vmatpush1.bf16.msra.mxu0 %v3698
      %3762 = vmatprep.subr.bf16.mxu0 %v3697
      %3763 = vmatpush1.bf16.msra.mxu0 %v3696
      %3764 = vmatprep.subr.bf16.mxu0 %v3695
      %3765 = vmatpush1.bf16.msra.mxu0 %v3694
      %3766 = vmatprep.subr.bf16.mxu0 %v3693
      %3767 = vmatpush1.bf16.msra.mxu0 %v3692
      %3768 = vmatprep.subr.bf16.mxu0 %v3691
      %3769 = vmatpush1.bf16.msra.mxu0 %v3690
      %3770 = vmatprep.subr.bf16.mxu0 %v3721
      %3771 = vmatpush2.bf16.msra.mxu0 %v3720
      %3772 = vmatprep.subr.bf16.mxu0 %v3719
      %3773 = vmatpush2.bf16.msra.mxu0 %v3718
      %3774 = vmatprep.subr.bf16.mxu0 %v3717
      %3775 = vmatpush2.bf16.msra.mxu0 %v3716
      %3776 = vmatprep.subr.bf16.mxu0 %v3715
      %3777 = vmatpush2.bf16.msra.mxu0 %v3714
      %3778 = vmatprep.subr.bf16.mxu0 %v3713
      %3779 = vmatpush2.bf16.msra.mxu0 %v3712
      %3780 = vmatprep.subr.bf16.mxu0 %v3711
      %3781 = vmatpush2.bf16.msra.mxu0 %v3710
      %3782 = vmatprep.subr.bf16.mxu0 %v3709
      %3783 = vmatpush2.bf16.msra.mxu0 %v3708
      %3784 = vmatprep.subr.bf16.mxu0 %v3707
      %3785 = vmatpush2.bf16.msra.mxu0 %v3706
      %3786 = vmatprep.mubr.bf16.mxu0 %v3451
      %3787 = vmatmul.mubr.bf16.gmra.mxu0 %v3434
      %v3788 = vpop.f32.mrf.mxu0
      %v3789 = vadd.f32 0.0, %v3788
      %v3790 = vpop.f32.mrf.mxu0
      %v3791 = vadd.f32 0.0, %v3790
      %v3792 = vpop.f32.mrf.mxu0
      %v3793 = vadd.f32 0.0, %v3792
      %v3794 = vpop.f32.mrf.mxu0
      %v3795 = vadd.f32 0.0, %v3794
      %3796 = vmatprep.mubr.bf16.mxu0 %v3469
      %3797 = vmatmul.mubr.bf16.gmra.mxu0 %v3460
      %v3798 = vpop.f32.mrf.mxu0
      %v3799 = vadd.f32 0.0, %v3798
      %v3800 = vpop.f32.mrf.mxu0
      %v3801 = vadd.f32 0.0, %v3800
      %v3802 = vpop.f32.mrf.mxu0
      %v3803 = vadd.f32 0.0, %v3802
      %v3804 = vpop.f32.mrf.mxu0
      %v3805 = vadd.f32 0.0, %v3804
      %3806 = vmatprep.mubr.bf16.mxu0 %v3487
      %3807 = vmatmul.mubr.bf16.gmra.mxu0 %v3478
      %v3808 = vpop.f32.mrf.mxu0
      %v3809 = vadd.f32 0.0, %v3808
      %v3810 = vpop.f32.mrf.mxu0
      %v3811 = vadd.f32 0.0, %v3810
      %v3812 = vpop.f32.mrf.mxu0
      %v3813 = vadd.f32 0.0, %v3812
      %v3814 = vpop.f32.mrf.mxu0
      %v3815 = vadd.f32 0.0, %v3814
      %3816 = vmatprep.mubr.bf16.mxu0 %v3505
      %3817 = vmatmul.mubr.bf16.gmra.mxu0 %v3496
      %v3818 = vpop.f32.mrf.mxu0
      %v3819 = vadd.f32 0.0, %v3818
      %v3820 = vpop.f32.mrf.mxu0
      %v3821 = vadd.f32 0.0, %v3820
      %v3822 = vpop.f32.mrf.mxu0
      %v3823 = vadd.f32 0.0, %v3822
      %v3824 = vpop.f32.mrf.mxu0
      %v3825 = vadd.f32 0.0, %v3824
      %3826 = vmatprep.mubr.bf16.mxu0 %v3523
      %3827 = vmatmul.mubr.bf16.gmra.mxu0 %v3514
      %v3828 = vpop.f32.mrf.mxu0
      %v3829 = vadd.f32 0.0, %v3828
      %v3830 = vpop.f32.mrf.mxu0
      %v3831 = vadd.f32 0.0, %v3830
      %v3832 = vpop.f32.mrf.mxu0
      %v3833 = vadd.f32 0.0, %v3832
      %v3834 = vpop.f32.mrf.mxu0
      %v3835 = vadd.f32 0.0, %v3834
      %3836 = vmatprep.mubr.bf16.mxu0 %v3541
      %3837 = vmatmul.mubr.bf16.gmra.mxu0 %v3532
      %v3838 = vpop.f32.mrf.mxu0
      %v3839 = vadd.f32 0.0, %v3838
      %v3840 = vpop.f32.mrf.mxu0
      %v3841 = vadd.f32 0.0, %v3840
      %v3842 = vpop.f32.mrf.mxu0
      %v3843 = vadd.f32 0.0, %v3842
      %v3844 = vpop.f32.mrf.mxu0
      %v3845 = vadd.f32 0.0, %v3844
      %3846 = vmatprep.mubr.bf16.mxu0 %v3559
      %3847 = vmatmul.mubr.bf16.gmra.mxu0 %v3550
      %v3848 = vpop.f32.mrf.mxu0
      %v3849 = vadd.f32 0.0, %v3848
      %v3850 = vpop.f32.mrf.mxu0
      %v3851 = vadd.f32 0.0, %v3850
      %v3852 = vpop.f32.mrf.mxu0
      %v3853 = vadd.f32 0.0, %v3852
      %v3854 = vpop.f32.mrf.mxu0
      %v3855 = vadd.f32 0.0, %v3854
      %3856 = vmatprep.mubr.bf16.mxu0 %v3577
      %3857 = vmatmul.mubr.bf16.gmra.mxu0 %v3568
      %v3858 = vpop.f32.mrf.mxu0
      %v3859 = vadd.f32 0.0, %v3858
      %v3860 = vpop.f32.mrf.mxu0
      %v3861 = vadd.f32 0.0, %v3860
      %v3862 = vpop.f32.mrf.mxu0
      %v3863 = vadd.f32 0.0, %v3862
      %v3864 = vpop.f32.mrf.mxu0
      %v3865 = vadd.f32 0.0, %v3864
      %3866 = vdwg.mxu0
      %v3867 = vadd.f32 %v3346, %v3789
      %v3868 = vadd.f32 %v3347, %v3791
      %v3869 = vadd.f32 %v3348, %v3793
      %v3870 = vadd.f32 %v3349, %v3795
      %v3871 = vadd.f32 %v3350, %v3799
      %v3872 = vadd.f32 %v3351, %v3801
      %v3873 = vadd.f32 %v3352, %v3803
      %v3874 = vadd.f32 %v3353, %v3805
      %v3875 = vadd.f32 %v3354, %v3809
      %v3876 = vadd.f32 %v3355, %v3811
      %v3877 = vadd.f32 %v3356, %v3813
      %v3878 = vadd.f32 %v3357, %v3815
      %v3879 = vadd.f32 %v3358, %v3819
      %v3880 = vadd.f32 %v3359, %v3821
      %v3881 = vadd.f32 %v3360, %v3823
      %v3882 = vadd.f32 %v3361, %v3825
      %v3883 = vadd.f32 %v3362, %v3829
      %v3884 = vadd.f32 %v3363, %v3831
      %v3885 = vadd.f32 %v3364, %v3833
      %v3886 = vadd.f32 %v3365, %v3835
      %v3887 = vadd.f32 %v3366, %v3839
      %v3888 = vadd.f32 %v3367, %v3841
      %v3889 = vadd.f32 %v3368, %v3843
      %v3890 = vadd.f32 %v3369, %v3845
      %v3891 = vadd.f32 %v3370, %v3849
      %v3892 = vadd.f32 %v3371, %v3851
      %v3893 = vadd.f32 %v3372, %v3853
      %v3894 = vadd.f32 %v3373, %v3855
      %v3895 = vadd.f32 %v3374, %v3859
      %v3896 = vadd.f32 %v3375, %v3861
      %v3897 = vadd.f32 %v3376, %v3863
      %v3898 = vadd.f32 %v3377, %v3865
      %v3899 = vld [vmem:[%s246 + $0x20] sm:$0x88]
      %s3900 = scalar_lea.vmem %s1, 2048
      %v3901 = vld [vmem:[%s3900] sm:$0xff]
      %v3902 = vld [vmem:[%s3900 + $0x8] sm:$0xff]
      %v3903 = vld [vmem:[%s3900 + $0x10] sm:$0xff]
      %v3904 = vld [vmem:[%s3900 + $0x18] sm:$0xff]
      %v3905 = vld [vmem:[%s3900 + $0x20] sm:$0xff]
      %v3906 = vld [vmem:[%s3900 + $0x28] sm:$0xff]
      %v3907 = vld [vmem:[%s3900 + $0x30] sm:$0xff]
      %v3908 = vld [vmem:[%s3900 + $0x38] sm:$0xff]
      %v3909 = vld [vmem:[%s3900 + $0x40] sm:$0xff]
      %v3910 = vld [vmem:[%s3900 + $0x48] sm:$0xff]
      %v3911 = vld [vmem:[%s3900 + $0x50] sm:$0xff]
      %v3912 = vld [vmem:[%s3900 + $0x58] sm:$0xff]
      %v3913 = vld [vmem:[%s3900 + $0x60] sm:$0xff]
      %v3914 = vld [vmem:[%s3900 + $0x68] sm:$0xff]
      %v3915 = vld [vmem:[%s3900 + $0x70] sm:$0xff]
      %v3916 = vld [vmem:[%s3900 + $0x78] sm:$0xff]
      %v3917 = vld [vmem:[%s3900 + $0x80] sm:$0xff]
      %v3918 = vld [vmem:[%s3900 + $0x88] sm:$0xff]
      %v3919 = vld [vmem:[%s3900 + $0x90] sm:$0xff]
      %v3920 = vld [vmem:[%s3900 + $0x98] sm:$0xff]
      %v3921 = vld [vmem:[%s3900 + $0xa0] sm:$0xff]
      %v3922 = vld [vmem:[%s3900 + $0xa8] sm:$0xff]
      %v3923 = vld [vmem:[%s3900 + $0xb0] sm:$0xff]
      %v3924 = vld [vmem:[%s3900 + $0xb8] sm:$0xff]
      %v3925 = vld [vmem:[%s3900 + $0xc0] sm:$0xff]
      %v3926 = vld [vmem:[%s3900 + $0xc8] sm:$0xff]
      %v3927 = vld [vmem:[%s3900 + $0xd0] sm:$0xff]
      %v3928 = vld [vmem:[%s3900 + $0xd8] sm:$0xff]
      %v3929 = vld [vmem:[%s3900 + $0xe0] sm:$0xff]
      %v3930 = vld [vmem:[%s3900 + $0xe8] sm:$0xff]
      %v3931 = vld [vmem:[%s3900 + $0xf0] sm:$0xff]
      %v3932 = vld [vmem:[%s3900 + $0xf8] sm:$0xff]
      %v3934 = vunpack.c.l.b16 %v3899
      %v3935 = vunpack.c.h.b16 %v3899
      %v3936 = vpack.c.b16 %v2973, %v3934
      %v3937 = vpack.c.b16 %v2974, %v3935
      %vm3938 = vcmask 1044480
      %v3939 = vrot.slane %v3936, 3
      %v3940 = vrot.slane %v3007, 3
      %v3941 = vsel %vm3938, %v3939, %v3940
      %v3942 = vrot.slane %v3937, 3
      %v3943 = vrot.slane %v3008, 3
      %v3944 = vsel %vm3938, %v3942, %v3943
      %v3945 = vrot.slane %v3009, 3
      %v3946 = vsel %vm3938, %v3940, %v3945
      %v3947 = vrot.slane %v3010, 3
      %v3948 = vsel %vm3938, %v3943, %v3947
      %v3949 = vrot.slane %v3011, 3
      %v3950 = vsel %vm3938, %v3945, %v3949
      %v3951 = vrot.slane %v3012, 3
      %v3952 = vsel %vm3938, %v3947, %v3951
      %v3953 = vrot.slane %v3013, 3
      %v3954 = vsel %vm3938, %v3949, %v3953
      %v3955 = vrot.slane %v3014, 3
      %v3956 = vsel %vm3938, %v3951, %v3955
      %v3957 = vrot.slane %v3015, 3
      %v3958 = vsel %vm3938, %v3953, %v3957
      %v3959 = vrot.slane %v3016, 3
      %v3960 = vsel %vm3938, %v3955, %v3959
      %v3961 = vrot.slane %v3017, 3
      %v3962 = vsel %vm3938, %v3957, %v3961
      %v3963 = vrot.slane %v3018, 3
      %v3964 = vsel %vm3938, %v3959, %v3963
      %v3965 = vrot.slane %v3019, 3
      %v3966 = vsel %vm3938, %v3961, %v3965
      %v3967 = vrot.slane %v3020, 3
      %v3968 = vsel %vm3938, %v3963, %v3967
      %v3969 = vrot.slane %v3415, 3
      %v3970 = vsel %vm3938, %v3965, %v3969
      %v3971 = vrot.slane %v3416, 3
      %v3972 = vsel %vm3938, %v3967, %v3971
      %v4021 = vunpack.c.l.b16 %v3901
      %v4022 = vunpack.c.h.b16 %v3901
      %v4023 = vunpack.c.l.b16 %v3902
      %v4024 = vunpack.c.h.b16 %v3902
      %v4025 = vunpack.c.l.b16 %v3903
      %v4026 = vunpack.c.h.b16 %v3903
      %v4027 = vunpack.c.l.b16 %v3904
      %v4028 = vunpack.c.h.b16 %v3904
      %v4029 = vunpack.c.l.b16 %v3905
      %v4030 = vunpack.c.h.b16 %v3905
      %v4031 = vunpack.c.l.b16 %v3906
      %v4032 = vunpack.c.h.b16 %v3906
      %v4033 = vunpack.c.l.b16 %v3907
      %v4034 = vunpack.c.h.b16 %v3907
      %v4035 = vunpack.c.l.b16 %v3908
      %v4036 = vunpack.c.h.b16 %v3908
      %v4037 = vunpack.c.l.b16 %v3909
      %v4038 = vunpack.c.h.b16 %v3909
      %v4039 = vunpack.c.l.b16 %v3910
      %v4040 = vunpack.c.h.b16 %v3910
      %v4041 = vunpack.c.l.b16 %v3911
      %v4042 = vunpack.c.h.b16 %v3911
      %v4043 = vunpack.c.l.b16 %v3912
      %v4044 = vunpack.c.h.b16 %v3912
      %v4045 = vunpack.c.l.b16 %v3913
      %v4046 = vunpack.c.h.b16 %v3913
      %v4047 = vunpack.c.l.b16 %v3914
      %v4048 = vunpack.c.h.b16 %v3914
      %v4049 = vunpack.c.l.b16 %v3915
      %v4050 = vunpack.c.h.b16 %v3915
      %v4051 = vunpack.c.l.b16 %v3916
      %v4052 = vunpack.c.h.b16 %v3916
      %v4053 = vunpack.c.l.b16 %v3917
      %v4054 = vunpack.c.h.b16 %v3917
      %v4055 = vunpack.c.l.b16 %v3918
      %v4056 = vunpack.c.h.b16 %v3918
      %v4057 = vunpack.c.l.b16 %v3919
      %v4058 = vunpack.c.h.b16 %v3919
      %v4059 = vunpack.c.l.b16 %v3920
      %v4060 = vunpack.c.h.b16 %v3920
      %v4061 = vunpack.c.l.b16 %v3921
      %v4062 = vunpack.c.h.b16 %v3921
      %v4063 = vunpack.c.l.b16 %v3922
      %v4064 = vunpack.c.h.b16 %v3922
      %v4065 = vunpack.c.l.b16 %v3923
      %v4066 = vunpack.c.h.b16 %v3923
      %v4067 = vunpack.c.l.b16 %v3924
      %v4068 = vunpack.c.h.b16 %v3924
      %v4069 = vunpack.c.l.b16 %v3925
      %v4070 = vunpack.c.h.b16 %v3925
      %v4071 = vunpack.c.l.b16 %v3926
      %v4072 = vunpack.c.h.b16 %v3926
      %v4073 = vunpack.c.l.b16 %v3927
      %v4074 = vunpack.c.h.b16 %v3927
      %v4075 = vunpack.c.l.b16 %v3928
      %v4076 = vunpack.c.h.b16 %v3928
      %v4077 = vunpack.c.l.b16 %v3929
      %v4078 = vunpack.c.h.b16 %v3929
      %v4079 = vunpack.c.l.b16 %v3930
      %v4080 = vunpack.c.h.b16 %v3930
      %v4081 = vunpack.c.l.b16 %v3931
      %v4082 = vunpack.c.h.b16 %v3931
      %v4083 = vunpack.c.l.b16 %v3932
      %v4084 = vunpack.c.h.b16 %v3932
      %v4085 = vpack.c.b16 %v4023, %v4021
      %v4086 = vpack.c.b16 %v4024, %v4022
      %v4087 = vpack.c.b16 %v4027, %v4025
      %v4088 = vpack.c.b16 %v4028, %v4026
      %v4089 = vpack.c.b16 %v4031, %v4029
      %v4090 = vpack.c.b16 %v4032, %v4030
      %v4091 = vpack.c.b16 %v4035, %v4033
      %v4092 = vpack.c.b16 %v4036, %v4034
      %v4093 = vpack.c.b16 %v4039, %v4037
      %v4094 = vpack.c.b16 %v4040, %v4038
      %v4095 = vpack.c.b16 %v4043, %v4041
      %v4096 = vpack.c.b16 %v4044, %v4042
      %v4097 = vpack.c.b16 %v4047, %v4045
      %v4098 = vpack.c.b16 %v4048, %v4046
      %v4099 = vpack.c.b16 %v4051, %v4049
      %v4100 = vpack.c.b16 %v4052, %v4050
      %v4101 = vpack.c.b16 %v4055, %v4053
      %v4102 = vpack.c.b16 %v4056, %v4054
      %v4103 = vpack.c.b16 %v4059, %v4057
      %v4104 = vpack.c.b16 %v4060, %v4058
      %v4105 = vpack.c.b16 %v4063, %v4061
      %v4106 = vpack.c.b16 %v4064, %v4062
      %v4107 = vpack.c.b16 %v4067, %v4065
      %v4108 = vpack.c.b16 %v4068, %v4066
      %v4109 = vpack.c.b16 %v4071, %v4069
      %v4110 = vpack.c.b16 %v4072, %v4070
      %v4111 = vpack.c.b16 %v4075, %v4073
      %v4112 = vpack.c.b16 %v4076, %v4074
      %v4113 = vpack.c.b16 %v4079, %v4077
      %v4114 = vpack.c.b16 %v4080, %v4078
      %v4115 = vpack.c.b16 %v4083, %v4081
      %v4116 = vpack.c.b16 %v4084, %v4082
      %4149 = vmatprep.subr.bf16.mxu0 %v4100
      %4150 = vmatpush1.bf16.msra.mxu0 %v4099
      %4151 = vmatprep.subr.bf16.mxu0 %v4098
      %4152 = vmatpush1.bf16.msra.mxu0 %v4097
      %4153 = vmatprep.subr.bf16.mxu0 %v4096
      %4154 = vmatpush1.bf16.msra.mxu0 %v4095
      %4155 = vmatprep.subr.bf16.mxu0 %v4094
      %4156 = vmatpush1.bf16.msra.mxu0 %v4093
      %4157 = vmatprep.subr.bf16.mxu0 %v4092
      %4158 = vmatpush1.bf16.msra.mxu0 %v4091
      %4159 = vmatprep.subr.bf16.mxu0 %v4090
      %4160 = vmatpush1.bf16.msra.mxu0 %v4089
      %4161 = vmatprep.subr.bf16.mxu0 %v4088
      %4162 = vmatpush1.bf16.msra.mxu0 %v4087
      %4163 = vmatprep.subr.bf16.mxu0 %v4086
      %4164 = vmatpush1.bf16.msra.mxu0 %v4085
      %4165 = vmatprep.subr.bf16.mxu0 %v4116
      %4166 = vmatpush2.bf16.msra.mxu0 %v4115
      %4167 = vmatprep.subr.bf16.mxu0 %v4114
      %4168 = vmatpush2.bf16.msra.mxu0 %v4113
      %4169 = vmatprep.subr.bf16.mxu0 %v4112
      %4170 = vmatpush2.bf16.msra.mxu0 %v4111
      %4171 = vmatprep.subr.bf16.mxu0 %v4110
      %4172 = vmatpush2.bf16.msra.mxu0 %v4109
      %4173 = vmatprep.subr.bf16.mxu0 %v4108
      %4174 = vmatpush2.bf16.msra.mxu0 %v4107
      %4175 = vmatprep.subr.bf16.mxu0 %v4106
      %4176 = vmatpush2.bf16.msra.mxu0 %v4105
      %4177 = vmatprep.subr.bf16.mxu0 %v4104
      %4178 = vmatpush2.bf16.msra.mxu0 %v4103
      %4179 = vmatprep.subr.bf16.mxu0 %v4102
      %4180 = vmatpush2.bf16.msra.mxu0 %v4101
      %4181 = vmatprep.mubr.bf16.mxu0 %v3944
      %4182 = vmatmul.mubr.bf16.gmra.mxu0 %v3941
      %v4183 = vpop.f32.mrf.mxu0
      %v4184 = vadd.f32 0.0, %v4183
      %v4185 = vpop.f32.mrf.mxu0
      %v4186 = vadd.f32 0.0, %v4185
      %v4187 = vpop.f32.mrf.mxu0
      %v4188 = vadd.f32 0.0, %v4187
      %v4189 = vpop.f32.mrf.mxu0
      %v4190 = vadd.f32 0.0, %v4189
      %4191 = vmatprep.mubr.bf16.mxu0 %v3948
      %4192 = vmatmul.mubr.bf16.gmra.mxu0 %v3946
      %v4193 = vpop.f32.mrf.mxu0
      %v4194 = vadd.f32 0.0, %v4193
      %v4195 = vpop.f32.mrf.mxu0
      %v4196 = vadd.f32 0.0, %v4195
      %v4197 = vpop.f32.mrf.mxu0
      %v4198 = vadd.f32 0.0, %v4197
      %v4199 = vpop.f32.mrf.mxu0
      %v4200 = vadd.f32 0.0, %v4199
      %4201 = vmatprep.mubr.bf16.mxu0 %v3952
      %4202 = vmatmul.mubr.bf16.gmra.mxu0 %v3950
      %v4203 = vpop.f32.mrf.mxu0
      %v4204 = vadd.f32 0.0, %v4203
      %v4205 = vpop.f32.mrf.mxu0
      %v4206 = vadd.f32 0.0, %v4205
      %v4207 = vpop.f32.mrf.mxu0
      %v4208 = vadd.f32 0.0, %v4207
      %v4209 = vpop.f32.mrf.mxu0
      %v4210 = vadd.f32 0.0, %v4209
      %4211 = vmatprep.mubr.bf16.mxu0 %v3956
      %4212 = vmatmul.mubr.bf16.gmra.mxu0 %v3954
      %v4213 = vpop.f32.mrf.mxu0
      %v4214 = vadd.f32 0.0, %v4213
      %v4215 = vpop.f32.mrf.mxu0
      %v4216 = vadd.f32 0.0, %v4215
      %v4217 = vpop.f32.mrf.mxu0
      %v4218 = vadd.f32 0.0, %v4217
      %v4219 = vpop.f32.mrf.mxu0
      %v4220 = vadd.f32 0.0, %v4219
      %4221 = vmatprep.mubr.bf16.mxu0 %v3960
      %4222 = vmatmul.mubr.bf16.gmra.mxu0 %v3958
      %v4223 = vpop.f32.mrf.mxu0
      %v4224 = vadd.f32 0.0, %v4223
      %v4225 = vpop.f32.mrf.mxu0
      %v4226 = vadd.f32 0.0, %v4225
      %v4227 = vpop.f32.mrf.mxu0
      %v4228 = vadd.f32 0.0, %v4227
      %v4229 = vpop.f32.mrf.mxu0
      %v4230 = vadd.f32 0.0, %v4229
      %4231 = vmatprep.mubr.bf16.mxu0 %v3964
      %4232 = vmatmul.mubr.bf16.gmra.mxu0 %v3962
      %v4233 = vpop.f32.mrf.mxu0
      %v4234 = vadd.f32 0.0, %v4233
      %v4235 = vpop.f32.mrf.mxu0
      %v4236 = vadd.f32 0.0, %v4235
      %v4237 = vpop.f32.mrf.mxu0
      %v4238 = vadd.f32 0.0, %v4237
      %v4239 = vpop.f32.mrf.mxu0
      %v4240 = vadd.f32 0.0, %v4239
      %4241 = vmatprep.mubr.bf16.mxu0 %v3968
      %4242 = vmatmul.mubr.bf16.gmra.mxu0 %v3966
      %v4243 = vpop.f32.mrf.mxu0
      %v4244 = vadd.f32 0.0, %v4243
      %v4245 = vpop.f32.mrf.mxu0
      %v4246 = vadd.f32 0.0, %v4245
      %v4247 = vpop.f32.mrf.mxu0
      %v4248 = vadd.f32 0.0, %v4247
      %v4249 = vpop.f32.mrf.mxu0
      %v4250 = vadd.f32 0.0, %v4249
      %4251 = vmatprep.mubr.bf16.mxu0 %v3972
      %4252 = vmatmul.mubr.bf16.gmra.mxu0 %v3970
      %v4253 = vpop.f32.mrf.mxu0
      %v4254 = vadd.f32 0.0, %v4253
      %v4255 = vpop.f32.mrf.mxu0
      %v4256 = vadd.f32 0.0, %v4255
      %v4257 = vpop.f32.mrf.mxu0
      %v4258 = vadd.f32 0.0, %v4257
      %v4259 = vpop.f32.mrf.mxu0
      %v4260 = vadd.f32 0.0, %v4259
      %4261 = vdwg.mxu0
      %v4262 = vadd.f32 %v3867, %v4184
      %v4263 = vadd.f32 %v3868, %v4186
      %v4264 = vadd.f32 %v3869, %v4188
      %v4265 = vadd.f32 %v3870, %v4190
      %v4266 = vadd.f32 %v3871, %v4194
      %v4267 = vadd.f32 %v3872, %v4196
      %v4268 = vadd.f32 %v3873, %v4198
      %v4269 = vadd.f32 %v3874, %v4200
      %v4270 = vadd.f32 %v3875, %v4204
      %v4271 = vadd.f32 %v3876, %v4206
      %v4272 = vadd.f32 %v3877, %v4208
      %v4273 = vadd.f32 %v3878, %v4210
      %v4274 = vadd.f32 %v3879, %v4214
      %v4275 = vadd.f32 %v3880, %v4216
      %v4276 = vadd.f32 %v3881, %v4218
      %v4277 = vadd.f32 %v3882, %v4220
      %v4278 = vadd.f32 %v3883, %v4224
      %v4279 = vadd.f32 %v3884, %v4226
      %v4280 = vadd.f32 %v3885, %v4228
      %v4281 = vadd.f32 %v3886, %v4230
      %v4282 = vadd.f32 %v3887, %v4234
      %v4283 = vadd.f32 %v3888, %v4236
      %v4284 = vadd.f32 %v3889, %v4238
      %v4285 = vadd.f32 %v3890, %v4240
      %v4286 = vadd.f32 %v3891, %v4244
      %v4287 = vadd.f32 %v3892, %v4246
      %v4288 = vadd.f32 %v3893, %v4248
      %v4289 = vadd.f32 %v3894, %v4250
      %v4290 = vadd.f32 %v3895, %v4254
      %v4291 = vadd.f32 %v3896, %v4256
      %v4292 = vadd.f32 %v3897, %v4258
      %v4293 = vadd.f32 %v3898, %v4260
      %v4294 = vld [vmem:[%s2] sm:$0x3]
      %v4296 = vlaneseq
      %v4297 = vshrl.u32 %v4296, 7
      %v4298 = vsub.s32 0, %v4297
      %v4299 = vrot.slane %v4294, %v4298
      %v4300 = vlaneseq
      %v4301 = vshrl.u32 %v4300, 7
      %v4302 = vsub.s32 1, %v4301
      %v4303 = vrot.slane %v4294, %v4302
      %v4306 = vmul.f32 %v4262, %v4299
      %v4307 = vmul.f32 %v4263, %v4303
      %v4308 = vmul.f32 %v4264, %v4299
      %v4309 = vmul.f32 %v4265, %v4303
      %v4310 = vmul.f32 %v4266, %v4299
      %v4311 = vmul.f32 %v4267, %v4303
      %v4312 = vmul.f32 %v4268, %v4299
      %v4313 = vmul.f32 %v4269, %v4303
      %v4314 = vmul.f32 %v4270, %v4299
      %v4315 = vmul.f32 %v4271, %v4303
      %v4316 = vmul.f32 %v4272, %v4299
      %v4317 = vmul.f32 %v4273, %v4303
      %v4318 = vmul.f32 %v4274, %v4299
      %v4319 = vmul.f32 %v4275, %v4303
      %v4320 = vmul.f32 %v4276, %v4299
      %v4321 = vmul.f32 %v4277, %v4303
      %v4322 = vmul.f32 %v4278, %v4299
      %v4323 = vmul.f32 %v4279, %v4303
      %v4324 = vmul.f32 %v4280, %v4299
      %v4325 = vmul.f32 %v4281, %v4303
      %v4326 = vmul.f32 %v4282, %v4299
      %v4327 = vmul.f32 %v4283, %v4303
      %v4328 = vmul.f32 %v4284, %v4299
      %v4329 = vmul.f32 %v4285, %v4303
      %v4330 = vmul.f32 %v4286, %v4299
      %v4331 = vmul.f32 %v4287, %v4303
      %v4332 = vmul.f32 %v4288, %v4299
      %v4333 = vmul.f32 %v4289, %v4303
      %v4334 = vmul.f32 %v4290, %v4299
      %v4335 = vmul.f32 %v4291, %v4303
      %v4336 = vmul.f32 %v4292, %v4299
      %v4337 = vmul.f32 %v4293, %v4303
      %v4338 = vld [vmem:[%s3] sm:$0x3]
      %v4340 = vlaneseq
      %v4341 = vshrl.u32 %v4340, 7
      %v4342 = vsub.s32 0, %v4341
      %v4343 = vrot.slane %v4338, %v4342
      %v4344 = vlaneseq
      %v4345 = vshrl.u32 %v4344, 7
      %v4346 = vsub.s32 1, %v4345
      %v4347 = vrot.slane %v4338, %v4346
      %v4350 = vadd.f32 %v4306, %v4343
      %v4351 = vadd.f32 %v4307, %v4347
      %v4352 = vadd.f32 %v4308, %v4343
      %v4353 = vadd.f32 %v4309, %v4347
      %v4354 = vadd.f32 %v4310, %v4343
      %v4355 = vadd.f32 %v4311, %v4347
      %v4356 = vadd.f32 %v4312, %v4343
      %v4357 = vadd.f32 %v4313, %v4347
      %v4358 = vadd.f32 %v4314, %v4343
      %v4359 = vadd.f32 %v4315, %v4347
      %v4360 = vadd.f32 %v4316, %v4343
      %v4361 = vadd.f32 %v4317, %v4347
      %v4362 = vadd.f32 %v4318, %v4343
      %v4363 = vadd.f32 %v4319, %v4347
      %v4364 = vadd.f32 %v4320, %v4343
      %v4365 = vadd.f32 %v4321, %v4347
      %v4366 = vadd.f32 %v4322, %v4343
      %v4367 = vadd.f32 %v4323, %v4347
      %v4368 = vadd.f32 %v4324, %v4343
      %v4369 = vadd.f32 %v4325, %v4347
      %v4370 = vadd.f32 %v4326, %v4343
      %v4371 = vadd.f32 %v4327, %v4347
      %v4372 = vadd.f32 %v4328, %v4343
      %v4373 = vadd.f32 %v4329, %v4347
      %v4374 = vadd.f32 %v4330, %v4343
      %v4375 = vadd.f32 %v4331, %v4347
      %v4376 = vadd.f32 %v4332, %v4343
      %v4377 = vadd.f32 %v4333, %v4347
      %v4378 = vadd.f32 %v4334, %v4343
      %v4379 = vadd.f32 %v4335, %v4347
      %v4380 = vadd.f32 %v4336, %v4343
      %v4381 = vadd.f32 %v4337, %v4347
      %v4382 = vmax.f32 %v4350, 0.0
      %v4383 = vmax.f32 %v4351, 0.0
      %v4384 = vmax.f32 %v4352, 0.0
      %v4385 = vmax.f32 %v4353, 0.0
      %v4386 = vmax.f32 %v4354, 0.0
      %v4387 = vmax.f32 %v4355, 0.0
      %v4388 = vmax.f32 %v4356, 0.0
      %v4389 = vmax.f32 %v4357, 0.0
      %v4390 = vmax.f32 %v4358, 0.0
      %v4391 = vmax.f32 %v4359, 0.0
      %v4392 = vmax.f32 %v4360, 0.0
      %v4393 = vmax.f32 %v4361, 0.0
      %v4394 = vmax.f32 %v4362, 0.0
      %v4395 = vmax.f32 %v4363, 0.0
      %v4396 = vmax.f32 %v4364, 0.0
      %v4397 = vmax.f32 %v4365, 0.0
      %v4398 = vmax.f32 %v4366, 0.0
      %v4399 = vmax.f32 %v4367, 0.0
      %v4400 = vmax.f32 %v4368, 0.0
      %v4401 = vmax.f32 %v4369, 0.0
      %v4402 = vmax.f32 %v4370, 0.0
      %v4403 = vmax.f32 %v4371, 0.0
      %v4404 = vmax.f32 %v4372, 0.0
      %v4405 = vmax.f32 %v4373, 0.0
      %v4406 = vmax.f32 %v4374, 0.0
      %v4407 = vmax.f32 %v4375, 0.0
      %v4408 = vmax.f32 %v4376, 0.0
      %v4409 = vmax.f32 %v4377, 0.0
      %v4410 = vmax.f32 %v4378, 0.0
      %v4411 = vmax.f32 %v4379, 0.0
      %v4412 = vmax.f32 %v4380, 0.0
      %v4413 = vmax.f32 %v4381, 0.0
      %v4414 = vpack.c.bf16 %v4384, %v4382
      %v4415 = vpack.c.bf16 %v4385, %v4383
      %v4416 = vpack.c.bf16 %v4388, %v4386
      %v4417 = vpack.c.bf16 %v4389, %v4387
      %v4418 = vpack.c.bf16 %v4392, %v4390
      %v4419 = vpack.c.bf16 %v4393, %v4391
      %v4420 = vpack.c.bf16 %v4396, %v4394
      %v4421 = vpack.c.bf16 %v4397, %v4395
      %v4422 = vpack.c.bf16 %v4400, %v4398
      %v4423 = vpack.c.bf16 %v4401, %v4399
      %v4424 = vpack.c.bf16 %v4404, %v4402
      %v4425 = vpack.c.bf16 %v4405, %v4403
      %v4426 = vpack.c.bf16 %v4408, %v4406
      %v4427 = vpack.c.bf16 %v4409, %v4407
      %v4428 = vpack.c.bf16 %v4412, %v4410
      %v4429 = vpack.c.bf16 %v4413, %v4411
      %v4430 = vld [vmem:[%s4] sm:$0xf]
      %v4431 = vld [vmem:[%s4 + $0x4] sm:$0xf]
      %v4432 = vld [vmem:[%s4 + $0x8] sm:$0xf]
      %v4433 = vld [vmem:[%s4 + $0xc] sm:$0xf]
      %v4434 = vld [vmem:[%s4 + $0x10] sm:$0xf]
      %v4435 = vld [vmem:[%s4 + $0x14] sm:$0xf]
      %v4436 = vld [vmem:[%s4 + $0x18] sm:$0xf]
      %v4437 = vld [vmem:[%s4 + $0x1c] sm:$0xf]
      %v4438 = vld [vmem:[%s4 + $0x20] sm:$0xf]
      %v4439 = vld [vmem:[%s4 + $0x24] sm:$0xf]
      %v4440 = vld [vmem:[%s4 + $0x28] sm:$0xf]
      %v4441 = vld [vmem:[%s4 + $0x2c] sm:$0xf]
      %v4442 = vld [vmem:[%s4 + $0x30] sm:$0xf]
      %v4443 = vld [vmem:[%s4 + $0x34] sm:$0xf]
      %v4444 = vld [vmem:[%s4 + $0x38] sm:$0xf]
      %v4445 = vld [vmem:[%s4 + $0x3c] sm:$0xf]
      %v4446 = vld [vmem:[%s4 + $0x40] sm:$0xf]
      %v4447 = vld [vmem:[%s4 + $0x44] sm:$0xf]
      %v4448 = vld [vmem:[%s4 + $0x48] sm:$0xf]
      %v4449 = vld [vmem:[%s4 + $0x4c] sm:$0xf]
      %v4450 = vld [vmem:[%s4 + $0x50] sm:$0xf]
      %v4451 = vld [vmem:[%s4 + $0x54] sm:$0xf]
      %v4452 = vld [vmem:[%s4 + $0x58] sm:$0xf]
      %v4453 = vld [vmem:[%s4 + $0x5c] sm:$0xf]
      %v4454 = vld [vmem:[%s4 + $0x60] sm:$0xf]
      %v4455 = vld [vmem:[%s4 + $0x64] sm:$0xf]
      %v4456 = vld [vmem:[%s4 + $0x68] sm:$0xf]
      %v4457 = vld [vmem:[%s4 + $0x6c] sm:$0xf]
      %v4458 = vld [vmem:[%s4 + $0x70] sm:$0xf]
      %v4459 = vld [vmem:[%s4 + $0x74] sm:$0xf]
      %v4460 = vld [vmem:[%s4 + $0x78] sm:$0xf]
      %v4461 = vld [vmem:[%s4 + $0x7c] sm:$0xf]
      %v4462 = vld [vmem:[%s5] sm:$0x1]
      %v4464 = vlaneseq
      %v4465 = vshrl.u32 %v4464, 7
      %v4466 = vsub.s32 0, %v4465
      %v4467 = vrot.slane %v4462, %v4466
      %v4501 = vunpack.c.l.b16 %v4430
      %v4502 = vunpack.c.l.b16 %v4431
      %v4503 = vunpack.c.l.b16 %v4432
      %v4504 = vunpack.c.l.b16 %v4433
      %v4505 = vunpack.c.l.b16 %v4434
      %v4506 = vunpack.c.l.b16 %v4435
      %v4507 = vunpack.c.l.b16 %v4436
      %v4508 = vunpack.c.l.b16 %v4437
      %v4509 = vunpack.c.l.b16 %v4438
      %v4510 = vunpack.c.l.b16 %v4439
      %v4511 = vunpack.c.l.b16 %v4440
      %v4512 = vunpack.c.l.b16 %v4441
      %v4513 = vunpack.c.l.b16 %v4442
      %v4514 = vunpack.c.l.b16 %v4443
      %v4515 = vunpack.c.l.b16 %v4444
      %v4516 = vunpack.c.l.b16 %v4445
      %v4517 = vunpack.c.l.b16 %v4446
      %v4518 = vunpack.c.l.b16 %v4447
      %v4519 = vunpack.c.l.b16 %v4448
      %v4520 = vunpack.c.l.b16 %v4449
      %v4521 = vunpack.c.l.b16 %v4450
      %v4522 = vunpack.c.l.b16 %v4451
      %v4523 = vunpack.c.l.b16 %v4452
      %v4524 = vunpack.c.l.b16 %v4453
      %v4525 = vunpack.c.l.b16 %v4454
      %v4526 = vunpack.c.l.b16 %v4455
      %v4527 = vunpack.c.l.b16 %v4456
      %v4528 = vunpack.c.l.b16 %v4457
      %v4529 = vunpack.c.l.b16 %v4458
      %v4530 = vunpack.c.l.b16 %v4459
      %v4531 = vunpack.c.l.b16 %v4460
      %v4532 = vunpack.c.l.b16 %v4461
      %v4533 = vpack.c.b16 %v4502, %v4501
      %v4534 = vpack.c.b16 %v4504, %v4503
      %v4535 = vpack.c.b16 %v4506, %v4505
      %v4536 = vpack.c.b16 %v4508, %v4507
      %v4537 = vpack.c.b16 %v4510, %v4509
      %v4538 = vpack.c.b16 %v4512, %v4511
      %v4539 = vpack.c.b16 %v4514, %v4513
      %v4540 = vpack.c.b16 %v4516, %v4515
      %v4541 = vpack.c.b16 %v4518, %v4517
      %v4542 = vpack.c.b16 %v4520, %v4519
      %v4543 = vpack.c.b16 %v4522, %v4521
      %v4544 = vpack.c.b16 %v4524, %v4523
      %v4545 = vpack.c.b16 %v4526, %v4525
      %v4546 = vpack.c.b16 %v4528, %v4527
      %v4547 = vpack.c.b16 %v4530, %v4529
      %v4548 = vpack.c.b16 %v4532, %v4531
      %4565 = vmatprep.subr.bf16.mxu0 0
      %4566 = vmatpush1.bf16.msra.mxu0 %v4540
      %4567 = vmatprep.subr.bf16.mxu0 0
      %4568 = vmatpush1.bf16.msra.mxu0 %v4539
      %4569 = vmatprep.subr.bf16.mxu0 0
      %4570 = vmatpush1.bf16.msra.mxu0 %v4538
      %4571 = vmatprep.subr.bf16.mxu0 0
      %4572 = vmatpush1.bf16.msra.mxu0 %v4537
      %4573 = vmatprep.subr.bf16.mxu0 0
      %4574 = vmatpush1.bf16.msra.mxu0 %v4536
      %4575 = vmatprep.subr.bf16.mxu0 0
      %4576 = vmatpush1.bf16.msra.mxu0 %v4535
      %4577 = vmatprep.subr.bf16.mxu0 0
      %4578 = vmatpush1.bf16.msra.mxu0 %v4534
      %4579 = vmatprep.subr.bf16.mxu0 0
      %4580 = vmatpush1.bf16.msra.mxu0 %v4533
      %4581 = vmatprep.subr.bf16.mxu0 0
      %4582 = vmatpush2.bf16.msra.mxu0 %v4548
      %4583 = vmatprep.subr.bf16.mxu0 0
      %4584 = vmatpush2.bf16.msra.mxu0 %v4547
      %4585 = vmatprep.subr.bf16.mxu0 0
      %4586 = vmatpush2.bf16.msra.mxu0 %v4546
      %4587 = vmatprep.subr.bf16.mxu0 0
      %4588 = vmatpush2.bf16.msra.mxu0 %v4545
      %4589 = vmatprep.subr.bf16.mxu0 0
      %4590 = vmatpush2.bf16.msra.mxu0 %v4544
      %4591 = vmatprep.subr.bf16.mxu0 0
      %4592 = vmatpush2.bf16.msra.mxu0 %v4543
      %4593 = vmatprep.subr.bf16.mxu0 0
      %4594 = vmatpush2.bf16.msra.mxu0 %v4542
      %4595 = vmatprep.subr.bf16.mxu0 0
      %4596 = vmatpush2.bf16.msra.mxu0 %v4541
      %4597 = vmatprep.mubr.bf16.mxu0 %v4415
      %4598 = vmatmul.mubr.bf16.gmra.mxu0 %v4414
      %v4599 = vpop.f32.mrf.mxu0
      %v4600 = vadd.f32 %v4467, %v4599
      %v4601 = vpop.f32.mrf.mxu0
      %v4602 = vpop.f32.mrf.mxu0
      %v4603 = vadd.f32 %v4467, %v4602
      %v4604 = vpop.f32.mrf.mxu0
      %4605 = vmatprep.mubr.bf16.mxu0 %v4417
      %4606 = vmatmul.mubr.bf16.gmra.mxu0 %v4416
      %v4607 = vpop.f32.mrf.mxu0
      %v4608 = vadd.f32 %v4467, %v4607
      %v4609 = vpop.f32.mrf.mxu0
      %v4610 = vpop.f32.mrf.mxu0
      %v4611 = vadd.f32 %v4467, %v4610
      %v4612 = vpop.f32.mrf.mxu0
      %4613 = vmatprep.mubr.bf16.mxu0 %v4419
      %4614 = vmatmul.mubr.bf16.gmra.mxu0 %v4418
      %v4615 = vpop.f32.mrf.mxu0
      %v4616 = vadd.f32 %v4467, %v4615
      %v4617 = vpop.f32.mrf.mxu0
      %v4618 = vpop.f32.mrf.mxu0
      %v4619 = vadd.f32 %v4467, %v4618
      %v4620 = vpop.f32.mrf.mxu0
      %4621 = vmatprep.mubr.bf16.mxu0 %v4421
      %4622 = vmatmul.mubr.bf16.gmra.mxu0 %v4420
      %v4623 = vpop.f32.mrf.mxu0
      %v4624 = vadd.f32 %v4467, %v4623
      %v4625 = vpop.f32.mrf.mxu0
      %v4626 = vpop.f32.mrf.mxu0
      %v4627 = vadd.f32 %v4467, %v4626
      %v4628 = vpop.f32.mrf.mxu0
      %4629 = vmatprep.mubr.bf16.mxu0 %v4423
      %4630 = vmatmul.mubr.bf16.gmra.mxu0 %v4422
      %v4631 = vpop.f32.mrf.mxu0
      %v4632 = vadd.f32 %v4467, %v4631
      %v4633 = vpop.f32.mrf.mxu0
      %v4634 = vpop.f32.mrf.mxu0
      %v4635 = vadd.f32 %v4467, %v4634
      %v4636 = vpop.f32.mrf.mxu0
      %4637 = vmatprep.mubr.bf16.mxu0 %v4425
      %4638 = vmatmul.mubr.bf16.gmra.mxu0 %v4424
      %v4639 = vpop.f32.mrf.mxu0
      %v4640 = vadd.f32 %v4467, %v4639
      %v4641 = vpop.f32.mrf.mxu0
      %v4642 = vpop.f32.mrf.mxu0
      %v4643 = vadd.f32 %v4467, %v4642
      %v4644 = vpop.f32.mrf.mxu0
      %4645 = vmatprep.mubr.bf16.mxu0 %v4427
      %4646 = vmatmul.mubr.bf16.gmra.mxu0 %v4426
      %v4647 = vpop.f32.mrf.mxu0
      %v4648 = vadd.f32 %v4467, %v4647
      %v4649 = vpop.f32.mrf.mxu0
      %v4650 = vpop.f32.mrf.mxu0
      %v4651 = vadd.f32 %v4467, %v4650
      %v4652 = vpop.f32.mrf.mxu0
      %4653 = vmatprep.mubr.bf16.mxu0 %v4429
      %4654 = vmatmul.mubr.bf16.gmra.mxu0 %v4428
      %v4655 = vpop.f32.mrf.mxu0
      %v4656 = vadd.f32 %v4467, %v4655
      %v4657 = vpop.f32.mrf.mxu0
      %v4658 = vpop.f32.mrf.mxu0
      %v4659 = vadd.f32 %v4467, %v4658
      %v4660 = vpop.f32.mrf.mxu0
      %4661 = vdwg.mxu0
      %v4662 = vlaneseq
      %v4663 = vand.u32 %v4662, 127
      %vm4664 = vcmp.lt.s32.totalorder %v4663, 3
      %v4665 = vxor.u32 %v4600, 2147483648
      %v4666 = vxor.u32 %v4603, 2147483648
      %v4667 = vxor.u32 %v4608, 2147483648
      %v4668 = vxor.u32 %v4611, 2147483648
      %v4669 = vxor.u32 %v4616, 2147483648
      %v4670 = vxor.u32 %v4619, 2147483648
      %v4671 = vxor.u32 %v4624, 2147483648
      %v4672 = vxor.u32 %v4627, 2147483648
      %v4673 = vxor.u32 %v4632, 2147483648
      %v4674 = vxor.u32 %v4635, 2147483648
      %v4675 = vxor.u32 %v4640, 2147483648
      %v4676 = vxor.u32 %v4643, 2147483648
      %v4677 = vxor.u32 %v4648, 2147483648
      %v4678 = vxor.u32 %v4651, 2147483648
      %v4679 = vxor.u32 %v4656, 2147483648
      %v4680 = vxor.u32 %v4659, 2147483648
      %v4681 = vmul.f32 %v4665, 1.442695
      %v4682 = vpow.pop %v4681
      %v4683 = vmul.f32 %v4666, 1.442695
      %v4684 = vpow.pop %v4683
      %v4685 = vmul.f32 %v4667, 1.442695
      %v4686 = vpow.pop %v4685
      %v4687 = vmul.f32 %v4668, 1.442695
      %v4688 = vpow.pop %v4687
      %v4689 = vmul.f32 %v4669, 1.442695
      %v4690 = vpow.pop %v4689
      %v4691 = vmul.f32 %v4670, 1.442695
      %v4692 = vpow.pop %v4691
      %v4693 = vmul.f32 %v4671, 1.442695
      %v4694 = vpow.pop %v4693
      %v4695 = vmul.f32 %v4672, 1.442695
      %v4696 = vpow.pop %v4695
      %v4697 = vmul.f32 %v4673, 1.442695
      %v4698 = vpow.pop %v4697
      %v4699 = vmul.f32 %v4674, 1.442695
      %v4700 = vpow.pop %v4699
      %v4701 = vmul.f32 %v4675, 1.442695
      %v4702 = vpow.pop %v4701
      %v4703 = vmul.f32 %v4676, 1.442695
      %v4704 = vpow.pop %v4703
      %v4705 = vmul.f32 %v4677, 1.442695
      %v4706 = vpow.pop %v4705
      %v4707 = vmul.f32 %v4678, 1.442695
      %v4708 = vpow.pop %v4707
      %v4709 = vmul.f32 %v4679, 1.442695
      %v4710 = vpow.pop %v4709
      %v4711 = vmul.f32 %v4680, 1.442695
      %v4712 = vpow.pop %v4711
      %v4713 = vadd.f32 %v4682, 1.0
      %v4714 = vadd.f32 %v4684, 1.0
      %v4715 = vadd.f32 %v4686, 1.0
      %v4716 = vadd.f32 %v4688, 1.0
      %v4717 = vadd.f32 %v4690, 1.0
      %v4718 = vadd.f32 %v4692, 1.0
      %v4719 = vadd.f32 %v4694, 1.0
      %v4720 = vadd.f32 %v4696, 1.0
      %v4721 = vadd.f32 %v4698, 1.0
      %v4722 = vadd.f32 %v4700, 1.0
      %v4723 = vadd.f32 %v4702, 1.0
      %v4724 = vadd.f32 %v4704, 1.0
      %v4725 = vadd.f32 %v4706, 1.0
      %v4726 = vadd.f32 %v4708, 1.0
      %v4727 = vadd.f32 %v4710, 1.0
      %v4728 = vadd.f32 %v4712, 1.0
      %v4729 = vrcp.pop %v4713
      %v4730 = vmul.f32 1.0, %v4729
      %v4731 = vrcp.pop %v4714
      %v4732 = vmul.f32 1.0, %v4731
      %v4733 = vrcp.pop %v4715
      %v4734 = vmul.f32 1.0, %v4733
      %v4735 = vrcp.pop %v4716
      %v4736 = vmul.f32 1.0, %v4735
      %v4737 = vrcp.pop %v4717
      %v4738 = vmul.f32 1.0, %v4737
      %v4739 = vrcp.pop %v4718
      %v4740 = vmul.f32 1.0, %v4739
      %v4741 = vrcp.pop %v4719
      %v4742 = vmul.f32 1.0, %v4741
      %v4743 = vrcp.pop %v4720
      %v4744 = vmul.f32 1.0, %v4743
      %v4745 = vrcp.pop %v4721
      %v4746 = vmul.f32 1.0, %v4745
      %v4747 = vrcp.pop %v4722
      %v4748 = vmul.f32 1.0, %v4747
      %v4749 = vrcp.pop %v4723
      %v4750 = vmul.f32 1.0, %v4749
      %v4751 = vrcp.pop %v4724
      %v4752 = vmul.f32 1.0, %v4751
      %v4753 = vrcp.pop %v4725
      %v4754 = vmul.f32 1.0, %v4753
      %v4755 = vrcp.pop %v4726
      %v4756 = vmul.f32 1.0, %v4755
      %v4757 = vrcp.pop %v4727
      %v4758 = vmul.f32 1.0, %v4757
      %v4759 = vrcp.pop %v4728
      %v4760 = vmul.f32 1.0, %v4759
      %v4761 = vsel %vm4664, %v4730, %v4600
      %v4762 = vsel %vm4664, %v4732, %v4603
      %v4763 = vsel %vm4664, %v4734, %v4608
      %v4764 = vsel %vm4664, %v4736, %v4611
      %v4765 = vsel %vm4664, %v4738, %v4616
      %v4766 = vsel %vm4664, %v4740, %v4619
      %v4767 = vsel %vm4664, %v4742, %v4624
      %v4768 = vsel %vm4664, %v4744, %v4627
      %v4769 = vsel %vm4664, %v4746, %v4632
      %v4770 = vsel %vm4664, %v4748, %v4635
      %v4771 = vsel %vm4664, %v4750, %v4640
      %v4772 = vsel %vm4664, %v4752, %v4643
      %v4773 = vsel %vm4664, %v4754, %v4648
      %v4774 = vsel %vm4664, %v4756, %v4651
      %v4775 = vsel %vm4664, %v4758, %v4656
      %v4776 = vsel %vm4664, %v4760, %v4659
      %4777 = vst [vmem:[%s251] sm:$0xff] %v4761
      %4778 = vst [vmem:[%s251 + $0x8] sm:$0xff] %v4762
      %4779 = vst [vmem:[%s251 + $0x10] sm:$0xff] %v4763
      %4780 = vst [vmem:[%s251 + $0x18] sm:$0xff] %v4764
      %4781 = vst [vmem:[%s251 + $0x20] sm:$0xff] %v4765
      %4782 = vst [vmem:[%s251 + $0x28] sm:$0xff] %v4766
      %4783 = vst [vmem:[%s251 + $0x30] sm:$0xff] %v4767
      %4784 = vst [vmem:[%s251 + $0x38] sm:$0xff] %v4768
      %4785 = vst [vmem:[%s251 + $0x40] sm:$0xff] %v4769
      %4786 = vst [vmem:[%s251 + $0x48] sm:$0xff] %v4770
      %4787 = vst [vmem:[%s251 + $0x50] sm:$0xff] %v4771
      %4788 = vst [vmem:[%s251 + $0x58] sm:$0xff] %v4772
      %4789 = vst [vmem:[%s251 + $0x60] sm:$0xff] %v4773
      %4790 = vst [vmem:[%s251 + $0x68] sm:$0xff] %v4774
      %4791 = vst [vmem:[%s251 + $0x70] sm:$0xff] %v4775
      %4792 = vst [vmem:[%s251 + $0x78] sm:$0xff] %v4776
      %v4793 = vld [vmem:[%s246 + $0x80] sm:$0xff]
      %v4794 = vld [vmem:[%s246 + $0x88] sm:$0xff]
      %v4795 = vld [vmem:[%s246 + $0x90] sm:$0xff]
      %v4796 = vld [vmem:[%s246 + $0x98] sm:$0xff]
      %v4797 = vld [vmem:[%s246 + $0xa0] sm:$0xff]
      %v4798 = vld [vmem:[%s246 + $0xa8] sm:$0xff]
      %v4799 = vld [vmem:[%s246 + $0xb0] sm:$0xff]
      %v4800 = vld [vmem:[%s246 + $0xb8] sm:$0xff]
      %v4801 = vld [vmem:[%s246 + $0xc0] sm:$0xff]
      %v4802 = vld [vmem:[%s246 + $0xc8] sm:$0xff]
      %v4803 = vld [vmem:[%s246 + $0xd0] sm:$0xff]
      %v4804 = vld [vmem:[%s246 + $0xd8] sm:$0xff]
      %v4805 = vld [vmem:[%s246 + $0xe0] sm:$0xff]
      %v4806 = vld [vmem:[%s246 + $0xe8] sm:$0xff]
      %v4807 = vld [vmem:[%s246 + $0xf0] sm:$0xff]
      %v4808 = vld [vmem:[%s246 + $0xf8] sm:$0xff]
      %v4809 = vld [vmem:[%s1] sm:$0xff]
      %v4810 = vld [vmem:[%s1 + $0x8] sm:$0xff]
      %v4811 = vld [vmem:[%s1 + $0x10] sm:$0xff]
      %v4812 = vld [vmem:[%s1 + $0x18] sm:$0xff]
      %v4813 = vld [vmem:[%s1 + $0x20] sm:$0xff]
      %v4814 = vld [vmem:[%s1 + $0x28] sm:$0xff]
      %v4815 = vld [vmem:[%s1 + $0x30] sm:$0xff]
      %v4816 = vld [vmem:[%s1 + $0x38] sm:$0xff]
      %v4817 = vld [vmem:[%s1 + $0x40] sm:$0xff]
      %v4818 = vld [vmem:[%s1 + $0x48] sm:$0xff]
      %v4819 = vld [vmem:[%s1 + $0x50] sm:$0xff]
      %v4820 = vld [vmem:[%s1 + $0x58] sm:$0xff]
      %v4821 = vld [vmem:[%s1 + $0x60] sm:$0xff]
      %v4822 = vld [vmem:[%s1 + $0x68] sm:$0xff]
      %v4823 = vld [vmem:[%s1 + $0x70] sm:$0xff]
      %v4824 = vld [vmem:[%s1 + $0x78] sm:$0xff]
      %v4825 = vld [vmem:[%s1 + $0x80] sm:$0xff]
      %v4826 = vld [vmem:[%s1 + $0x88] sm:$0xff]
      %v4827 = vld [vmem:[%s1 + $0x90] sm:$0xff]
      %v4828 = vld [vmem:[%s1 + $0x98] sm:$0xff]
      %v4829 = vld [vmem:[%s1 + $0xa0] sm:$0xff]
      %v4830 = vld [vmem:[%s1 + $0xa8] sm:$0xff]
      %v4831 = vld [vmem:[%s1 + $0xb0] sm:$0xff]
      %v4832 = vld [vmem:[%s1 + $0xb8] sm:$0xff]
      %v4833 = vld [vmem:[%s1 + $0xc0] sm:$0xff]
      %v4834 = vld [vmem:[%s1 + $0xc8] sm:$0xff]
      %v4835 = vld [vmem:[%s1 + $0xd0] sm:$0xff]
      %v4836 = vld [vmem:[%s1 + $0xd8] sm:$0xff]
      %v4837 = vld [vmem:[%s1 + $0xe0] sm:$0xff]
      %v4838 = vld [vmem:[%s1 + $0xe8] sm:$0xff]
      %v4839 = vld [vmem:[%s1 + $0xf0] sm:$0xff]
      %v4840 = vld [vmem:[%s1 + $0xf8] sm:$0xff]
      %v4841 = vld [vmem:[%s246 + $0x100] sm:$0x11]
      %v4842 = vld [vmem:[%s302] sm:$0xff]
      %v4843 = vld [vmem:[%s302 + $0x8] sm:$0xff]
      %v4844 = vld [vmem:[%s302 + $0x10] sm:$0xff]
      %v4845 = vld [vmem:[%s302 + $0x18] sm:$0xff]
      %v4846 = vld [vmem:[%s302 + $0x20] sm:$0xff]
      %v4847 = vld [vmem:[%s302 + $0x28] sm:$0xff]
      %v4848 = vld [vmem:[%s302 + $0x30] sm:$0xff]
      %v4849 = vld [vmem:[%s302 + $0x38] sm:$0xff]
      %v4850 = vld [vmem:[%s302 + $0x40] sm:$0xff]
      %v4851 = vld [vmem:[%s302 + $0x48] sm:$0xff]
      %v4852 = vld [vmem:[%s302 + $0x50] sm:$0xff]
      %v4853 = vld [vmem:[%s302 + $0x58] sm:$0xff]
      %v4854 = vld [vmem:[%s302 + $0x60] sm:$0xff]
      %v4855 = vld [vmem:[%s302 + $0x68] sm:$0xff]
      %v4856 = vld [vmem:[%s302 + $0x70] sm:$0xff]
      %v4857 = vld [vmem:[%s302 + $0x78] sm:$0xff]
      %v4858 = vld [vmem:[%s302 + $0x80] sm:$0xff]
      %v4859 = vld [vmem:[%s302 + $0x88] sm:$0xff]
      %v4860 = vld [vmem:[%s302 + $0x90] sm:$0xff]
      %v4861 = vld [vmem:[%s302 + $0x98] sm:$0xff]
      %v4862 = vld [vmem:[%s302 + $0xa0] sm:$0xff]
      %v4863 = vld [vmem:[%s302 + $0xa8] sm:$0xff]
      %v4864 = vld [vmem:[%s302 + $0xb0] sm:$0xff]
      %v4865 = vld [vmem:[%s302 + $0xb8] sm:$0xff]
      %v4866 = vld [vmem:[%s302 + $0xc0] sm:$0xff]
      %v4867 = vld [vmem:[%s302 + $0xc8] sm:$0xff]
      %v4868 = vld [vmem:[%s302 + $0xd0] sm:$0xff]
      %v4869 = vld [vmem:[%s302 + $0xd8] sm:$0xff]
      %v4870 = vld [vmem:[%s302 + $0xe0] sm:$0xff]
      %v4871 = vld [vmem:[%s302 + $0xe8] sm:$0xff]
      %v4872 = vld [vmem:[%s302 + $0xf0] sm:$0xff]
      %v4873 = vld [vmem:[%s302 + $0xf8] sm:$0xff]
      %v4891 = vunpack.c.l.b16 %v4793
      %v4892 = vunpack.c.h.b16 %v4793
      %v4893 = vunpack.c.l.b16 %v4794
      %v4894 = vunpack.c.h.b16 %v4794
      %v4895 = vunpack.c.l.b16 %v4795
      %v4896 = vunpack.c.h.b16 %v4795
      %v4897 = vunpack.c.l.b16 %v4796
      %v4898 = vunpack.c.h.b16 %v4796
      %v4899 = vunpack.c.l.b16 %v4797
      %v4900 = vunpack.c.h.b16 %v4797
      %v4901 = vunpack.c.l.b16 %v4798
      %v4902 = vunpack.c.h.b16 %v4798
      %v4903 = vunpack.c.l.b16 %v4799
      %v4904 = vunpack.c.h.b16 %v4799
      %v4905 = vunpack.c.l.b16 %v4800
      %v4906 = vunpack.c.h.b16 %v4800
      %v4907 = vunpack.c.l.b16 %v4801
      %v4908 = vunpack.c.h.b16 %v4801
      %v4909 = vunpack.c.l.b16 %v4802
      %v4910 = vunpack.c.h.b16 %v4802
      %v4911 = vunpack.c.l.b16 %v4803
      %v4912 = vunpack.c.h.b16 %v4803
      %v4913 = vunpack.c.l.b16 %v4804
      %v4914 = vunpack.c.h.b16 %v4804
      %v4915 = vunpack.c.l.b16 %v4805
      %v4916 = vunpack.c.h.b16 %v4805
      %v4917 = vunpack.c.l.b16 %v4806
      %v4918 = vunpack.c.h.b16 %v4806
      %v4919 = vunpack.c.l.b16 %v4807
      %v4920 = vunpack.c.h.b16 %v4807
      %v4921 = vunpack.c.l.b16 %v4808
      %v4922 = vunpack.c.h.b16 %v4808
      %v4923 = vunpack.c.l.b16 %v4841
      %v4924 = vunpack.c.h.b16 %v4841
      %v4925 = vpack.c.b16 %v4893, %v4891
      %v4926 = vpack.c.b16 %v4894, %v4892
      %v4927 = vpack.c.b16 %v4897, %v4895
      %v4928 = vpack.c.b16 %v4898, %v4896
      %v4929 = vpack.c.b16 %v4901, %v4899
      %v4930 = vpack.c.b16 %v4902, %v4900
      %v4931 = vpack.c.b16 %v4905, %v4903
      %v4932 = vpack.c.b16 %v4906, %v4904
      %v4933 = vpack.c.b16 %v4909, %v4907
      %v4934 = vpack.c.b16 %v4910, %v4908
      %v4935 = vpack.c.b16 %v4913, %v4911
      %v4936 = vpack.c.b16 %v4914, %v4912
      %v4937 = vpack.c.b16 %v4917, %v4915
      %v4938 = vpack.c.b16 %v4918, %v4916
      %v4939 = vpack.c.b16 %v4921, %v4919
      %v4940 = vpack.c.b16 %v4922, %v4920
      %v4941 = vpack.c.b16 %v4923, %v4923
      %v4942 = vpack.c.b16 %v4924, %v4924
      %v4944 = vshrl.u32 %v4925, 16
      %v4946 = vshll.u32 %v4925, 16
      %v4948 = vrot.slane %v4946, 1
      %v4949 = vor.u32 %v4944, %v4948
      %v4951 = vshll.u32 %v4927, 16
      %v4953 = vrot.slane %v4951, 1
      %v4954 = vsel %vm404, %v4949, %v4953
      %v4956 = vshrl.u32 %v4926, 16
      %v4958 = vshll.u32 %v4926, 16
      %v4960 = vrot.slane %v4958, 1
      %v4961 = vor.u32 %v4956, %v4960
      %v4963 = vshll.u32 %v4928, 16
      %v4965 = vrot.slane %v4963, 1
      %v4966 = vsel %vm404, %v4961, %v4965
      %v4967 = vshrl.u32 %v4927, 16
      %v4969 = vor.u32 %v4967, %v4953
      %v4971 = vshll.u32 %v4929, 16
      %v4973 = vrot.slane %v4971, 1
      %v4974 = vsel %vm404, %v4969, %v4973
      %v4975 = vshrl.u32 %v4928, 16
      %v4977 = vor.u32 %v4975, %v4965
      %v4979 = vshll.u32 %v4930, 16
      %v4981 = vrot.slane %v4979, 1
      %v4982 = vsel %vm404, %v4977, %v4981
      %v4983 = vshrl.u32 %v4929, 16
      %v4985 = vor.u32 %v4983, %v4973
      %v4987 = vshll.u32 %v4931, 16
      %v4989 = vrot.slane %v4987, 1
      %v4990 = vsel %vm404, %v4985, %v4989
      %v4991 = vshrl.u32 %v4930, 16
      %v4993 = vor.u32 %v4991, %v4981
      %v4995 = vshll.u32 %v4932, 16
      %v4997 = vrot.slane %v4995, 1
      %v4998 = vsel %vm404, %v4993, %v4997
      %v4999 = vshrl.u32 %v4931, 16
      %v5001 = vor.u32 %v4999, %v4989
      %v5003 = vshll.u32 %v4933, 16
      %v5005 = vrot.slane %v5003, 1
      %v5006 = vsel %vm404, %v5001, %v5005
      %v5007 = vshrl.u32 %v4932, 16
      %v5009 = vor.u32 %v5007, %v4997
      %v5011 = vshll.u32 %v4934, 16
      %v5013 = vrot.slane %v5011, 1
      %v5014 = vsel %vm404, %v5009, %v5013
      %v5015 = vshrl.u32 %v4933, 16
      %v5017 = vor.u32 %v5015, %v5005
      %v5019 = vshll.u32 %v4935, 16
      %v5021 = vrot.slane %v5019, 1
      %v5022 = vsel %vm404, %v5017, %v5021
      %v5023 = vshrl.u32 %v4934, 16
      %v5025 = vor.u32 %v5023, %v5013
      %v5027 = vshll.u32 %v4936, 16
      %v5029 = vrot.slane %v5027, 1
      %v5030 = vsel %vm404, %v5025, %v5029
      %v5031 = vshrl.u32 %v4935, 16
      %v5033 = vor.u32 %v5031, %v5021
      %v5035 = vshll.u32 %v4937, 16
      %v5037 = vrot.slane %v5035, 1
      %v5038 = vsel %vm404, %v5033, %v5037
      %v5039 = vshrl.u32 %v4936, 16
      %v5041 = vor.u32 %v5039, %v5029
      %v5043 = vshll.u32 %v4938, 16
      %v5045 = vrot.slane %v5043, 1
      %v5046 = vsel %vm404, %v5041, %v5045
      %v5047 = vshrl.u32 %v4937, 16
      %v5049 = vor.u32 %v5047, %v5037
      %v5051 = vshll.u32 %v4939, 16
      %v5053 = vrot.slane %v5051, 1
      %v5054 = vsel %vm404, %v5049, %v5053
      %v5055 = vshrl.u32 %v4938, 16
      %v5057 = vor.u32 %v5055, %v5045
      %v5059 = vshll.u32 %v4940, 16
      %v5061 = vrot.slane %v5059, 1
      %v5062 = vsel %vm404, %v5057, %v5061
      %v5063 = vshrl.u32 %v4939, 16
      %v5065 = vor.u32 %v5063, %v5053
      %v5067 = vshll.u32 %v4941, 16
      %v5069 = vrot.slane %v5067, 1
      %v5070 = vsel %vm404, %v5065, %v5069
      %v5071 = vshrl.u32 %v4940, 16
      %v5073 = vor.u32 %v5071, %v5061
      %v5075 = vshll.u32 %v4942, 16
      %v5077 = vrot.slane %v5075, 1
      %v5078 = vsel %vm404, %v5073, %v5077
      %v5127 = vunpack.c.l.b16 %v4842
      %v5128 = vunpack.c.h.b16 %v4842
      %v5129 = vunpack.c.l.b16 %v4843
      %v5130 = vunpack.c.h.b16 %v4843
      %v5131 = vunpack.c.l.b16 %v4844
      %v5132 = vunpack.c.h.b16 %v4844
      %v5133 = vunpack.c.l.b16 %v4845
      %v5134 = vunpack.c.h.b16 %v4845
      %v5135 = vunpack.c.l.b16 %v4846
      %v5136 = vunpack.c.h.b16 %v4846
      %v5137 = vunpack.c.l.b16 %v4847
      %v5138 = vunpack.c.h.b16 %v4847
      %v5139 = vunpack.c.l.b16 %v4848
      %v5140 = vunpack.c.h.b16 %v4848
      %v5141 = vunpack.c.l.b16 %v4849
      %v5142 = vunpack.c.h.b16 %v4849
      %v5143 = vunpack.c.l.b16 %v4850
      %v5144 = vunpack.c.h.b16 %v4850
      %v5145 = vunpack.c.l.b16 %v4851
      %v5146 = vunpack.c.h.b16 %v4851
      %v5147 = vunpack.c.l.b16 %v4852
      %v5148 = vunpack.c.h.b16 %v4852
      %v5149 = vunpack.c.l.b16 %v4853
      %v5150 = vunpack.c.h.b16 %v4853
      %v5151 = vunpack.c.l.b16 %v4854
      %v5152 = vunpack.c.h.b16 %v4854
      %v5153 = vunpack.c.l.b16 %v4855
      %v5154 = vunpack.c.h.b16 %v4855
      %v5155 = vunpack.c.l.b16 %v4856
      %v5156 = vunpack.c.h.b16 %v4856
      %v5157 = vunpack.c.l.b16 %v4857
      %v5158 = vunpack.c.h.b16 %v4857
      %v5159 = vunpack.c.l.b16 %v4858
      %v5160 = vunpack.c.h.b16 %v4858
      %v5161 = vunpack.c.l.b16 %v4859
      %v5162 = vunpack.c.h.b16 %v4859
      %v5163 = vunpack.c.l.b16 %v4860
      %v5164 = vunpack.c.h.b16 %v4860
      %v5165 = vunpack.c.l.b16 %v4861
      %v5166 = vunpack.c.h.b16 %v4861
      %v5167 = vunpack.c.l.b16 %v4862
      %v5168 = vunpack.c.h.b16 %v4862
      %v5169 = vunpack.c.l.b16 %v4863
      %v5170 = vunpack.c.h.b16 %v4863
      %v5171 = vunpack.c.l.b16 %v4864
      %v5172 = vunpack.c.h.b16 %v4864
      %v5173 = vunpack.c.l.b16 %v4865
      %v5174 = vunpack.c.h.b16 %v4865
      %v5175 = vunpack.c.l.b16 %v4866
      %v5176 = vunpack.c.h.b16 %v4866
      %v5177 = vunpack.c.l.b16 %v4867
      %v5178 = vunpack.c.h.b16 %v4867
      %v5179 = vunpack.c.l.b16 %v4868
      %v5180 = vunpack.c.h.b16 %v4868
      %v5181 = vunpack.c.l.b16 %v4869
      %v5182 = vunpack.c.h.b16 %v4869
      %v5183 = vunpack.c.l.b16 %v4870
      %v5184 = vunpack.c.h.b16 %v4870
      %v5185 = vunpack.c.l.b16 %v4871
      %v5186 = vunpack.c.h.b16 %v4871
      %v5187 = vunpack.c.l.b16 %v4872
      %v5188 = vunpack.c.h.b16 %v4872
      %v5189 = vunpack.c.l.b16 %v4873
      %v5190 = vunpack.c.h.b16 %v4873
      %v5191 = vpack.c.b16 %v5129, %v5127
      %v5192 = vpack.c.b16 %v5130, %v5128
      %v5193 = vpack.c.b16 %v5133, %v5131
      %v5194 = vpack.c.b16 %v5134, %v5132
      %v5195 = vpack.c.b16 %v5137, %v5135
      %v5196 = vpack.c.b16 %v5138, %v5136
      %v5197 = vpack.c.b16 %v5141, %v5139
      %v5198 = vpack.c.b16 %v5142, %v5140
      %v5199 = vpack.c.b16 %v5145, %v5143
      %v5200 = vpack.c.b16 %v5146, %v5144
      %v5201 = vpack.c.b16 %v5149, %v5147
      %v5202 = vpack.c.b16 %v5150, %v5148
      %v5203 = vpack.c.b16 %v5153, %v5151
      %v5204 = vpack.c.b16 %v5154, %v5152
      %v5205 = vpack.c.b16 %v5157, %v5155
      %v5206 = vpack.c.b16 %v5158, %v5156
      %v5207 = vpack.c.b16 %v5161, %v5159
      %v5208 = vpack.c.b16 %v5162, %v5160
      %v5209 = vpack.c.b16 %v5165, %v5163
      %v5210 = vpack.c.b16 %v5166, %v5164
      %v5211 = vpack.c.b16 %v5169, %v5167
      %v5212 = vpack.c.b16 %v5170, %v5168
      %v5213 = vpack.c.b16 %v5173, %v5171
      %v5214 = vpack.c.b16 %v5174, %v5172
      %v5215 = vpack.c.b16 %v5177, %v5175
      %v5216 = vpack.c.b16 %v5178, %v5176
      %v5217 = vpack.c.b16 %v5181, %v5179
      %v5218 = vpack.c.b16 %v5182, %v5180
      %v5219 = vpack.c.b16 %v5185, %v5183
      %v5220 = vpack.c.b16 %v5186, %v5184
      %v5221 = vpack.c.b16 %v5189, %v5187
      %v5222 = vpack.c.b16 %v5190, %v5188
      %5255 = vmatprep.subr.bf16.mxu0 %v5206
      %5256 = vmatpush1.bf16.msra.mxu0 %v5205
      %5257 = vmatprep.subr.bf16.mxu0 %v5204
      %5258 = vmatpush1.bf16.msra.mxu0 %v5203
      %5259 = vmatprep.subr.bf16.mxu0 %v5202
      %5260 = vmatpush1.bf16.msra.mxu0 %v5201
      %5261 = vmatprep.subr.bf16.mxu0 %v5200
      %5262 = vmatpush1.bf16.msra.mxu0 %v5199
      %5263 = vmatprep.subr.bf16.mxu0 %v5198
      %5264 = vmatpush1.bf16.msra.mxu0 %v5197
      %5265 = vmatprep.subr.bf16.mxu0 %v5196
      %5266 = vmatpush1.bf16.msra.mxu0 %v5195
      %5267 = vmatprep.subr.bf16.mxu0 %v5194
      %5268 = vmatpush1.bf16.msra.mxu0 %v5193
      %5269 = vmatprep.subr.bf16.mxu0 %v5192
      %5270 = vmatpush1.bf16.msra.mxu0 %v5191
      %5271 = vmatprep.subr.bf16.mxu0 %v5222
      %5272 = vmatpush2.bf16.msra.mxu0 %v5221
      %5273 = vmatprep.subr.bf16.mxu0 %v5220
      %5274 = vmatpush2.bf16.msra.mxu0 %v5219
      %5275 = vmatprep.subr.bf16.mxu0 %v5218
      %5276 = vmatpush2.bf16.msra.mxu0 %v5217
      %5277 = vmatprep.subr.bf16.mxu0 %v5216
      %5278 = vmatpush2.bf16.msra.mxu0 %v5215
      %5279 = vmatprep.subr.bf16.mxu0 %v5214
      %5280 = vmatpush2.bf16.msra.mxu0 %v5213
      %5281 = vmatprep.subr.bf16.mxu0 %v5212
      %5282 = vmatpush2.bf16.msra.mxu0 %v5211
      %5283 = vmatprep.subr.bf16.mxu0 %v5210
      %5284 = vmatpush2.bf16.msra.mxu0 %v5209
      %5285 = vmatprep.subr.bf16.mxu0 %v5208
      %5286 = vmatpush2.bf16.msra.mxu0 %v5207
      %5287 = vmatprep.mubr.bf16.mxu0 %v4966
      %5288 = vmatmul.mubr.bf16.gmra.mxu0 %v4954
      %v5289 = vpop.f32.mrf.mxu0
      %v5290 = vadd.f32 0.0, %v5289
      %v5291 = vpop.f32.mrf.mxu0
      %v5292 = vadd.f32 0.0, %v5291
      %v5293 = vpop.f32.mrf.mxu0
      %v5294 = vadd.f32 0.0, %v5293
      %v5295 = vpop.f32.mrf.mxu0
      %v5296 = vadd.f32 0.0, %v5295
      %5297 = vmatprep.mubr.bf16.mxu0 %v4982
      %5298 = vmatmul.mubr.bf16.gmra.mxu0 %v4974
      %v5299 = vpop.f32.mrf.mxu0
      %v5300 = vadd.f32 0.0, %v5299
      %v5301 = vpop.f32.mrf.mxu0
      %v5302 = vadd.f32 0.0, %v5301
      %v5303 = vpop.f32.mrf.mxu0
      %v5304 = vadd.f32 0.0, %v5303
      %v5305 = vpop.f32.mrf.mxu0
      %v5306 = vadd.f32 0.0, %v5305
      %5307 = vmatprep.mubr.bf16.mxu0 %v4998
      %5308 = vmatmul.mubr.bf16.gmra.mxu0 %v4990
      %v5309 = vpop.f32.mrf.mxu0
      %v5310 = vadd.f32 0.0, %v5309
      %v5311 = vpop.f32.mrf.mxu0
      %v5312 = vadd.f32 0.0, %v5311
      %v5313 = vpop.f32.mrf.mxu0
      %v5314 = vadd.f32 0.0, %v5313
      %v5315 = vpop.f32.mrf.mxu0
      %v5316 = vadd.f32 0.0, %v5315
      %5317 = vmatprep.mubr.bf16.mxu0 %v5014
      %5318 = vmatmul.mubr.bf16.gmra.mxu0 %v5006
      %v5319 = vpop.f32.mrf.mxu0
      %v5320 = vadd.f32 0.0, %v5319
      %v5321 = vpop.f32.mrf.mxu0
      %v5322 = vadd.f32 0.0, %v5321
      %v5323 = vpop.f32.mrf.mxu0
      %v5324 = vadd.f32 0.0, %v5323
      %v5325 = vpop.f32.mrf.mxu0
      %v5326 = vadd.f32 0.0, %v5325
      %5327 = vmatprep.mubr.bf16.mxu0 %v5030
      %5328 = vmatmul.mubr.bf16.gmra.mxu0 %v5022
      %v5329 = vpop.f32.mrf.mxu0
      %v5330 = vadd.f32 0.0, %v5329
      %v5331 = vpop.f32.mrf.mxu0
      %v5332 = vadd.f32 0.0, %v5331
      %v5333 = vpop.f32.mrf.mxu0
      %v5334 = vadd.f32 0.0, %v5333
      %v5335 = vpop.f32.mrf.mxu0
      %v5336 = vadd.f32 0.0, %v5335
      %5337 = vmatprep.mubr.bf16.mxu0 %v5046
      %5338 = vmatmul.mubr.bf16.gmra.mxu0 %v5038
      %v5339 = vpop.f32.mrf.mxu0
      %v5340 = vadd.f32 0.0, %v5339
      %v5341 = vpop.f32.mrf.mxu0
      %v5342 = vadd.f32 0.0, %v5341
      %v5343 = vpop.f32.mrf.mxu0
      %v5344 = vadd.f32 0.0, %v5343
      %v5345 = vpop.f32.mrf.mxu0
      %v5346 = vadd.f32 0.0, %v5345
      %5347 = vmatprep.mubr.bf16.mxu0 %v5062
      %5348 = vmatmul.mubr.bf16.gmra.mxu0 %v5054
      %v5349 = vpop.f32.mrf.mxu0
      %v5350 = vadd.f32 0.0, %v5349
      %v5351 = vpop.f32.mrf.mxu0
      %v5352 = vadd.f32 0.0, %v5351
      %v5353 = vpop.f32.mrf.mxu0
      %v5354 = vadd.f32 0.0, %v5353
      %v5355 = vpop.f32.mrf.mxu0
      %v5356 = vadd.f32 0.0, %v5355
      %5357 = vmatprep.mubr.bf16.mxu0 %v5078
      %5358 = vmatmul.mubr.bf16.gmra.mxu0 %v5070
      %v5359 = vpop.f32.mrf.mxu0
      %v5360 = vadd.f32 0.0, %v5359
      %v5361 = vpop.f32.mrf.mxu0
      %v5362 = vadd.f32 0.0, %v5361
      %v5363 = vpop.f32.mrf.mxu0
      %v5364 = vadd.f32 0.0, %v5363
      %v5365 = vpop.f32.mrf.mxu0
      %v5366 = vadd.f32 0.0, %v5365
      %5367 = vdwg.mxu0
      %v5416 = vunpack.c.l.b16 %v4809
      %v5417 = vunpack.c.h.b16 %v4809
      %v5418 = vunpack.c.l.b16 %v4810
      %v5419 = vunpack.c.h.b16 %v4810
      %v5420 = vunpack.c.l.b16 %v4811
      %v5421 = vunpack.c.h.b16 %v4811
      %v5422 = vunpack.c.l.b16 %v4812
      %v5423 = vunpack.c.h.b16 %v4812
      %v5424 = vunpack.c.l.b16 %v4813
      %v5425 = vunpack.c.h.b16 %v4813
      %v5426 = vunpack.c.l.b16 %v4814
      %v5427 = vunpack.c.h.b16 %v4814
      %v5428 = vunpack.c.l.b16 %v4815
      %v5429 = vunpack.c.h.b16 %v4815
      %v5430 = vunpack.c.l.b16 %v4816
      %v5431 = vunpack.c.h.b16 %v4816
      %v5432 = vunpack.c.l.b16 %v4817
      %v5433 = vunpack.c.h.b16 %v4817
      %v5434 = vunpack.c.l.b16 %v4818
      %v5435 = vunpack.c.h.b16 %v4818
      %v5436 = vunpack.c.l.b16 %v4819
      %v5437 = vunpack.c.h.b16 %v4819
      %v5438 = vunpack.c.l.b16 %v4820
      %v5439 = vunpack.c.h.b16 %v4820
      %v5440 = vunpack.c.l.b16 %v4821
      %v5441 = vunpack.c.h.b16 %v4821
      %v5442 = vunpack.c.l.b16 %v4822
      %v5443 = vunpack.c.h.b16 %v4822
      %v5444 = vunpack.c.l.b16 %v4823
      %v5445 = vunpack.c.h.b16 %v4823
      %v5446 = vunpack.c.l.b16 %v4824
      %v5447 = vunpack.c.h.b16 %v4824
      %v5448 = vunpack.c.l.b16 %v4825
      %v5449 = vunpack.c.h.b16 %v4825
      %v5450 = vunpack.c.l.b16 %v4826
      %v5451 = vunpack.c.h.b16 %v4826
      %v5452 = vunpack.c.l.b16 %v4827
      %v5453 = vunpack.c.h.b16 %v4827
      %v5454 = vunpack.c.l.b16 %v4828
      %v5455 = vunpack.c.h.b16 %v4828
      %v5456 = vunpack.c.l.b16 %v4829
      %v5457 = vunpack.c.h.b16 %v4829
      %v5458 = vunpack.c.l.b16 %v4830
      %v5459 = vunpack.c.h.b16 %v4830
      %v5460 = vunpack.c.l.b16 %v4831
      %v5461 = vunpack.c.h.b16 %v4831
      %v5462 = vunpack.c.l.b16 %v4832
      %v5463 = vunpack.c.h.b16 %v4832
      %v5464 = vunpack.c.l.b16 %v4833
      %v5465 = vunpack.c.h.b16 %v4833
      %v5466 = vunpack.c.l.b16 %v4834
      %v5467 = vunpack.c.h.b16 %v4834
      %v5468 = vunpack.c.l.b16 %v4835
      %v5469 = vunpack.c.h.b16 %v4835
      %v5470 = vunpack.c.l.b16 %v4836
      %v5471 = vunpack.c.h.b16 %v4836
      %v5472 = vunpack.c.l.b16 %v4837
      %v5473 = vunpack.c.h.b16 %v4837
      %v5474 = vunpack.c.l.b16 %v4838
      %v5475 = vunpack.c.h.b16 %v4838
      %v5476 = vunpack.c.l.b16 %v4839
      %v5477 = vunpack.c.h.b16 %v4839
      %v5478 = vunpack.c.l.b16 %v4840
      %v5479 = vunpack.c.h.b16 %v4840
      %v5480 = vpack.c.b16 %v5418, %v5416
      %v5481 = vpack.c.b16 %v5419, %v5417
      %v5482 = vpack.c.b16 %v5422, %v5420
      %v5483 = vpack.c.b16 %v5423, %v5421
      %v5484 = vpack.c.b16 %v5426, %v5424
      %v5485 = vpack.c.b16 %v5427, %v5425
      %v5486 = vpack.c.b16 %v5430, %v5428
      %v5487 = vpack.c.b16 %v5431, %v5429
      %v5488 = vpack.c.b16 %v5434, %v5432
      %v5489 = vpack.c.b16 %v5435, %v5433
      %v5490 = vpack.c.b16 %v5438, %v5436
      %v5491 = vpack.c.b16 %v5439, %v5437
      %v5492 = vpack.c.b16 %v5442, %v5440
      %v5493 = vpack.c.b16 %v5443, %v5441
      %v5494 = vpack.c.b16 %v5446, %v5444
      %v5495 = vpack.c.b16 %v5447, %v5445
      %v5496 = vpack.c.b16 %v5450, %v5448
      %v5497 = vpack.c.b16 %v5451, %v5449
      %v5498 = vpack.c.b16 %v5454, %v5452
      %v5499 = vpack.c.b16 %v5455, %v5453
      %v5500 = vpack.c.b16 %v5458, %v5456
      %v5501 = vpack.c.b16 %v5459, %v5457
      %v5502 = vpack.c.b16 %v5462, %v5460
      %v5503 = vpack.c.b16 %v5463, %v5461
      %v5504 = vpack.c.b16 %v5466, %v5464
      %v5505 = vpack.c.b16 %v5467, %v5465
      %v5506 = vpack.c.b16 %v5470, %v5468
      %v5507 = vpack.c.b16 %v5471, %v5469
      %v5508 = vpack.c.b16 %v5474, %v5472
      %v5509 = vpack.c.b16 %v5475, %v5473
      %v5510 = vpack.c.b16 %v5478, %v5476
      %v5511 = vpack.c.b16 %v5479, %v5477
      %5544 = vmatprep.subr.bf16.mxu0 %v5495
      %5545 = vmatpush1.bf16.msra.mxu0 %v5494
      %5546 = vmatprep.subr.bf16.mxu0 %v5493
      %5547 = vmatpush1.bf16.msra.mxu0 %v5492
      %5548 = vmatprep.subr.bf16.mxu0 %v5491
      %5549 = vmatpush1.bf16.msra.mxu0 %v5490
      %5550 = vmatprep.subr.bf16.mxu0 %v5489
      %5551 = vmatpush1.bf16.msra.mxu0 %v5488
      %5552 = vmatprep.subr.bf16.mxu0 %v5487
      %5553 = vmatpush1.bf16.msra.mxu0 %v5486
      %5554 = vmatprep.subr.bf16.mxu0 %v5485
      %5555 = vmatpush1.bf16.msra.mxu0 %v5484
      %5556 = vmatprep.subr.bf16.mxu0 %v5483
      %5557 = vmatpush1.bf16.msra.mxu0 %v5482
      %5558 = vmatprep.subr.bf16.mxu0 %v5481
      %5559 = vmatpush1.bf16.msra.mxu0 %v5480
      %5560 = vmatprep.subr.bf16.mxu0 %v5511
      %5561 = vmatpush2.bf16.msra.mxu0 %v5510
      %5562 = vmatprep.subr.bf16.mxu0 %v5509
      %5563 = vmatpush2.bf16.msra.mxu0 %v5508
      %5564 = vmatprep.subr.bf16.mxu0 %v5507
      %5565 = vmatpush2.bf16.msra.mxu0 %v5506
      %5566 = vmatprep.subr.bf16.mxu0 %v5505
      %5567 = vmatpush2.bf16.msra.mxu0 %v5504
      %5568 = vmatprep.subr.bf16.mxu0 %v5503
      %5569 = vmatpush2.bf16.msra.mxu0 %v5502
      %5570 = vmatprep.subr.bf16.mxu0 %v5501
      %5571 = vmatpush2.bf16.msra.mxu0 %v5500
      %5572 = vmatprep.subr.bf16.mxu0 %v5499
      %5573 = vmatpush2.bf16.msra.mxu0 %v5498
      %5574 = vmatprep.subr.bf16.mxu0 %v5497
      %5575 = vmatpush2.bf16.msra.mxu0 %v5496
      %5576 = vmatprep.mubr.bf16.mxu0 %v4926
      %5577 = vmatmul.mubr.bf16.gmra.mxu0 %v4925
      %v5578 = vpop.f32.mrf.mxu0
      %v5579 = vadd.f32 %v5290, %v5578
      %v5580 = vpop.f32.mrf.mxu0
      %v5581 = vadd.f32 %v5292, %v5580
      %v5582 = vpop.f32.mrf.mxu0
      %v5583 = vadd.f32 %v5294, %v5582
      %v5584 = vpop.f32.mrf.mxu0
      %v5585 = vadd.f32 %v5296, %v5584
      %5586 = vmatprep.mubr.bf16.mxu0 %v4928
      %5587 = vmatmul.mubr.bf16.gmra.mxu0 %v4927
      %v5588 = vpop.f32.mrf.mxu0
      %v5589 = vadd.f32 %v5300, %v5588
      %v5590 = vpop.f32.mrf.mxu0
      %v5591 = vadd.f32 %v5302, %v5590
      %v5592 = vpop.f32.mrf.mxu0
      %v5593 = vadd.f32 %v5304, %v5592
      %v5594 = vpop.f32.mrf.mxu0
      %v5595 = vadd.f32 %v5306, %v5594
      %5596 = vmatprep.mubr.bf16.mxu0 %v4930
      %5597 = vmatmul.mubr.bf16.gmra.mxu0 %v4929
      %v5598 = vpop.f32.mrf.mxu0
      %v5599 = vadd.f32 %v5310, %v5598
      %v5600 = vpop.f32.mrf.mxu0
      %v5601 = vadd.f32 %v5312, %v5600
      %v5602 = vpop.f32.mrf.mxu0
      %v5603 = vadd.f32 %v5314, %v5602
      %v5604 = vpop.f32.mrf.mxu0
      %v5605 = vadd.f32 %v5316, %v5604
      %5606 = vmatprep.mubr.bf16.mxu0 %v4932
      %5607 = vmatmul.mubr.bf16.gmra.mxu0 %v4931
      %v5608 = vpop.f32.mrf.mxu0
      %v5609 = vadd.f32 %v5320, %v5608
      %v5610 = vpop.f32.mrf.mxu0
      %v5611 = vadd.f32 %v5322, %v5610
      %v5612 = vpop.f32.mrf.mxu0
      %v5613 = vadd.f32 %v5324, %v5612
      %v5614 = vpop.f32.mrf.mxu0
      %v5615 = vadd.f32 %v5326, %v5614
      %5616 = vmatprep.mubr.bf16.mxu0 %v4934
      %5617 = vmatmul.mubr.bf16.gmra.mxu0 %v4933
      %v5618 = vpop.f32.mrf.mxu0
      %v5619 = vadd.f32 %v5330, %v5618
      %v5620 = vpop.f32.mrf.mxu0
      %v5621 = vadd.f32 %v5332, %v5620
      %v5622 = vpop.f32.mrf.mxu0
      %v5623 = vadd.f32 %v5334, %v5622
      %v5624 = vpop.f32.mrf.mxu0
      %v5625 = vadd.f32 %v5336, %v5624
      %5626 = vmatprep.mubr.bf16.mxu0 %v4936
      %5627 = vmatmul.mubr.bf16.gmra.mxu0 %v4935
      %v5628 = vpop.f32.mrf.mxu0
      %v5629 = vadd.f32 %v5340, %v5628
      %v5630 = vpop.f32.mrf.mxu0
      %v5631 = vadd.f32 %v5342, %v5630
      %v5632 = vpop.f32.mrf.mxu0
      %v5633 = vadd.f32 %v5344, %v5632
      %v5634 = vpop.f32.mrf.mxu0
      %v5635 = vadd.f32 %v5346, %v5634
      %5636 = vmatprep.mubr.bf16.mxu0 %v4938
      %5637 = vmatmul.mubr.bf16.gmra.mxu0 %v4937
      %v5638 = vpop.f32.mrf.mxu0
      %v5639 = vadd.f32 %v5350, %v5638
      %v5640 = vpop.f32.mrf.mxu0
      %v5641 = vadd.f32 %v5352, %v5640
      %v5642 = vpop.f32.mrf.mxu0
      %v5643 = vadd.f32 %v5354, %v5642
      %v5644 = vpop.f32.mrf.mxu0
      %v5645 = vadd.f32 %v5356, %v5644
      %5646 = vmatprep.mubr.bf16.mxu0 %v4940
      %5647 = vmatmul.mubr.bf16.gmra.mxu0 %v4939
      %v5648 = vpop.f32.mrf.mxu0
      %v5649 = vadd.f32 %v5360, %v5648
      %v5650 = vpop.f32.mrf.mxu0
      %v5651 = vadd.f32 %v5362, %v5650
      %v5652 = vpop.f32.mrf.mxu0
      %v5653 = vadd.f32 %v5364, %v5652
      %v5654 = vpop.f32.mrf.mxu0
      %v5655 = vadd.f32 %v5366, %v5654
      %5656 = vdwg.mxu0
      %v5657 = vld [vmem:[%s246 + $0x80] sm:$0xee]
      %v5658 = vld [vmem:[%s1120] sm:$0xff]
      %v5659 = vld [vmem:[%s1120 + $0x8] sm:$0xff]
      %v5660 = vld [vmem:[%s1120 + $0x10] sm:$0xff]
      %v5661 = vld [vmem:[%s1120 + $0x18] sm:$0xff]
      %v5662 = vld [vmem:[%s1120 + $0x20] sm:$0xff]
      %v5663 = vld [vmem:[%s1120 + $0x28] sm:$0xff]
      %v5664 = vld [vmem:[%s1120 + $0x30] sm:$0xff]
      %v5665 = vld [vmem:[%s1120 + $0x38] sm:$0xff]
      %v5666 = vld [vmem:[%s1120 + $0x40] sm:$0xff]
      %v5667 = vld [vmem:[%s1120 + $0x48] sm:$0xff]
      %v5668 = vld [vmem:[%s1120 + $0x50] sm:$0xff]
      %v5669 = vld [vmem:[%s1120 + $0x58] sm:$0xff]
      %v5670 = vld [vmem:[%s1120 + $0x60] sm:$0xff]
      %v5671 = vld [vmem:[%s1120 + $0x68] sm:$0xff]
      %v5672 = vld [vmem:[%s1120 + $0x70] sm:$0xff]
      %v5673 = vld [vmem:[%s1120 + $0x78] sm:$0xff]
      %v5674 = vld [vmem:[%s1120 + $0x80] sm:$0xff]
      %v5675 = vld [vmem:[%s1120 + $0x88] sm:$0xff]
      %v5676 = vld [vmem:[%s1120 + $0x90] sm:$0xff]
      %v5677 = vld [vmem:[%s1120 + $0x98] sm:$0xff]
      %v5678 = vld [vmem:[%s1120 + $0xa0] sm:$0xff]
      %v5679 = vld [vmem:[%s1120 + $0xa8] sm:$0xff]
      %v5680 = vld [vmem:[%s1120 + $0xb0] sm:$0xff]
      %v5681 = vld [vmem:[%s1120 + $0xb8] sm:$0xff]
      %v5682 = vld [vmem:[%s1120 + $0xc0] sm:$0xff]
      %v5683 = vld [vmem:[%s1120 + $0xc8] sm:$0xff]
      %v5684 = vld [vmem:[%s1120 + $0xd0] sm:$0xff]
      %v5685 = vld [vmem:[%s1120 + $0xd8] sm:$0xff]
      %v5686 = vld [vmem:[%s1120 + $0xe0] sm:$0xff]
      %v5687 = vld [vmem:[%s1120 + $0xe8] sm:$0xff]
      %v5688 = vld [vmem:[%s1120 + $0xf0] sm:$0xff]
      %v5689 = vld [vmem:[%s1120 + $0xf8] sm:$0xff]
      %v5691 = vunpack.c.l.b16 %v5657
      %v5692 = vunpack.c.h.b16 %v5657
      %v5693 = vpack.c.b16 %v4893, %v5691
      %v5694 = vpack.c.b16 %v4894, %v5692
      %v5695 = vrot.slane %v5693, 1
      %v5696 = vrot.slane %v4927, 1
      %v5697 = vsel %vm1158, %v5695, %v5696
      %v5698 = vrot.slane %v5694, 1
      %v5699 = vrot.slane %v4928, 1
      %v5700 = vsel %vm1158, %v5698, %v5699
      %v5701 = vrot.slane %v4929, 1
      %v5702 = vsel %vm1158, %v5696, %v5701
      %v5703 = vrot.slane %v4930, 1
      %v5704 = vsel %vm1158, %v5699, %v5703
      %v5705 = vrot.slane %v4931, 1
      %v5706 = vsel %vm1158, %v5701, %v5705
      %v5707 = vrot.slane %v4932, 1
      %v5708 = vsel %vm1158, %v5703, %v5707
      %v5709 = vrot.slane %v4933, 1
      %v5710 = vsel %vm1158, %v5705, %v5709
      %v5711 = vrot.slane %v4934, 1
      %v5712 = vsel %vm1158, %v5707, %v5711
      %v5713 = vrot.slane %v4935, 1
      %v5714 = vsel %vm1158, %v5709, %v5713
      %v5715 = vrot.slane %v4936, 1
      %v5716 = vsel %vm1158, %v5711, %v5715
      %v5717 = vrot.slane %v4937, 1
      %v5718 = vsel %vm1158, %v5713, %v5717
      %v5719 = vrot.slane %v4938, 1
      %v5720 = vsel %vm1158, %v5715, %v5719
      %v5721 = vrot.slane %v4939, 1
      %v5722 = vsel %vm1158, %v5717, %v5721
      %v5723 = vrot.slane %v4940, 1
      %v5724 = vsel %vm1158, %v5719, %v5723
      %v5725 = vrot.slane %v4941, 1
      %v5726 = vsel %vm1158, %v5721, %v5725
      %v5727 = vrot.slane %v4942, 1
      %v5728 = vsel %vm1158, %v5723, %v5727
      %v5777 = vunpack.c.l.b16 %v5658
      %v5778 = vunpack.c.h.b16 %v5658
      %v5779 = vunpack.c.l.b16 %v5659
      %v5780 = vunpack.c.h.b16 %v5659
      %v5781 = vunpack.c.l.b16 %v5660
      %v5782 = vunpack.c.h.b16 %v5660
      %v5783 = vunpack.c.l.b16 %v5661
      %v5784 = vunpack.c.h.b16 %v5661
      %v5785 = vunpack.c.l.b16 %v5662
      %v5786 = vunpack.c.h.b16 %v5662
      %v5787 = vunpack.c.l.b16 %v5663
      %v5788 = vunpack.c.h.b16 %v5663
      %v5789 = vunpack.c.l.b16 %v5664
      %v5790 = vunpack.c.h.b16 %v5664
      %v5791 = vunpack.c.l.b16 %v5665
      %v5792 = vunpack.c.h.b16 %v5665
      %v5793 = vunpack.c.l.b16 %v5666
      %v5794 = vunpack.c.h.b16 %v5666
      %v5795 = vunpack.c.l.b16 %v5667
      %v5796 = vunpack.c.h.b16 %v5667
      %v5797 = vunpack.c.l.b16 %v5668
      %v5798 = vunpack.c.h.b16 %v5668
      %v5799 = vunpack.c.l.b16 %v5669
      %v5800 = vunpack.c.h.b16 %v5669
      %v5801 = vunpack.c.l.b16 %v5670
      %v5802 = vunpack.c.h.b16 %v5670
      %v5803 = vunpack.c.l.b16 %v5671
      %v5804 = vunpack.c.h.b16 %v5671
      %v5805 = vunpack.c.l.b16 %v5672
      %v5806 = vunpack.c.h.b16 %v5672
      %v5807 = vunpack.c.l.b16 %v5673
      %v5808 = vunpack.c.h.b16 %v5673
      %v5809 = vunpack.c.l.b16 %v5674
      %v5810 = vunpack.c.h.b16 %v5674
      %v5811 = vunpack.c.l.b16 %v5675
      %v5812 = vunpack.c.h.b16 %v5675
      %v5813 = vunpack.c.l.b16 %v5676
      %v5814 = vunpack.c.h.b16 %v5676
      %v5815 = vunpack.c.l.b16 %v5677
      %v5816 = vunpack.c.h.b16 %v5677
      %v5817 = vunpack.c.l.b16 %v5678
      %v5818 = vunpack.c.h.b16 %v5678
      %v5819 = vunpack.c.l.b16 %v5679
      %v5820 = vunpack.c.h.b16 %v5679
      %v5821 = vunpack.c.l.b16 %v5680
      %v5822 = vunpack.c.h.b16 %v5680
      %v5823 = vunpack.c.l.b16 %v5681
      %v5824 = vunpack.c.h.b16 %v5681
      %v5825 = vunpack.c.l.b16 %v5682
      %v5826 = vunpack.c.h.b16 %v5682
      %v5827 = vunpack.c.l.b16 %v5683
      %v5828 = vunpack.c.h.b16 %v5683
      %v5829 = vunpack.c.l.b16 %v5684
      %v5830 = vunpack.c.h.b16 %v5684
      %v5831 = vunpack.c.l.b16 %v5685
      %v5832 = vunpack.c.h.b16 %v5685
      %v5833 = vunpack.c.l.b16 %v5686
      %v5834 = vunpack.c.h.b16 %v5686
      %v5835 = vunpack.c.l.b16 %v5687
      %v5836 = vunpack.c.h.b16 %v5687
      %v5837 = vunpack.c.l.b16 %v5688
      %v5838 = vunpack.c.h.b16 %v5688
      %v5839 = vunpack.c.l.b16 %v5689
      %v5840 = vunpack.c.h.b16 %v5689
      %v5841 = vpack.c.b16 %v5779, %v5777
      %v5842 = vpack.c.b16 %v5780, %v5778
      %v5843 = vpack.c.b16 %v5783, %v5781
      %v5844 = vpack.c.b16 %v5784, %v5782
      %v5845 = vpack.c.b16 %v5787, %v5785
      %v5846 = vpack.c.b16 %v5788, %v5786
      %v5847 = vpack.c.b16 %v5791, %v5789
      %v5848 = vpack.c.b16 %v5792, %v5790
      %v5849 = vpack.c.b16 %v5795, %v5793
      %v5850 = vpack.c.b16 %v5796, %v5794
      %v5851 = vpack.c.b16 %v5799, %v5797
      %v5852 = vpack.c.b16 %v5800, %v5798
      %v5853 = vpack.c.b16 %v5803, %v5801
      %v5854 = vpack.c.b16 %v5804, %v5802
      %v5855 = vpack.c.b16 %v5807, %v5805
      %v5856 = vpack.c.b16 %v5808, %v5806
      %v5857 = vpack.c.b16 %v5811, %v5809
      %v5858 = vpack.c.b16 %v5812, %v5810
      %v5859 = vpack.c.b16 %v5815, %v5813
      %v5860 = vpack.c.b16 %v5816, %v5814
      %v5861 = vpack.c.b16 %v5819, %v5817
      %v5862 = vpack.c.b16 %v5820, %v5818
      %v5863 = vpack.c.b16 %v5823, %v5821
      %v5864 = vpack.c.b16 %v5824, %v5822
      %v5865 = vpack.c.b16 %v5827, %v5825
      %v5866 = vpack.c.b16 %v5828, %v5826
      %v5867 = vpack.c.b16 %v5831, %v5829
      %v5868 = vpack.c.b16 %v5832, %v5830
      %v5869 = vpack.c.b16 %v5835, %v5833
      %v5870 = vpack.c.b16 %v5836, %v5834
      %v5871 = vpack.c.b16 %v5839, %v5837
      %v5872 = vpack.c.b16 %v5840, %v5838
      %5905 = vmatprep.subr.bf16.mxu0 %v5856
      %5906 = vmatpush1.bf16.msra.mxu0 %v5855
      %5907 = vmatprep.subr.bf16.mxu0 %v5854
      %5908 = vmatpush1.bf16.msra.mxu0 %v5853
      %5909 = vmatprep.subr.bf16.mxu0 %v5852
      %5910 = vmatpush1.bf16.msra.mxu0 %v5851
      %5911 = vmatprep.subr.bf16.mxu0 %v5850
      %5912 = vmatpush1.bf16.msra.mxu0 %v5849
      %5913 = vmatprep.subr.bf16.mxu0 %v5848
      %5914 = vmatpush1.bf16.msra.mxu0 %v5847
      %5915 = vmatprep.subr.bf16.mxu0 %v5846
      %5916 = vmatpush1.bf16.msra.mxu0 %v5845
      %5917 = vmatprep.subr.bf16.mxu0 %v5844
      %5918 = vmatpush1.bf16.msra.mxu0 %v5843
      %5919 = vmatprep.subr.bf16.mxu0 %v5842
      %5920 = vmatpush1.bf16.msra.mxu0 %v5841
      %5921 = vmatprep.subr.bf16.mxu0 %v5872
      %5922 = vmatpush2.bf16.msra.mxu0 %v5871
      %5923 = vmatprep.subr.bf16.mxu0 %v5870
      %5924 = vmatpush2.bf16.msra.mxu0 %v5869
      %5925 = vmatprep.subr.bf16.mxu0 %v5868
      %5926 = vmatpush2.bf16.msra.mxu0 %v5867
      %5927 = vmatprep.subr.bf16.mxu0 %v5866
      %5928 = vmatpush2.bf16.msra.mxu0 %v5865
      %5929 = vmatprep.subr.bf16.mxu0 %v5864
      %5930 = vmatpush2.bf16.msra.mxu0 %v5863
      %5931 = vmatprep.subr.bf16.mxu0 %v5862
      %5932 = vmatpush2.bf16.msra.mxu0 %v5861
      %5933 = vmatprep.subr.bf16.mxu0 %v5860
      %5934 = vmatpush2.bf16.msra.mxu0 %v5859
      %5935 = vmatprep.subr.bf16.mxu0 %v5858
      %5936 = vmatpush2.bf16.msra.mxu0 %v5857
      %5937 = vmatprep.mubr.bf16.mxu0 %v5700
      %5938 = vmatmul.mubr.bf16.gmra.mxu0 %v5697
      %v5939 = vpop.f32.mrf.mxu0
      %v5940 = vadd.f32 0.0, %v5939
      %v5941 = vpop.f32.mrf.mxu0
      %v5942 = vadd.f32 0.0, %v5941
      %v5943 = vpop.f32.mrf.mxu0
      %v5944 = vadd.f32 0.0, %v5943
      %v5945 = vpop.f32.mrf.mxu0
      %v5946 = vadd.f32 0.0, %v5945
      %5947 = vmatprep.mubr.bf16.mxu0 %v5704
      %5948 = vmatmul.mubr.bf16.gmra.mxu0 %v5702
      %v5949 = vpop.f32.mrf.mxu0
      %v5950 = vadd.f32 0.0, %v5949
      %v5951 = vpop.f32.mrf.mxu0
      %v5952 = vadd.f32 0.0, %v5951
      %v5953 = vpop.f32.mrf.mxu0
      %v5954 = vadd.f32 0.0, %v5953
      %v5955 = vpop.f32.mrf.mxu0
      %v5956 = vadd.f32 0.0, %v5955
      %5957 = vmatprep.mubr.bf16.mxu0 %v5708
      %5958 = vmatmul.mubr.bf16.gmra.mxu0 %v5706
      %v5959 = vpop.f32.mrf.mxu0
      %v5960 = vadd.f32 0.0, %v5959
      %v5961 = vpop.f32.mrf.mxu0
      %v5962 = vadd.f32 0.0, %v5961
      %v5963 = vpop.f32.mrf.mxu0
      %v5964 = vadd.f32 0.0, %v5963
      %v5965 = vpop.f32.mrf.mxu0
      %v5966 = vadd.f32 0.0, %v5965
      %5967 = vmatprep.mubr.bf16.mxu0 %v5712
      %5968 = vmatmul.mubr.bf16.gmra.mxu0 %v5710
      %v5969 = vpop.f32.mrf.mxu0
      %v5970 = vadd.f32 0.0, %v5969
      %v5971 = vpop.f32.mrf.mxu0
      %v5972 = vadd.f32 0.0, %v5971
      %v5973 = vpop.f32.mrf.mxu0
      %v5974 = vadd.f32 0.0, %v5973
      %v5975 = vpop.f32.mrf.mxu0
      %v5976 = vadd.f32 0.0, %v5975
      %5977 = vmatprep.mubr.bf16.mxu0 %v5716
      %5978 = vmatmul.mubr.bf16.gmra.mxu0 %v5714
      %v5979 = vpop.f32.mrf.mxu0
      %v5980 = vadd.f32 0.0, %v5979
      %v5981 = vpop.f32.mrf.mxu0
      %v5982 = vadd.f32 0.0, %v5981
      %v5983 = vpop.f32.mrf.mxu0
      %v5984 = vadd.f32 0.0, %v5983
      %v5985 = vpop.f32.mrf.mxu0
      %v5986 = vadd.f32 0.0, %v5985
      %5987 = vmatprep.mubr.bf16.mxu0 %v5720
      %5988 = vmatmul.mubr.bf16.gmra.mxu0 %v5718
      %v5989 = vpop.f32.mrf.mxu0
      %v5990 = vadd.f32 0.0, %v5989
      %v5991 = vpop.f32.mrf.mxu0
      %v5992 = vadd.f32 0.0, %v5991
      %v5993 = vpop.f32.mrf.mxu0
      %v5994 = vadd.f32 0.0, %v5993
      %v5995 = vpop.f32.mrf.mxu0
      %v5996 = vadd.f32 0.0, %v5995
      %5997 = vmatprep.mubr.bf16.mxu0 %v5724
      %5998 = vmatmul.mubr.bf16.gmra.mxu0 %v5722
      %v5999 = vpop.f32.mrf.mxu0
      %v6000 = vadd.f32 0.0, %v5999
      %v6001 = vpop.f32.mrf.mxu0
      %v6002 = vadd.f32 0.0, %v6001
      %v6003 = vpop.f32.mrf.mxu0
      %v6004 = vadd.f32 0.0, %v6003
      %v6005 = vpop.f32.mrf.mxu0
      %v6006 = vadd.f32 0.0, %v6005
      %6007 = vmatprep.mubr.bf16.mxu0 %v5728
      %6008 = vmatmul.mubr.bf16.gmra.mxu0 %v5726
      %v6009 = vpop.f32.mrf.mxu0
      %v6010 = vadd.f32 0.0, %v6009
      %v6011 = vpop.f32.mrf.mxu0
      %v6012 = vadd.f32 0.0, %v6011
      %v6013 = vpop.f32.mrf.mxu0
      %v6014 = vadd.f32 0.0, %v6013
      %v6015 = vpop.f32.mrf.mxu0
      %v6016 = vadd.f32 0.0, %v6015
      %6017 = vdwg.mxu0
      %v6018 = vadd.f32 %v5579, %v5940
      %v6019 = vadd.f32 %v5581, %v5942
      %v6020 = vadd.f32 %v5583, %v5944
      %v6021 = vadd.f32 %v5585, %v5946
      %v6022 = vadd.f32 %v5589, %v5950
      %v6023 = vadd.f32 %v5591, %v5952
      %v6024 = vadd.f32 %v5593, %v5954
      %v6025 = vadd.f32 %v5595, %v5956
      %v6026 = vadd.f32 %v5599, %v5960
      %v6027 = vadd.f32 %v5601, %v5962
      %v6028 = vadd.f32 %v5603, %v5964
      %v6029 = vadd.f32 %v5605, %v5966
      %v6030 = vadd.f32 %v5609, %v5970
      %v6031 = vadd.f32 %v5611, %v5972
      %v6032 = vadd.f32 %v5613, %v5974
      %v6033 = vadd.f32 %v5615, %v5976
      %v6034 = vadd.f32 %v5619, %v5980
      %v6035 = vadd.f32 %v5621, %v5982
      %v6036 = vadd.f32 %v5623, %v5984
      %v6037 = vadd.f32 %v5625, %v5986
      %v6038 = vadd.f32 %v5629, %v5990
      %v6039 = vadd.f32 %v5631, %v5992
      %v6040 = vadd.f32 %v5633, %v5994
      %v6041 = vadd.f32 %v5635, %v5996
      %v6042 = vadd.f32 %v5639, %v6000
      %v6043 = vadd.f32 %v5641, %v6002
      %v6044 = vadd.f32 %v5643, %v6004
      %v6045 = vadd.f32 %v5645, %v6006
      %v6046 = vadd.f32 %v5649, %v6010
      %v6047 = vadd.f32 %v5651, %v6012
      %v6048 = vadd.f32 %v5653, %v6014
      %v6049 = vadd.f32 %v5655, %v6016
      %v6050 = vld [vmem:[%s246 + $0x90] sm:$0xee]
      %v6051 = vld [vmem:[%s246 + $0x98] sm:$0xff]
      %v6052 = vld [vmem:[%s246 + $0xa0] sm:$0xff]
      %v6053 = vld [vmem:[%s246 + $0xa8] sm:$0xff]
      %v6054 = vld [vmem:[%s246 + $0xb0] sm:$0xff]
      %v6055 = vld [vmem:[%s246 + $0xb8] sm:$0xff]
      %v6056 = vld [vmem:[%s246 + $0xc0] sm:$0xff]
      %v6057 = vld [vmem:[%s246 + $0xc8] sm:$0xff]
      %v6058 = vld [vmem:[%s246 + $0xd0] sm:$0xff]
      %v6059 = vld [vmem:[%s246 + $0xd8] sm:$0xff]
      %v6060 = vld [vmem:[%s246 + $0xe0] sm:$0xff]
      %v6061 = vld [vmem:[%s246 + $0xe8] sm:$0xff]
      %v6062 = vld [vmem:[%s246 + $0xf0] sm:$0xff]
      %v6063 = vld [vmem:[%s246 + $0xf8] sm:$0xff]
      %v6064 = vld [vmem:[%s246 + $0x100] sm:$0xff]
      %v6065 = vld [vmem:[%s246 + $0x108] sm:$0xff]
      %v6066 = vld [vmem:[%s246 + $0x110] sm:$0x11]
      %v6067 = vld [vmem:[%s1531] sm:$0xff]
      %v6068 = vld [vmem:[%s1531 + $0x8] sm:$0xff]
      %v6069 = vld [vmem:[%s1531 + $0x10] sm:$0xff]
      %v6070 = vld [vmem:[%s1531 + $0x18] sm:$0xff]
      %v6071 = vld [vmem:[%s1531 + $0x20] sm:$0xff]
      %v6072 = vld [vmem:[%s1531 + $0x28] sm:$0xff]
      %v6073 = vld [vmem:[%s1531 + $0x30] sm:$0xff]
      %v6074 = vld [vmem:[%s1531 + $0x38] sm:$0xff]
      %v6075 = vld [vmem:[%s1531 + $0x40] sm:$0xff]
      %v6076 = vld [vmem:[%s1531 + $0x48] sm:$0xff]
      %v6077 = vld [vmem:[%s1531 + $0x50] sm:$0xff]
      %v6078 = vld [vmem:[%s1531 + $0x58] sm:$0xff]
      %v6079 = vld [vmem:[%s1531 + $0x60] sm:$0xff]
      %v6080 = vld [vmem:[%s1531 + $0x68] sm:$0xff]
      %v6081 = vld [vmem:[%s1531 + $0x70] sm:$0xff]
      %v6082 = vld [vmem:[%s1531 + $0x78] sm:$0xff]
      %v6083 = vld [vmem:[%s1531 + $0x80] sm:$0xff]
      %v6084 = vld [vmem:[%s1531 + $0x88] sm:$0xff]
      %v6085 = vld [vmem:[%s1531 + $0x90] sm:$0xff]
      %v6086 = vld [vmem:[%s1531 + $0x98] sm:$0xff]
      %v6087 = vld [vmem:[%s1531 + $0xa0] sm:$0xff]
      %v6088 = vld [vmem:[%s1531 + $0xa8] sm:$0xff]
      %v6089 = vld [vmem:[%s1531 + $0xb0] sm:$0xff]
      %v6090 = vld [vmem:[%s1531 + $0xb8] sm:$0xff]
      %v6091 = vld [vmem:[%s1531 + $0xc0] sm:$0xff]
      %v6092 = vld [vmem:[%s1531 + $0xc8] sm:$0xff]
      %v6093 = vld [vmem:[%s1531 + $0xd0] sm:$0xff]
      %v6094 = vld [vmem:[%s1531 + $0xd8] sm:$0xff]
      %v6095 = vld [vmem:[%s1531 + $0xe0] sm:$0xff]
      %v6096 = vld [vmem:[%s1531 + $0xe8] sm:$0xff]
      %v6097 = vld [vmem:[%s1531 + $0xf0] sm:$0xff]
      %v6098 = vld [vmem:[%s1531 + $0xf8] sm:$0xff]
      %v6116 = vunpack.c.l.b16 %v6050
      %v6117 = vunpack.c.h.b16 %v6050
      %v6118 = vunpack.c.l.b16 %v6051
      %v6119 = vunpack.c.h.b16 %v6051
      %v6120 = vunpack.c.l.b16 %v6052
      %v6121 = vunpack.c.h.b16 %v6052
      %v6122 = vunpack.c.l.b16 %v6053
      %v6123 = vunpack.c.h.b16 %v6053
      %v6124 = vunpack.c.l.b16 %v6054
      %v6125 = vunpack.c.h.b16 %v6054
      %v6126 = vunpack.c.l.b16 %v6055
      %v6127 = vunpack.c.h.b16 %v6055
      %v6128 = vunpack.c.l.b16 %v6056
      %v6129 = vunpack.c.h.b16 %v6056
      %v6130 = vunpack.c.l.b16 %v6057
      %v6131 = vunpack.c.h.b16 %v6057
      %v6132 = vunpack.c.l.b16 %v6058
      %v6133 = vunpack.c.h.b16 %v6058
      %v6134 = vunpack.c.l.b16 %v6059
      %v6135 = vunpack.c.h.b16 %v6059
      %v6136 = vunpack.c.l.b16 %v6060
      %v6137 = vunpack.c.h.b16 %v6060
      %v6138 = vunpack.c.l.b16 %v6061
      %v6139 = vunpack.c.h.b16 %v6061
      %v6140 = vunpack.c.l.b16 %v6062
      %v6141 = vunpack.c.h.b16 %v6062
      %v6142 = vunpack.c.l.b16 %v6063
      %v6143 = vunpack.c.h.b16 %v6063
      %v6144 = vunpack.c.l.b16 %v6064
      %v6145 = vunpack.c.h.b16 %v6064
      %v6146 = vunpack.c.l.b16 %v6065
      %v6147 = vunpack.c.h.b16 %v6065
      %v6148 = vunpack.c.l.b16 %v6066
      %v6149 = vunpack.c.h.b16 %v6066
      %v6150 = vpack.c.b16 %v6118, %v6116
      %v6151 = vpack.c.b16 %v6119, %v6117
      %v6152 = vpack.c.b16 %v6122, %v6120
      %v6153 = vpack.c.b16 %v6123, %v6121
      %v6154 = vpack.c.b16 %v6126, %v6124
      %v6155 = vpack.c.b16 %v6127, %v6125
      %v6156 = vpack.c.b16 %v6130, %v6128
      %v6157 = vpack.c.b16 %v6131, %v6129
      %v6158 = vpack.c.b16 %v6134, %v6132
      %v6159 = vpack.c.b16 %v6135, %v6133
      %v6160 = vpack.c.b16 %v6138, %v6136
      %v6161 = vpack.c.b16 %v6139, %v6137
      %v6162 = vpack.c.b16 %v6142, %v6140
      %v6163 = vpack.c.b16 %v6143, %v6141
      %v6164 = vpack.c.b16 %v6146, %v6144
      %v6165 = vpack.c.b16 %v6147, %v6145
      %v6166 = vpack.c.b16 %v6148, %v6148
      %v6167 = vpack.c.b16 %v6149, %v6149
      %v6168 = vrot.slane %v6150, 1
      %v6169 = vrot.slane %v6152, 1
      %v6170 = vsel %vm1158, %v6168, %v6169
      %v6171 = vrot.slane %v6151, 1
      %v6172 = vrot.slane %v6153, 1
      %v6173 = vsel %vm1158, %v6171, %v6172
      %v6174 = vrot.slane %v6154, 1
      %v6175 = vsel %vm1158, %v6169, %v6174
      %v6176 = vrot.slane %v6155, 1
      %v6177 = vsel %vm1158, %v6172, %v6176
      %v6178 = vrot.slane %v6156, 1
      %v6179 = vsel %vm1158, %v6174, %v6178
      %v6180 = vrot.slane %v6157, 1
      %v6181 = vsel %vm1158, %v6176, %v6180
      %v6182 = vrot.slane %v6158, 1
      %v6183 = vsel %vm1158, %v6178, %v6182
      %v6184 = vrot.slane %v6159, 1
      %v6185 = vsel %vm1158, %v6180, %v6184
      %v6186 = vrot.slane %v6160, 1
      %v6187 = vsel %vm1158, %v6182, %v6186
      %v6188 = vrot.slane %v6161, 1
      %v6189 = vsel %vm1158, %v6184, %v6188
      %v6190 = vrot.slane %v6162, 1
      %v6191 = vsel %vm1158, %v6186, %v6190
      %v6192 = vrot.slane %v6163, 1
      %v6193 = vsel %vm1158, %v6188, %v6192
      %v6194 = vrot.slane %v6164, 1
      %v6195 = vsel %vm1158, %v6190, %v6194
      %v6196 = vrot.slane %v6165, 1
      %v6197 = vsel %vm1158, %v6192, %v6196
      %v6198 = vrot.slane %v6166, 1
      %v6199 = vsel %vm1158, %v6194, %v6198
      %v6200 = vrot.slane %v6167, 1
      %v6201 = vsel %vm1158, %v6196, %v6200
      %v6250 = vunpack.c.l.b16 %v6067
      %v6251 = vunpack.c.h.b16 %v6067
      %v6252 = vunpack.c.l.b16 %v6068
      %v6253 = vunpack.c.h.b16 %v6068
      %v6254 = vunpack.c.l.b16 %v6069
      %v6255 = vunpack.c.h.b16 %v6069
      %v6256 = vunpack.c.l.b16 %v6070
      %v6257 = vunpack.c.h.b16 %v6070
      %v6258 = vunpack.c.l.b16 %v6071
      %v6259 = vunpack.c.h.b16 %v6071
      %v6260 = vunpack.c.l.b16 %v6072
      %v6261 = vunpack.c.h.b16 %v6072
      %v6262 = vunpack.c.l.b16 %v6073
      %v6263 = vunpack.c.h.b16 %v6073
      %v6264 = vunpack.c.l.b16 %v6074
      %v6265 = vunpack.c.h.b16 %v6074
      %v6266 = vunpack.c.l.b16 %v6075
      %v6267 = vunpack.c.h.b16 %v6075
      %v6268 = vunpack.c.l.b16 %v6076
      %v6269 = vunpack.c.h.b16 %v6076
      %v6270 = vunpack.c.l.b16 %v6077
      %v6271 = vunpack.c.h.b16 %v6077
      %v6272 = vunpack.c.l.b16 %v6078
      %v6273 = vunpack.c.h.b16 %v6078
      %v6274 = vunpack.c.l.b16 %v6079
      %v6275 = vunpack.c.h.b16 %v6079
      %v6276 = vunpack.c.l.b16 %v6080
      %v6277 = vunpack.c.h.b16 %v6080
      %v6278 = vunpack.c.l.b16 %v6081
      %v6279 = vunpack.c.h.b16 %v6081
      %v6280 = vunpack.c.l.b16 %v6082
      %v6281 = vunpack.c.h.b16 %v6082
      %v6282 = vunpack.c.l.b16 %v6083
      %v6283 = vunpack.c.h.b16 %v6083
      %v6284 = vunpack.c.l.b16 %v6084
      %v6285 = vunpack.c.h.b16 %v6084
      %v6286 = vunpack.c.l.b16 %v6085
      %v6287 = vunpack.c.h.b16 %v6085
      %v6288 = vunpack.c.l.b16 %v6086
      %v6289 = vunpack.c.h.b16 %v6086
      %v6290 = vunpack.c.l.b16 %v6087
      %v6291 = vunpack.c.h.b16 %v6087
      %v6292 = vunpack.c.l.b16 %v6088
      %v6293 = vunpack.c.h.b16 %v6088
      %v6294 = vunpack.c.l.b16 %v6089
      %v6295 = vunpack.c.h.b16 %v6089
      %v6296 = vunpack.c.l.b16 %v6090
      %v6297 = vunpack.c.h.b16 %v6090
      %v6298 = vunpack.c.l.b16 %v6091
      %v6299 = vunpack.c.h.b16 %v6091
      %v6300 = vunpack.c.l.b16 %v6092
      %v6301 = vunpack.c.h.b16 %v6092
      %v6302 = vunpack.c.l.b16 %v6093
      %v6303 = vunpack.c.h.b16 %v6093
      %v6304 = vunpack.c.l.b16 %v6094
      %v6305 = vunpack.c.h.b16 %v6094
      %v6306 = vunpack.c.l.b16 %v6095
      %v6307 = vunpack.c.h.b16 %v6095
      %v6308 = vunpack.c.l.b16 %v6096
      %v6309 = vunpack.c.h.b16 %v6096
      %v6310 = vunpack.c.l.b16 %v6097
      %v6311 = vunpack.c.h.b16 %v6097
      %v6312 = vunpack.c.l.b16 %v6098
      %v6313 = vunpack.c.h.b16 %v6098
      %v6314 = vpack.c.b16 %v6252, %v6250
      %v6315 = vpack.c.b16 %v6253, %v6251
      %v6316 = vpack.c.b16 %v6256, %v6254
      %v6317 = vpack.c.b16 %v6257, %v6255
      %v6318 = vpack.c.b16 %v6260, %v6258
      %v6319 = vpack.c.b16 %v6261, %v6259
      %v6320 = vpack.c.b16 %v6264, %v6262
      %v6321 = vpack.c.b16 %v6265, %v6263
      %v6322 = vpack.c.b16 %v6268, %v6266
      %v6323 = vpack.c.b16 %v6269, %v6267
      %v6324 = vpack.c.b16 %v6272, %v6270
      %v6325 = vpack.c.b16 %v6273, %v6271
      %v6326 = vpack.c.b16 %v6276, %v6274
      %v6327 = vpack.c.b16 %v6277, %v6275
      %v6328 = vpack.c.b16 %v6280, %v6278
      %v6329 = vpack.c.b16 %v6281, %v6279
      %v6330 = vpack.c.b16 %v6284, %v6282
      %v6331 = vpack.c.b16 %v6285, %v6283
      %v6332 = vpack.c.b16 %v6288, %v6286
      %v6333 = vpack.c.b16 %v6289, %v6287
      %v6334 = vpack.c.b16 %v6292, %v6290
      %v6335 = vpack.c.b16 %v6293, %v6291
      %v6336 = vpack.c.b16 %v6296, %v6294
      %v6337 = vpack.c.b16 %v6297, %v6295
      %v6338 = vpack.c.b16 %v6300, %v6298
      %v6339 = vpack.c.b16 %v6301, %v6299
      %v6340 = vpack.c.b16 %v6304, %v6302
      %v6341 = vpack.c.b16 %v6305, %v6303
      %v6342 = vpack.c.b16 %v6308, %v6306
      %v6343 = vpack.c.b16 %v6309, %v6307
      %v6344 = vpack.c.b16 %v6312, %v6310
      %v6345 = vpack.c.b16 %v6313, %v6311
      %6378 = vmatprep.subr.bf16.mxu0 %v6329
      %6379 = vmatpush1.bf16.msra.mxu0 %v6328
      %6380 = vmatprep.subr.bf16.mxu0 %v6327
      %6381 = vmatpush1.bf16.msra.mxu0 %v6326
      %6382 = vmatprep.subr.bf16.mxu0 %v6325
      %6383 = vmatpush1.bf16.msra.mxu0 %v6324
      %6384 = vmatprep.subr.bf16.mxu0 %v6323
      %6385 = vmatpush1.bf16.msra.mxu0 %v6322
      %6386 = vmatprep.subr.bf16.mxu0 %v6321
      %6387 = vmatpush1.bf16.msra.mxu0 %v6320
      %6388 = vmatprep.subr.bf16.mxu0 %v6319
      %6389 = vmatpush1.bf16.msra.mxu0 %v6318
      %6390 = vmatprep.subr.bf16.mxu0 %v6317
      %6391 = vmatpush1.bf16.msra.mxu0 %v6316
      %6392 = vmatprep.subr.bf16.mxu0 %v6315
      %6393 = vmatpush1.bf16.msra.mxu0 %v6314
      %6394 = vmatprep.subr.bf16.mxu0 %v6345
      %6395 = vmatpush2.bf16.msra.mxu0 %v6344
      %6396 = vmatprep.subr.bf16.mxu0 %v6343
      %6397 = vmatpush2.bf16.msra.mxu0 %v6342
      %6398 = vmatprep.subr.bf16.mxu0 %v6341
      %6399 = vmatpush2.bf16.msra.mxu0 %v6340
      %6400 = vmatprep.subr.bf16.mxu0 %v6339
      %6401 = vmatpush2.bf16.msra.mxu0 %v6338
      %6402 = vmatprep.subr.bf16.mxu0 %v6337
      %6403 = vmatpush2.bf16.msra.mxu0 %v6336
      %6404 = vmatprep.subr.bf16.mxu0 %v6335
      %6405 = vmatpush2.bf16.msra.mxu0 %v6334
      %6406 = vmatprep.subr.bf16.mxu0 %v6333
      %6407 = vmatpush2.bf16.msra.mxu0 %v6332
      %6408 = vmatprep.subr.bf16.mxu0 %v6331
      %6409 = vmatpush2.bf16.msra.mxu0 %v6330
      %6410 = vmatprep.mubr.bf16.mxu0 %v6173
      %6411 = vmatmul.mubr.bf16.gmra.mxu0 %v6170
      %v6412 = vpop.f32.mrf.mxu0
      %v6413 = vadd.f32 0.0, %v6412
      %v6414 = vpop.f32.mrf.mxu0
      %v6415 = vadd.f32 0.0, %v6414
      %v6416 = vpop.f32.mrf.mxu0
      %v6417 = vadd.f32 0.0, %v6416
      %v6418 = vpop.f32.mrf.mxu0
      %v6419 = vadd.f32 0.0, %v6418
      %6420 = vmatprep.mubr.bf16.mxu0 %v6177
      %6421 = vmatmul.mubr.bf16.gmra.mxu0 %v6175
      %v6422 = vpop.f32.mrf.mxu0
      %v6423 = vadd.f32 0.0, %v6422
      %v6424 = vpop.f32.mrf.mxu0
      %v6425 = vadd.f32 0.0, %v6424
      %v6426 = vpop.f32.mrf.mxu0
      %v6427 = vadd.f32 0.0, %v6426
      %v6428 = vpop.f32.mrf.mxu0
      %v6429 = vadd.f32 0.0, %v6428
      %6430 = vmatprep.mubr.bf16.mxu0 %v6181
      %6431 = vmatmul.mubr.bf16.gmra.mxu0 %v6179
      %v6432 = vpop.f32.mrf.mxu0
      %v6433 = vadd.f32 0.0, %v6432
      %v6434 = vpop.f32.mrf.mxu0
      %v6435 = vadd.f32 0.0, %v6434
      %v6436 = vpop.f32.mrf.mxu0
      %v6437 = vadd.f32 0.0, %v6436
      %v6438 = vpop.f32.mrf.mxu0
      %v6439 = vadd.f32 0.0, %v6438
      %6440 = vmatprep.mubr.bf16.mxu0 %v6185
      %6441 = vmatmul.mubr.bf16.gmra.mxu0 %v6183
      %v6442 = vpop.f32.mrf.mxu0
      %v6443 = vadd.f32 0.0, %v6442
      %v6444 = vpop.f32.mrf.mxu0
      %v6445 = vadd.f32 0.0, %v6444
      %v6446 = vpop.f32.mrf.mxu0
      %v6447 = vadd.f32 0.0, %v6446
      %v6448 = vpop.f32.mrf.mxu0
      %v6449 = vadd.f32 0.0, %v6448
      %6450 = vmatprep.mubr.bf16.mxu0 %v6189
      %6451 = vmatmul.mubr.bf16.gmra.mxu0 %v6187
      %v6452 = vpop.f32.mrf.mxu0
      %v6453 = vadd.f32 0.0, %v6452
      %v6454 = vpop.f32.mrf.mxu0
      %v6455 = vadd.f32 0.0, %v6454
      %v6456 = vpop.f32.mrf.mxu0
      %v6457 = vadd.f32 0.0, %v6456
      %v6458 = vpop.f32.mrf.mxu0
      %v6459 = vadd.f32 0.0, %v6458
      %6460 = vmatprep.mubr.bf16.mxu0 %v6193
      %6461 = vmatmul.mubr.bf16.gmra.mxu0 %v6191
      %v6462 = vpop.f32.mrf.mxu0
      %v6463 = vadd.f32 0.0, %v6462
      %v6464 = vpop.f32.mrf.mxu0
      %v6465 = vadd.f32 0.0, %v6464
      %v6466 = vpop.f32.mrf.mxu0
      %v6467 = vadd.f32 0.0, %v6466
      %v6468 = vpop.f32.mrf.mxu0
      %v6469 = vadd.f32 0.0, %v6468
      %6470 = vmatprep.mubr.bf16.mxu0 %v6197
      %6471 = vmatmul.mubr.bf16.gmra.mxu0 %v6195
      %v6472 = vpop.f32.mrf.mxu0
      %v6473 = vadd.f32 0.0, %v6472
      %v6474 = vpop.f32.mrf.mxu0
      %v6475 = vadd.f32 0.0, %v6474
      %v6476 = vpop.f32.mrf.mxu0
      %v6477 = vadd.f32 0.0, %v6476
      %v6478 = vpop.f32.mrf.mxu0
      %v6479 = vadd.f32 0.0, %v6478
      %6480 = vmatprep.mubr.bf16.mxu0 %v6201
      %6481 = vmatmul.mubr.bf16.gmra.mxu0 %v6199
      %v6482 = vpop.f32.mrf.mxu0
      %v6483 = vadd.f32 0.0, %v6482
      %v6484 = vpop.f32.mrf.mxu0
      %v6485 = vadd.f32 0.0, %v6484
      %v6486 = vpop.f32.mrf.mxu0
      %v6487 = vadd.f32 0.0, %v6486
      %v6488 = vpop.f32.mrf.mxu0
      %v6489 = vadd.f32 0.0, %v6488
      %6490 = vdwg.mxu0
      %v6491 = vadd.f32 %v6018, %v6413
      %v6492 = vadd.f32 %v6019, %v6415
      %v6493 = vadd.f32 %v6020, %v6417
      %v6494 = vadd.f32 %v6021, %v6419
      %v6495 = vadd.f32 %v6022, %v6423
      %v6496 = vadd.f32 %v6023, %v6425
      %v6497 = vadd.f32 %v6024, %v6427
      %v6498 = vadd.f32 %v6025, %v6429
      %v6499 = vadd.f32 %v6026, %v6433
      %v6500 = vadd.f32 %v6027, %v6435
      %v6501 = vadd.f32 %v6028, %v6437
      %v6502 = vadd.f32 %v6029, %v6439
      %v6503 = vadd.f32 %v6030, %v6443
      %v6504 = vadd.f32 %v6031, %v6445
      %v6505 = vadd.f32 %v6032, %v6447
      %v6506 = vadd.f32 %v6033, %v6449
      %v6507 = vadd.f32 %v6034, %v6453
      %v6508 = vadd.f32 %v6035, %v6455
      %v6509 = vadd.f32 %v6036, %v6457
      %v6510 = vadd.f32 %v6037, %v6459
      %v6511 = vadd.f32 %v6038, %v6463
      %v6512 = vadd.f32 %v6039, %v6465
      %v6513 = vadd.f32 %v6040, %v6467
      %v6514 = vadd.f32 %v6041, %v6469
      %v6515 = vadd.f32 %v6042, %v6473
      %v6516 = vadd.f32 %v6043, %v6475
      %v6517 = vadd.f32 %v6044, %v6477
      %v6518 = vadd.f32 %v6045, %v6479
      %v6519 = vadd.f32 %v6046, %v6483
      %v6520 = vadd.f32 %v6047, %v6485
      %v6521 = vadd.f32 %v6048, %v6487
      %v6522 = vadd.f32 %v6049, %v6489
      %v6523 = vld [vmem:[%s246 + $0x110] sm:$0x33]
      %v6524 = vld [vmem:[%s1989] sm:$0xff]
      %v6525 = vld [vmem:[%s1989 + $0x8] sm:$0xff]
      %v6526 = vld [vmem:[%s1989 + $0x10] sm:$0xff]
      %v6527 = vld [vmem:[%s1989 + $0x18] sm:$0xff]
      %v6528 = vld [vmem:[%s1989 + $0x20] sm:$0xff]
      %v6529 = vld [vmem:[%s1989 + $0x28] sm:$0xff]
      %v6530 = vld [vmem:[%s1989 + $0x30] sm:$0xff]
      %v6531 = vld [vmem:[%s1989 + $0x38] sm:$0xff]
      %v6532 = vld [vmem:[%s1989 + $0x40] sm:$0xff]
      %v6533 = vld [vmem:[%s1989 + $0x48] sm:$0xff]
      %v6534 = vld [vmem:[%s1989 + $0x50] sm:$0xff]
      %v6535 = vld [vmem:[%s1989 + $0x58] sm:$0xff]
      %v6536 = vld [vmem:[%s1989 + $0x60] sm:$0xff]
      %v6537 = vld [vmem:[%s1989 + $0x68] sm:$0xff]
      %v6538 = vld [vmem:[%s1989 + $0x70] sm:$0xff]
      %v6539 = vld [vmem:[%s1989 + $0x78] sm:$0xff]
      %v6540 = vld [vmem:[%s1989 + $0x80] sm:$0xff]
      %v6541 = vld [vmem:[%s1989 + $0x88] sm:$0xff]
      %v6542 = vld [vmem:[%s1989 + $0x90] sm:$0xff]
      %v6543 = vld [vmem:[%s1989 + $0x98] sm:$0xff]
      %v6544 = vld [vmem:[%s1989 + $0xa0] sm:$0xff]
      %v6545 = vld [vmem:[%s1989 + $0xa8] sm:$0xff]
      %v6546 = vld [vmem:[%s1989 + $0xb0] sm:$0xff]
      %v6547 = vld [vmem:[%s1989 + $0xb8] sm:$0xff]
      %v6548 = vld [vmem:[%s1989 + $0xc0] sm:$0xff]
      %v6549 = vld [vmem:[%s1989 + $0xc8] sm:$0xff]
      %v6550 = vld [vmem:[%s1989 + $0xd0] sm:$0xff]
      %v6551 = vld [vmem:[%s1989 + $0xd8] sm:$0xff]
      %v6552 = vld [vmem:[%s1989 + $0xe0] sm:$0xff]
      %v6553 = vld [vmem:[%s1989 + $0xe8] sm:$0xff]
      %v6554 = vld [vmem:[%s1989 + $0xf0] sm:$0xff]
      %v6555 = vld [vmem:[%s1989 + $0xf8] sm:$0xff]
      %v6557 = vunpack.c.l.b16 %v6523
      %v6558 = vunpack.c.h.b16 %v6523
      %v6559 = vpack.c.b16 %v6557, %v6557
      %v6560 = vpack.c.b16 %v6558, %v6558
      %v6562 = vshrl.u32 %v6150, 16
      %v6564 = vrot.slane %v6562, 1
      %v6565 = vshll.u32 %v6150, 16
      %v6567 = vrot.slane %v6565, 2
      %v6568 = vor.u32 %v6564, %v6567
      %v6570 = vshrl.u32 %v6152, 16
      %v6572 = vrot.slane %v6570, 1
      %v6573 = vshll.u32 %v6152, 16
      %v6575 = vrot.slane %v6573, 2
      %v6576 = vor.u32 %v6572, %v6575
      %v6577 = vsel %vm2027, %v6568, %v6576
      %v6579 = vshrl.u32 %v6151, 16
      %v6581 = vrot.slane %v6579, 1
      %v6582 = vshll.u32 %v6151, 16
      %v6584 = vrot.slane %v6582, 2
      %v6585 = vor.u32 %v6581, %v6584
      %v6587 = vshrl.u32 %v6153, 16
      %v6589 = vrot.slane %v6587, 1
      %v6590 = vshll.u32 %v6153, 16
      %v6592 = vrot.slane %v6590, 2
      %v6593 = vor.u32 %v6589, %v6592
      %v6594 = vsel %vm2027, %v6585, %v6593
      %v6596 = vshrl.u32 %v6154, 16
      %v6598 = vrot.slane %v6596, 1
      %v6599 = vshll.u32 %v6154, 16
      %v6601 = vrot.slane %v6599, 2
      %v6602 = vor.u32 %v6598, %v6601
      %v6603 = vsel %vm2027, %v6576, %v6602
      %v6605 = vshrl.u32 %v6155, 16
      %v6607 = vrot.slane %v6605, 1
      %v6608 = vshll.u32 %v6155, 16
      %v6610 = vrot.slane %v6608, 2
      %v6611 = vor.u32 %v6607, %v6610
      %v6612 = vsel %vm2027, %v6593, %v6611
      %v6614 = vshrl.u32 %v6156, 16
      %v6616 = vrot.slane %v6614, 1
      %v6617 = vshll.u32 %v6156, 16
      %v6619 = vrot.slane %v6617, 2
      %v6620 = vor.u32 %v6616, %v6619
      %v6621 = vsel %vm2027, %v6602, %v6620
      %v6623 = vshrl.u32 %v6157, 16
      %v6625 = vrot.slane %v6623, 1
      %v6626 = vshll.u32 %v6157, 16
      %v6628 = vrot.slane %v6626, 2
      %v6629 = vor.u32 %v6625, %v6628
      %v6630 = vsel %vm2027, %v6611, %v6629
      %v6632 = vshrl.u32 %v6158, 16
      %v6634 = vrot.slane %v6632, 1
      %v6635 = vshll.u32 %v6158, 16
      %v6637 = vrot.slane %v6635, 2
      %v6638 = vor.u32 %v6634, %v6637
      %v6639 = vsel %vm2027, %v6620, %v6638
      %v6641 = vshrl.u32 %v6159, 16
      %v6643 = vrot.slane %v6641, 1
      %v6644 = vshll.u32 %v6159, 16
      %v6646 = vrot.slane %v6644, 2
      %v6647 = vor.u32 %v6643, %v6646
      %v6648 = vsel %vm2027, %v6629, %v6647
      %v6650 = vshrl.u32 %v6160, 16
      %v6652 = vrot.slane %v6650, 1
      %v6653 = vshll.u32 %v6160, 16
      %v6655 = vrot.slane %v6653, 2
      %v6656 = vor.u32 %v6652, %v6655
      %v6657 = vsel %vm2027, %v6638, %v6656
      %v6659 = vshrl.u32 %v6161, 16
      %v6661 = vrot.slane %v6659, 1
      %v6662 = vshll.u32 %v6161, 16
      %v6664 = vrot.slane %v6662, 2
      %v6665 = vor.u32 %v6661, %v6664
      %v6666 = vsel %vm2027, %v6647, %v6665
      %v6668 = vshrl.u32 %v6162, 16
      %v6670 = vrot.slane %v6668, 1
      %v6671 = vshll.u32 %v6162, 16
      %v6673 = vrot.slane %v6671, 2
      %v6674 = vor.u32 %v6670, %v6673
      %v6675 = vsel %vm2027, %v6656, %v6674
      %v6677 = vshrl.u32 %v6163, 16
      %v6679 = vrot.slane %v6677, 1
      %v6680 = vshll.u32 %v6163, 16
      %v6682 = vrot.slane %v6680, 2
      %v6683 = vor.u32 %v6679, %v6682
      %v6684 = vsel %vm2027, %v6665, %v6683
      %v6686 = vshrl.u32 %v6164, 16
      %v6688 = vrot.slane %v6686, 1
      %v6689 = vshll.u32 %v6164, 16
      %v6691 = vrot.slane %v6689, 2
      %v6692 = vor.u32 %v6688, %v6691
      %v6693 = vsel %vm2027, %v6674, %v6692
      %v6695 = vshrl.u32 %v6165, 16
      %v6697 = vrot.slane %v6695, 1
      %v6698 = vshll.u32 %v6165, 16
      %v6700 = vrot.slane %v6698, 2
      %v6701 = vor.u32 %v6697, %v6700
      %v6702 = vsel %vm2027, %v6683, %v6701
      %v6704 = vshrl.u32 %v6559, 16
      %v6706 = vrot.slane %v6704, 1
      %v6707 = vshll.u32 %v6559, 16
      %v6709 = vrot.slane %v6707, 2
      %v6710 = vor.u32 %v6706, %v6709
      %v6711 = vsel %vm2027, %v6692, %v6710
      %v6713 = vshrl.u32 %v6560, 16
      %v6715 = vrot.slane %v6713, 1
      %v6716 = vshll.u32 %v6560, 16
      %v6718 = vrot.slane %v6716, 2
      %v6719 = vor.u32 %v6715, %v6718
      %v6720 = vsel %vm2027, %v6701, %v6719
      %v6769 = vunpack.c.l.b16 %v6524
      %v6770 = vunpack.c.h.b16 %v6524
      %v6771 = vunpack.c.l.b16 %v6525
      %v6772 = vunpack.c.h.b16 %v6525
      %v6773 = vunpack.c.l.b16 %v6526
      %v6774 = vunpack.c.h.b16 %v6526
      %v6775 = vunpack.c.l.b16 %v6527
      %v6776 = vunpack.c.h.b16 %v6527
      %v6777 = vunpack.c.l.b16 %v6528
      %v6778 = vunpack.c.h.b16 %v6528
      %v6779 = vunpack.c.l.b16 %v6529
      %v6780 = vunpack.c.h.b16 %v6529
      %v6781 = vunpack.c.l.b16 %v6530
      %v6782 = vunpack.c.h.b16 %v6530
      %v6783 = vunpack.c.l.b16 %v6531
      %v6784 = vunpack.c.h.b16 %v6531
      %v6785 = vunpack.c.l.b16 %v6532
      %v6786 = vunpack.c.h.b16 %v6532
      %v6787 = vunpack.c.l.b16 %v6533
      %v6788 = vunpack.c.h.b16 %v6533
      %v6789 = vunpack.c.l.b16 %v6534
      %v6790 = vunpack.c.h.b16 %v6534
      %v6791 = vunpack.c.l.b16 %v6535
      %v6792 = vunpack.c.h.b16 %v6535
      %v6793 = vunpack.c.l.b16 %v6536
      %v6794 = vunpack.c.h.b16 %v6536
      %v6795 = vunpack.c.l.b16 %v6537
      %v6796 = vunpack.c.h.b16 %v6537
      %v6797 = vunpack.c.l.b16 %v6538
      %v6798 = vunpack.c.h.b16 %v6538
      %v6799 = vunpack.c.l.b16 %v6539
      %v6800 = vunpack.c.h.b16 %v6539
      %v6801 = vunpack.c.l.b16 %v6540
      %v6802 = vunpack.c.h.b16 %v6540
      %v6803 = vunpack.c.l.b16 %v6541
      %v6804 = vunpack.c.h.b16 %v6541
      %v6805 = vunpack.c.l.b16 %v6542
      %v6806 = vunpack.c.h.b16 %v6542
      %v6807 = vunpack.c.l.b16 %v6543
      %v6808 = vunpack.c.h.b16 %v6543
      %v6809 = vunpack.c.l.b16 %v6544
      %v6810 = vunpack.c.h.b16 %v6544
      %v6811 = vunpack.c.l.b16 %v6545
      %v6812 = vunpack.c.h.b16 %v6545
      %v6813 = vunpack.c.l.b16 %v6546
      %v6814 = vunpack.c.h.b16 %v6546
      %v6815 = vunpack.c.l.b16 %v6547
      %v6816 = vunpack.c.h.b16 %v6547
      %v6817 = vunpack.c.l.b16 %v6548
      %v6818 = vunpack.c.h.b16 %v6548
      %v6819 = vunpack.c.l.b16 %v6549
      %v6820 = vunpack.c.h.b16 %v6549
      %v6821 = vunpack.c.l.b16 %v6550
      %v6822 = vunpack.c.h.b16 %v6550
      %v6823 = vunpack.c.l.b16 %v6551
      %v6824 = vunpack.c.h.b16 %v6551
      %v6825 = vunpack.c.l.b16 %v6552
      %v6826 = vunpack.c.h.b16 %v6552
      %v6827 = vunpack.c.l.b16 %v6553
      %v6828 = vunpack.c.h.b16 %v6553
      %v6829 = vunpack.c.l.b16 %v6554
      %v6830 = vunpack.c.h.b16 %v6554
      %v6831 = vunpack.c.l.b16 %v6555
      %v6832 = vunpack.c.h.b16 %v6555
      %v6833 = vpack.c.b16 %v6771, %v6769
      %v6834 = vpack.c.b16 %v6772, %v6770
      %v6835 = vpack.c.b16 %v6775, %v6773
      %v6836 = vpack.c.b16 %v6776, %v6774
      %v6837 = vpack.c.b16 %v6779, %v6777
      %v6838 = vpack.c.b16 %v6780, %v6778
      %v6839 = vpack.c.b16 %v6783, %v6781
      %v6840 = vpack.c.b16 %v6784, %v6782
      %v6841 = vpack.c.b16 %v6787, %v6785
      %v6842 = vpack.c.b16 %v6788, %v6786
      %v6843 = vpack.c.b16 %v6791, %v6789
      %v6844 = vpack.c.b16 %v6792, %v6790
      %v6845 = vpack.c.b16 %v6795, %v6793
      %v6846 = vpack.c.b16 %v6796, %v6794
      %v6847 = vpack.c.b16 %v6799, %v6797
      %v6848 = vpack.c.b16 %v6800, %v6798
      %v6849 = vpack.c.b16 %v6803, %v6801
      %v6850 = vpack.c.b16 %v6804, %v6802
      %v6851 = vpack.c.b16 %v6807, %v6805
      %v6852 = vpack.c.b16 %v6808, %v6806
      %v6853 = vpack.c.b16 %v6811, %v6809
      %v6854 = vpack.c.b16 %v6812, %v6810
      %v6855 = vpack.c.b16 %v6815, %v6813
      %v6856 = vpack.c.b16 %v6816, %v6814
      %v6857 = vpack.c.b16 %v6819, %v6817
      %v6858 = vpack.c.b16 %v6820, %v6818
      %v6859 = vpack.c.b16 %v6823, %v6821
      %v6860 = vpack.c.b16 %v6824, %v6822
      %v6861 = vpack.c.b16 %v6827, %v6825
      %v6862 = vpack.c.b16 %v6828, %v6826
      %v6863 = vpack.c.b16 %v6831, %v6829
      %v6864 = vpack.c.b16 %v6832, %v6830
      %6897 = vmatprep.subr.bf16.mxu0 %v6848
      %6898 = vmatpush1.bf16.msra.mxu0 %v6847
      %6899 = vmatprep.subr.bf16.mxu0 %v6846
      %6900 = vmatpush1.bf16.msra.mxu0 %v6845
      %6901 = vmatprep.subr.bf16.mxu0 %v6844
      %6902 = vmatpush1.bf16.msra.mxu0 %v6843
      %6903 = vmatprep.subr.bf16.mxu0 %v6842
      %6904 = vmatpush1.bf16.msra.mxu0 %v6841
      %6905 = vmatprep.subr.bf16.mxu0 %v6840
      %6906 = vmatpush1.bf16.msra.mxu0 %v6839
      %6907 = vmatprep.subr.bf16.mxu0 %v6838
      %6908 = vmatpush1.bf16.msra.mxu0 %v6837
      %6909 = vmatprep.subr.bf16.mxu0 %v6836
      %6910 = vmatpush1.bf16.msra.mxu0 %v6835
      %6911 = vmatprep.subr.bf16.mxu0 %v6834
      %6912 = vmatpush1.bf16.msra.mxu0 %v6833
      %6913 = vmatprep.subr.bf16.mxu0 %v6864
      %6914 = vmatpush2.bf16.msra.mxu0 %v6863
      %6915 = vmatprep.subr.bf16.mxu0 %v6862
      %6916 = vmatpush2.bf16.msra.mxu0 %v6861
      %6917 = vmatprep.subr.bf16.mxu0 %v6860
      %6918 = vmatpush2.bf16.msra.mxu0 %v6859
      %6919 = vmatprep.subr.bf16.mxu0 %v6858
      %6920 = vmatpush2.bf16.msra.mxu0 %v6857
      %6921 = vmatprep.subr.bf16.mxu0 %v6856
      %6922 = vmatpush2.bf16.msra.mxu0 %v6855
      %6923 = vmatprep.subr.bf16.mxu0 %v6854
      %6924 = vmatpush2.bf16.msra.mxu0 %v6853
      %6925 = vmatprep.subr.bf16.mxu0 %v6852
      %6926 = vmatpush2.bf16.msra.mxu0 %v6851
      %6927 = vmatprep.subr.bf16.mxu0 %v6850
      %6928 = vmatpush2.bf16.msra.mxu0 %v6849
      %6929 = vmatprep.mubr.bf16.mxu0 %v6594
      %6930 = vmatmul.mubr.bf16.gmra.mxu0 %v6577
      %v6931 = vpop.f32.mrf.mxu0
      %v6932 = vadd.f32 0.0, %v6931
      %v6933 = vpop.f32.mrf.mxu0
      %v6934 = vadd.f32 0.0, %v6933
      %v6935 = vpop.f32.mrf.mxu0
      %v6936 = vadd.f32 0.0, %v6935
      %v6937 = vpop.f32.mrf.mxu0
      %v6938 = vadd.f32 0.0, %v6937
      %6939 = vmatprep.mubr.bf16.mxu0 %v6612
      %6940 = vmatmul.mubr.bf16.gmra.mxu0 %v6603
      %v6941 = vpop.f32.mrf.mxu0
      %v6942 = vadd.f32 0.0, %v6941
      %v6943 = vpop.f32.mrf.mxu0
      %v6944 = vadd.f32 0.0, %v6943
      %v6945 = vpop.f32.mrf.mxu0
      %v6946 = vadd.f32 0.0, %v6945
      %v6947 = vpop.f32.mrf.mxu0
      %v6948 = vadd.f32 0.0, %v6947
      %6949 = vmatprep.mubr.bf16.mxu0 %v6630
      %6950 = vmatmul.mubr.bf16.gmra.mxu0 %v6621
      %v6951 = vpop.f32.mrf.mxu0
      %v6952 = vadd.f32 0.0, %v6951
      %v6953 = vpop.f32.mrf.mxu0
      %v6954 = vadd.f32 0.0, %v6953
      %v6955 = vpop.f32.mrf.mxu0
      %v6956 = vadd.f32 0.0, %v6955
      %v6957 = vpop.f32.mrf.mxu0
      %v6958 = vadd.f32 0.0, %v6957
      %6959 = vmatprep.mubr.bf16.mxu0 %v6648
      %6960 = vmatmul.mubr.bf16.gmra.mxu0 %v6639
      %v6961 = vpop.f32.mrf.mxu0
      %v6962 = vadd.f32 0.0, %v6961
      %v6963 = vpop.f32.mrf.mxu0
      %v6964 = vadd.f32 0.0, %v6963
      %v6965 = vpop.f32.mrf.mxu0
      %v6966 = vadd.f32 0.0, %v6965
      %v6967 = vpop.f32.mrf.mxu0
      %v6968 = vadd.f32 0.0, %v6967
      %6969 = vmatprep.mubr.bf16.mxu0 %v6666
      %6970 = vmatmul.mubr.bf16.gmra.mxu0 %v6657
      %v6971 = vpop.f32.mrf.mxu0
      %v6972 = vadd.f32 0.0, %v6971
      %v6973 = vpop.f32.mrf.mxu0
      %v6974 = vadd.f32 0.0, %v6973
      %v6975 = vpop.f32.mrf.mxu0
      %v6976 = vadd.f32 0.0, %v6975
      %v6977 = vpop.f32.mrf.mxu0
      %v6978 = vadd.f32 0.0, %v6977
      %6979 = vmatprep.mubr.bf16.mxu0 %v6684
      %6980 = vmatmul.mubr.bf16.gmra.mxu0 %v6675
      %v6981 = vpop.f32.mrf.mxu0
      %v6982 = vadd.f32 0.0, %v6981
      %v6983 = vpop.f32.mrf.mxu0
      %v6984 = vadd.f32 0.0, %v6983
      %v6985 = vpop.f32.mrf.mxu0
      %v6986 = vadd.f32 0.0, %v6985
      %v6987 = vpop.f32.mrf.mxu0
      %v6988 = vadd.f32 0.0, %v6987
      %6989 = vmatprep.mubr.bf16.mxu0 %v6702
      %6990 = vmatmul.mubr.bf16.gmra.mxu0 %v6693
      %v6991 = vpop.f32.mrf.mxu0
      %v6992 = vadd.f32 0.0, %v6991
      %v6993 = vpop.f32.mrf.mxu0
      %v6994 = vadd.f32 0.0, %v6993
      %v6995 = vpop.f32.mrf.mxu0
      %v6996 = vadd.f32 0.0, %v6995
      %v6997 = vpop.f32.mrf.mxu0
      %v6998 = vadd.f32 0.0, %v6997
      %6999 = vmatprep.mubr.bf16.mxu0 %v6720
      %7000 = vmatmul.mubr.bf16.gmra.mxu0 %v6711
      %v7001 = vpop.f32.mrf.mxu0
      %v7002 = vadd.f32 0.0, %v7001
      %v7003 = vpop.f32.mrf.mxu0
      %v7004 = vadd.f32 0.0, %v7003
      %v7005 = vpop.f32.mrf.mxu0
      %v7006 = vadd.f32 0.0, %v7005
      %v7007 = vpop.f32.mrf.mxu0
      %v7008 = vadd.f32 0.0, %v7007
      %7009 = vdwg.mxu0
      %v7010 = vadd.f32 %v6491, %v6932
      %v7011 = vadd.f32 %v6492, %v6934
      %v7012 = vadd.f32 %v6493, %v6936
      %v7013 = vadd.f32 %v6494, %v6938
      %v7014 = vadd.f32 %v6495, %v6942
      %v7015 = vadd.f32 %v6496, %v6944
      %v7016 = vadd.f32 %v6497, %v6946
      %v7017 = vadd.f32 %v6498, %v6948
      %v7018 = vadd.f32 %v6499, %v6952
      %v7019 = vadd.f32 %v6500, %v6954
      %v7020 = vadd.f32 %v6501, %v6956
      %v7021 = vadd.f32 %v6502, %v6958
      %v7022 = vadd.f32 %v6503, %v6962
      %v7023 = vadd.f32 %v6504, %v6964
      %v7024 = vadd.f32 %v6505, %v6966
      %v7025 = vadd.f32 %v6506, %v6968
      %v7026 = vadd.f32 %v6507, %v6972
      %v7027 = vadd.f32 %v6508, %v6974
      %v7028 = vadd.f32 %v6509, %v6976
      %v7029 = vadd.f32 %v6510, %v6978
      %v7030 = vadd.f32 %v6511, %v6982
      %v7031 = vadd.f32 %v6512, %v6984
      %v7032 = vadd.f32 %v6513, %v6986
      %v7033 = vadd.f32 %v6514, %v6988
      %v7034 = vadd.f32 %v6515, %v6992
      %v7035 = vadd.f32 %v6516, %v6994
      %v7036 = vadd.f32 %v6517, %v6996
      %v7037 = vadd.f32 %v6518, %v6998
      %v7038 = vadd.f32 %v6519, %v7002
      %v7039 = vadd.f32 %v6520, %v7004
      %v7040 = vadd.f32 %v6521, %v7006
      %v7041 = vadd.f32 %v6522, %v7008
      %v7042 = vld [vmem:[%s246 + $0x90] sm:$0xcc]
      %v7043 = vld [vmem:[%s2510] sm:$0xff]
      %v7044 = vld [vmem:[%s2510 + $0x8] sm:$0xff]
      %v7045 = vld [vmem:[%s2510 + $0x10] sm:$0xff]
      %v7046 = vld [vmem:[%s2510 + $0x18] sm:$0xff]
      %v7047 = vld [vmem:[%s2510 + $0x20] sm:$0xff]
      %v7048 = vld [vmem:[%s2510 + $0x28] sm:$0xff]
      %v7049 = vld [vmem:[%s2510 + $0x30] sm:$0xff]
      %v7050 = vld [vmem:[%s2510 + $0x38] sm:$0xff]
      %v7051 = vld [vmem:[%s2510 + $0x40] sm:$0xff]
      %v7052 = vld [vmem:[%s2510 + $0x48] sm:$0xff]
      %v7053 = vld [vmem:[%s2510 + $0x50] sm:$0xff]
      %v7054 = vld [vmem:[%s2510 + $0x58] sm:$0xff]
      %v7055 = vld [vmem:[%s2510 + $0x60] sm:$0xff]
      %v7056 = vld [vmem:[%s2510 + $0x68] sm:$0xff]
      %v7057 = vld [vmem:[%s2510 + $0x70] sm:$0xff]
      %v7058 = vld [vmem:[%s2510 + $0x78] sm:$0xff]
      %v7059 = vld [vmem:[%s2510 + $0x80] sm:$0xff]
      %v7060 = vld [vmem:[%s2510 + $0x88] sm:$0xff]
      %v7061 = vld [vmem:[%s2510 + $0x90] sm:$0xff]
      %v7062 = vld [vmem:[%s2510 + $0x98] sm:$0xff]
      %v7063 = vld [vmem:[%s2510 + $0xa0] sm:$0xff]
      %v7064 = vld [vmem:[%s2510 + $0xa8] sm:$0xff]
      %v7065 = vld [vmem:[%s2510 + $0xb0] sm:$0xff]
      %v7066 = vld [vmem:[%s2510 + $0xb8] sm:$0xff]
      %v7067 = vld [vmem:[%s2510 + $0xc0] sm:$0xff]
      %v7068 = vld [vmem:[%s2510 + $0xc8] sm:$0xff]
      %v7069 = vld [vmem:[%s2510 + $0xd0] sm:$0xff]
      %v7070 = vld [vmem:[%s2510 + $0xd8] sm:$0xff]
      %v7071 = vld [vmem:[%s2510 + $0xe0] sm:$0xff]
      %v7072 = vld [vmem:[%s2510 + $0xe8] sm:$0xff]
      %v7073 = vld [vmem:[%s2510 + $0xf0] sm:$0xff]
      %v7074 = vld [vmem:[%s2510 + $0xf8] sm:$0xff]
      %v7076 = vunpack.c.l.b16 %v7042
      %v7077 = vunpack.c.h.b16 %v7042
      %v7078 = vpack.c.b16 %v6118, %v7076
      %v7079 = vpack.c.b16 %v6119, %v7077
      %v7080 = vrot.slane %v7078, 2
      %v7081 = vrot.slane %v6152, 2
      %v7082 = vsel %vm2548, %v7080, %v7081
      %v7083 = vrot.slane %v7079, 2
      %v7084 = vrot.slane %v6153, 2
      %v7085 = vsel %vm2548, %v7083, %v7084
      %v7086 = vrot.slane %v6154, 2
      %v7087 = vsel %vm2548, %v7081, %v7086
      %v7088 = vrot.slane %v6155, 2
      %v7089 = vsel %vm2548, %v7084, %v7088
      %v7090 = vrot.slane %v6156, 2
      %v7091 = vsel %vm2548, %v7086, %v7090
      %v7092 = vrot.slane %v6157, 2
      %v7093 = vsel %vm2548, %v7088, %v7092
      %v7094 = vrot.slane %v6158, 2
      %v7095 = vsel %vm2548, %v7090, %v7094
      %v7096 = vrot.slane %v6159, 2
      %v7097 = vsel %vm2548, %v7092, %v7096
      %v7098 = vrot.slane %v6160, 2
      %v7099 = vsel %vm2548, %v7094, %v7098
      %v7100 = vrot.slane %v6161, 2
      %v7101 = vsel %vm2548, %v7096, %v7100
      %v7102 = vrot.slane %v6162, 2
      %v7103 = vsel %vm2548, %v7098, %v7102
      %v7104 = vrot.slane %v6163, 2
      %v7105 = vsel %vm2548, %v7100, %v7104
      %v7106 = vrot.slane %v6164, 2
      %v7107 = vsel %vm2548, %v7102, %v7106
      %v7108 = vrot.slane %v6165, 2
      %v7109 = vsel %vm2548, %v7104, %v7108
      %v7110 = vrot.slane %v6559, 2
      %v7111 = vsel %vm2548, %v7106, %v7110
      %v7112 = vrot.slane %v6560, 2
      %v7113 = vsel %vm2548, %v7108, %v7112
      %v7162 = vunpack.c.l.b16 %v7043
      %v7163 = vunpack.c.h.b16 %v7043
      %v7164 = vunpack.c.l.b16 %v7044
      %v7165 = vunpack.c.h.b16 %v7044
      %v7166 = vunpack.c.l.b16 %v7045
      %v7167 = vunpack.c.h.b16 %v7045
      %v7168 = vunpack.c.l.b16 %v7046
      %v7169 = vunpack.c.h.b16 %v7046
      %v7170 = vunpack.c.l.b16 %v7047
      %v7171 = vunpack.c.h.b16 %v7047
      %v7172 = vunpack.c.l.b16 %v7048
      %v7173 = vunpack.c.h.b16 %v7048
      %v7174 = vunpack.c.l.b16 %v7049
      %v7175 = vunpack.c.h.b16 %v7049
      %v7176 = vunpack.c.l.b16 %v7050
      %v7177 = vunpack.c.h.b16 %v7050
      %v7178 = vunpack.c.l.b16 %v7051
      %v7179 = vunpack.c.h.b16 %v7051
      %v7180 = vunpack.c.l.b16 %v7052
      %v7181 = vunpack.c.h.b16 %v7052
      %v7182 = vunpack.c.l.b16 %v7053
      %v7183 = vunpack.c.h.b16 %v7053
      %v7184 = vunpack.c.l.b16 %v7054
      %v7185 = vunpack.c.h.b16 %v7054
      %v7186 = vunpack.c.l.b16 %v7055
      %v7187 = vunpack.c.h.b16 %v7055
      %v7188 = vunpack.c.l.b16 %v7056
      %v7189 = vunpack.c.h.b16 %v7056
      %v7190 = vunpack.c.l.b16 %v7057
      %v7191 = vunpack.c.h.b16 %v7057
      %v7192 = vunpack.c.l.b16 %v7058
      %v7193 = vunpack.c.h.b16 %v7058
      %v7194 = vunpack.c.l.b16 %v7059
      %v7195 = vunpack.c.h.b16 %v7059
      %v7196 = vunpack.c.l.b16 %v7060
      %v7197 = vunpack.c.h.b16 %v7060
      %v7198 = vunpack.c.l.b16 %v7061
      %v7199 = vunpack.c.h.b16 %v7061
      %v7200 = vunpack.c.l.b16 %v7062
      %v7201 = vunpack.c.h.b16 %v7062
      %v7202 = vunpack.c.l.b16 %v7063
      %v7203 = vunpack.c.h.b16 %v7063
      %v7204 = vunpack.c.l.b16 %v7064
      %v7205 = vunpack.c.h.b16 %v7064
      %v7206 = vunpack.c.l.b16 %v7065
      %v7207 = vunpack.c.h.b16 %v7065
      %v7208 = vunpack.c.l.b16 %v7066
      %v7209 = vunpack.c.h.b16 %v7066
      %v7210 = vunpack.c.l.b16 %v7067
      %v7211 = vunpack.c.h.b16 %v7067
      %v7212 = vunpack.c.l.b16 %v7068
      %v7213 = vunpack.c.h.b16 %v7068
      %v7214 = vunpack.c.l.b16 %v7069
      %v7215 = vunpack.c.h.b16 %v7069
      %v7216 = vunpack.c.l.b16 %v7070
      %v7217 = vunpack.c.h.b16 %v7070
      %v7218 = vunpack.c.l.b16 %v7071
      %v7219 = vunpack.c.h.b16 %v7071
      %v7220 = vunpack.c.l.b16 %v7072
      %v7221 = vunpack.c.h.b16 %v7072
      %v7222 = vunpack.c.l.b16 %v7073
      %v7223 = vunpack.c.h.b16 %v7073
      %v7224 = vunpack.c.l.b16 %v7074
      %v7225 = vunpack.c.h.b16 %v7074
      %v7226 = vpack.c.b16 %v7164, %v7162
      %v7227 = vpack.c.b16 %v7165, %v7163
      %v7228 = vpack.c.b16 %v7168, %v7166
      %v7229 = vpack.c.b16 %v7169, %v7167
      %v7230 = vpack.c.b16 %v7172, %v7170
      %v7231 = vpack.c.b16 %v7173, %v7171
      %v7232 = vpack.c.b16 %v7176, %v7174
      %v7233 = vpack.c.b16 %v7177, %v7175
      %v7234 = vpack.c.b16 %v7180, %v7178
      %v7235 = vpack.c.b16 %v7181, %v7179
      %v7236 = vpack.c.b16 %v7184, %v7182
      %v7237 = vpack.c.b16 %v7185, %v7183
      %v7238 = vpack.c.b16 %v7188, %v7186
      %v7239 = vpack.c.b16 %v7189, %v7187
      %v7240 = vpack.c.b16 %v7192, %v7190
      %v7241 = vpack.c.b16 %v7193, %v7191
      %v7242 = vpack.c.b16 %v7196, %v7194
      %v7243 = vpack.c.b16 %v7197, %v7195
      %v7244 = vpack.c.b16 %v7200, %v7198
      %v7245 = vpack.c.b16 %v7201, %v7199
      %v7246 = vpack.c.b16 %v7204, %v7202
      %v7247 = vpack.c.b16 %v7205, %v7203
      %v7248 = vpack.c.b16 %v7208, %v7206
      %v7249 = vpack.c.b16 %v7209, %v7207
      %v7250 = vpack.c.b16 %v7212, %v7210
      %v7251 = vpack.c.b16 %v7213, %v7211
      %v7252 = vpack.c.b16 %v7216, %v7214
      %v7253 = vpack.c.b16 %v7217, %v7215
      %v7254 = vpack.c.b16 %v7220, %v7218
      %v7255 = vpack.c.b16 %v7221, %v7219
      %v7256 = vpack.c.b16 %v7224, %v7222
      %v7257 = vpack.c.b16 %v7225, %v7223
      %7290 = vmatprep.subr.bf16.mxu0 %v7241
      %7291 = vmatpush1.bf16.msra.mxu0 %v7240
      %7292 = vmatprep.subr.bf16.mxu0 %v7239
      %7293 = vmatpush1.bf16.msra.mxu0 %v7238
      %7294 = vmatprep.subr.bf16.mxu0 %v7237
      %7295 = vmatpush1.bf16.msra.mxu0 %v7236
      %7296 = vmatprep.subr.bf16.mxu0 %v7235
      %7297 = vmatpush1.bf16.msra.mxu0 %v7234
      %7298 = vmatprep.subr.bf16.mxu0 %v7233
      %7299 = vmatpush1.bf16.msra.mxu0 %v7232
      %7300 = vmatprep.subr.bf16.mxu0 %v7231
      %7301 = vmatpush1.bf16.msra.mxu0 %v7230
      %7302 = vmatprep.subr.bf16.mxu0 %v7229
      %7303 = vmatpush1.bf16.msra.mxu0 %v7228
      %7304 = vmatprep.subr.bf16.mxu0 %v7227
      %7305 = vmatpush1.bf16.msra.mxu0 %v7226
      %7306 = vmatprep.subr.bf16.mxu0 %v7257
      %7307 = vmatpush2.bf16.msra.mxu0 %v7256
      %7308 = vmatprep.subr.bf16.mxu0 %v7255
      %7309 = vmatpush2.bf16.msra.mxu0 %v7254
      %7310 = vmatprep.subr.bf16.mxu0 %v7253
      %7311 = vmatpush2.bf16.msra.mxu0 %v7252
      %7312 = vmatprep.subr.bf16.mxu0 %v7251
      %7313 = vmatpush2.bf16.msra.mxu0 %v7250
      %7314 = vmatprep.subr.bf16.mxu0 %v7249
      %7315 = vmatpush2.bf16.msra.mxu0 %v7248
      %7316 = vmatprep.subr.bf16.mxu0 %v7247
      %7317 = vmatpush2.bf16.msra.mxu0 %v7246
      %7318 = vmatprep.subr.bf16.mxu0 %v7245
      %7319 = vmatpush2.bf16.msra.mxu0 %v7244
      %7320 = vmatprep.subr.bf16.mxu0 %v7243
      %7321 = vmatpush2.bf16.msra.mxu0 %v7242
      %7322 = vmatprep.mubr.bf16.mxu0 %v7085
      %7323 = vmatmul.mubr.bf16.gmra.mxu0 %v7082
      %v7324 = vpop.f32.mrf.mxu0
      %v7325 = vadd.f32 0.0, %v7324
      %v7326 = vpop.f32.mrf.mxu0
      %v7327 = vadd.f32 0.0, %v7326
      %v7328 = vpop.f32.mrf.mxu0
      %v7329 = vadd.f32 0.0, %v7328
      %v7330 = vpop.f32.mrf.mxu0
      %v7331 = vadd.f32 0.0, %v7330
      %7332 = vmatprep.mubr.bf16.mxu0 %v7089
      %7333 = vmatmul.mubr.bf16.gmra.mxu0 %v7087
      %v7334 = vpop.f32.mrf.mxu0
      %v7335 = vadd.f32 0.0, %v7334
      %v7336 = vpop.f32.mrf.mxu0
      %v7337 = vadd.f32 0.0, %v7336
      %v7338 = vpop.f32.mrf.mxu0
      %v7339 = vadd.f32 0.0, %v7338
      %v7340 = vpop.f32.mrf.mxu0
      %v7341 = vadd.f32 0.0, %v7340
      %7342 = vmatprep.mubr.bf16.mxu0 %v7093
      %7343 = vmatmul.mubr.bf16.gmra.mxu0 %v7091
      %v7344 = vpop.f32.mrf.mxu0
      %v7345 = vadd.f32 0.0, %v7344
      %v7346 = vpop.f32.mrf.mxu0
      %v7347 = vadd.f32 0.0, %v7346
      %v7348 = vpop.f32.mrf.mxu0
      %v7349 = vadd.f32 0.0, %v7348
      %v7350 = vpop.f32.mrf.mxu0
      %v7351 = vadd.f32 0.0, %v7350
      %7352 = vmatprep.mubr.bf16.mxu0 %v7097
      %7353 = vmatmul.mubr.bf16.gmra.mxu0 %v7095
      %v7354 = vpop.f32.mrf.mxu0
      %v7355 = vadd.f32 0.0, %v7354
      %v7356 = vpop.f32.mrf.mxu0
      %v7357 = vadd.f32 0.0, %v7356
      %v7358 = vpop.f32.mrf.mxu0
      %v7359 = vadd.f32 0.0, %v7358
      %v7360 = vpop.f32.mrf.mxu0
      %v7361 = vadd.f32 0.0, %v7360
      %7362 = vmatprep.mubr.bf16.mxu0 %v7101
      %7363 = vmatmul.mubr.bf16.gmra.mxu0 %v7099
      %v7364 = vpop.f32.mrf.mxu0
      %v7365 = vadd.f32 0.0, %v7364
      %v7366 = vpop.f32.mrf.mxu0
      %v7367 = vadd.f32 0.0, %v7366
      %v7368 = vpop.f32.mrf.mxu0
      %v7369 = vadd.f32 0.0, %v7368
      %v7370 = vpop.f32.mrf.mxu0
      %v7371 = vadd.f32 0.0, %v7370
      %7372 = vmatprep.mubr.bf16.mxu0 %v7105
      %7373 = vmatmul.mubr.bf16.gmra.mxu0 %v7103
      %v7374 = vpop.f32.mrf.mxu0
      %v7375 = vadd.f32 0.0, %v7374
      %v7376 = vpop.f32.mrf.mxu0
      %v7377 = vadd.f32 0.0, %v7376
      %v7378 = vpop.f32.mrf.mxu0
      %v7379 = vadd.f32 0.0, %v7378
      %v7380 = vpop.f32.mrf.mxu0
      %v7381 = vadd.f32 0.0, %v7380
      %7382 = vmatprep.mubr.bf16.mxu0 %v7109
      %7383 = vmatmul.mubr.bf16.gmra.mxu0 %v7107
      %v7384 = vpop.f32.mrf.mxu0
      %v7385 = vadd.f32 0.0, %v7384
      %v7386 = vpop.f32.mrf.mxu0
      %v7387 = vadd.f32 0.0, %v7386
      %v7388 = vpop.f32.mrf.mxu0
      %v7389 = vadd.f32 0.0, %v7388
      %v7390 = vpop.f32.mrf.mxu0
      %v7391 = vadd.f32 0.0, %v7390
      %7392 = vmatprep.mubr.bf16.mxu0 %v7113
      %7393 = vmatmul.mubr.bf16.gmra.mxu0 %v7111
      %v7394 = vpop.f32.mrf.mxu0
      %v7395 = vadd.f32 0.0, %v7394
      %v7396 = vpop.f32.mrf.mxu0
      %v7397 = vadd.f32 0.0, %v7396
      %v7398 = vpop.f32.mrf.mxu0
      %v7399 = vadd.f32 0.0, %v7398
      %v7400 = vpop.f32.mrf.mxu0
      %v7401 = vadd.f32 0.0, %v7400
      %7402 = vdwg.mxu0
      %v7403 = vadd.f32 %v7010, %v7325
      %v7404 = vadd.f32 %v7011, %v7327
      %v7405 = vadd.f32 %v7012, %v7329
      %v7406 = vadd.f32 %v7013, %v7331
      %v7407 = vadd.f32 %v7014, %v7335
      %v7408 = vadd.f32 %v7015, %v7337
      %v7409 = vadd.f32 %v7016, %v7339
      %v7410 = vadd.f32 %v7017, %v7341
      %v7411 = vadd.f32 %v7018, %v7345
      %v7412 = vadd.f32 %v7019, %v7347
      %v7413 = vadd.f32 %v7020, %v7349
      %v7414 = vadd.f32 %v7021, %v7351
      %v7415 = vadd.f32 %v7022, %v7355
      %v7416 = vadd.f32 %v7023, %v7357
      %v7417 = vadd.f32 %v7024, %v7359
      %v7418 = vadd.f32 %v7025, %v7361
      %v7419 = vadd.f32 %v7026, %v7365
      %v7420 = vadd.f32 %v7027, %v7367
      %v7421 = vadd.f32 %v7028, %v7369
      %v7422 = vadd.f32 %v7029, %v7371
      %v7423 = vadd.f32 %v7030, %v7375
      %v7424 = vadd.f32 %v7031, %v7377
      %v7425 = vadd.f32 %v7032, %v7379
      %v7426 = vadd.f32 %v7033, %v7381
      %v7427 = vadd.f32 %v7034, %v7385
      %v7428 = vadd.f32 %v7035, %v7387
      %v7429 = vadd.f32 %v7036, %v7389
      %v7430 = vadd.f32 %v7037, %v7391
      %v7431 = vadd.f32 %v7038, %v7395
      %v7432 = vadd.f32 %v7039, %v7397
      %v7433 = vadd.f32 %v7040, %v7399
      %v7434 = vadd.f32 %v7041, %v7401
      %v7435 = vld [vmem:[%s246 + $0xa0] sm:$0xcc]
      %v7436 = vld [vmem:[%s246 + $0xa8] sm:$0xff]
      %v7437 = vld [vmem:[%s246 + $0xb0] sm:$0xff]
      %v7438 = vld [vmem:[%s246 + $0xb8] sm:$0xff]
      %v7439 = vld [vmem:[%s246 + $0xc0] sm:$0xff]
      %v7440 = vld [vmem:[%s246 + $0xc8] sm:$0xff]
      %v7441 = vld [vmem:[%s246 + $0xd0] sm:$0xff]
      %v7442 = vld [vmem:[%s246 + $0xd8] sm:$0xff]
      %v7443 = vld [vmem:[%s246 + $0xe0] sm:$0xff]
      %v7444 = vld [vmem:[%s246 + $0xe8] sm:$0xff]
      %v7445 = vld [vmem:[%s246 + $0xf0] sm:$0xff]
      %v7446 = vld [vmem:[%s246 + $0xf8] sm:$0xff]
      %v7447 = vld [vmem:[%s246 + $0x100] sm:$0xff]
      %v7448 = vld [vmem:[%s246 + $0x108] sm:$0xff]
      %v7449 = vld [vmem:[%s246 + $0x110] sm:$0xff]
      %v7450 = vld [vmem:[%s246 + $0x118] sm:$0xff]
      %v7451 = vld [vmem:[%s246 + $0x120] sm:$0x33]
      %v7452 = vld [vmem:[%s2921] sm:$0xff]
      %v7453 = vld [vmem:[%s2921 + $0x8] sm:$0xff]
      %v7454 = vld [vmem:[%s2921 + $0x10] sm:$0xff]
      %v7455 = vld [vmem:[%s2921 + $0x18] sm:$0xff]
      %v7456 = vld [vmem:[%s2921 + $0x20] sm:$0xff]
      %v7457 = vld [vmem:[%s2921 + $0x28] sm:$0xff]
      %v7458 = vld [vmem:[%s2921 + $0x30] sm:$0xff]
      %v7459 = vld [vmem:[%s2921 + $0x38] sm:$0xff]
      %v7460 = vld [vmem:[%s2921 + $0x40] sm:$0xff]
      %v7461 = vld [vmem:[%s2921 + $0x48] sm:$0xff]
      %v7462 = vld [vmem:[%s2921 + $0x50] sm:$0xff]
      %v7463 = vld [vmem:[%s2921 + $0x58] sm:$0xff]
      %v7464 = vld [vmem:[%s2921 + $0x60] sm:$0xff]
      %v7465 = vld [vmem:[%s2921 + $0x68] sm:$0xff]
      %v7466 = vld [vmem:[%s2921 + $0x70] sm:$0xff]
      %v7467 = vld [vmem:[%s2921 + $0x78] sm:$0xff]
      %v7468 = vld [vmem:[%s2921 + $0x80] sm:$0xff]
      %v7469 = vld [vmem:[%s2921 + $0x88] sm:$0xff]
      %v7470 = vld [vmem:[%s2921 + $0x90] sm:$0xff]
      %v7471 = vld [vmem:[%s2921 + $0x98] sm:$0xff]
      %v7472 = vld [vmem:[%s2921 + $0xa0] sm:$0xff]
      %v7473 = vld [vmem:[%s2921 + $0xa8] sm:$0xff]
      %v7474 = vld [vmem:[%s2921 + $0xb0] sm:$0xff]
      %v7475 = vld [vmem:[%s2921 + $0xb8] sm:$0xff]
      %v7476 = vld [vmem:[%s2921 + $0xc0] sm:$0xff]
      %v7477 = vld [vmem:[%s2921 + $0xc8] sm:$0xff]
      %v7478 = vld [vmem:[%s2921 + $0xd0] sm:$0xff]
      %v7479 = vld [vmem:[%s2921 + $0xd8] sm:$0xff]
      %v7480 = vld [vmem:[%s2921 + $0xe0] sm:$0xff]
      %v7481 = vld [vmem:[%s2921 + $0xe8] sm:$0xff]
      %v7482 = vld [vmem:[%s2921 + $0xf0] sm:$0xff]
      %v7483 = vld [vmem:[%s2921 + $0xf8] sm:$0xff]
      %v7501 = vunpack.c.l.b16 %v7435
      %v7502 = vunpack.c.h.b16 %v7435
      %v7503 = vunpack.c.l.b16 %v7436
      %v7504 = vunpack.c.h.b16 %v7436
      %v7505 = vunpack.c.l.b16 %v7437
      %v7506 = vunpack.c.h.b16 %v7437
      %v7507 = vunpack.c.l.b16 %v7438
      %v7508 = vunpack.c.h.b16 %v7438
      %v7509 = vunpack.c.l.b16 %v7439
      %v7510 = vunpack.c.h.b16 %v7439
      %v7511 = vunpack.c.l.b16 %v7440
      %v7512 = vunpack.c.h.b16 %v7440
      %v7513 = vunpack.c.l.b16 %v7441
      %v7514 = vunpack.c.h.b16 %v7441
      %v7515 = vunpack.c.l.b16 %v7442
      %v7516 = vunpack.c.h.b16 %v7442
      %v7517 = vunpack.c.l.b16 %v7443
      %v7518 = vunpack.c.h.b16 %v7443
      %v7519 = vunpack.c.l.b16 %v7444
      %v7520 = vunpack.c.h.b16 %v7444
      %v7521 = vunpack.c.l.b16 %v7445
      %v7522 = vunpack.c.h.b16 %v7445
      %v7523 = vunpack.c.l.b16 %v7446
      %v7524 = vunpack.c.h.b16 %v7446
      %v7525 = vunpack.c.l.b16 %v7447
      %v7526 = vunpack.c.h.b16 %v7447
      %v7527 = vunpack.c.l.b16 %v7448
      %v7528 = vunpack.c.h.b16 %v7448
      %v7529 = vunpack.c.l.b16 %v7449
      %v7530 = vunpack.c.h.b16 %v7449
      %v7531 = vunpack.c.l.b16 %v7450
      %v7532 = vunpack.c.h.b16 %v7450
      %v7533 = vunpack.c.l.b16 %v7451
      %v7534 = vunpack.c.h.b16 %v7451
      %v7535 = vpack.c.b16 %v7503, %v7501
      %v7536 = vpack.c.b16 %v7504, %v7502
      %v7537 = vpack.c.b16 %v7507, %v7505
      %v7538 = vpack.c.b16 %v7508, %v7506
      %v7539 = vpack.c.b16 %v7511, %v7509
      %v7540 = vpack.c.b16 %v7512, %v7510
      %v7541 = vpack.c.b16 %v7515, %v7513
      %v7542 = vpack.c.b16 %v7516, %v7514
      %v7543 = vpack.c.b16 %v7519, %v7517
      %v7544 = vpack.c.b16 %v7520, %v7518
      %v7545 = vpack.c.b16 %v7523, %v7521
      %v7546 = vpack.c.b16 %v7524, %v7522
      %v7547 = vpack.c.b16 %v7527, %v7525
      %v7548 = vpack.c.b16 %v7528, %v7526
      %v7549 = vpack.c.b16 %v7531, %v7529
      %v7550 = vpack.c.b16 %v7532, %v7530
      %v7551 = vpack.c.b16 %v7533, %v7533
      %v7552 = vpack.c.b16 %v7534, %v7534
      %v7553 = vrot.slane %v7535, 2
      %v7554 = vrot.slane %v7537, 2
      %v7555 = vsel %vm2548, %v7553, %v7554
      %v7556 = vrot.slane %v7536, 2
      %v7557 = vrot.slane %v7538, 2
      %v7558 = vsel %vm2548, %v7556, %v7557
      %v7559 = vrot.slane %v7539, 2
      %v7560 = vsel %vm2548, %v7554, %v7559
      %v7561 = vrot.slane %v7540, 2
      %v7562 = vsel %vm2548, %v7557, %v7561
      %v7563 = vrot.slane %v7541, 2
      %v7564 = vsel %vm2548, %v7559, %v7563
      %v7565 = vrot.slane %v7542, 2
      %v7566 = vsel %vm2548, %v7561, %v7565
      %v7567 = vrot.slane %v7543, 2
      %v7568 = vsel %vm2548, %v7563, %v7567
      %v7569 = vrot.slane %v7544, 2
      %v7570 = vsel %vm2548, %v7565, %v7569
      %v7571 = vrot.slane %v7545, 2
      %v7572 = vsel %vm2548, %v7567, %v7571
      %v7573 = vrot.slane %v7546, 2
      %v7574 = vsel %vm2548, %v7569, %v7573
      %v7575 = vrot.slane %v7547, 2
      %v7576 = vsel %vm2548, %v7571, %v7575
      %v7577 = vrot.slane %v7548, 2
      %v7578 = vsel %vm2548, %v7573, %v7577
      %v7579 = vrot.slane %v7549, 2
      %v7580 = vsel %vm2548, %v7575, %v7579
      %v7581 = vrot.slane %v7550, 2
      %v7582 = vsel %vm2548, %v7577, %v7581
      %v7583 = vrot.slane %v7551, 2
      %v7584 = vsel %vm2548, %v7579, %v7583
      %v7585 = vrot.slane %v7552, 2
      %v7586 = vsel %vm2548, %v7581, %v7585
      %v7635 = vunpack.c.l.b16 %v7452
      %v7636 = vunpack.c.h.b16 %v7452
      %v7637 = vunpack.c.l.b16 %v7453
      %v7638 = vunpack.c.h.b16 %v7453
      %v7639 = vunpack.c.l.b16 %v7454
      %v7640 = vunpack.c.h.b16 %v7454
      %v7641 = vunpack.c.l.b16 %v7455
      %v7642 = vunpack.c.h.b16 %v7455
      %v7643 = vunpack.c.l.b16 %v7456
      %v7644 = vunpack.c.h.b16 %v7456
      %v7645 = vunpack.c.l.b16 %v7457
      %v7646 = vunpack.c.h.b16 %v7457
      %v7647 = vunpack.c.l.b16 %v7458
      %v7648 = vunpack.c.h.b16 %v7458
      %v7649 = vunpack.c.l.b16 %v7459
      %v7650 = vunpack.c.h.b16 %v7459
      %v7651 = vunpack.c.l.b16 %v7460
      %v7652 = vunpack.c.h.b16 %v7460
      %v7653 = vunpack.c.l.b16 %v7461
      %v7654 = vunpack.c.h.b16 %v7461
      %v7655 = vunpack.c.l.b16 %v7462
      %v7656 = vunpack.c.h.b16 %v7462
      %v7657 = vunpack.c.l.b16 %v7463
      %v7658 = vunpack.c.h.b16 %v7463
      %v7659 = vunpack.c.l.b16 %v7464
      %v7660 = vunpack.c.h.b16 %v7464
      %v7661 = vunpack.c.l.b16 %v7465
      %v7662 = vunpack.c.h.b16 %v7465
      %v7663 = vunpack.c.l.b16 %v7466
      %v7664 = vunpack.c.h.b16 %v7466
      %v7665 = vunpack.c.l.b16 %v7467
      %v7666 = vunpack.c.h.b16 %v7467
      %v7667 = vunpack.c.l.b16 %v7468
      %v7668 = vunpack.c.h.b16 %v7468
      %v7669 = vunpack.c.l.b16 %v7469
      %v7670 = vunpack.c.h.b16 %v7469
      %v7671 = vunpack.c.l.b16 %v7470
      %v7672 = vunpack.c.h.b16 %v7470
      %v7673 = vunpack.c.l.b16 %v7471
      %v7674 = vunpack.c.h.b16 %v7471
      %v7675 = vunpack.c.l.b16 %v7472
      %v7676 = vunpack.c.h.b16 %v7472
      %v7677 = vunpack.c.l.b16 %v7473
      %v7678 = vunpack.c.h.b16 %v7473
      %v7679 = vunpack.c.l.b16 %v7474
      %v7680 = vunpack.c.h.b16 %v7474
      %v7681 = vunpack.c.l.b16 %v7475
      %v7682 = vunpack.c.h.b16 %v7475
      %v7683 = vunpack.c.l.b16 %v7476
      %v7684 = vunpack.c.h.b16 %v7476
      %v7685 = vunpack.c.l.b16 %v7477
      %v7686 = vunpack.c.h.b16 %v7477
      %v7687 = vunpack.c.l.b16 %v7478
      %v7688 = vunpack.c.h.b16 %v7478
      %v7689 = vunpack.c.l.b16 %v7479
      %v7690 = vunpack.c.h.b16 %v7479
      %v7691 = vunpack.c.l.b16 %v7480
      %v7692 = vunpack.c.h.b16 %v7480
      %v7693 = vunpack.c.l.b16 %v7481
      %v7694 = vunpack.c.h.b16 %v7481
      %v7695 = vunpack.c.l.b16 %v7482
      %v7696 = vunpack.c.h.b16 %v7482
      %v7697 = vunpack.c.l.b16 %v7483
      %v7698 = vunpack.c.h.b16 %v7483
      %v7699 = vpack.c.b16 %v7637, %v7635
      %v7700 = vpack.c.b16 %v7638, %v7636
      %v7701 = vpack.c.b16 %v7641, %v7639
      %v7702 = vpack.c.b16 %v7642, %v7640
      %v7703 = vpack.c.b16 %v7645, %v7643
      %v7704 = vpack.c.b16 %v7646, %v7644
      %v7705 = vpack.c.b16 %v7649, %v7647
      %v7706 = vpack.c.b16 %v7650, %v7648
      %v7707 = vpack.c.b16 %v7653, %v7651
      %v7708 = vpack.c.b16 %v7654, %v7652
      %v7709 = vpack.c.b16 %v7657, %v7655
      %v7710 = vpack.c.b16 %v7658, %v7656
      %v7711 = vpack.c.b16 %v7661, %v7659
      %v7712 = vpack.c.b16 %v7662, %v7660
      %v7713 = vpack.c.b16 %v7665, %v7663
      %v7714 = vpack.c.b16 %v7666, %v7664
      %v7715 = vpack.c.b16 %v7669, %v7667
      %v7716 = vpack.c.b16 %v7670, %v7668
      %v7717 = vpack.c.b16 %v7673, %v7671
      %v7718 = vpack.c.b16 %v7674, %v7672
      %v7719 = vpack.c.b16 %v7677, %v7675
      %v7720 = vpack.c.b16 %v7678, %v7676
      %v7721 = vpack.c.b16 %v7681, %v7679
      %v7722 = vpack.c.b16 %v7682, %v7680
      %v7723 = vpack.c.b16 %v7685, %v7683
      %v7724 = vpack.c.b16 %v7686, %v7684
      %v7725 = vpack.c.b16 %v7689, %v7687
      %v7726 = vpack.c.b16 %v7690, %v7688
      %v7727 = vpack.c.b16 %v7693, %v7691
      %v7728 = vpack.c.b16 %v7694, %v7692
      %v7729 = vpack.c.b16 %v7697, %v7695
      %v7730 = vpack.c.b16 %v7698, %v7696
      %7763 = vmatprep.subr.bf16.mxu0 %v7714
      %7764 = vmatpush1.bf16.msra.mxu0 %v7713
      %7765 = vmatprep.subr.bf16.mxu0 %v7712
      %7766 = vmatpush1.bf16.msra.mxu0 %v7711
      %7767 = vmatprep.subr.bf16.mxu0 %v7710
      %7768 = vmatpush1.bf16.msra.mxu0 %v7709
      %7769 = vmatprep.subr.bf16.mxu0 %v7708
      %7770 = vmatpush1.bf16.msra.mxu0 %v7707
      %7771 = vmatprep.subr.bf16.mxu0 %v7706
      %7772 = vmatpush1.bf16.msra.mxu0 %v7705
      %7773 = vmatprep.subr.bf16.mxu0 %v7704
      %7774 = vmatpush1.bf16.msra.mxu0 %v7703
      %7775 = vmatprep.subr.bf16.mxu0 %v7702
      %7776 = vmatpush1.bf16.msra.mxu0 %v7701
      %7777 = vmatprep.subr.bf16.mxu0 %v7700
      %7778 = vmatpush1.bf16.msra.mxu0 %v7699
      %7779 = vmatprep.subr.bf16.mxu0 %v7730
      %7780 = vmatpush2.bf16.msra.mxu0 %v7729
      %7781 = vmatprep.subr.bf16.mxu0 %v7728
      %7782 = vmatpush2.bf16.msra.mxu0 %v7727
      %7783 = vmatprep.subr.bf16.mxu0 %v7726
      %7784 = vmatpush2.bf16.msra.mxu0 %v7725
      %7785 = vmatprep.subr.bf16.mxu0 %v7724
      %7786 = vmatpush2.bf16.msra.mxu0 %v7723
      %7787 = vmatprep.subr.bf16.mxu0 %v7722
      %7788 = vmatpush2.bf16.msra.mxu0 %v7721
      %7789 = vmatprep.subr.bf16.mxu0 %v7720
      %7790 = vmatpush2.bf16.msra.mxu0 %v7719
      %7791 = vmatprep.subr.bf16.mxu0 %v7718
      %7792 = vmatpush2.bf16.msra.mxu0 %v7717
      %7793 = vmatprep.subr.bf16.mxu0 %v7716
      %7794 = vmatpush2.bf16.msra.mxu0 %v7715
      %7795 = vmatprep.mubr.bf16.mxu0 %v7558
      %7796 = vmatmul.mubr.bf16.gmra.mxu0 %v7555
      %v7797 = vpop.f32.mrf.mxu0
      %v7798 = vadd.f32 0.0, %v7797
      %v7799 = vpop.f32.mrf.mxu0
      %v7800 = vadd.f32 0.0, %v7799
      %v7801 = vpop.f32.mrf.mxu0
      %v7802 = vadd.f32 0.0, %v7801
      %v7803 = vpop.f32.mrf.mxu0
      %v7804 = vadd.f32 0.0, %v7803
      %7805 = vmatprep.mubr.bf16.mxu0 %v7562
      %7806 = vmatmul.mubr.bf16.gmra.mxu0 %v7560
      %v7807 = vpop.f32.mrf.mxu0
      %v7808 = vadd.f32 0.0, %v7807
      %v7809 = vpop.f32.mrf.mxu0
      %v7810 = vadd.f32 0.0, %v7809
      %v7811 = vpop.f32.mrf.mxu0
      %v7812 = vadd.f32 0.0, %v7811
      %v7813 = vpop.f32.mrf.mxu0
      %v7814 = vadd.f32 0.0, %v7813
      %7815 = vmatprep.mubr.bf16.mxu0 %v7566
      %7816 = vmatmul.mubr.bf16.gmra.mxu0 %v7564
      %v7817 = vpop.f32.mrf.mxu0
      %v7818 = vadd.f32 0.0, %v7817
      %v7819 = vpop.f32.mrf.mxu0
      %v7820 = vadd.f32 0.0, %v7819
      %v7821 = vpop.f32.mrf.mxu0
      %v7822 = vadd.f32 0.0, %v7821
      %v7823 = vpop.f32.mrf.mxu0
      %v7824 = vadd.f32 0.0, %v7823
      %7825 = vmatprep.mubr.bf16.mxu0 %v7570
      %7826 = vmatmul.mubr.bf16.gmra.mxu0 %v7568
      %v7827 = vpop.f32.mrf.mxu0
      %v7828 = vadd.f32 0.0, %v7827
      %v7829 = vpop.f32.mrf.mxu0
      %v7830 = vadd.f32 0.0, %v7829
      %v7831 = vpop.f32.mrf.mxu0
      %v7832 = vadd.f32 0.0, %v7831
      %v7833 = vpop.f32.mrf.mxu0
      %v7834 = vadd.f32 0.0, %v7833
      %7835 = vmatprep.mubr.bf16.mxu0 %v7574
      %7836 = vmatmul.mubr.bf16.gmra.mxu0 %v7572
      %v7837 = vpop.f32.mrf.mxu0
      %v7838 = vadd.f32 0.0, %v7837
      %v7839 = vpop.f32.mrf.mxu0
      %v7840 = vadd.f32 0.0, %v7839
      %v7841 = vpop.f32.mrf.mxu0
      %v7842 = vadd.f32 0.0, %v7841
      %v7843 = vpop.f32.mrf.mxu0
      %v7844 = vadd.f32 0.0, %v7843
      %7845 = vmatprep.mubr.bf16.mxu0 %v7578
      %7846 = vmatmul.mubr.bf16.gmra.mxu0 %v7576
      %v7847 = vpop.f32.mrf.mxu0
      %v7848 = vadd.f32 0.0, %v7847
      %v7849 = vpop.f32.mrf.mxu0
      %v7850 = vadd.f32 0.0, %v7849
      %v7851 = vpop.f32.mrf.mxu0
      %v7852 = vadd.f32 0.0, %v7851
      %v7853 = vpop.f32.mrf.mxu0
      %v7854 = vadd.f32 0.0, %v7853
      %7855 = vmatprep.mubr.bf16.mxu0 %v7582
      %7856 = vmatmul.mubr.bf16.gmra.mxu0 %v7580
      %v7857 = vpop.f32.mrf.mxu0
      %v7858 = vadd.f32 0.0, %v7857
      %v7859 = vpop.f32.mrf.mxu0
      %v7860 = vadd.f32 0.0, %v7859
      %v7861 = vpop.f32.mrf.mxu0
      %v7862 = vadd.f32 0.0, %v7861
      %v7863 = vpop.f32.mrf.mxu0
      %v7864 = vadd.f32 0.0, %v7863
      %7865 = vmatprep.mubr.bf16.mxu0 %v7586
      %7866 = vmatmul.mubr.bf16.gmra.mxu0 %v7584
      %v7867 = vpop.f32.mrf.mxu0
      %v7868 = vadd.f32 0.0, %v7867
      %v7869 = vpop.f32.mrf.mxu0
      %v7870 = vadd.f32 0.0, %v7869
      %v7871 = vpop.f32.mrf.mxu0
      %v7872 = vadd.f32 0.0, %v7871
      %v7873 = vpop.f32.mrf.mxu0
      %v7874 = vadd.f32 0.0, %v7873
      %7875 = vdwg.mxu0
      %v7876 = vadd.f32 %v7403, %v7798
      %v7877 = vadd.f32 %v7404, %v7800
      %v7878 = vadd.f32 %v7405, %v7802
      %v7879 = vadd.f32 %v7406, %v7804
      %v7880 = vadd.f32 %v7407, %v7808
      %v7881 = vadd.f32 %v7408, %v7810
      %v7882 = vadd.f32 %v7409, %v7812
      %v7883 = vadd.f32 %v7410, %v7814
      %v7884 = vadd.f32 %v7411, %v7818
      %v7885 = vadd.f32 %v7412, %v7820
      %v7886 = vadd.f32 %v7413, %v7822
      %v7887 = vadd.f32 %v7414, %v7824
      %v7888 = vadd.f32 %v7415, %v7828
      %v7889 = vadd.f32 %v7416, %v7830
      %v7890 = vadd.f32 %v7417, %v7832
      %v7891 = vadd.f32 %v7418, %v7834
      %v7892 = vadd.f32 %v7419, %v7838
      %v7893 = vadd.f32 %v7420, %v7840
      %v7894 = vadd.f32 %v7421, %v7842
      %v7895 = vadd.f32 %v7422, %v7844
      %v7896 = vadd.f32 %v7423, %v7848
      %v7897 = vadd.f32 %v7424, %v7850
      %v7898 = vadd.f32 %v7425, %v7852
      %v7899 = vadd.f32 %v7426, %v7854
      %v7900 = vadd.f32 %v7427, %v7858
      %v7901 = vadd.f32 %v7428, %v7860
      %v7902 = vadd.f32 %v7429, %v7862
      %v7903 = vadd.f32 %v7430, %v7864
      %v7904 = vadd.f32 %v7431, %v7868
      %v7905 = vadd.f32 %v7432, %v7870
      %v7906 = vadd.f32 %v7433, %v7872
      %v7907 = vadd.f32 %v7434, %v7874
      %v7908 = vld [vmem:[%s246 + $0x120] sm:$0x77]
      %v7909 = vld [vmem:[%s3379] sm:$0xff]
      %v7910 = vld [vmem:[%s3379 + $0x8] sm:$0xff]
      %v7911 = vld [vmem:[%s3379 + $0x10] sm:$0xff]
      %v7912 = vld [vmem:[%s3379 + $0x18] sm:$0xff]
      %v7913 = vld [vmem:[%s3379 + $0x20] sm:$0xff]
      %v7914 = vld [vmem:[%s3379 + $0x28] sm:$0xff]
      %v7915 = vld [vmem:[%s3379 + $0x30] sm:$0xff]
      %v7916 = vld [vmem:[%s3379 + $0x38] sm:$0xff]
      %v7917 = vld [vmem:[%s3379 + $0x40] sm:$0xff]
      %v7918 = vld [vmem:[%s3379 + $0x48] sm:$0xff]
      %v7919 = vld [vmem:[%s3379 + $0x50] sm:$0xff]
      %v7920 = vld [vmem:[%s3379 + $0x58] sm:$0xff]
      %v7921 = vld [vmem:[%s3379 + $0x60] sm:$0xff]
      %v7922 = vld [vmem:[%s3379 + $0x68] sm:$0xff]
      %v7923 = vld [vmem:[%s3379 + $0x70] sm:$0xff]
      %v7924 = vld [vmem:[%s3379 + $0x78] sm:$0xff]
      %v7925 = vld [vmem:[%s3379 + $0x80] sm:$0xff]
      %v7926 = vld [vmem:[%s3379 + $0x88] sm:$0xff]
      %v7927 = vld [vmem:[%s3379 + $0x90] sm:$0xff]
      %v7928 = vld [vmem:[%s3379 + $0x98] sm:$0xff]
      %v7929 = vld [vmem:[%s3379 + $0xa0] sm:$0xff]
      %v7930 = vld [vmem:[%s3379 + $0xa8] sm:$0xff]
      %v7931 = vld [vmem:[%s3379 + $0xb0] sm:$0xff]
      %v7932 = vld [vmem:[%s3379 + $0xb8] sm:$0xff]
      %v7933 = vld [vmem:[%s3379 + $0xc0] sm:$0xff]
      %v7934 = vld [vmem:[%s3379 + $0xc8] sm:$0xff]
      %v7935 = vld [vmem:[%s3379 + $0xd0] sm:$0xff]
      %v7936 = vld [vmem:[%s3379 + $0xd8] sm:$0xff]
      %v7937 = vld [vmem:[%s3379 + $0xe0] sm:$0xff]
      %v7938 = vld [vmem:[%s3379 + $0xe8] sm:$0xff]
      %v7939 = vld [vmem:[%s3379 + $0xf0] sm:$0xff]
      %v7940 = vld [vmem:[%s3379 + $0xf8] sm:$0xff]
      %v7942 = vunpack.c.l.b16 %v7908
      %v7943 = vunpack.c.h.b16 %v7908
      %v7944 = vpack.c.b16 %v7942, %v7942
      %v7945 = vpack.c.b16 %v7943, %v7943
      %v7947 = vshrl.u32 %v7535, 16
      %v7949 = vrot.slane %v7947, 2
      %v7950 = vshll.u32 %v7535, 16
      %v7952 = vrot.slane %v7950, 3
      %v7953 = vor.u32 %v7949, %v7952
      %v7955 = vshrl.u32 %v7537, 16
      %v7957 = vrot.slane %v7955, 2
      %v7958 = vshll.u32 %v7537, 16
      %v7960 = vrot.slane %v7958, 3
      %v7961 = vor.u32 %v7957, %v7960
      %v7962 = vsel %vm3417, %v7953, %v7961
      %v7964 = vshrl.u32 %v7536, 16
      %v7966 = vrot.slane %v7964, 2
      %v7967 = vshll.u32 %v7536, 16
      %v7969 = vrot.slane %v7967, 3
      %v7970 = vor.u32 %v7966, %v7969
      %v7972 = vshrl.u32 %v7538, 16
      %v7974 = vrot.slane %v7972, 2
      %v7975 = vshll.u32 %v7538, 16
      %v7977 = vrot.slane %v7975, 3
      %v7978 = vor.u32 %v7974, %v7977
      %v7979 = vsel %vm3417, %v7970, %v7978
      %v7981 = vshrl.u32 %v7539, 16
      %v7983 = vrot.slane %v7981, 2
      %v7984 = vshll.u32 %v7539, 16
      %v7986 = vrot.slane %v7984, 3
      %v7987 = vor.u32 %v7983, %v7986
      %v7988 = vsel %vm3417, %v7961, %v7987
      %v7990 = vshrl.u32 %v7540, 16
      %v7992 = vrot.slane %v7990, 2
      %v7993 = vshll.u32 %v7540, 16
      %v7995 = vrot.slane %v7993, 3
      %v7996 = vor.u32 %v7992, %v7995
      %v7997 = vsel %vm3417, %v7978, %v7996
      %v7999 = vshrl.u32 %v7541, 16
      %v8001 = vrot.slane %v7999, 2
      %v8002 = vshll.u32 %v7541, 16
      %v8004 = vrot.slane %v8002, 3
      %v8005 = vor.u32 %v8001, %v8004
      %v8006 = vsel %vm3417, %v7987, %v8005
      %v8008 = vshrl.u32 %v7542, 16
      %v8010 = vrot.slane %v8008, 2
      %v8011 = vshll.u32 %v7542, 16
      %v8013 = vrot.slane %v8011, 3
      %v8014 = vor.u32 %v8010, %v8013
      %v8015 = vsel %vm3417, %v7996, %v8014
      %v8017 = vshrl.u32 %v7543, 16
      %v8019 = vrot.slane %v8017, 2
      %v8020 = vshll.u32 %v7543, 16
      %v8022 = vrot.slane %v8020, 3
      %v8023 = vor.u32 %v8019, %v8022
      %v8024 = vsel %vm3417, %v8005, %v8023
      %v8026 = vshrl.u32 %v7544, 16
      %v8028 = vrot.slane %v8026, 2
      %v8029 = vshll.u32 %v7544, 16
      %v8031 = vrot.slane %v8029, 3
      %v8032 = vor.u32 %v8028, %v8031
      %v8033 = vsel %vm3417, %v8014, %v8032
      %v8035 = vshrl.u32 %v7545, 16
      %v8037 = vrot.slane %v8035, 2
      %v8038 = vshll.u32 %v7545, 16
      %v8040 = vrot.slane %v8038, 3
      %v8041 = vor.u32 %v8037, %v8040
      %v8042 = vsel %vm3417, %v8023, %v8041
      %v8044 = vshrl.u32 %v7546, 16
      %v8046 = vrot.slane %v8044, 2
      %v8047 = vshll.u32 %v7546, 16
      %v8049 = vrot.slane %v8047, 3
      %v8050 = vor.u32 %v8046, %v8049
      %v8051 = vsel %vm3417, %v8032, %v8050
      %v8053 = vshrl.u32 %v7547, 16
      %v8055 = vrot.slane %v8053, 2
      %v8056 = vshll.u32 %v7547, 16
      %v8058 = vrot.slane %v8056, 3
      %v8059 = vor.u32 %v8055, %v8058
      %v8060 = vsel %vm3417, %v8041, %v8059
      %v8062 = vshrl.u32 %v7548, 16
      %v8064 = vrot.slane %v8062, 2
      %v8065 = vshll.u32 %v7548, 16
      %v8067 = vrot.slane %v8065, 3
      %v8068 = vor.u32 %v8064, %v8067
      %v8069 = vsel %vm3417, %v8050, %v8068
      %v8071 = vshrl.u32 %v7549, 16
      %v8073 = vrot.slane %v8071, 2
      %v8074 = vshll.u32 %v7549, 16
      %v8076 = vrot.slane %v8074, 3
      %v8077 = vor.u32 %v8073, %v8076
      %v8078 = vsel %vm3417, %v8059, %v8077
      %v8080 = vshrl.u32 %v7550, 16
      %v8082 = vrot.slane %v8080, 2
      %v8083 = vshll.u32 %v7550, 16
      %v8085 = vrot.slane %v8083, 3
      %v8086 = vor.u32 %v8082, %v8085
      %v8087 = vsel %vm3417, %v8068, %v8086
      %v8089 = vshrl.u32 %v7944, 16
      %v8091 = vrot.slane %v8089, 2
      %v8092 = vshll.u32 %v7944, 16
      %v8094 = vrot.slane %v8092, 3
      %v8095 = vor.u32 %v8091, %v8094
      %v8096 = vsel %vm3417, %v8077, %v8095
      %v8098 = vshrl.u32 %v7945, 16
      %v8100 = vrot.slane %v8098, 2
      %v8101 = vshll.u32 %v7945, 16
      %v8103 = vrot.slane %v8101, 3
      %v8104 = vor.u32 %v8100, %v8103
      %v8105 = vsel %vm3417, %v8086, %v8104
      %v8154 = vunpack.c.l.b16 %v7909
      %v8155 = vunpack.c.h.b16 %v7909
      %v8156 = vunpack.c.l.b16 %v7910
      %v8157 = vunpack.c.h.b16 %v7910
      %v8158 = vunpack.c.l.b16 %v7911
      %v8159 = vunpack.c.h.b16 %v7911
      %v8160 = vunpack.c.l.b16 %v7912
      %v8161 = vunpack.c.h.b16 %v7912
      %v8162 = vunpack.c.l.b16 %v7913
      %v8163 = vunpack.c.h.b16 %v7913
      %v8164 = vunpack.c.l.b16 %v7914
      %v8165 = vunpack.c.h.b16 %v7914
      %v8166 = vunpack.c.l.b16 %v7915
      %v8167 = vunpack.c.h.b16 %v7915
      %v8168 = vunpack.c.l.b16 %v7916
      %v8169 = vunpack.c.h.b16 %v7916
      %v8170 = vunpack.c.l.b16 %v7917
      %v8171 = vunpack.c.h.b16 %v7917
      %v8172 = vunpack.c.l.b16 %v7918
      %v8173 = vunpack.c.h.b16 %v7918
      %v8174 = vunpack.c.l.b16 %v7919
      %v8175 = vunpack.c.h.b16 %v7919
      %v8176 = vunpack.c.l.b16 %v7920
      %v8177 = vunpack.c.h.b16 %v7920
      %v8178 = vunpack.c.l.b16 %v7921
      %v8179 = vunpack.c.h.b16 %v7921
      %v8180 = vunpack.c.l.b16 %v7922
      %v8181 = vunpack.c.h.b16 %v7922
      %v8182 = vunpack.c.l.b16 %v7923
      %v8183 = vunpack.c.h.b16 %v7923
      %v8184 = vunpack.c.l.b16 %v7924
      %v8185 = vunpack.c.h.b16 %v7924
      %v8186 = vunpack.c.l.b16 %v7925
      %v8187 = vunpack.c.h.b16 %v7925
      %v8188 = vunpack.c.l.b16 %v7926
      %v8189 = vunpack.c.h.b16 %v7926
      %v8190 = vunpack.c.l.b16 %v7927
      %v8191 = vunpack.c.h.b16 %v7927
      %v8192 = vunpack.c.l.b16 %v7928
      %v8193 = vunpack.c.h.b16 %v7928
      %v8194 = vunpack.c.l.b16 %v7929
      %v8195 = vunpack.c.h.b16 %v7929
      %v8196 = vunpack.c.l.b16 %v7930
      %v8197 = vunpack.c.h.b16 %v7930
      %v8198 = vunpack.c.l.b16 %v7931
      %v8199 = vunpack.c.h.b16 %v7931
      %v8200 = vunpack.c.l.b16 %v7932
      %v8201 = vunpack.c.h.b16 %v7932
      %v8202 = vunpack.c.l.b16 %v7933
      %v8203 = vunpack.c.h.b16 %v7933
      %v8204 = vunpack.c.l.b16 %v7934
      %v8205 = vunpack.c.h.b16 %v7934
      %v8206 = vunpack.c.l.b16 %v7935
      %v8207 = vunpack.c.h.b16 %v7935
      %v8208 = vunpack.c.l.b16 %v7936
      %v8209 = vunpack.c.h.b16 %v7936
      %v8210 = vunpack.c.l.b16 %v7937
      %v8211 = vunpack.c.h.b16 %v7937
      %v8212 = vunpack.c.l.b16 %v7938
      %v8213 = vunpack.c.h.b16 %v7938
      %v8214 = vunpack.c.l.b16 %v7939
      %v8215 = vunpack.c.h.b16 %v7939
      %v8216 = vunpack.c.l.b16 %v7940
      %v8217 = vunpack.c.h.b16 %v7940
      %v8218 = vpack.c.b16 %v8156, %v8154
      %v8219 = vpack.c.b16 %v8157, %v8155
      %v8220 = vpack.c.b16 %v8160, %v8158
      %v8221 = vpack.c.b16 %v8161, %v8159
      %v8222 = vpack.c.b16 %v8164, %v8162
      %v8223 = vpack.c.b16 %v8165, %v8163
      %v8224 = vpack.c.b16 %v8168, %v8166
      %v8225 = vpack.c.b16 %v8169, %v8167
      %v8226 = vpack.c.b16 %v8172, %v8170
      %v8227 = vpack.c.b16 %v8173, %v8171
      %v8228 = vpack.c.b16 %v8176, %v8174
      %v8229 = vpack.c.b16 %v8177, %v8175
      %v8230 = vpack.c.b16 %v8180, %v8178
      %v8231 = vpack.c.b16 %v8181, %v8179
      %v8232 = vpack.c.b16 %v8184, %v8182
      %v8233 = vpack.c.b16 %v8185, %v8183
      %v8234 = vpack.c.b16 %v8188, %v8186
      %v8235 = vpack.c.b16 %v8189, %v8187
      %v8236 = vpack.c.b16 %v8192, %v8190
      %v8237 = vpack.c.b16 %v8193, %v8191
      %v8238 = vpack.c.b16 %v8196, %v8194
      %v8239 = vpack.c.b16 %v8197, %v8195
      %v8240 = vpack.c.b16 %v8200, %v8198
      %v8241 = vpack.c.b16 %v8201, %v8199
      %v8242 = vpack.c.b16 %v8204, %v8202
      %v8243 = vpack.c.b16 %v8205, %v8203
      %v8244 = vpack.c.b16 %v8208, %v8206
      %v8245 = vpack.c.b16 %v8209, %v8207
      %v8246 = vpack.c.b16 %v8212, %v8210
      %v8247 = vpack.c.b16 %v8213, %v8211
      %v8248 = vpack.c.b16 %v8216, %v8214
      %v8249 = vpack.c.b16 %v8217, %v8215
      %8282 = vmatprep.subr.bf16.mxu0 %v8233
      %8283 = vmatpush1.bf16.msra.mxu0 %v8232
      %8284 = vmatprep.subr.bf16.mxu0 %v8231
      %8285 = vmatpush1.bf16.msra.mxu0 %v8230
      %8286 = vmatprep.subr.bf16.mxu0 %v8229
      %8287 = vmatpush1.bf16.msra.mxu0 %v8228
      %8288 = vmatprep.subr.bf16.mxu0 %v8227
      %8289 = vmatpush1.bf16.msra.mxu0 %v8226
      %8290 = vmatprep.subr.bf16.mxu0 %v8225
      %8291 = vmatpush1.bf16.msra.mxu0 %v8224
      %8292 = vmatprep.subr.bf16.mxu0 %v8223
      %8293 = vmatpush1.bf16.msra.mxu0 %v8222
      %8294 = vmatprep.subr.bf16.mxu0 %v8221
      %8295 = vmatpush1.bf16.msra.mxu0 %v8220
      %8296 = vmatprep.subr.bf16.mxu0 %v8219
      %8297 = vmatpush1.bf16.msra.mxu0 %v8218
      %8298 = vmatprep.subr.bf16.mxu0 %v8249
      %8299 = vmatpush2.bf16.msra.mxu0 %v8248
      %8300 = vmatprep.subr.bf16.mxu0 %v8247
      %8301 = vmatpush2.bf16.msra.mxu0 %v8246
      %8302 = vmatprep.subr.bf16.mxu0 %v8245
      %8303 = vmatpush2.bf16.msra.mxu0 %v8244
      %8304 = vmatprep.subr.bf16.mxu0 %v8243
      %8305 = vmatpush2.bf16.msra.mxu0 %v8242
      %8306 = vmatprep.subr.bf16.mxu0 %v8241
      %8307 = vmatpush2.bf16.msra.mxu0 %v8240
      %8308 = vmatprep.subr.bf16.mxu0 %v8239
      %8309 = vmatpush2.bf16.msra.mxu0 %v8238
      %8310 = vmatprep.subr.bf16.mxu0 %v8237
      %8311 = vmatpush2.bf16.msra.mxu0 %v8236
      %8312 = vmatprep.subr.bf16.mxu0 %v8235
      %8313 = vmatpush2.bf16.msra.mxu0 %v8234
      %8314 = vmatprep.mubr.bf16.mxu0 %v7979
      %8315 = vmatmul.mubr.bf16.gmra.mxu0 %v7962
      %v8316 = vpop.f32.mrf.mxu0
      %v8317 = vadd.f32 0.0, %v8316
      %v8318 = vpop.f32.mrf.mxu0
      %v8319 = vadd.f32 0.0, %v8318
      %v8320 = vpop.f32.mrf.mxu0
      %v8321 = vadd.f32 0.0, %v8320
      %v8322 = vpop.f32.mrf.mxu0
      %v8323 = vadd.f32 0.0, %v8322
      %8324 = vmatprep.mubr.bf16.mxu0 %v7997
      %8325 = vmatmul.mubr.bf16.gmra.mxu0 %v7988
      %v8326 = vpop.f32.mrf.mxu0
      %v8327 = vadd.f32 0.0, %v8326
      %v8328 = vpop.f32.mrf.mxu0
      %v8329 = vadd.f32 0.0, %v8328
      %v8330 = vpop.f32.mrf.mxu0
      %v8331 = vadd.f32 0.0, %v8330
      %v8332 = vpop.f32.mrf.mxu0
      %v8333 = vadd.f32 0.0, %v8332
      %8334 = vmatprep.mubr.bf16.mxu0 %v8015
      %8335 = vmatmul.mubr.bf16.gmra.mxu0 %v8006
      %v8336 = vpop.f32.mrf.mxu0
      %v8337 = vadd.f32 0.0, %v8336
      %v8338 = vpop.f32.mrf.mxu0
      %v8339 = vadd.f32 0.0, %v8338
      %v8340 = vpop.f32.mrf.mxu0
      %v8341 = vadd.f32 0.0, %v8340
      %v8342 = vpop.f32.mrf.mxu0
      %v8343 = vadd.f32 0.0, %v8342
      %8344 = vmatprep.mubr.bf16.mxu0 %v8033
      %8345 = vmatmul.mubr.bf16.gmra.mxu0 %v8024
      %v8346 = vpop.f32.mrf.mxu0
      %v8347 = vadd.f32 0.0, %v8346
      %v8348 = vpop.f32.mrf.mxu0
      %v8349 = vadd.f32 0.0, %v8348
      %v8350 = vpop.f32.mrf.mxu0
      %v8351 = vadd.f32 0.0, %v8350
      %v8352 = vpop.f32.mrf.mxu0
      %v8353 = vadd.f32 0.0, %v8352
      %8354 = vmatprep.mubr.bf16.mxu0 %v8051
      %8355 = vmatmul.mubr.bf16.gmra.mxu0 %v8042
      %v8356 = vpop.f32.mrf.mxu0
      %v8357 = vadd.f32 0.0, %v8356
      %v8358 = vpop.f32.mrf.mxu0
      %v8359 = vadd.f32 0.0, %v8358
      %v8360 = vpop.f32.mrf.mxu0
      %v8361 = vadd.f32 0.0, %v8360
      %v8362 = vpop.f32.mrf.mxu0
      %v8363 = vadd.f32 0.0, %v8362
      %8364 = vmatprep.mubr.bf16.mxu0 %v8069
      %8365 = vmatmul.mubr.bf16.gmra.mxu0 %v8060
      %v8366 = vpop.f32.mrf.mxu0
      %v8367 = vadd.f32 0.0, %v8366
      %v8368 = vpop.f32.mrf.mxu0
      %v8369 = vadd.f32 0.0, %v8368
      %v8370 = vpop.f32.mrf.mxu0
      %v8371 = vadd.f32 0.0, %v8370
      %v8372 = vpop.f32.mrf.mxu0
      %v8373 = vadd.f32 0.0, %v8372
      %8374 = vmatprep.mubr.bf16.mxu0 %v8087
      %8375 = vmatmul.mubr.bf16.gmra.mxu0 %v8078
      %v8376 = vpop.f32.mrf.mxu0
      %v8377 = vadd.f32 0.0, %v8376
      %v8378 = vpop.f32.mrf.mxu0
      %v8379 = vadd.f32 0.0, %v8378
      %v8380 = vpop.f32.mrf.mxu0
      %v8381 = vadd.f32 0.0, %v8380
      %v8382 = vpop.f32.mrf.mxu0
      %v8383 = vadd.f32 0.0, %v8382
      %8384 = vmatprep.mubr.bf16.mxu0 %v8105
      %8385 = vmatmul.mubr.bf16.gmra.mxu0 %v8096
      %v8386 = vpop.f32.mrf.mxu0
      %v8387 = vadd.f32 0.0, %v8386
      %v8388 = vpop.f32.mrf.mxu0
      %v8389 = vadd.f32 0.0, %v8388
      %v8390 = vpop.f32.mrf.mxu0
      %v8391 = vadd.f32 0.0, %v8390
      %v8392 = vpop.f32.mrf.mxu0
      %v8393 = vadd.f32 0.0, %v8392
      %8394 = vdwg.mxu0
      %v8395 = vadd.f32 %v7876, %v8317
      %v8396 = vadd.f32 %v7877, %v8319
      %v8397 = vadd.f32 %v7878, %v8321
      %v8398 = vadd.f32 %v7879, %v8323
      %v8399 = vadd.f32 %v7880, %v8327
      %v8400 = vadd.f32 %v7881, %v8329
      %v8401 = vadd.f32 %v7882, %v8331
      %v8402 = vadd.f32 %v7883, %v8333
      %v8403 = vadd.f32 %v7884, %v8337
      %v8404 = vadd.f32 %v7885, %v8339
      %v8405 = vadd.f32 %v7886, %v8341
      %v8406 = vadd.f32 %v7887, %v8343
      %v8407 = vadd.f32 %v7888, %v8347
      %v8408 = vadd.f32 %v7889, %v8349
      %v8409 = vadd.f32 %v7890, %v8351
      %v8410 = vadd.f32 %v7891, %v8353
      %v8411 = vadd.f32 %v7892, %v8357
      %v8412 = vadd.f32 %v7893, %v8359
      %v8413 = vadd.f32 %v7894, %v8361
      %v8414 = vadd.f32 %v7895, %v8363
      %v8415 = vadd.f32 %v7896, %v8367
      %v8416 = vadd.f32 %v7897, %v8369
      %v8417 = vadd.f32 %v7898, %v8371
      %v8418 = vadd.f32 %v7899, %v8373
      %v8419 = vadd.f32 %v7900, %v8377
      %v8420 = vadd.f32 %v7901, %v8379
      %v8421 = vadd.f32 %v7902, %v8381
      %v8422 = vadd.f32 %v7903, %v8383
      %v8423 = vadd.f32 %v7904, %v8387
      %v8424 = vadd.f32 %v7905, %v8389
      %v8425 = vadd.f32 %v7906, %v8391
      %v8426 = vadd.f32 %v7907, %v8393
      %v8427 = vld [vmem:[%s246 + $0xa0] sm:$0x88]
      %v8428 = vld [vmem:[%s3900] sm:$0xff]
      %v8429 = vld [vmem:[%s3900 + $0x8] sm:$0xff]
      %v8430 = vld [vmem:[%s3900 + $0x10] sm:$0xff]
      %v8431 = vld [vmem:[%s3900 + $0x18] sm:$0xff]
      %v8432 = vld [vmem:[%s3900 + $0x20] sm:$0xff]
      %v8433 = vld [vmem:[%s3900 + $0x28] sm:$0xff]
      %v8434 = vld [vmem:[%s3900 + $0x30] sm:$0xff]
      %v8435 = vld [vmem:[%s3900 + $0x38] sm:$0xff]
      %v8436 = vld [vmem:[%s3900 + $0x40] sm:$0xff]
      %v8437 = vld [vmem:[%s3900 + $0x48] sm:$0xff]
      %v8438 = vld [vmem:[%s3900 + $0x50] sm:$0xff]
      %v8439 = vld [vmem:[%s3900 + $0x58] sm:$0xff]
      %v8440 = vld [vmem:[%s3900 + $0x60] sm:$0xff]
      %v8441 = vld [vmem:[%s3900 + $0x68] sm:$0xff]
      %v8442 = vld [vmem:[%s3900 + $0x70] sm:$0xff]
      %v8443 = vld [vmem:[%s3900 + $0x78] sm:$0xff]
      %v8444 = vld [vmem:[%s3900 + $0x80] sm:$0xff]
      %v8445 = vld [vmem:[%s3900 + $0x88] sm:$0xff]
      %v8446 = vld [vmem:[%s3900 + $0x90] sm:$0xff]
      %v8447 = vld [vmem:[%s3900 + $0x98] sm:$0xff]
      %v8448 = vld [vmem:[%s3900 + $0xa0] sm:$0xff]
      %v8449 = vld [vmem:[%s3900 + $0xa8] sm:$0xff]
      %v8450 = vld [vmem:[%s3900 + $0xb0] sm:$0xff]
      %v8451 = vld [vmem:[%s3900 + $0xb8] sm:$0xff]
      %v8452 = vld [vmem:[%s3900 + $0xc0] sm:$0xff]
      %v8453 = vld [vmem:[%s3900 + $0xc8] sm:$0xff]
      %v8454 = vld [vmem:[%s3900 + $0xd0] sm:$0xff]
      %v8455 = vld [vmem:[%s3900 + $0xd8] sm:$0xff]
      %v8456 = vld [vmem:[%s3900 + $0xe0] sm:$0xff]
      %v8457 = vld [vmem:[%s3900 + $0xe8] sm:$0xff]
      %v8458 = vld [vmem:[%s3900 + $0xf0] sm:$0xff]
      %v8459 = vld [vmem:[%s3900 + $0xf8] sm:$0xff]
      %v8461 = vunpack.c.l.b16 %v8427
      %v8462 = vunpack.c.h.b16 %v8427
      %v8463 = vpack.c.b16 %v7503, %v8461
      %v8464 = vpack.c.b16 %v7504, %v8462
      %v8465 = vrot.slane %v8463, 3
      %v8466 = vrot.slane %v7537, 3
      %v8467 = vsel %vm3938, %v8465, %v8466
      %v8468 = vrot.slane %v8464, 3
      %v8469 = vrot.slane %v7538, 3
      %v8470 = vsel %vm3938, %v8468, %v8469
      %v8471 = vrot.slane %v7539, 3
      %v8472 = vsel %vm3938, %v8466, %v8471
      %v8473 = vrot.slane %v7540, 3
      %v8474 = vsel %vm3938, %v8469, %v8473
      %v8475 = vrot.slane %v7541, 3
      %v8476 = vsel %vm3938, %v8471, %v8475
      %v8477 = vrot.slane %v7542, 3
      %v8478 = vsel %vm3938, %v8473, %v8477
      %v8479 = vrot.slane %v7543, 3
      %v8480 = vsel %vm3938, %v8475, %v8479
      %v8481 = vrot.slane %v7544, 3
      %v8482 = vsel %vm3938, %v8477, %v8481
      %v8483 = vrot.slane %v7545, 3
      %v8484 = vsel %vm3938, %v8479, %v8483
      %v8485 = vrot.slane %v7546, 3
      %v8486 = vsel %vm3938, %v8481, %v8485
      %v8487 = vrot.slane %v7547, 3
      %v8488 = vsel %vm3938, %v8483, %v8487
      %v8489 = vrot.slane %v7548, 3
      %v8490 = vsel %vm3938, %v8485, %v8489
      %v8491 = vrot.slane %v7549, 3
      %v8492 = vsel %vm3938, %v8487, %v8491
      %v8493 = vrot.slane %v7550, 3
      %v8494 = vsel %vm3938, %v8489, %v8493
      %v8495 = vrot.slane %v7944, 3
      %v8496 = vsel %vm3938, %v8491, %v8495
      %v8497 = vrot.slane %v7945, 3
      %v8498 = vsel %vm3938, %v8493, %v8497
      %v8547 = vunpack.c.l.b16 %v8428
      %v8548 = vunpack.c.h.b16 %v8428
      %v8549 = vunpack.c.l.b16 %v8429
      %v8550 = vunpack.c.h.b16 %v8429
      %v8551 = vunpack.c.l.b16 %v8430
      %v8552 = vunpack.c.h.b16 %v8430
      %v8553 = vunpack.c.l.b16 %v8431
      %v8554 = vunpack.c.h.b16 %v8431
      %v8555 = vunpack.c.l.b16 %v8432
      %v8556 = vunpack.c.h.b16 %v8432
      %v8557 = vunpack.c.l.b16 %v8433
      %v8558 = vunpack.c.h.b16 %v8433
      %v8559 = vunpack.c.l.b16 %v8434
      %v8560 = vunpack.c.h.b16 %v8434
      %v8561 = vunpack.c.l.b16 %v8435
      %v8562 = vunpack.c.h.b16 %v8435
      %v8563 = vunpack.c.l.b16 %v8436
      %v8564 = vunpack.c.h.b16 %v8436
      %v8565 = vunpack.c.l.b16 %v8437
      %v8566 = vunpack.c.h.b16 %v8437
      %v8567 = vunpack.c.l.b16 %v8438
      %v8568 = vunpack.c.h.b16 %v8438
      %v8569 = vunpack.c.l.b16 %v8439
      %v8570 = vunpack.c.h.b16 %v8439
      %v8571 = vunpack.c.l.b16 %v8440
      %v8572 = vunpack.c.h.b16 %v8440
      %v8573 = vunpack.c.l.b16 %v8441
      %v8574 = vunpack.c.h.b16 %v8441
      %v8575 = vunpack.c.l.b16 %v8442
      %v8576 = vunpack.c.h.b16 %v8442
      %v8577 = vunpack.c.l.b16 %v8443
      %v8578 = vunpack.c.h.b16 %v8443
      %v8579 = vunpack.c.l.b16 %v8444
      %v8580 = vunpack.c.h.b16 %v8444
      %v8581 = vunpack.c.l.b16 %v8445
      %v8582 = vunpack.c.h.b16 %v8445
      %v8583 = vunpack.c.l.b16 %v8446
      %v8584 = vunpack.c.h.b16 %v8446
      %v8585 = vunpack.c.l.b16 %v8447
      %v8586 = vunpack.c.h.b16 %v8447
      %v8587 = vunpack.c.l.b16 %v8448
      %v8588 = vunpack.c.h.b16 %v8448
      %v8589 = vunpack.c.l.b16 %v8449
      %v8590 = vunpack.c.h.b16 %v8449
      %v8591 = vunpack.c.l.b16 %v8450
      %v8592 = vunpack.c.h.b16 %v8450
      %v8593 = vunpack.c.l.b16 %v8451
      %v8594 = vunpack.c.h.b16 %v8451
      %v8595 = vunpack.c.l.b16 %v8452
      %v8596 = vunpack.c.h.b16 %v8452
      %v8597 = vunpack.c.l.b16 %v8453
      %v8598 = vunpack.c.h.b16 %v8453
      %v8599 = vunpack.c.l.b16 %v8454
      %v8600 = vunpack.c.h.b16 %v8454
      %v8601 = vunpack.c.l.b16 %v8455
      %v8602 = vunpack.c.h.b16 %v8455
      %v8603 = vunpack.c.l.b16 %v8456
      %v8604 = vunpack.c.h.b16 %v8456
      %v8605 = vunpack.c.l.b16 %v8457
      %v8606 = vunpack.c.h.b16 %v8457
      %v8607 = vunpack.c.l.b16 %v8458
      %v8608 = vunpack.c.h.b16 %v8458
      %v8609 = vunpack.c.l.b16 %v8459
      %v8610 = vunpack.c.h.b16 %v8459
      %v8611 = vpack.c.b16 %v8549, %v8547
      %v8612 = vpack.c.b16 %v8550, %v8548
      %v8613 = vpack.c.b16 %v8553, %v8551
      %v8614 = vpack.c.b16 %v8554, %v8552
      %v8615 = vpack.c.b16 %v8557, %v8555
      %v8616 = vpack.c.b16 %v8558, %v8556
      %v8617 = vpack.c.b16 %v8561, %v8559
      %v8618 = vpack.c.b16 %v8562, %v8560
      %v8619 = vpack.c.b16 %v8565, %v8563
      %v8620 = vpack.c.b16 %v8566, %v8564
      %v8621 = vpack.c.b16 %v8569, %v8567
      %v8622 = vpack.c.b16 %v8570, %v8568
      %v8623 = vpack.c.b16 %v8573, %v8571
      %v8624 = vpack.c.b16 %v8574, %v8572
      %v8625 = vpack.c.b16 %v8577, %v8575
      %v8626 = vpack.c.b16 %v8578, %v8576
      %v8627 = vpack.c.b16 %v8581, %v8579
      %v8628 = vpack.c.b16 %v8582, %v8580
      %v8629 = vpack.c.b16 %v8585, %v8583
      %v8630 = vpack.c.b16 %v8586, %v8584
      %v8631 = vpack.c.b16 %v8589, %v8587
      %v8632 = vpack.c.b16 %v8590, %v8588
      %v8633 = vpack.c.b16 %v8593, %v8591
      %v8634 = vpack.c.b16 %v8594, %v8592
      %v8635 = vpack.c.b16 %v8597, %v8595
      %v8636 = vpack.c.b16 %v8598, %v8596
      %v8637 = vpack.c.b16 %v8601, %v8599
      %v8638 = vpack.c.b16 %v8602, %v8600
      %v8639 = vpack.c.b16 %v8605, %v8603
      %v8640 = vpack.c.b16 %v8606, %v8604
      %v8641 = vpack.c.b16 %v8609, %v8607
      %v8642 = vpack.c.b16 %v8610, %v8608
      %8675 = vmatprep.subr.bf16.mxu0 %v8626
      %8676 = vmatpush1.bf16.msra.mxu0 %v8625
      %8677 = vmatprep.subr.bf16.mxu0 %v8624
      %8678 = vmatpush1.bf16.msra.mxu0 %v8623
      %8679 = vmatprep.subr.bf16.mxu0 %v8622
      %8680 = vmatpush1.bf16.msra.mxu0 %v8621
      %8681 = vmatprep.subr.bf16.mxu0 %v8620
      %8682 = vmatpush1.bf16.msra.mxu0 %v8619
      %8683 = vmatprep.subr.bf16.mxu0 %v8618
      %8684 = vmatpush1.bf16.msra.mxu0 %v8617
      %8685 = vmatprep.subr.bf16.mxu0 %v8616
      %8686 = vmatpush1.bf16.msra.mxu0 %v8615
      %8687 = vmatprep.subr.bf16.mxu0 %v8614
      %8688 = vmatpush1.bf16.msra.mxu0 %v8613
      %8689 = vmatprep.subr.bf16.mxu0 %v8612
      %8690 = vmatpush1.bf16.msra.mxu0 %v8611
      %8691 = vmatprep.subr.bf16.mxu0 %v8642
      %8692 = vmatpush2.bf16.msra.mxu0 %v8641
      %8693 = vmatprep.subr.bf16.mxu0 %v8640
      %8694 = vmatpush2.bf16.msra.mxu0 %v8639
      %8695 = vmatprep.subr.bf16.mxu0 %v8638
      %8696 = vmatpush2.bf16.msra.mxu0 %v8637
      %8697 = vmatprep.subr.bf16.mxu0 %v8636
      %8698 = vmatpush2.bf16.msra.mxu0 %v8635
      %8699 = vmatprep.subr.bf16.mxu0 %v8634
      %8700 = vmatpush2.bf16.msra.mxu0 %v8633
      %8701 = vmatprep.subr.bf16.mxu0 %v8632
      %8702 = vmatpush2.bf16.msra.mxu0 %v8631
      %8703 = vmatprep.subr.bf16.mxu0 %v8630
      %8704 = vmatpush2.bf16.msra.mxu0 %v8629
      %8705 = vmatprep.subr.bf16.mxu0 %v8628
      %8706 = vmatpush2.bf16.msra.mxu0 %v8627
      %8707 = vmatprep.mubr.bf16.mxu0 %v8470
      %8708 = vmatmul.mubr.bf16.gmra.mxu0 %v8467
      %v8709 = vpop.f32.mrf.mxu0
      %v8710 = vadd.f32 0.0, %v8709
      %v8711 = vpop.f32.mrf.mxu0
      %v8712 = vadd.f32 0.0, %v8711
      %v8713 = vpop.f32.mrf.mxu0
      %v8714 = vadd.f32 0.0, %v8713
      %v8715 = vpop.f32.mrf.mxu0
      %v8716 = vadd.f32 0.0, %v8715
      %8717 = vmatprep.mubr.bf16.mxu0 %v8474
      %8718 = vmatmul.mubr.bf16.gmra.mxu0 %v8472
      %v8719 = vpop.f32.mrf.mxu0
      %v8720 = vadd.f32 0.0, %v8719
      %v8721 = vpop.f32.mrf.mxu0
      %v8722 = vadd.f32 0.0, %v8721
      %v8723 = vpop.f32.mrf.mxu0
      %v8724 = vadd.f32 0.0, %v8723
      %v8725 = vpop.f32.mrf.mxu0
      %v8726 = vadd.f32 0.0, %v8725
      %8727 = vmatprep.mubr.bf16.mxu0 %v8478
      %8728 = vmatmul.mubr.bf16.gmra.mxu0 %v8476
      %v8729 = vpop.f32.mrf.mxu0
      %v8730 = vadd.f32 0.0, %v8729
      %v8731 = vpop.f32.mrf.mxu0
      %v8732 = vadd.f32 0.0, %v8731
      %v8733 = vpop.f32.mrf.mxu0
      %v8734 = vadd.f32 0.0, %v8733
      %v8735 = vpop.f32.mrf.mxu0
      %v8736 = vadd.f32 0.0, %v8735
      %8737 = vmatprep.mubr.bf16.mxu0 %v8482
      %8738 = vmatmul.mubr.bf16.gmra.mxu0 %v8480
      %v8739 = vpop.f32.mrf.mxu0
      %v8740 = vadd.f32 0.0, %v8739
      %v8741 = vpop.f32.mrf.mxu0
      %v8742 = vadd.f32 0.0, %v8741
      %v8743 = vpop.f32.mrf.mxu0
      %v8744 = vadd.f32 0.0, %v8743
      %v8745 = vpop.f32.mrf.mxu0
      %v8746 = vadd.f32 0.0, %v8745
      %8747 = vmatprep.mubr.bf16.mxu0 %v8486
      %8748 = vmatmul.mubr.bf16.gmra.mxu0 %v8484
      %v8749 = vpop.f32.mrf.mxu0
      %v8750 = vadd.f32 0.0, %v8749
      %v8751 = vpop.f32.mrf.mxu0
      %v8752 = vadd.f32 0.0, %v8751
      %v8753 = vpop.f32.mrf.mxu0
      %v8754 = vadd.f32 0.0, %v8753
      %v8755 = vpop.f32.mrf.mxu0
      %v8756 = vadd.f32 0.0, %v8755
      %8757 = vmatprep.mubr.bf16.mxu0 %v8490
      %8758 = vmatmul.mubr.bf16.gmra.mxu0 %v8488
      %v8759 = vpop.f32.mrf.mxu0
      %v8760 = vadd.f32 0.0, %v8759
      %v8761 = vpop.f32.mrf.mxu0
      %v8762 = vadd.f32 0.0, %v8761
      %v8763 = vpop.f32.mrf.mxu0
      %v8764 = vadd.f32 0.0, %v8763
      %v8765 = vpop.f32.mrf.mxu0
      %v8766 = vadd.f32 0.0, %v8765
      %8767 = vmatprep.mubr.bf16.mxu0 %v8494
      %8768 = vmatmul.mubr.bf16.gmra.mxu0 %v8492
      %v8769 = vpop.f32.mrf.mxu0
      %v8770 = vadd.f32 0.0, %v8769
      %v8771 = vpop.f32.mrf.mxu0
      %v8772 = vadd.f32 0.0, %v8771
      %v8773 = vpop.f32.mrf.mxu0
      %v8774 = vadd.f32 0.0, %v8773
      %v8775 = vpop.f32.mrf.mxu0
      %v8776 = vadd.f32 0.0, %v8775
      %8777 = vmatprep.mubr.bf16.mxu0 %v8498
      %8778 = vmatmul.mubr.bf16.gmra.mxu0 %v8496
      %v8779 = vpop.f32.mrf.mxu0
      %v8780 = vadd.f32 0.0, %v8779
      %v8781 = vpop.f32.mrf.mxu0
      %v8782 = vadd.f32 0.0, %v8781
      %v8783 = vpop.f32.mrf.mxu0
      %v8784 = vadd.f32 0.0, %v8783
      %v8785 = vpop.f32.mrf.mxu0
      %v8786 = vadd.f32 0.0, %v8785
      %8787 = vdwg.mxu0
      %v8788 = vadd.f32 %v8395, %v8710
      %v8789 = vadd.f32 %v8396, %v8712
      %v8790 = vadd.f32 %v8397, %v8714
      %v8791 = vadd.f32 %v8398, %v8716
      %v8792 = vadd.f32 %v8399, %v8720
      %v8793 = vadd.f32 %v8400, %v8722
      %v8794 = vadd.f32 %v8401, %v8724
      %v8795 = vadd.f32 %v8402, %v8726
      %v8796 = vadd.f32 %v8403, %v8730
      %v8797 = vadd.f32 %v8404, %v8732
      %v8798 = vadd.f32 %v8405, %v8734
      %v8799 = vadd.f32 %v8406, %v8736
      %v8800 = vadd.f32 %v8407, %v8740
      %v8801 = vadd.f32 %v8408, %v8742
      %v8802 = vadd.f32 %v8409, %v8744
      %v8803 = vadd.f32 %v8410, %v8746
      %v8804 = vadd.f32 %v8411, %v8750
      %v8805 = vadd.f32 %v8412, %v8752
      %v8806 = vadd.f32 %v8413, %v8754
      %v8807 = vadd.f32 %v8414, %v8756
      %v8808 = vadd.f32 %v8415, %v8760
      %v8809 = vadd.f32 %v8416, %v8762
      %v8810 = vadd.f32 %v8417, %v8764
      %v8811 = vadd.f32 %v8418, %v8766
      %v8812 = vadd.f32 %v8419, %v8770
      %v8813 = vadd.f32 %v8420, %v8772
      %v8814 = vadd.f32 %v8421, %v8774
      %v8815 = vadd.f32 %v8422, %v8776
      %v8816 = vadd.f32 %v8423, %v8780
      %v8817 = vadd.f32 %v8424, %v8782
      %v8818 = vadd.f32 %v8425, %v8784
      %v8819 = vadd.f32 %v8426, %v8786
      %v8820 = vld [vmem:[%s2] sm:$0x3]
      %v8822 = vlaneseq
      %v8823 = vshrl.u32 %v8822, 7
      %v8824 = vsub.s32 0, %v8823
      %v8825 = vrot.slane %v8820, %v8824
      %v8826 = vlaneseq
      %v8827 = vshrl.u32 %v8826, 7
      %v8828 = vsub.s32 1, %v8827
      %v8829 = vrot.slane %v8820, %v8828
      %v8832 = vmul.f32 %v8788, %v8825
      %v8833 = vmul.f32 %v8789, %v8829
      %v8834 = vmul.f32 %v8790, %v8825
      %v8835 = vmul.f32 %v8791, %v8829
      %v8836 = vmul.f32 %v8792, %v8825
      %v8837 = vmul.f32 %v8793, %v8829
      %v8838 = vmul.f32 %v8794, %v8825
      %v8839 = vmul.f32 %v8795, %v8829
      %v8840 = vmul.f32 %v8796, %v8825
      %v8841 = vmul.f32 %v8797, %v8829
      %v8842 = vmul.f32 %v8798, %v8825
      %v8843 = vmul.f32 %v8799, %v8829
      %v8844 = vmul.f32 %v8800, %v8825
      %v8845 = vmul.f32 %v8801, %v8829
      %v8846 = vmul.f32 %v8802, %v8825
      %v8847 = vmul.f32 %v8803, %v8829
      %v8848 = vmul.f32 %v8804, %v8825
      %v8849 = vmul.f32 %v8805, %v8829
      %v8850 = vmul.f32 %v8806, %v8825
      %v8851 = vmul.f32 %v8807, %v8829
      %v8852 = vmul.f32 %v8808, %v8825
      %v8853 = vmul.f32 %v8809, %v8829
      %v8854 = vmul.f32 %v8810, %v8825
      %v8855 = vmul.f32 %v8811, %v8829
      %v8856 = vmul.f32 %v8812, %v8825
      %v8857 = vmul.f32 %v8813, %v8829
      %v8858 = vmul.f32 %v8814, %v8825
      %v8859 = vmul.f32 %v8815, %v8829
      %v8860 = vmul.f32 %v8816, %v8825
      %v8861 = vmul.f32 %v8817, %v8829
      %v8862 = vmul.f32 %v8818, %v8825
      %v8863 = vmul.f32 %v8819, %v8829
      %v8864 = vld [vmem:[%s3] sm:$0x3]
      %v8866 = vlaneseq
      %v8867 = vshrl.u32 %v8866, 7
      %v8868 = vsub.s32 0, %v8867
      %v8869 = vrot.slane %v8864, %v8868
      %v8870 = vlaneseq
      %v8871 = vshrl.u32 %v8870, 7
      %v8872 = vsub.s32 1, %v8871
      %v8873 = vrot.slane %v8864, %v8872
      %v8876 = vadd.f32 %v8832, %v8869
      %v8877 = vadd.f32 %v8833, %v8873
      %v8878 = vadd.f32 %v8834, %v8869
      %v8879 = vadd.f32 %v8835, %v8873
      %v8880 = vadd.f32 %v8836, %v8869
      %v8881 = vadd.f32 %v8837, %v8873
      %v8882 = vadd.f32 %v8838, %v8869
      %v8883 = vadd.f32 %v8839, %v8873
      %v8884 = vadd.f32 %v8840, %v8869
      %v8885 = vadd.f32 %v8841, %v8873
      %v8886 = vadd.f32 %v8842, %v8869
      %v8887 = vadd.f32 %v8843, %v8873
      %v8888 = vadd.f32 %v8844, %v8869
      %v8889 = vadd.f32 %v8845, %v8873
      %v8890 = vadd.f32 %v8846, %v8869
      %v8891 = vadd.f32 %v8847, %v8873
      %v8892 = vadd.f32 %v8848, %v8869
      %v8893 = vadd.f32 %v8849, %v8873
      %v8894 = vadd.f32 %v8850, %v8869
      %v8895 = vadd.f32 %v8851, %v8873
      %v8896 = vadd.f32 %v8852, %v8869
      %v8897 = vadd.f32 %v8853, %v8873
      %v8898 = vadd.f32 %v8854, %v8869
      %v8899 = vadd.f32 %v8855, %v8873
      %v8900 = vadd.f32 %v8856, %v8869
      %v8901 = vadd.f32 %v8857, %v8873
      %v8902 = vadd.f32 %v8858, %v8869
      %v8903 = vadd.f32 %v8859, %v8873
      %v8904 = vadd.f32 %v8860, %v8869
      %v8905 = vadd.f32 %v8861, %v8873
      %v8906 = vadd.f32 %v8862, %v8869
      %v8907 = vadd.f32 %v8863, %v8873
      %v8908 = vmax.f32 %v8876, 0.0
      %v8909 = vmax.f32 %v8877, 0.0
      %v8910 = vmax.f32 %v8878, 0.0
      %v8911 = vmax.f32 %v8879, 0.0
      %v8912 = vmax.f32 %v8880, 0.0
      %v8913 = vmax.f32 %v8881, 0.0
      %v8914 = vmax.f32 %v8882, 0.0
      %v8915 = vmax.f32 %v8883, 0.0
      %v8916 = vmax.f32 %v8884, 0.0
      %v8917 = vmax.f32 %v8885, 0.0
      %v8918 = vmax.f32 %v8886, 0.0
      %v8919 = vmax.f32 %v8887, 0.0
      %v8920 = vmax.f32 %v8888, 0.0
      %v8921 = vmax.f32 %v8889, 0.0
      %v8922 = vmax.f32 %v8890, 0.0
      %v8923 = vmax.f32 %v8891, 0.0
      %v8924 = vmax.f32 %v8892, 0.0
      %v8925 = vmax.f32 %v8893, 0.0
      %v8926 = vmax.f32 %v8894, 0.0
      %v8927 = vmax.f32 %v8895, 0.0
      %v8928 = vmax.f32 %v8896, 0.0
      %v8929 = vmax.f32 %v8897, 0.0
      %v8930 = vmax.f32 %v8898, 0.0
      %v8931 = vmax.f32 %v8899, 0.0
      %v8932 = vmax.f32 %v8900, 0.0
      %v8933 = vmax.f32 %v8901, 0.0
      %v8934 = vmax.f32 %v8902, 0.0
      %v8935 = vmax.f32 %v8903, 0.0
      %v8936 = vmax.f32 %v8904, 0.0
      %v8937 = vmax.f32 %v8905, 0.0
      %v8938 = vmax.f32 %v8906, 0.0
      %v8939 = vmax.f32 %v8907, 0.0
      %v8940 = vpack.c.bf16 %v8910, %v8908
      %v8941 = vpack.c.bf16 %v8911, %v8909
      %v8942 = vpack.c.bf16 %v8914, %v8912
      %v8943 = vpack.c.bf16 %v8915, %v8913
      %v8944 = vpack.c.bf16 %v8918, %v8916
      %v8945 = vpack.c.bf16 %v8919, %v8917
      %v8946 = vpack.c.bf16 %v8922, %v8920
      %v8947 = vpack.c.bf16 %v8923, %v8921
      %v8948 = vpack.c.bf16 %v8926, %v8924
      %v8949 = vpack.c.bf16 %v8927, %v8925
      %v8950 = vpack.c.bf16 %v8930, %v8928
      %v8951 = vpack.c.bf16 %v8931, %v8929
      %v8952 = vpack.c.bf16 %v8934, %v8932
      %v8953 = vpack.c.bf16 %v8935, %v8933
      %v8954 = vpack.c.bf16 %v8938, %v8936
      %v8955 = vpack.c.bf16 %v8939, %v8937
      %v8956 = vld [vmem:[%s4] sm:$0xf]
      %v8957 = vld [vmem:[%s4 + $0x4] sm:$0xf]
      %v8958 = vld [vmem:[%s4 + $0x8] sm:$0xf]
      %v8959 = vld [vmem:[%s4 + $0xc] sm:$0xf]
      %v8960 = vld [vmem:[%s4 + $0x10] sm:$0xf]
      %v8961 = vld [vmem:[%s4 + $0x14] sm:$0xf]
      %v8962 = vld [vmem:[%s4 + $0x18] sm:$0xf]
      %v8963 = vld [vmem:[%s4 + $0x1c] sm:$0xf]
      %v8964 = vld [vmem:[%s4 + $0x20] sm:$0xf]
      %v8965 = vld [vmem:[%s4 + $0x24] sm:$0xf]
      %v8966 = vld [vmem:[%s4 + $0x28] sm:$0xf]
      %v8967 = vld [vmem:[%s4 + $0x2c] sm:$0xf]
      %v8968 = vld [vmem:[%s4 + $0x30] sm:$0xf]
      %v8969 = vld [vmem:[%s4 + $0x34] sm:$0xf]
      %v8970 = vld [vmem:[%s4 + $0x38] sm:$0xf]
      %v8971 = vld [vmem:[%s4 + $0x3c] sm:$0xf]
      %v8972 = vld [vmem:[%s4 + $0x40] sm:$0xf]
      %v8973 = vld [vmem:[%s4 + $0x44] sm:$0xf]
      %v8974 = vld [vmem:[%s4 + $0x48] sm:$0xf]
      %v8975 = vld [vmem:[%s4 + $0x4c] sm:$0xf]
      %v8976 = vld [vmem:[%s4 + $0x50] sm:$0xf]
      %v8977 = vld [vmem:[%s4 + $0x54] sm:$0xf]
      %v8978 = vld [vmem:[%s4 + $0x58] sm:$0xf]
      %v8979 = vld [vmem:[%s4 + $0x5c] sm:$0xf]
      %v8980 = vld [vmem:[%s4 + $0x60] sm:$0xf]
      %v8981 = vld [vmem:[%s4 + $0x64] sm:$0xf]
      %v8982 = vld [vmem:[%s4 + $0x68] sm:$0xf]
      %v8983 = vld [vmem:[%s4 + $0x6c] sm:$0xf]
      %v8984 = vld [vmem:[%s4 + $0x70] sm:$0xf]
      %v8985 = vld [vmem:[%s4 + $0x74] sm:$0xf]
      %v8986 = vld [vmem:[%s4 + $0x78] sm:$0xf]
      %v8987 = vld [vmem:[%s4 + $0x7c] sm:$0xf]
      %v8988 = vld [vmem:[%s5] sm:$0x1]
      %v8990 = vlaneseq
      %v8991 = vshrl.u32 %v8990, 7
      %v8992 = vsub.s32 0, %v8991
      %v8993 = vrot.slane %v8988, %v8992
      %v9027 = vunpack.c.l.b16 %v8956
      %v9028 = vunpack.c.l.b16 %v8957
      %v9029 = vunpack.c.l.b16 %v8958
      %v9030 = vunpack.c.l.b16 %v8959
      %v9031 = vunpack.c.l.b16 %v8960
      %v9032 = vunpack.c.l.b16 %v8961
      %v9033 = vunpack.c.l.b16 %v8962
      %v9034 = vunpack.c.l.b16 %v8963
      %v9035 = vunpack.c.l.b16 %v8964
      %v9036 = vunpack.c.l.b16 %v8965
      %v9037 = vunpack.c.l.b16 %v8966
      %v9038 = vunpack.c.l.b16 %v8967
      %v9039 = vunpack.c.l.b16 %v8968
      %v9040 = vunpack.c.l.b16 %v8969
      %v9041 = vunpack.c.l.b16 %v8970
      %v9042 = vunpack.c.l.b16 %v8971
      %v9043 = vunpack.c.l.b16 %v8972
      %v9044 = vunpack.c.l.b16 %v8973
      %v9045 = vunpack.c.l.b16 %v8974
      %v9046 = vunpack.c.l.b16 %v8975
      %v9047 = vunpack.c.l.b16 %v8976
      %v9048 = vunpack.c.l.b16 %v8977
      %v9049 = vunpack.c.l.b16 %v8978
      %v9050 = vunpack.c.l.b16 %v8979
      %v9051 = vunpack.c.l.b16 %v8980
      %v9052 = vunpack.c.l.b16 %v8981
      %v9053 = vunpack.c.l.b16 %v8982
      %v9054 = vunpack.c.l.b16 %v8983
      %v9055 = vunpack.c.l.b16 %v8984
      %v9056 = vunpack.c.l.b16 %v8985
      %v9057 = vunpack.c.l.b16 %v8986
      %v9058 = vunpack.c.l.b16 %v8987
      %v9059 = vpack.c.b16 %v9028, %v9027
      %v9060 = vpack.c.b16 %v9030, %v9029
      %v9061 = vpack.c.b16 %v9032, %v9031
      %v9062 = vpack.c.b16 %v9034, %v9033
      %v9063 = vpack.c.b16 %v9036, %v9035
      %v9064 = vpack.c.b16 %v9038, %v9037
      %v9065 = vpack.c.b16 %v9040, %v9039
      %v9066 = vpack.c.b16 %v9042, %v9041
      %v9067 = vpack.c.b16 %v9044, %v9043
      %v9068 = vpack.c.b16 %v9046, %v9045
      %v9069 = vpack.c.b16 %v9048, %v9047
      %v9070 = vpack.c.b16 %v9050, %v9049
      %v9071 = vpack.c.b16 %v9052, %v9051
      %v9072 = vpack.c.b16 %v9054, %v9053
      %v9073 = vpack.c.b16 %v9056, %v9055
      %v9074 = vpack.c.b16 %v9058, %v9057
      %9091 = vmatprep.subr.bf16.mxu0 0
      %9092 = vmatpush1.bf16.msra.mxu0 %v9066
      %9093 = vmatprep.subr.bf16.mxu0 0
      %9094 = vmatpush1.bf16.msra.mxu0 %v9065
      %9095 = vmatprep.subr.bf16.mxu0 0
      %9096 = vmatpush1.bf16.msra.mxu0 %v9064
      %9097 = vmatprep.subr.bf16.mxu0 0
      %9098 = vmatpush1.bf16.msra.mxu0 %v9063
      %9099 = vmatprep.subr.bf16.mxu0 0
      %9100 = vmatpush1.bf16.msra.mxu0 %v9062
      %9101 = vmatprep.subr.bf16.mxu0 0
      %9102 = vmatpush1.bf16.msra.mxu0 %v9061
      %9103 = vmatprep.subr.bf16.mxu0 0
      %9104 = vmatpush1.bf16.msra.mxu0 %v9060
      %9105 = vmatprep.subr.bf16.mxu0 0
      %9106 = vmatpush1.bf16.msra.mxu0 %v9059
      %9107 = vmatprep.subr.bf16.mxu0 0
      %9108 = vmatpush2.bf16.msra.mxu0 %v9074
      %9109 = vmatprep.subr.bf16.mxu0 0
      %9110 = vmatpush2.bf16.msra.mxu0 %v9073
      %9111 = vmatprep.subr.bf16.mxu0 0
      %9112 = vmatpush2.bf16.msra.mxu0 %v9072
      %9113 = vmatprep.subr.bf16.mxu0 0
      %9114 = vmatpush2.bf16.msra.mxu0 %v9071
      %9115 = vmatprep.subr.bf16.mxu0 0
      %9116 = vmatpush2.bf16.msra.mxu0 %v9070
      %9117 = vmatprep.subr.bf16.mxu0 0
      %9118 = vmatpush2.bf16.msra.mxu0 %v9069
      %9119 = vmatprep.subr.bf16.mxu0 0
      %9120 = vmatpush2.bf16.msra.mxu0 %v9068
      %9121 = vmatprep.subr.bf16.mxu0 0
      %9122 = vmatpush2.bf16.msra.mxu0 %v9067
      %9123 = vmatprep.mubr.bf16.mxu0 %v8941
      %9124 = vmatmul.mubr.bf16.gmra.mxu0 %v8940
      %v9125 = vpop.f32.mrf.mxu0
      %v9126 = vadd.f32 %v8993, %v9125
      %v9127 = vpop.f32.mrf.mxu0
      %v9128 = vpop.f32.mrf.mxu0
      %v9129 = vadd.f32 %v8993, %v9128
      %v9130 = vpop.f32.mrf.mxu0
      %9131 = vmatprep.mubr.bf16.mxu0 %v8943
      %9132 = vmatmul.mubr.bf16.gmra.mxu0 %v8942
      %v9133 = vpop.f32.mrf.mxu0
      %v9134 = vadd.f32 %v8993, %v9133
      %v9135 = vpop.f32.mrf.mxu0
      %v9136 = vpop.f32.mrf.mxu0
      %v9137 = vadd.f32 %v8993, %v9136
      %v9138 = vpop.f32.mrf.mxu0
      %9139 = vmatprep.mubr.bf16.mxu0 %v8945
      %9140 = vmatmul.mubr.bf16.gmra.mxu0 %v8944
      %v9141 = vpop.f32.mrf.mxu0
      %v9142 = vadd.f32 %v8993, %v9141
      %v9143 = vpop.f32.mrf.mxu0
      %v9144 = vpop.f32.mrf.mxu0
      %v9145 = vadd.f32 %v8993, %v9144
      %v9146 = vpop.f32.mrf.mxu0
      %9147 = vmatprep.mubr.bf16.mxu0 %v8947
      %9148 = vmatmul.mubr.bf16.gmra.mxu0 %v8946
      %v9149 = vpop.f32.mrf.mxu0
      %v9150 = vadd.f32 %v8993, %v9149
      %v9151 = vpop.f32.mrf.mxu0
      %v9152 = vpop.f32.mrf.mxu0
      %v9153 = vadd.f32 %v8993, %v9152
      %v9154 = vpop.f32.mrf.mxu0
      %9155 = vmatprep.mubr.bf16.mxu0 %v8949
      %9156 = vmatmul.mubr.bf16.gmra.mxu0 %v8948
      %v9157 = vpop.f32.mrf.mxu0
      %v9158 = vadd.f32 %v8993, %v9157
      %v9159 = vpop.f32.mrf.mxu0
      %v9160 = vpop.f32.mrf.mxu0
      %v9161 = vadd.f32 %v8993, %v9160
      %v9162 = vpop.f32.mrf.mxu0
      %9163 = vmatprep.mubr.bf16.mxu0 %v8951
      %9164 = vmatmul.mubr.bf16.gmra.mxu0 %v8950
      %v9165 = vpop.f32.mrf.mxu0
      %v9166 = vadd.f32 %v8993, %v9165
      %v9167 = vpop.f32.mrf.mxu0
      %v9168 = vpop.f32.mrf.mxu0
      %v9169 = vadd.f32 %v8993, %v9168
      %v9170 = vpop.f32.mrf.mxu0
      %9171 = vmatprep.mubr.bf16.mxu0 %v8953
      %9172 = vmatmul.mubr.bf16.gmra.mxu0 %v8952
      %v9173 = vpop.f32.mrf.mxu0
      %v9174 = vadd.f32 %v8993, %v9173
      %v9175 = vpop.f32.mrf.mxu0
      %v9176 = vpop.f32.mrf.mxu0
      %v9177 = vadd.f32 %v8993, %v9176
      %v9178 = vpop.f32.mrf.mxu0
      %9179 = vmatprep.mubr.bf16.mxu0 %v8955
      %9180 = vmatmul.mubr.bf16.gmra.mxu0 %v8954
      %v9181 = vpop.f32.mrf.mxu0
      %v9182 = vadd.f32 %v8993, %v9181
      %v9183 = vpop.f32.mrf.mxu0
      %v9184 = vpop.f32.mrf.mxu0
      %v9185 = vadd.f32 %v8993, %v9184
      %v9186 = vpop.f32.mrf.mxu0
      %9187 = vdwg.mxu0
      %v9188 = vxor.u32 %v9126, 2147483648
      %v9189 = vxor.u32 %v9129, 2147483648
      %v9190 = vxor.u32 %v9134, 2147483648
      %v9191 = vxor.u32 %v9137, 2147483648
      %v9192 = vxor.u32 %v9142, 2147483648
      %v9193 = vxor.u32 %v9145, 2147483648
      %v9194 = vxor.u32 %v9150, 2147483648
      %v9195 = vxor.u32 %v9153, 2147483648
      %v9196 = vxor.u32 %v9158, 2147483648
      %v9197 = vxor.u32 %v9161, 2147483648
      %v9198 = vxor.u32 %v9166, 2147483648
      %v9199 = vxor.u32 %v9169, 2147483648
      %v9200 = vxor.u32 %v9174, 2147483648
      %v9201 = vxor.u32 %v9177, 2147483648
      %v9202 = vxor.u32 %v9182, 2147483648
      %v9203 = vxor.u32 %v9185, 2147483648
      %v9204 = vmul.f32 %v9188, 1.442695
      %v9205 = vpow.pop %v9204
      %v9206 = vmul.f32 %v9189, 1.442695
      %v9207 = vpow.pop %v9206
      %v9208 = vmul.f32 %v9190, 1.442695
      %v9209 = vpow.pop %v9208
      %v9210 = vmul.f32 %v9191, 1.442695
      %v9211 = vpow.pop %v9210
      %v9212 = vmul.f32 %v9192, 1.442695
      %v9213 = vpow.pop %v9212
      %v9214 = vmul.f32 %v9193, 1.442695
      %v9215 = vpow.pop %v9214
      %v9216 = vmul.f32 %v9194, 1.442695
      %v9217 = vpow.pop %v9216
      %v9218 = vmul.f32 %v9195, 1.442695
      %v9219 = vpow.pop %v9218
      %v9220 = vmul.f32 %v9196, 1.442695
      %v9221 = vpow.pop %v9220
      %v9222 = vmul.f32 %v9197, 1.442695
      %v9223 = vpow.pop %v9222
      %v9224 = vmul.f32 %v9198, 1.442695
      %v9225 = vpow.pop %v9224
      %v9226 = vmul.f32 %v9199, 1.442695
      %v9227 = vpow.pop %v9226
      %v9228 = vmul.f32 %v9200, 1.442695
      %v9229 = vpow.pop %v9228
      %v9230 = vmul.f32 %v9201, 1.442695
      %v9231 = vpow.pop %v9230
      %v9232 = vmul.f32 %v9202, 1.442695
      %v9233 = vpow.pop %v9232
      %v9234 = vmul.f32 %v9203, 1.442695
      %v9235 = vpow.pop %v9234
      %v9236 = vadd.f32 %v9205, 1.0
      %v9237 = vadd.f32 %v9207, 1.0
      %v9238 = vadd.f32 %v9209, 1.0
      %v9239 = vadd.f32 %v9211, 1.0
      %v9240 = vadd.f32 %v9213, 1.0
      %v9241 = vadd.f32 %v9215, 1.0
      %v9242 = vadd.f32 %v9217, 1.0
      %v9243 = vadd.f32 %v9219, 1.0
      %v9244 = vadd.f32 %v9221, 1.0
      %v9245 = vadd.f32 %v9223, 1.0
      %v9246 = vadd.f32 %v9225, 1.0
      %v9247 = vadd.f32 %v9227, 1.0
      %v9248 = vadd.f32 %v9229, 1.0
      %v9249 = vadd.f32 %v9231, 1.0
      %v9250 = vadd.f32 %v9233, 1.0
      %v9251 = vadd.f32 %v9235, 1.0
      %v9252 = vrcp.pop %v9236
      %v9253 = vmul.f32 1.0, %v9252
      %v9254 = vrcp.pop %v9237
      %v9255 = vmul.f32 1.0, %v9254
      %v9256 = vrcp.pop %v9238
      %v9257 = vmul.f32 1.0, %v9256
      %v9258 = vrcp.pop %v9239
      %v9259 = vmul.f32 1.0, %v9258
      %v9260 = vrcp.pop %v9240
      %v9261 = vmul.f32 1.0, %v9260
      %v9262 = vrcp.pop %v9241
      %v9263 = vmul.f32 1.0, %v9262
      %v9264 = vrcp.pop %v9242
      %v9265 = vmul.f32 1.0, %v9264
      %v9266 = vrcp.pop %v9243
      %v9267 = vmul.f32 1.0, %v9266
      %v9268 = vrcp.pop %v9244
      %v9269 = vmul.f32 1.0, %v9268
      %v9270 = vrcp.pop %v9245
      %v9271 = vmul.f32 1.0, %v9270
      %v9272 = vrcp.pop %v9246
      %v9273 = vmul.f32 1.0, %v9272
      %v9274 = vrcp.pop %v9247
      %v9275 = vmul.f32 1.0, %v9274
      %v9276 = vrcp.pop %v9248
      %v9277 = vmul.f32 1.0, %v9276
      %v9278 = vrcp.pop %v9249
      %v9279 = vmul.f32 1.0, %v9278
      %v9280 = vrcp.pop %v9250
      %v9281 = vmul.f32 1.0, %v9280
      %v9282 = vrcp.pop %v9251
      %v9283 = vmul.f32 1.0, %v9282
      %v9284 = vsel %vm4664, %v9253, %v9126
      %v9285 = vsel %vm4664, %v9255, %v9129
      %v9286 = vsel %vm4664, %v9257, %v9134
      %v9287 = vsel %vm4664, %v9259, %v9137
      %v9288 = vsel %vm4664, %v9261, %v9142
      %v9289 = vsel %vm4664, %v9263, %v9145
      %v9290 = vsel %vm4664, %v9265, %v9150
      %v9291 = vsel %vm4664, %v9267, %v9153
      %v9292 = vsel %vm4664, %v9269, %v9158
      %v9293 = vsel %vm4664, %v9271, %v9161
      %v9294 = vsel %vm4664, %v9273, %v9166
      %v9295 = vsel %vm4664, %v9275, %v9169
      %v9296 = vsel %vm4664, %v9277, %v9174
      %v9297 = vsel %vm4664, %v9279, %v9177
      %v9298 = vsel %vm4664, %v9281, %v9182
      %v9299 = vsel %vm4664, %v9283, %v9185
      %9300 = vst [vmem:[%s251 + $0x80] sm:$0xff] %v9284
      %9301 = vst [vmem:[%s251 + $0x88] sm:$0xff] %v9285
      %9302 = vst [vmem:[%s251 + $0x90] sm:$0xff] %v9286
      %9303 = vst [vmem:[%s251 + $0x98] sm:$0xff] %v9287
      %9304 = vst [vmem:[%s251 + $0xa0] sm:$0xff] %v9288
      %9305 = vst [vmem:[%s251 + $0xa8] sm:$0xff] %v9289
      %9306 = vst [vmem:[%s251 + $0xb0] sm:$0xff] %v9290
      %9307 = vst [vmem:[%s251 + $0xb8] sm:$0xff] %v9291
      %9308 = vst [vmem:[%s251 + $0xc0] sm:$0xff] %v9292
      %9309 = vst [vmem:[%s251 + $0xc8] sm:$0xff] %v9293
      %9310 = vst [vmem:[%s251 + $0xd0] sm:$0xff] %v9294
      %9311 = vst [vmem:[%s251 + $0xd8] sm:$0xff] %v9295
      %9312 = vst [vmem:[%s251 + $0xe0] sm:$0xff] %v9296
      %9313 = vst [vmem:[%s251 + $0xe8] sm:$0xff] %v9297
      %9314 = vst [vmem:[%s251 + $0xf0] sm:$0xff] %v9298
      %9315 = vst [vmem:[%s251 + $0xf8] sm:$0xff] %v9299
      %v9316 = vld [vmem:[%s246 + $0x100] sm:$0xff]
      %v9317 = vld [vmem:[%s246 + $0x108] sm:$0xff]
      %v9318 = vld [vmem:[%s246 + $0x110] sm:$0xff]
      %v9319 = vld [vmem:[%s246 + $0x118] sm:$0xff]
      %v9320 = vld [vmem:[%s1] sm:$0xff]
      %v9321 = vld [vmem:[%s1 + $0x8] sm:$0xff]
      %v9322 = vld [vmem:[%s1 + $0x10] sm:$0xff]
      %v9323 = vld [vmem:[%s1 + $0x18] sm:$0xff]
      %v9324 = vld [vmem:[%s1 + $0x20] sm:$0xff]
      %v9325 = vld [vmem:[%s1 + $0x28] sm:$0xff]
      %v9326 = vld [vmem:[%s1 + $0x30] sm:$0xff]
      %v9327 = vld [vmem:[%s1 + $0x38] sm:$0xff]
      %v9328 = vld [vmem:[%s1 + $0x40] sm:$0xff]
      %v9329 = vld [vmem:[%s1 + $0x48] sm:$0xff]
      %v9330 = vld [vmem:[%s1 + $0x50] sm:$0xff]
      %v9331 = vld [vmem:[%s1 + $0x58] sm:$0xff]
      %v9332 = vld [vmem:[%s1 + $0x60] sm:$0xff]
      %v9333 = vld [vmem:[%s1 + $0x68] sm:$0xff]
      %v9334 = vld [vmem:[%s1 + $0x70] sm:$0xff]
      %v9335 = vld [vmem:[%s1 + $0x78] sm:$0xff]
      %v9336 = vld [vmem:[%s1 + $0x80] sm:$0xff]
      %v9337 = vld [vmem:[%s1 + $0x88] sm:$0xff]
      %v9338 = vld [vmem:[%s1 + $0x90] sm:$0xff]
      %v9339 = vld [vmem:[%s1 + $0x98] sm:$0xff]
      %v9340 = vld [vmem:[%s1 + $0xa0] sm:$0xff]
      %v9341 = vld [vmem:[%s1 + $0xa8] sm:$0xff]
      %v9342 = vld [vmem:[%s1 + $0xb0] sm:$0xff]
      %v9343 = vld [vmem:[%s1 + $0xb8] sm:$0xff]
      %v9344 = vld [vmem:[%s1 + $0xc0] sm:$0xff]
      %v9345 = vld [vmem:[%s1 + $0xc8] sm:$0xff]
      %v9346 = vld [vmem:[%s1 + $0xd0] sm:$0xff]
      %v9347 = vld [vmem:[%s1 + $0xd8] sm:$0xff]
      %v9348 = vld [vmem:[%s1 + $0xe0] sm:$0xff]
      %v9349 = vld [vmem:[%s1 + $0xe8] sm:$0xff]
      %v9350 = vld [vmem:[%s1 + $0xf0] sm:$0xff]
      %v9351 = vld [vmem:[%s1 + $0xf8] sm:$0xff]
      %v9352 = vld [vmem:[%s246 + $0x120] sm:$0x11]
      %v9353 = vld [vmem:[%s302] sm:$0xff]
      %v9354 = vld [vmem:[%s302 + $0x8] sm:$0xff]
      %v9355 = vld [vmem:[%s302 + $0x10] sm:$0xff]
      %v9356 = vld [vmem:[%s302 + $0x18] sm:$0xff]
      %v9357 = vld [vmem:[%s302 + $0x20] sm:$0xff]
      %v9358 = vld [vmem:[%s302 + $0x28] sm:$0xff]
      %v9359 = vld [vmem:[%s302 + $0x30] sm:$0xff]
      %v9360 = vld [vmem:[%s302 + $0x38] sm:$0xff]
      %v9361 = vld [vmem:[%s302 + $0x40] sm:$0xff]
      %v9362 = vld [vmem:[%s302 + $0x48] sm:$0xff]
      %v9363 = vld [vmem:[%s302 + $0x50] sm:$0xff]
      %v9364 = vld [vmem:[%s302 + $0x58] sm:$0xff]
      %v9365 = vld [vmem:[%s302 + $0x60] sm:$0xff]
      %v9366 = vld [vmem:[%s302 + $0x68] sm:$0xff]
      %v9367 = vld [vmem:[%s302 + $0x70] sm:$0xff]
      %v9368 = vld [vmem:[%s302 + $0x78] sm:$0xff]
      %v9369 = vld [vmem:[%s302 + $0x80] sm:$0xff]
      %v9370 = vld [vmem:[%s302 + $0x88] sm:$0xff]
      %v9371 = vld [vmem:[%s302 + $0x90] sm:$0xff]
      %v9372 = vld [vmem:[%s302 + $0x98] sm:$0xff]
      %v9373 = vld [vmem:[%s302 + $0xa0] sm:$0xff]
      %v9374 = vld [vmem:[%s302 + $0xa8] sm:$0xff]
      %v9375 = vld [vmem:[%s302 + $0xb0] sm:$0xff]
      %v9376 = vld [vmem:[%s302 + $0xb8] sm:$0xff]
      %v9377 = vld [vmem:[%s302 + $0xc0] sm:$0xff]
      %v9378 = vld [vmem:[%s302 + $0xc8] sm:$0xff]
      %v9379 = vld [vmem:[%s302 + $0xd0] sm:$0xff]
      %v9380 = vld [vmem:[%s302 + $0xd8] sm:$0xff]
      %v9381 = vld [vmem:[%s302 + $0xe0] sm:$0xff]
      %v9382 = vld [vmem:[%s302 + $0xe8] sm:$0xff]
      %v9383 = vld [vmem:[%s302 + $0xf0] sm:$0xff]
      %v9384 = vld [vmem:[%s302 + $0xf8] sm:$0xff]
      %v9390 = vunpack.c.l.b16 %v9316
      %v9391 = vunpack.c.h.b16 %v9316
      %v9392 = vunpack.c.l.b16 %v9317
      %v9393 = vunpack.c.h.b16 %v9317
      %v9394 = vunpack.c.l.b16 %v9318
      %v9395 = vunpack.c.h.b16 %v9318
      %v9396 = vunpack.c.l.b16 %v9319
      %v9397 = vunpack.c.h.b16 %v9319
      %v9398 = vunpack.c.l.b16 %v9352
      %v9399 = vunpack.c.h.b16 %v9352
      %v9400 = vpack.c.b16 %v9392, %v9390
      %v9401 = vpack.c.b16 %v9393, %v9391
      %v9402 = vpack.c.b16 %v9396, %v9394
      %v9403 = vpack.c.b16 %v9397, %v9395
      %v9404 = vpack.c.b16 %v9398, %v9398
      %v9405 = vpack.c.b16 %v9399, %v9399
      %v9407 = vshrl.u32 %v9400, 16
      %v9409 = vshll.u32 %v9400, 16
      %v9411 = vrot.slane %v9409, 1
      %v9412 = vor.u32 %v9407, %v9411
      %v9414 = vshll.u32 %v9402, 16
      %v9416 = vrot.slane %v9414, 1
      %v9417 = vsel %vm404, %v9412, %v9416
      %v9419 = vshrl.u32 %v9401, 16
      %v9421 = vshll.u32 %v9401, 16
      %v9423 = vrot.slane %v9421, 1
      %v9424 = vor.u32 %v9419, %v9423
      %v9426 = vshll.u32 %v9403, 16
      %v9428 = vrot.slane %v9426, 1
      %v9429 = vsel %vm404, %v9424, %v9428
      %v9430 = vshrl.u32 %v9402, 16
      %v9432 = vor.u32 %v9430, %v9416
      %v9434 = vshll.u32 %v9404, 16
      %v9436 = vrot.slane %v9434, 1
      %v9437 = vsel %vm404, %v9432, %v9436
      %v9438 = vshrl.u32 %v9403, 16
      %v9440 = vor.u32 %v9438, %v9428
      %v9442 = vshll.u32 %v9405, 16
      %v9444 = vrot.slane %v9442, 1
      %v9445 = vsel %vm404, %v9440, %v9444
      %v9482 = vunpack.c.l.b16 %v9353
      %v9483 = vunpack.c.h.b16 %v9353
      %v9484 = vunpack.c.l.b16 %v9354
      %v9485 = vunpack.c.h.b16 %v9354
      %v9486 = vunpack.c.l.b16 %v9355
      %v9487 = vunpack.c.h.b16 %v9355
      %v9488 = vunpack.c.l.b16 %v9356
      %v9489 = vunpack.c.h.b16 %v9356
      %v9490 = vunpack.c.l.b16 %v9357
      %v9491 = vunpack.c.h.b16 %v9357
      %v9492 = vunpack.c.l.b16 %v9358
      %v9493 = vunpack.c.h.b16 %v9358
      %v9494 = vunpack.c.l.b16 %v9359
      %v9495 = vunpack.c.h.b16 %v9359
      %v9496 = vunpack.c.l.b16 %v9360
      %v9497 = vunpack.c.h.b16 %v9360
      %v9498 = vunpack.c.l.b16 %v9361
      %v9499 = vunpack.c.h.b16 %v9361
      %v9500 = vunpack.c.l.b16 %v9362
      %v9501 = vunpack.c.h.b16 %v9362
      %v9502 = vunpack.c.l.b16 %v9363
      %v9503 = vunpack.c.h.b16 %v9363
      %v9504 = vunpack.c.l.b16 %v9364
      %v9505 = vunpack.c.h.b16 %v9364
      %v9506 = vunpack.c.l.b16 %v9365
      %v9507 = vunpack.c.h.b16 %v9365
      %v9508 = vunpack.c.l.b16 %v9366
      %v9509 = vunpack.c.h.b16 %v9366
      %v9510 = vunpack.c.l.b16 %v9367
      %v9511 = vunpack.c.h.b16 %v9367
      %v9512 = vunpack.c.l.b16 %v9368
      %v9513 = vunpack.c.h.b16 %v9368
      %v9514 = vunpack.c.l.b16 %v9369
      %v9515 = vunpack.c.h.b16 %v9369
      %v9516 = vunpack.c.l.b16 %v9370
      %v9517 = vunpack.c.h.b16 %v9370
      %v9518 = vunpack.c.l.b16 %v9371
      %v9519 = vunpack.c.h.b16 %v9371
      %v9520 = vunpack.c.l.b16 %v9372
      %v9521 = vunpack.c.h.b16 %v9372
      %v9522 = vunpack.c.l.b16 %v9373
      %v9523 = vunpack.c.h.b16 %v9373
      %v9524 = vunpack.c.l.b16 %v9374
      %v9525 = vunpack.c.h.b16 %v9374
      %v9526 = vunpack.c.l.b16 %v9375
      %v9527 = vunpack.c.h.b16 %v9375
      %v9528 = vunpack.c.l.b16 %v9376
      %v9529 = vunpack.c.h.b16 %v9376
      %v9530 = vunpack.c.l.b16 %v9377
      %v9531 = vunpack.c.h.b16 %v9377
      %v9532 = vunpack.c.l.b16 %v9378
      %v9533 = vunpack.c.h.b16 %v9378
      %v9534 = vunpack.c.l.b16 %v9379
      %v9535 = vunpack.c.h.b16 %v9379
      %v9536 = vunpack.c.l.b16 %v9380
      %v9537 = vunpack.c.h.b16 %v9380
      %v9538 = vunpack.c.l.b16 %v9381
      %v9539 = vunpack.c.h.b16 %v9381
      %v9540 = vunpack.c.l.b16 %v9382
      %v9541 = vunpack.c.h.b16 %v9382
      %v9542 = vunpack.c.l.b16 %v9383
      %v9543 = vunpack.c.h.b16 %v9383
      %v9544 = vunpack.c.l.b16 %v9384
      %v9545 = vunpack.c.h.b16 %v9384
      %v9546 = vpack.c.b16 %v9484, %v9482
      %v9547 = vpack.c.b16 %v9485, %v9483
      %v9548 = vpack.c.b16 %v9488, %v9486
      %v9549 = vpack.c.b16 %v9489, %v9487
      %v9550 = vpack.c.b16 %v9492, %v9490
      %v9551 = vpack.c.b16 %v9493, %v9491
      %v9552 = vpack.c.b16 %v9496, %v9494
      %v9553 = vpack.c.b16 %v9497, %v9495
      %v9554 = vpack.c.b16 %v9500, %v9498
      %v9555 = vpack.c.b16 %v9501, %v9499
      %v9556 = vpack.c.b16 %v9504, %v9502
      %v9557 = vpack.c.b16 %v9505, %v9503
      %v9558 = vpack.c.b16 %v9508, %v9506
      %v9559 = vpack.c.b16 %v9509, %v9507
      %v9560 = vpack.c.b16 %v9512, %v9510
      %v9561 = vpack.c.b16 %v9513, %v9511
      %v9562 = vpack.c.b16 %v9516, %v9514
      %v9563 = vpack.c.b16 %v9517, %v9515
      %v9564 = vpack.c.b16 %v9520, %v9518
      %v9565 = vpack.c.b16 %v9521, %v9519
      %v9566 = vpack.c.b16 %v9524, %v9522
      %v9567 = vpack.c.b16 %v9525, %v9523
      %v9568 = vpack.c.b16 %v9528, %v9526
      %v9569 = vpack.c.b16 %v9529, %v9527
      %v9570 = vpack.c.b16 %v9532, %v9530
      %v9571 = vpack.c.b16 %v9533, %v9531
      %v9572 = vpack.c.b16 %v9536, %v9534
      %v9573 = vpack.c.b16 %v9537, %v9535
      %v9574 = vpack.c.b16 %v9540, %v9538
      %v9575 = vpack.c.b16 %v9541, %v9539
      %v9576 = vpack.c.b16 %v9544, %v9542
      %v9577 = vpack.c.b16 %v9545, %v9543
      %9610 = vmatprep.subr.bf16.mxu0 %v9561
      %9611 = vmatpush1.bf16.msra.mxu0 %v9560
      %9612 = vmatprep.subr.bf16.mxu0 %v9559
      %9613 = vmatpush1.bf16.msra.mxu0 %v9558
      %9614 = vmatprep.subr.bf16.mxu0 %v9557
      %9615 = vmatpush1.bf16.msra.mxu0 %v9556
      %9616 = vmatprep.subr.bf16.mxu0 %v9555
      %9617 = vmatpush1.bf16.msra.mxu0 %v9554
      %9618 = vmatprep.subr.bf16.mxu0 %v9553
      %9619 = vmatpush1.bf16.msra.mxu0 %v9552
      %9620 = vmatprep.subr.bf16.mxu0 %v9551
      %9621 = vmatpush1.bf16.msra.mxu0 %v9550
      %9622 = vmatprep.subr.bf16.mxu0 %v9549
      %9623 = vmatpush1.bf16.msra.mxu0 %v9548
      %9624 = vmatprep.subr.bf16.mxu0 %v9547
      %9625 = vmatpush1.bf16.msra.mxu0 %v9546
      %9626 = vmatprep.subr.bf16.mxu0 %v9577
      %9627 = vmatpush2.bf16.msra.mxu0 %v9576
      %9628 = vmatprep.subr.bf16.mxu0 %v9575
      %9629 = vmatpush2.bf16.msra.mxu0 %v9574
      %9630 = vmatprep.subr.bf16.mxu0 %v9573
      %9631 = vmatpush2.bf16.msra.mxu0 %v9572
      %9632 = vmatprep.subr.bf16.mxu0 %v9571
      %9633 = vmatpush2.bf16.msra.mxu0 %v9570
      %9634 = vmatprep.subr.bf16.mxu0 %v9569
      %9635 = vmatpush2.bf16.msra.mxu0 %v9568
      %9636 = vmatprep.subr.bf16.mxu0 %v9567
      %9637 = vmatpush2.bf16.msra.mxu0 %v9566
      %9638 = vmatprep.subr.bf16.mxu0 %v9565
      %9639 = vmatpush2.bf16.msra.mxu0 %v9564
      %9640 = vmatprep.subr.bf16.mxu0 %v9563
      %9641 = vmatpush2.bf16.msra.mxu0 %v9562
      %9642 = vmatprep.mubr.bf16.mxu0 %v9429
      %9643 = vmatmul.mubr.bf16.gmra.mxu0 %v9417
      %v9644 = vpop.f32.mrf.mxu0
      %v9645 = vadd.f32 0.0, %v9644
      %v9646 = vpop.f32.mrf.mxu0
      %v9647 = vadd.f32 0.0, %v9646
      %v9648 = vpop.f32.mrf.mxu0
      %v9649 = vadd.f32 0.0, %v9648
      %v9650 = vpop.f32.mrf.mxu0
      %v9651 = vadd.f32 0.0, %v9650
      %9652 = vmatprep.mubr.bf16.mxu0 %v9445
      %9653 = vmatmul.mubr.bf16.gmra.mxu0 %v9437
      %v9654 = vpop.f32.mrf.mxu0
      %v9655 = vadd.f32 0.0, %v9654
      %v9656 = vpop.f32.mrf.mxu0
      %v9657 = vadd.f32 0.0, %v9656
      %v9658 = vpop.f32.mrf.mxu0
      %v9659 = vadd.f32 0.0, %v9658
      %v9660 = vpop.f32.mrf.mxu0
      %v9661 = vadd.f32 0.0, %v9660
      %9662 = vdwg.mxu0
      %v9699 = vunpack.c.l.b16 %v9320
      %v9700 = vunpack.c.h.b16 %v9320
      %v9701 = vunpack.c.l.b16 %v9321
      %v9702 = vunpack.c.h.b16 %v9321
      %v9703 = vunpack.c.l.b16 %v9322
      %v9704 = vunpack.c.h.b16 %v9322
      %v9705 = vunpack.c.l.b16 %v9323
      %v9706 = vunpack.c.h.b16 %v9323
      %v9707 = vunpack.c.l.b16 %v9324
      %v9708 = vunpack.c.h.b16 %v9324
      %v9709 = vunpack.c.l.b16 %v9325
      %v9710 = vunpack.c.h.b16 %v9325
      %v9711 = vunpack.c.l.b16 %v9326
      %v9712 = vunpack.c.h.b16 %v9326
      %v9713 = vunpack.c.l.b16 %v9327
      %v9714 = vunpack.c.h.b16 %v9327
      %v9715 = vunpack.c.l.b16 %v9328
      %v9716 = vunpack.c.h.b16 %v9328
      %v9717 = vunpack.c.l.b16 %v9329
      %v9718 = vunpack.c.h.b16 %v9329
      %v9719 = vunpack.c.l.b16 %v9330
      %v9720 = vunpack.c.h.b16 %v9330
      %v9721 = vunpack.c.l.b16 %v9331
      %v9722 = vunpack.c.h.b16 %v9331
      %v9723 = vunpack.c.l.b16 %v9332
      %v9724 = vunpack.c.h.b16 %v9332
      %v9725 = vunpack.c.l.b16 %v9333
      %v9726 = vunpack.c.h.b16 %v9333
      %v9727 = vunpack.c.l.b16 %v9334
      %v9728 = vunpack.c.h.b16 %v9334
      %v9729 = vunpack.c.l.b16 %v9335
      %v9730 = vunpack.c.h.b16 %v9335
      %v9731 = vunpack.c.l.b16 %v9336
      %v9732 = vunpack.c.h.b16 %v9336
      %v9733 = vunpack.c.l.b16 %v9337
      %v9734 = vunpack.c.h.b16 %v9337
      %v9735 = vunpack.c.l.b16 %v9338
      %v9736 = vunpack.c.h.b16 %v9338
      %v9737 = vunpack.c.l.b16 %v9339
      %v9738 = vunpack.c.h.b16 %v9339
      %v9739 = vunpack.c.l.b16 %v9340
      %v9740 = vunpack.c.h.b16 %v9340
      %v9741 = vunpack.c.l.b16 %v9341
      %v9742 = vunpack.c.h.b16 %v9341
      %v9743 = vunpack.c.l.b16 %v9342
      %v9744 = vunpack.c.h.b16 %v9342
      %v9745 = vunpack.c.l.b16 %v9343
      %v9746 = vunpack.c.h.b16 %v9343
      %v9747 = vunpack.c.l.b16 %v9344
      %v9748 = vunpack.c.h.b16 %v9344
      %v9749 = vunpack.c.l.b16 %v9345
      %v9750 = vunpack.c.h.b16 %v9345
      %v9751 = vunpack.c.l.b16 %v9346
      %v9752 = vunpack.c.h.b16 %v9346
      %v9753 = vunpack.c.l.b16 %v9347
      %v9754 = vunpack.c.h.b16 %v9347
      %v9755 = vunpack.c.l.b16 %v9348
      %v9756 = vunpack.c.h.b16 %v9348
      %v9757 = vunpack.c.l.b16 %v9349
      %v9758 = vunpack.c.h.b16 %v9349
      %v9759 = vunpack.c.l.b16 %v9350
      %v9760 = vunpack.c.h.b16 %v9350
      %v9761 = vunpack.c.l.b16 %v9351
      %v9762 = vunpack.c.h.b16 %v9351
      %v9763 = vpack.c.b16 %v9701, %v9699
      %v9764 = vpack.c.b16 %v9702, %v9700
      %v9765 = vpack.c.b16 %v9705, %v9703
      %v9766 = vpack.c.b16 %v9706, %v9704
      %v9767 = vpack.c.b16 %v9709, %v9707
      %v9768 = vpack.c.b16 %v9710, %v9708
      %v9769 = vpack.c.b16 %v9713, %v9711
      %v9770 = vpack.c.b16 %v9714, %v9712
      %v9771 = vpack.c.b16 %v9717, %v9715
      %v9772 = vpack.c.b16 %v9718, %v9716
      %v9773 = vpack.c.b16 %v9721, %v9719
      %v9774 = vpack.c.b16 %v9722, %v9720
      %v9775 = vpack.c.b16 %v9725, %v9723
      %v9776 = vpack.c.b16 %v9726, %v9724
      %v9777 = vpack.c.b16 %v9729, %v9727
      %v9778 = vpack.c.b16 %v9730, %v9728
      %v9779 = vpack.c.b16 %v9733, %v9731
      %v9780 = vpack.c.b16 %v9734, %v9732
      %v9781 = vpack.c.b16 %v9737, %v9735
      %v9782 = vpack.c.b16 %v9738, %v9736
      %v9783 = vpack.c.b16 %v9741, %v9739
      %v9784 = vpack.c.b16 %v9742, %v9740
      %v9785 = vpack.c.b16 %v9745, %v9743
      %v9786 = vpack.c.b16 %v9746, %v9744
      %v9787 = vpack.c.b16 %v9749, %v9747
      %v9788 = vpack.c.b16 %v9750, %v9748
      %v9789 = vpack.c.b16 %v9753, %v9751
      %v9790 = vpack.c.b16 %v9754, %v9752
      %v9791 = vpack.c.b16 %v9757, %v9755
      %v9792 = vpack.c.b16 %v9758, %v9756
      %v9793 = vpack.c.b16 %v9761, %v9759
      %v9794 = vpack.c.b16 %v9762, %v9760
      %9827 = vmatprep.subr.bf16.mxu0 %v9778
      %9828 = vmatpush1.bf16.msra.mxu0 %v9777
      %9829 = vmatprep.subr.bf16.mxu0 %v9776
      %9830 = vmatpush1.bf16.msra.mxu0 %v9775
      %9831 = vmatprep.subr.bf16.mxu0 %v9774
      %9832 = vmatpush1.bf16.msra.mxu0 %v9773
      %9833 = vmatprep.subr.bf16.mxu0 %v9772
      %9834 = vmatpush1.bf16.msra.mxu0 %v9771
      %9835 = vmatprep.subr.bf16.mxu0 %v9770
      %9836 = vmatpush1.bf16.msra.mxu0 %v9769
      %9837 = vmatprep.subr.bf16.mxu0 %v9768
      %9838 = vmatpush1.bf16.msra.mxu0 %v9767
      %9839 = vmatprep.subr.bf16.mxu0 %v9766
      %9840 = vmatpush1.bf16.msra.mxu0 %v9765
      %9841 = vmatprep.subr.bf16.mxu0 %v9764
      %9842 = vmatpush1.bf16.msra.mxu0 %v9763
      %9843 = vmatprep.subr.bf16.mxu0 %v9794
      %9844 = vmatpush2.bf16.msra.mxu0 %v9793
      %9845 = vmatprep.subr.bf16.mxu0 %v9792
      %9846 = vmatpush2.bf16.msra.mxu0 %v9791
      %9847 = vmatprep.subr.bf16.mxu0 %v9790
      %9848 = vmatpush2.bf16.msra.mxu0 %v9789
      %9849 = vmatprep.subr.bf16.mxu0 %v9788
      %9850 = vmatpush2.bf16.msra.mxu0 %v9787
      %9851 = vmatprep.subr.bf16.mxu0 %v9786
      %9852 = vmatpush2.bf16.msra.mxu0 %v9785
      %9853 = vmatprep.subr.bf16.mxu0 %v9784
      %9854 = vmatpush2.bf16.msra.mxu0 %v9783
      %9855 = vmatprep.subr.bf16.mxu0 %v9782
      %9856 = vmatpush2.bf16.msra.mxu0 %v9781
      %9857 = vmatprep.subr.bf16.mxu0 %v9780
      %9858 = vmatpush2.bf16.msra.mxu0 %v9779
      %9859 = vmatprep.mubr.bf16.mxu0 %v9401
      %9860 = vmatmul.mubr.bf16.gmra.mxu0 %v9400
      %v9861 = vpop.f32.mrf.mxu0
      %v9862 = vadd.f32 %v9645, %v9861
      %v9863 = vpop.f32.mrf.mxu0
      %v9864 = vadd.f32 %v9647, %v9863
      %v9865 = vpop.f32.mrf.mxu0
      %v9866 = vadd.f32 %v9649, %v9865
      %v9867 = vpop.f32.mrf.mxu0
      %v9868 = vadd.f32 %v9651, %v9867
      %9869 = vmatprep.mubr.bf16.mxu0 %v9403
      %9870 = vmatmul.mubr.bf16.gmra.mxu0 %v9402
      %v9871 = vpop.f32.mrf.mxu0
      %v9872 = vadd.f32 %v9655, %v9871
      %v9873 = vpop.f32.mrf.mxu0
      %v9874 = vadd.f32 %v9657, %v9873
      %v9875 = vpop.f32.mrf.mxu0
      %v9876 = vadd.f32 %v9659, %v9875
      %v9877 = vpop.f32.mrf.mxu0
      %v9878 = vadd.f32 %v9661, %v9877
      %9879 = vdwg.mxu0
      %v9880 = vld [vmem:[%s246 + $0x100] sm:$0xee]
      %v9881 = vld [vmem:[%s1120] sm:$0xff]
      %v9882 = vld [vmem:[%s1120 + $0x8] sm:$0xff]
      %v9883 = vld [vmem:[%s1120 + $0x10] sm:$0xff]
      %v9884 = vld [vmem:[%s1120 + $0x18] sm:$0xff]
      %v9885 = vld [vmem:[%s1120 + $0x20] sm:$0xff]
      %v9886 = vld [vmem:[%s1120 + $0x28] sm:$0xff]
      %v9887 = vld [vmem:[%s1120 + $0x30] sm:$0xff]
      %v9888 = vld [vmem:[%s1120 + $0x38] sm:$0xff]
      %v9889 = vld [vmem:[%s1120 + $0x40] sm:$0xff]
      %v9890 = vld [vmem:[%s1120 + $0x48] sm:$0xff]
      %v9891 = vld [vmem:[%s1120 + $0x50] sm:$0xff]
      %v9892 = vld [vmem:[%s1120 + $0x58] sm:$0xff]
      %v9893 = vld [vmem:[%s1120 + $0x60] sm:$0xff]
      %v9894 = vld [vmem:[%s1120 + $0x68] sm:$0xff]
      %v9895 = vld [vmem:[%s1120 + $0x70] sm:$0xff]
      %v9896 = vld [vmem:[%s1120 + $0x78] sm:$0xff]
      %v9897 = vld [vmem:[%s1120 + $0x80] sm:$0xff]
      %v9898 = vld [vmem:[%s1120 + $0x88] sm:$0xff]
      %v9899 = vld [vmem:[%s1120 + $0x90] sm:$0xff]
      %v9900 = vld [vmem:[%s1120 + $0x98] sm:$0xff]
      %v9901 = vld [vmem:[%s1120 + $0xa0] sm:$0xff]
      %v9902 = vld [vmem:[%s1120 + $0xa8] sm:$0xff]
      %v9903 = vld [vmem:[%s1120 + $0xb0] sm:$0xff]
      %v9904 = vld [vmem:[%s1120 + $0xb8] sm:$0xff]
      %v9905 = vld [vmem:[%s1120 + $0xc0] sm:$0xff]
      %v9906 = vld [vmem:[%s1120 + $0xc8] sm:$0xff]
      %v9907 = vld [vmem:[%s1120 + $0xd0] sm:$0xff]
      %v9908 = vld [vmem:[%s1120 + $0xd8] sm:$0xff]
      %v9909 = vld [vmem:[%s1120 + $0xe0] sm:$0xff]
      %v9910 = vld [vmem:[%s1120 + $0xe8] sm:$0xff]
      %v9911 = vld [vmem:[%s1120 + $0xf0] sm:$0xff]
      %v9912 = vld [vmem:[%s1120 + $0xf8] sm:$0xff]
      %v9914 = vunpack.c.l.b16 %v9880
      %v9915 = vunpack.c.h.b16 %v9880
      %v9916 = vpack.c.b16 %v9392, %v9914
      %v9917 = vpack.c.b16 %v9393, %v9915
      %v9918 = vrot.slane %v9916, 1
      %v9919 = vrot.slane %v9402, 1
      %v9920 = vsel %vm1158, %v9918, %v9919
      %v9921 = vrot.slane %v9917, 1
      %v9922 = vrot.slane %v9403, 1
      %v9923 = vsel %vm1158, %v9921, %v9922
      %v9924 = vrot.slane %v9404, 1
      %v9925 = vsel %vm1158, %v9919, %v9924
      %v9926 = vrot.slane %v9405, 1
      %v9927 = vsel %vm1158, %v9922, %v9926
      %v9964 = vunpack.c.l.b16 %v9881
      %v9965 = vunpack.c.h.b16 %v9881
      %v9966 = vunpack.c.l.b16 %v9882
      %v9967 = vunpack.c.h.b16 %v9882
      %v9968 = vunpack.c.l.b16 %v9883
      %v9969 = vunpack.c.h.b16 %v9883
      %v9970 = vunpack.c.l.b16 %v9884
      %v9971 = vunpack.c.h.b16 %v9884
      %v9972 = vunpack.c.l.b16 %v9885
      %v9973 = vunpack.c.h.b16 %v9885
      %v9974 = vunpack.c.l.b16 %v9886
      %v9975 = vunpack.c.h.b16 %v9886
      %v9976 = vunpack.c.l.b16 %v9887
      %v9977 = vunpack.c.h.b16 %v9887
      %v9978 = vunpack.c.l.b16 %v9888
      %v9979 = vunpack.c.h.b16 %v9888
      %v9980 = vunpack.c.l.b16 %v9889
      %v9981 = vunpack.c.h.b16 %v9889
      %v9982 = vunpack.c.l.b16 %v9890
      %v9983 = vunpack.c.h.b16 %v9890
      %v9984 = vunpack.c.l.b16 %v9891
      %v9985 = vunpack.c.h.b16 %v9891
      %v9986 = vunpack.c.l.b16 %v9892
      %v9987 = vunpack.c.h.b16 %v9892
      %v9988 = vunpack.c.l.b16 %v9893
      %v9989 = vunpack.c.h.b16 %v9893
      %v9990 = vunpack.c.l.b16 %v9894
      %v9991 = vunpack.c.h.b16 %v9894
      %v9992 = vunpack.c.l.b16 %v9895
      %v9993 = vunpack.c.h.b16 %v9895
      %v9994 = vunpack.c.l.b16 %v9896
      %v9995 = vunpack.c.h.b16 %v9896
      %v9996 = vunpack.c.l.b16 %v9897
      %v9997 = vunpack.c.h.b16 %v9897
      %v9998 = vunpack.c.l.b16 %v9898
      %v9999 = vunpack.c.h.b16 %v9898
      %v10000 = vunpack.c.l.b16 %v9899
      %v10001 = vunpack.c.h.b16 %v9899
      %v10002 = vunpack.c.l.b16 %v9900
      %v10003 = vunpack.c.h.b16 %v9900
      %v10004 = vunpack.c.l.b16 %v9901
      %v10005 = vunpack.c.h.b16 %v9901
      %v10006 = vunpack.c.l.b16 %v9902
      %v10007 = vunpack.c.h.b16 %v9902
      %v10008 = vunpack.c.l.b16 %v9903
      %v10009 = vunpack.c.h.b16 %v9903
      %v10010 = vunpack.c.l.b16 %v9904
      %v10011 = vunpack.c.h.b16 %v9904
      %v10012 = vunpack.c.l.b16 %v9905
      %v10013 = vunpack.c.h.b16 %v9905
      %v10014 = vunpack.c.l.b16 %v9906
      %v10015 = vunpack.c.h.b16 %v9906
      %v10016 = vunpack.c.l.b16 %v9907
      %v10017 = vunpack.c.h.b16 %v9907
      %v10018 = vunpack.c.l.b16 %v9908
      %v10019 = vunpack.c.h.b16 %v9908
      %v10020 = vunpack.c.l.b16 %v9909
      %v10021 = vunpack.c.h.b16 %v9909
      %v10022 = vunpack.c.l.b16 %v9910
      %v10023 = vunpack.c.h.b16 %v9910
      %v10024 = vunpack.c.l.b16 %v9911
      %v10025 = vunpack.c.h.b16 %v9911
      %v10026 = vunpack.c.l.b16 %v9912
      %v10027 = vunpack.c.h.b16 %v9912
      %v10028 = vpack.c.b16 %v9966, %v9964
      %v10029 = vpack.c.b16 %v9967, %v9965
      %v10030 = vpack.c.b16 %v9970, %v9968
      %v10031 = vpack.c.b16 %v9971, %v9969
      %v10032 = vpack.c.b16 %v9974, %v9972
      %v10033 = vpack.c.b16 %v9975, %v9973
      %v10034 = vpack.c.b16 %v9978, %v9976
      %v10035 = vpack.c.b16 %v9979, %v9977
      %v10036 = vpack.c.b16 %v9982, %v9980
      %v10037 = vpack.c.b16 %v9983, %v9981
      %v10038 = vpack.c.b16 %v9986, %v9984
      %v10039 = vpack.c.b16 %v9987, %v9985
      %v10040 = vpack.c.b16 %v9990, %v9988
      %v10041 = vpack.c.b16 %v9991, %v9989
      %v10042 = vpack.c.b16 %v9994, %v9992
      %v10043 = vpack.c.b16 %v9995, %v9993
      %v10044 = vpack.c.b16 %v9998, %v9996
      %v10045 = vpack.c.b16 %v9999, %v9997
      %v10046 = vpack.c.b16 %v10002, %v10000
      %v10047 = vpack.c.b16 %v10003, %v10001
      %v10048 = vpack.c.b16 %v10006, %v10004
      %v10049 = vpack.c.b16 %v10007, %v10005
      %v10050 = vpack.c.b16 %v10010, %v10008
      %v10051 = vpack.c.b16 %v10011, %v10009
      %v10052 = vpack.c.b16 %v10014, %v10012
      %v10053 = vpack.c.b16 %v10015, %v10013
      %v10054 = vpack.c.b16 %v10018, %v10016
      %v10055 = vpack.c.b16 %v10019, %v10017
      %v10056 = vpack.c.b16 %v10022, %v10020
      %v10057 = vpack.c.b16 %v10023, %v10021
      %v10058 = vpack.c.b16 %v10026, %v10024
      %v10059 = vpack.c.b16 %v10027, %v10025
      %10092 = vmatprep.subr.bf16.mxu0 %v10043
      %10093 = vmatpush1.bf16.msra.mxu0 %v10042
      %10094 = vmatprep.subr.bf16.mxu0 %v10041
      %10095 = vmatpush1.bf16.msra.mxu0 %v10040
      %10096 = vmatprep.subr.bf16.mxu0 %v10039
      %10097 = vmatpush1.bf16.msra.mxu0 %v10038
      %10098 = vmatprep.subr.bf16.mxu0 %v10037
      %10099 = vmatpush1.bf16.msra.mxu0 %v10036
      %10100 = vmatprep.subr.bf16.mxu0 %v10035
      %10101 = vmatpush1.bf16.msra.mxu0 %v10034
      %10102 = vmatprep.subr.bf16.mxu0 %v10033
      %10103 = vmatpush1.bf16.msra.mxu0 %v10032
      %10104 = vmatprep.subr.bf16.mxu0 %v10031
      %10105 = vmatpush1.bf16.msra.mxu0 %v10030
      %10106 = vmatprep.subr.bf16.mxu0 %v10029
      %10107 = vmatpush1.bf16.msra.mxu0 %v10028
      %10108 = vmatprep.subr.bf16.mxu0 %v10059
      %10109 = vmatpush2.bf16.msra.mxu0 %v10058
      %10110 = vmatprep.subr.bf16.mxu0 %v10057
      %10111 = vmatpush2.bf16.msra.mxu0 %v10056
      %10112 = vmatprep.subr.bf16.mxu0 %v10055
      %10113 = vmatpush2.bf16.msra.mxu0 %v10054
      %10114 = vmatprep.subr.bf16.mxu0 %v10053
      %10115 = vmatpush2.bf16.msra.mxu0 %v10052
      %10116 = vmatprep.subr.bf16.mxu0 %v10051
      %10117 = vmatpush2.bf16.msra.mxu0 %v10050
      %10118 = vmatprep.subr.bf16.mxu0 %v10049
      %10119 = vmatpush2.bf16.msra.mxu0 %v10048
      %10120 = vmatprep.subr.bf16.mxu0 %v10047
      %10121 = vmatpush2.bf16.msra.mxu0 %v10046
      %10122 = vmatprep.subr.bf16.mxu0 %v10045
      %10123 = vmatpush2.bf16.msra.mxu0 %v10044
      %10124 = vmatprep.mubr.bf16.mxu0 %v9923
      %10125 = vmatmul.mubr.bf16.gmra.mxu0 %v9920
      %v10126 = vpop.f32.mrf.mxu0
      %v10127 = vadd.f32 0.0, %v10126
      %v10128 = vpop.f32.mrf.mxu0
      %v10129 = vadd.f32 0.0, %v10128
      %v10130 = vpop.f32.mrf.mxu0
      %v10131 = vadd.f32 0.0, %v10130
      %v10132 = vpop.f32.mrf.mxu0
      %v10133 = vadd.f32 0.0, %v10132
      %10134 = vmatprep.mubr.bf16.mxu0 %v9927
      %10135 = vmatmul.mubr.bf16.gmra.mxu0 %v9925
      %v10136 = vpop.f32.mrf.mxu0
      %v10137 = vadd.f32 0.0, %v10136
      %v10138 = vpop.f32.mrf.mxu0
      %v10139 = vadd.f32 0.0, %v10138
      %v10140 = vpop.f32.mrf.mxu0
      %v10141 = vadd.f32 0.0, %v10140
      %v10142 = vpop.f32.mrf.mxu0
      %v10143 = vadd.f32 0.0, %v10142
      %10144 = vdwg.mxu0
      %v10145 = vadd.f32 %v9862, %v10127
      %v10146 = vadd.f32 %v9864, %v10129
      %v10147 = vadd.f32 %v9866, %v10131
      %v10148 = vadd.f32 %v9868, %v10133
      %v10149 = vadd.f32 %v9872, %v10137
      %v10150 = vadd.f32 %v9874, %v10139
      %v10151 = vadd.f32 %v9876, %v10141
      %v10152 = vadd.f32 %v9878, %v10143
      %v10153 = vld [vmem:[%s246 + $0x110] sm:$0xee]
      %v10154 = vld [vmem:[%s246 + $0x118] sm:$0xff]
      %v10155 = vld [vmem:[%s246 + $0x120] sm:$0xff]
      %v10156 = vld [vmem:[%s246 + $0x128] sm:$0xff]
      %v10157 = vld [vmem:[%s246 + $0x130] sm:$0x11]
      %v10158 = vld [vmem:[%s1531] sm:$0xff]
      %v10159 = vld [vmem:[%s1531 + $0x8] sm:$0xff]
      %v10160 = vld [vmem:[%s1531 + $0x10] sm:$0xff]
      %v10161 = vld [vmem:[%s1531 + $0x18] sm:$0xff]
      %v10162 = vld [vmem:[%s1531 + $0x20] sm:$0xff]
      %v10163 = vld [vmem:[%s1531 + $0x28] sm:$0xff]
      %v10164 = vld [vmem:[%s1531 + $0x30] sm:$0xff]
      %v10165 = vld [vmem:[%s1531 + $0x38] sm:$0xff]
      %v10166 = vld [vmem:[%s1531 + $0x40] sm:$0xff]
      %v10167 = vld [vmem:[%s1531 + $0x48] sm:$0xff]
      %v10168 = vld [vmem:[%s1531 + $0x50] sm:$0xff]
      %v10169 = vld [vmem:[%s1531 + $0x58] sm:$0xff]
      %v10170 = vld [vmem:[%s1531 + $0x60] sm:$0xff]
      %v10171 = vld [vmem:[%s1531 + $0x68] sm:$0xff]
      %v10172 = vld [vmem:[%s1531 + $0x70] sm:$0xff]
      %v10173 = vld [vmem:[%s1531 + $0x78] sm:$0xff]
      %v10174 = vld [vmem:[%s1531 + $0x80] sm:$0xff]
      %v10175 = vld [vmem:[%s1531 + $0x88] sm:$0xff]
      %v10176 = vld [vmem:[%s1531 + $0x90] sm:$0xff]
      %v10177 = vld [vmem:[%s1531 + $0x98] sm:$0xff]
      %v10178 = vld [vmem:[%s1531 + $0xa0] sm:$0xff]
      %v10179 = vld [vmem:[%s1531 + $0xa8] sm:$0xff]
      %v10180 = vld [vmem:[%s1531 + $0xb0] sm:$0xff]
      %v10181 = vld [vmem:[%s1531 + $0xb8] sm:$0xff]
      %v10182 = vld [vmem:[%s1531 + $0xc0] sm:$0xff]
      %v10183 = vld [vmem:[%s1531 + $0xc8] sm:$0xff]
      %v10184 = vld [vmem:[%s1531 + $0xd0] sm:$0xff]
      %v10185 = vld [vmem:[%s1531 + $0xd8] sm:$0xff]
      %v10186 = vld [vmem:[%s1531 + $0xe0] sm:$0xff]
      %v10187 = vld [vmem:[%s1531 + $0xe8] sm:$0xff]
      %v10188 = vld [vmem:[%s1531 + $0xf0] sm:$0xff]
      %v10189 = vld [vmem:[%s1531 + $0xf8] sm:$0xff]
      %v10195 = vunpack.c.l.b16 %v10153
      %v10196 = vunpack.c.h.b16 %v10153
      %v10197 = vunpack.c.l.b16 %v10154
      %v10198 = vunpack.c.h.b16 %v10154
      %v10199 = vunpack.c.l.b16 %v10155
      %v10200 = vunpack.c.h.b16 %v10155
      %v10201 = vunpack.c.l.b16 %v10156
      %v10202 = vunpack.c.h.b16 %v10156
      %v10203 = vunpack.c.l.b16 %v10157
      %v10204 = vunpack.c.h.b16 %v10157
      %v10205 = vpack.c.b16 %v10197, %v10195
      %v10206 = vpack.c.b16 %v10198, %v10196
      %v10207 = vpack.c.b16 %v10201, %v10199
      %v10208 = vpack.c.b16 %v10202, %v10200
      %v10209 = vpack.c.b16 %v10203, %v10203
      %v10210 = vpack.c.b16 %v10204, %v10204
      %v10211 = vrot.slane %v10205, 1
      %v10212 = vrot.slane %v10207, 1
      %v10213 = vsel %vm1158, %v10211, %v10212
      %v10214 = vrot.slane %v10206, 1
      %v10215 = vrot.slane %v10208, 1
      %v10216 = vsel %vm1158, %v10214, %v10215
      %v10217 = vrot.slane %v10209, 1
      %v10218 = vsel %vm1158, %v10212, %v10217
      %v10219 = vrot.slane %v10210, 1
      %v10220 = vsel %vm1158, %v10215, %v10219
      %v10257 = vunpack.c.l.b16 %v10158
      %v10258 = vunpack.c.h.b16 %v10158
      %v10259 = vunpack.c.l.b16 %v10159
      %v10260 = vunpack.c.h.b16 %v10159
      %v10261 = vunpack.c.l.b16 %v10160
      %v10262 = vunpack.c.h.b16 %v10160
      %v10263 = vunpack.c.l.b16 %v10161
      %v10264 = vunpack.c.h.b16 %v10161
      %v10265 = vunpack.c.l.b16 %v10162
      %v10266 = vunpack.c.h.b16 %v10162
      %v10267 = vunpack.c.l.b16 %v10163
      %v10268 = vunpack.c.h.b16 %v10163
      %v10269 = vunpack.c.l.b16 %v10164
      %v10270 = vunpack.c.h.b16 %v10164
      %v10271 = vunpack.c.l.b16 %v10165
      %v10272 = vunpack.c.h.b16 %v10165
      %v10273 = vunpack.c.l.b16 %v10166
      %v10274 = vunpack.c.h.b16 %v10166
      %v10275 = vunpack.c.l.b16 %v10167
      %v10276 = vunpack.c.h.b16 %v10167
      %v10277 = vunpack.c.l.b16 %v10168
      %v10278 = vunpack.c.h.b16 %v10168
      %v10279 = vunpack.c.l.b16 %v10169
      %v10280 = vunpack.c.h.b16 %v10169
      %v10281 = vunpack.c.l.b16 %v10170
      %v10282 = vunpack.c.h.b16 %v10170
      %v10283 = vunpack.c.l.b16 %v10171
      %v10284 = vunpack.c.h.b16 %v10171
      %v10285 = vunpack.c.l.b16 %v10172
      %v10286 = vunpack.c.h.b16 %v10172
      %v10287 = vunpack.c.l.b16 %v10173
      %v10288 = vunpack.c.h.b16 %v10173
      %v10289 = vunpack.c.l.b16 %v10174
      %v10290 = vunpack.c.h.b16 %v10174
      %v10291 = vunpack.c.l.b16 %v10175
      %v10292 = vunpack.c.h.b16 %v10175
      %v10293 = vunpack.c.l.b16 %v10176
      %v10294 = vunpack.c.h.b16 %v10176
      %v10295 = vunpack.c.l.b16 %v10177
      %v10296 = vunpack.c.h.b16 %v10177
      %v10297 = vunpack.c.l.b16 %v10178
      %v10298 = vunpack.c.h.b16 %v10178
      %v10299 = vunpack.c.l.b16 %v10179
      %v10300 = vunpack.c.h.b16 %v10179
      %v10301 = vunpack.c.l.b16 %v10180
      %v10302 = vunpack.c.h.b16 %v10180
      %v10303 = vunpack.c.l.b16 %v10181
      %v10304 = vunpack.c.h.b16 %v10181
      %v10305 = vunpack.c.l.b16 %v10182
      %v10306 = vunpack.c.h.b16 %v10182
      %v10307 = vunpack.c.l.b16 %v10183
      %v10308 = vunpack.c.h.b16 %v10183
      %v10309 = vunpack.c.l.b16 %v10184
      %v10310 = vunpack.c.h.b16 %v10184
      %v10311 = vunpack.c.l.b16 %v10185
      %v10312 = vunpack.c.h.b16 %v10185
      %v10313 = vunpack.c.l.b16 %v10186
      %v10314 = vunpack.c.h.b16 %v10186
      %v10315 = vunpack.c.l.b16 %v10187
      %v10316 = vunpack.c.h.b16 %v10187
      %v10317 = vunpack.c.l.b16 %v10188
      %v10318 = vunpack.c.h.b16 %v10188
      %v10319 = vunpack.c.l.b16 %v10189
      %v10320 = vunpack.c.h.b16 %v10189
      %v10321 = vpack.c.b16 %v10259, %v10257
      %v10322 = vpack.c.b16 %v10260, %v10258
      %v10323 = vpack.c.b16 %v10263, %v10261
      %v10324 = vpack.c.b16 %v10264, %v10262
      %v10325 = vpack.c.b16 %v10267, %v10265
      %v10326 = vpack.c.b16 %v10268, %v10266
      %v10327 = vpack.c.b16 %v10271, %v10269
      %v10328 = vpack.c.b16 %v10272, %v10270
      %v10329 = vpack.c.b16 %v10275, %v10273
      %v10330 = vpack.c.b16 %v10276, %v10274
      %v10331 = vpack.c.b16 %v10279, %v10277
      %v10332 = vpack.c.b16 %v10280, %v10278
      %v10333 = vpack.c.b16 %v10283, %v10281
      %v10334 = vpack.c.b16 %v10284, %v10282
      %v10335 = vpack.c.b16 %v10287, %v10285
      %v10336 = vpack.c.b16 %v10288, %v10286
      %v10337 = vpack.c.b16 %v10291, %v10289
      %v10338 = vpack.c.b16 %v10292, %v10290
      %v10339 = vpack.c.b16 %v10295, %v10293
      %v10340 = vpack.c.b16 %v10296, %v10294
      %v10341 = vpack.c.b16 %v10299, %v10297
      %v10342 = vpack.c.b16 %v10300, %v10298
      %v10343 = vpack.c.b16 %v10303, %v10301
      %v10344 = vpack.c.b16 %v10304, %v10302
      %v10345 = vpack.c.b16 %v10307, %v10305
      %v10346 = vpack.c.b16 %v10308, %v10306
      %v10347 = vpack.c.b16 %v10311, %v10309
      %v10348 = vpack.c.b16 %v10312, %v10310
      %v10349 = vpack.c.b16 %v10315, %v10313
      %v10350 = vpack.c.b16 %v10316, %v10314
      %v10351 = vpack.c.b16 %v10319, %v10317
      %v10352 = vpack.c.b16 %v10320, %v10318
      %10385 = vmatprep.subr.bf16.mxu0 %v10336
      %10386 = vmatpush1.bf16.msra.mxu0 %v10335
      %10387 = vmatprep.subr.bf16.mxu0 %v10334
      %10388 = vmatpush1.bf16.msra.mxu0 %v10333
      %10389 = vmatprep.subr.bf16.mxu0 %v10332
      %10390 = vmatpush1.bf16.msra.mxu0 %v10331
      %10391 = vmatprep.subr.bf16.mxu0 %v10330
      %10392 = vmatpush1.bf16.msra.mxu0 %v10329
      %10393 = vmatprep.subr.bf16.mxu0 %v10328
      %10394 = vmatpush1.bf16.msra.mxu0 %v10327
      %10395 = vmatprep.subr.bf16.mxu0 %v10326
      %10396 = vmatpush1.bf16.msra.mxu0 %v10325
      %10397 = vmatprep.subr.bf16.mxu0 %v10324
      %10398 = vmatpush1.bf16.msra.mxu0 %v10323
      %10399 = vmatprep.subr.bf16.mxu0 %v10322
      %10400 = vmatpush1.bf16.msra.mxu0 %v10321
      %10401 = vmatprep.subr.bf16.mxu0 %v10352
      %10402 = vmatpush2.bf16.msra.mxu0 %v10351
      %10403 = vmatprep.subr.bf16.mxu0 %v10350
      %10404 = vmatpush2.bf16.msra.mxu0 %v10349
      %10405 = vmatprep.subr.bf16.mxu0 %v10348
      %10406 = vmatpush2.bf16.msra.mxu0 %v10347
      %10407 = vmatprep.subr.bf16.mxu0 %v10346
      %10408 = vmatpush2.bf16.msra.mxu0 %v10345
      %10409 = vmatprep.subr.bf16.mxu0 %v10344
      %10410 = vmatpush2.bf16.msra.mxu0 %v10343
      %10411 = vmatprep.subr.bf16.mxu0 %v10342
      %10412 = vmatpush2.bf16.msra.mxu0 %v10341
      %10413 = vmatprep.subr.bf16.mxu0 %v10340
      %10414 = vmatpush2.bf16.msra.mxu0 %v10339
      %10415 = vmatprep.subr.bf16.mxu0 %v10338
      %10416 = vmatpush2.bf16.msra.mxu0 %v10337
      %10417 = vmatprep.mubr.bf16.mxu0 %v10216
      %10418 = vmatmul.mubr.bf16.gmra.mxu0 %v10213
      %v10419 = vpop.f32.mrf.mxu0
      %v10420 = vadd.f32 0.0, %v10419
      %v10421 = vpop.f32.mrf.mxu0
      %v10422 = vadd.f32 0.0, %v10421
      %v10423 = vpop.f32.mrf.mxu0
      %v10424 = vadd.f32 0.0, %v10423
      %v10425 = vpop.f32.mrf.mxu0
      %v10426 = vadd.f32 0.0, %v10425
      %10427 = vmatprep.mubr.bf16.mxu0 %v10220
      %10428 = vmatmul.mubr.bf16.gmra.mxu0 %v10218
      %v10429 = vpop.f32.mrf.mxu0
      %v10430 = vadd.f32 0.0, %v10429
      %v10431 = vpop.f32.mrf.mxu0
      %v10432 = vadd.f32 0.0, %v10431
      %v10433 = vpop.f32.mrf.mxu0
      %v10434 = vadd.f32 0.0, %v10433
      %v10435 = vpop.f32.mrf.mxu0
      %v10436 = vadd.f32 0.0, %v10435
      %10437 = vdwg.mxu0
      %v10438 = vadd.f32 %v10145, %v10420
      %v10439 = vadd.f32 %v10146, %v10422
      %v10440 = vadd.f32 %v10147, %v10424
      %v10441 = vadd.f32 %v10148, %v10426
      %v10442 = vadd.f32 %v10149, %v10430
      %v10443 = vadd.f32 %v10150, %v10432
      %v10444 = vadd.f32 %v10151, %v10434
      %v10445 = vadd.f32 %v10152, %v10436
      %v10446 = vld [vmem:[%s246 + $0x130] sm:$0x33]
      %v10447 = vld [vmem:[%s1989] sm:$0xff]
      %v10448 = vld [vmem:[%s1989 + $0x8] sm:$0xff]
      %v10449 = vld [vmem:[%s1989 + $0x10] sm:$0xff]
      %v10450 = vld [vmem:[%s1989 + $0x18] sm:$0xff]
      %v10451 = vld [vmem:[%s1989 + $0x20] sm:$0xff]
      %v10452 = vld [vmem:[%s1989 + $0x28] sm:$0xff]
      %v10453 = vld [vmem:[%s1989 + $0x30] sm:$0xff]
      %v10454 = vld [vmem:[%s1989 + $0x38] sm:$0xff]
      %v10455 = vld [vmem:[%s1989 + $0x40] sm:$0xff]
      %v10456 = vld [vmem:[%s1989 + $0x48] sm:$0xff]
      %v10457 = vld [vmem:[%s1989 + $0x50] sm:$0xff]
      %v10458 = vld [vmem:[%s1989 + $0x58] sm:$0xff]
      %v10459 = vld [vmem:[%s1989 + $0x60] sm:$0xff]
      %v10460 = vld [vmem:[%s1989 + $0x68] sm:$0xff]
      %v10461 = vld [vmem:[%s1989 + $0x70] sm:$0xff]
      %v10462 = vld [vmem:[%s1989 + $0x78] sm:$0xff]
      %v10463 = vld [vmem:[%s1989 + $0x80] sm:$0xff]
      %v10464 = vld [vmem:[%s1989 + $0x88] sm:$0xff]
      %v10465 = vld [vmem:[%s1989 + $0x90] sm:$0xff]
      %v10466 = vld [vmem:[%s1989 + $0x98] sm:$0xff]
      %v10467 = vld [vmem:[%s1989 + $0xa0] sm:$0xff]
      %v10468 = vld [vmem:[%s1989 + $0xa8] sm:$0xff]
      %v10469 = vld [vmem:[%s1989 + $0xb0] sm:$0xff]
      %v10470 = vld [vmem:[%s1989 + $0xb8] sm:$0xff]
      %v10471 = vld [vmem:[%s1989 + $0xc0] sm:$0xff]
      %v10472 = vld [vmem:[%s1989 + $0xc8] sm:$0xff]
      %v10473 = vld [vmem:[%s1989 + $0xd0] sm:$0xff]
      %v10474 = vld [vmem:[%s1989 + $0xd8] sm:$0xff]
      %v10475 = vld [vmem:[%s1989 + $0xe0] sm:$0xff]
      %v10476 = vld [vmem:[%s1989 + $0xe8] sm:$0xff]
      %v10477 = vld [vmem:[%s1989 + $0xf0] sm:$0xff]
      %v10478 = vld [vmem:[%s1989 + $0xf8] sm:$0xff]
      %v10480 = vunpack.c.l.b16 %v10446
      %v10481 = vunpack.c.h.b16 %v10446
      %v10482 = vpack.c.b16 %v10480, %v10480
      %v10483 = vpack.c.b16 %v10481, %v10481
      %v10485 = vshrl.u32 %v10205, 16
      %v10487 = vrot.slane %v10485, 1
      %v10488 = vshll.u32 %v10205, 16
      %v10490 = vrot.slane %v10488, 2
      %v10491 = vor.u32 %v10487, %v10490
      %v10493 = vshrl.u32 %v10207, 16
      %v10495 = vrot.slane %v10493, 1
      %v10496 = vshll.u32 %v10207, 16
      %v10498 = vrot.slane %v10496, 2
      %v10499 = vor.u32 %v10495, %v10498
      %v10500 = vsel %vm2027, %v10491, %v10499
      %v10502 = vshrl.u32 %v10206, 16
      %v10504 = vrot.slane %v10502, 1
      %v10505 = vshll.u32 %v10206, 16
      %v10507 = vrot.slane %v10505, 2
      %v10508 = vor.u32 %v10504, %v10507
      %v10510 = vshrl.u32 %v10208, 16
      %v10512 = vrot.slane %v10510, 1
      %v10513 = vshll.u32 %v10208, 16
      %v10515 = vrot.slane %v10513, 2
      %v10516 = vor.u32 %v10512, %v10515
      %v10517 = vsel %vm2027, %v10508, %v10516
      %v10519 = vshrl.u32 %v10482, 16
      %v10521 = vrot.slane %v10519, 1
      %v10522 = vshll.u32 %v10482, 16
      %v10524 = vrot.slane %v10522, 2
      %v10525 = vor.u32 %v10521, %v10524
      %v10526 = vsel %vm2027, %v10499, %v10525
      %v10528 = vshrl.u32 %v10483, 16
      %v10530 = vrot.slane %v10528, 1
      %v10531 = vshll.u32 %v10483, 16
      %v10533 = vrot.slane %v10531, 2
      %v10534 = vor.u32 %v10530, %v10533
      %v10535 = vsel %vm2027, %v10516, %v10534
      %v10572 = vunpack.c.l.b16 %v10447
      %v10573 = vunpack.c.h.b16 %v10447
      %v10574 = vunpack.c.l.b16 %v10448
      %v10575 = vunpack.c.h.b16 %v10448
      %v10576 = vunpack.c.l.b16 %v10449
      %v10577 = vunpack.c.h.b16 %v10449
      %v10578 = vunpack.c.l.b16 %v10450
      %v10579 = vunpack.c.h.b16 %v10450
      %v10580 = vunpack.c.l.b16 %v10451
      %v10581 = vunpack.c.h.b16 %v10451
      %v10582 = vunpack.c.l.b16 %v10452
      %v10583 = vunpack.c.h.b16 %v10452
      %v10584 = vunpack.c.l.b16 %v10453
      %v10585 = vunpack.c.h.b16 %v10453
      %v10586 = vunpack.c.l.b16 %v10454
      %v10587 = vunpack.c.h.b16 %v10454
      %v10588 = vunpack.c.l.b16 %v10455
      %v10589 = vunpack.c.h.b16 %v10455
      %v10590 = vunpack.c.l.b16 %v10456
      %v10591 = vunpack.c.h.b16 %v10456
      %v10592 = vunpack.c.l.b16 %v10457
      %v10593 = vunpack.c.h.b16 %v10457
      %v10594 = vunpack.c.l.b16 %v10458
      %v10595 = vunpack.c.h.b16 %v10458
      %v10596 = vunpack.c.l.b16 %v10459
      %v10597 = vunpack.c.h.b16 %v10459
      %v10598 = vunpack.c.l.b16 %v10460
      %v10599 = vunpack.c.h.b16 %v10460
      %v10600 = vunpack.c.l.b16 %v10461
      %v10601 = vunpack.c.h.b16 %v10461
      %v10602 = vunpack.c.l.b16 %v10462
      %v10603 = vunpack.c.h.b16 %v10462
      %v10604 = vunpack.c.l.b16 %v10463
      %v10605 = vunpack.c.h.b16 %v10463
      %v10606 = vunpack.c.l.b16 %v10464
      %v10607 = vunpack.c.h.b16 %v10464
      %v10608 = vunpack.c.l.b16 %v10465
      %v10609 = vunpack.c.h.b16 %v10465
      %v10610 = vunpack.c.l.b16 %v10466
      %v10611 = vunpack.c.h.b16 %v10466
      %v10612 = vunpack.c.l.b16 %v10467
      %v10613 = vunpack.c.h.b16 %v10467
      %v10614 = vunpack.c.l.b16 %v10468
      %v10615 = vunpack.c.h.b16 %v10468
      %v10616 = vunpack.c.l.b16 %v10469
      %v10617 = vunpack.c.h.b16 %v10469
      %v10618 = vunpack.c.l.b16 %v10470
      %v10619 = vunpack.c.h.b16 %v10470
      %v10620 = vunpack.c.l.b16 %v10471
      %v10621 = vunpack.c.h.b16 %v10471
      %v10622 = vunpack.c.l.b16 %v10472
      %v10623 = vunpack.c.h.b16 %v10472
      %v10624 = vunpack.c.l.b16 %v10473
      %v10625 = vunpack.c.h.b16 %v10473
      %v10626 = vunpack.c.l.b16 %v10474
      %v10627 = vunpack.c.h.b16 %v10474
      %v10628 = vunpack.c.l.b16 %v10475
      %v10629 = vunpack.c.h.b16 %v10475
      %v10630 = vunpack.c.l.b16 %v10476
      %v10631 = vunpack.c.h.b16 %v10476
      %v10632 = vunpack.c.l.b16 %v10477
      %v10633 = vunpack.c.h.b16 %v10477
      %v10634 = vunpack.c.l.b16 %v10478
      %v10635 = vunpack.c.h.b16 %v10478
      %v10636 = vpack.c.b16 %v10574, %v10572
      %v10637 = vpack.c.b16 %v10575, %v10573
      %v10638 = vpack.c.b16 %v10578, %v10576
      %v10639 = vpack.c.b16 %v10579, %v10577
      %v10640 = vpack.c.b16 %v10582, %v10580
      %v10641 = vpack.c.b16 %v10583, %v10581
      %v10642 = vpack.c.b16 %v10586, %v10584
      %v10643 = vpack.c.b16 %v10587, %v10585
      %v10644 = vpack.c.b16 %v10590, %v10588
      %v10645 = vpack.c.b16 %v10591, %v10589
      %v10646 = vpack.c.b16 %v10594, %v10592
      %v10647 = vpack.c.b16 %v10595, %v10593
      %v10648 = vpack.c.b16 %v10598, %v10596
      %v10649 = vpack.c.b16 %v10599, %v10597
      %v10650 = vpack.c.b16 %v10602, %v10600
      %v10651 = vpack.c.b16 %v10603, %v10601
      %v10652 = vpack.c.b16 %v10606, %v10604
      %v10653 = vpack.c.b16 %v10607, %v10605
      %v10654 = vpack.c.b16 %v10610, %v10608
      %v10655 = vpack.c.b16 %v10611, %v10609
      %v10656 = vpack.c.b16 %v10614, %v10612
      %v10657 = vpack.c.b16 %v10615, %v10613
      %v10658 = vpack.c.b16 %v10618, %v10616
      %v10659 = vpack.c.b16 %v10619, %v10617
      %v10660 = vpack.c.b16 %v10622, %v10620
      %v10661 = vpack.c.b16 %v10623, %v10621
      %v10662 = vpack.c.b16 %v10626, %v10624
      %v10663 = vpack.c.b16 %v10627, %v10625
      %v10664 = vpack.c.b16 %v10630, %v10628
      %v10665 = vpack.c.b16 %v10631, %v10629
      %v10666 = vpack.c.b16 %v10634, %v10632
      %v10667 = vpack.c.b16 %v10635, %v10633
      %10700 = vmatprep.subr.bf16.mxu0 %v10651
      %10701 = vmatpush1.bf16.msra.mxu0 %v10650
      %10702 = vmatprep.subr.bf16.mxu0 %v10649
      %10703 = vmatpush1.bf16.msra.mxu0 %v10648
      %10704 = vmatprep.subr.bf16.mxu0 %v10647
      %10705 = vmatpush1.bf16.msra.mxu0 %v10646
      %10706 = vmatprep.subr.bf16.mxu0 %v10645
      %10707 = vmatpush1.bf16.msra.mxu0 %v10644
      %10708 = vmatprep.subr.bf16.mxu0 %v10643
      %10709 = vmatpush1.bf16.msra.mxu0 %v10642
      %10710 = vmatprep.subr.bf16.mxu0 %v10641
      %10711 = vmatpush1.bf16.msra.mxu0 %v10640
      %10712 = vmatprep.subr.bf16.mxu0 %v10639
      %10713 = vmatpush1.bf16.msra.mxu0 %v10638
      %10714 = vmatprep.subr.bf16.mxu0 %v10637
      %10715 = vmatpush1.bf16.msra.mxu0 %v10636
      %10716 = vmatprep.subr.bf16.mxu0 %v10667
      %10717 = vmatpush2.bf16.msra.mxu0 %v10666
      %10718 = vmatprep.subr.bf16.mxu0 %v10665
      %10719 = vmatpush2.bf16.msra.mxu0 %v10664
      %10720 = vmatprep.subr.bf16.mxu0 %v10663
      %10721 = vmatpush2.bf16.msra.mxu0 %v10662
      %10722 = vmatprep.subr.bf16.mxu0 %v10661
      %10723 = vmatpush2.bf16.msra.mxu0 %v10660
      %10724 = vmatprep.subr.bf16.mxu0 %v10659
      %10725 = vmatpush2.bf16.msra.mxu0 %v10658
      %10726 = vmatprep.subr.bf16.mxu0 %v10657
      %10727 = vmatpush2.bf16.msra.mxu0 %v10656
      %10728 = vmatprep.subr.bf16.mxu0 %v10655
      %10729 = vmatpush2.bf16.msra.mxu0 %v10654
      %10730 = vmatprep.subr.bf16.mxu0 %v10653
      %10731 = vmatpush2.bf16.msra.mxu0 %v10652
      %10732 = vmatprep.mubr.bf16.mxu0 %v10517
      %10733 = vmatmul.mubr.bf16.gmra.mxu0 %v10500
      %v10734 = vpop.f32.mrf.mxu0
      %v10735 = vadd.f32 0.0, %v10734
      %v10736 = vpop.f32.mrf.mxu0
      %v10737 = vadd.f32 0.0, %v10736
      %v10738 = vpop.f32.mrf.mxu0
      %v10739 = vadd.f32 0.0, %v10738
      %v10740 = vpop.f32.mrf.mxu0
      %v10741 = vadd.f32 0.0, %v10740
      %10742 = vmatprep.mubr.bf16.mxu0 %v10535
      %10743 = vmatmul.mubr.bf16.gmra.mxu0 %v10526
      %v10744 = vpop.f32.mrf.mxu0
      %v10745 = vadd.f32 0.0, %v10744
      %v10746 = vpop.f32.mrf.mxu0
      %v10747 = vadd.f32 0.0, %v10746
      %v10748 = vpop.f32.mrf.mxu0
      %v10749 = vadd.f32 0.0, %v10748
      %v10750 = vpop.f32.mrf.mxu0
      %v10751 = vadd.f32 0.0, %v10750
      %10752 = vdwg.mxu0
      %v10753 = vadd.f32 %v10438, %v10735
      %v10754 = vadd.f32 %v10439, %v10737
      %v10755 = vadd.f32 %v10440, %v10739
      %v10756 = vadd.f32 %v10441, %v10741
      %v10757 = vadd.f32 %v10442, %v10745
      %v10758 = vadd.f32 %v10443, %v10747
      %v10759 = vadd.f32 %v10444, %v10749
      %v10760 = vadd.f32 %v10445, %v10751
      %v10761 = vld [vmem:[%s246 + $0x110] sm:$0xcc]
      %v10762 = vld [vmem:[%s2510] sm:$0xff]
      %v10763 = vld [vmem:[%s2510 + $0x8] sm:$0xff]
      %v10764 = vld [vmem:[%s2510 + $0x10] sm:$0xff]
      %v10765 = vld [vmem:[%s2510 + $0x18] sm:$0xff]
      %v10766 = vld [vmem:[%s2510 + $0x20] sm:$0xff]
      %v10767 = vld [vmem:[%s2510 + $0x28] sm:$0xff]
      %v10768 = vld [vmem:[%s2510 + $0x30] sm:$0xff]
      %v10769 = vld [vmem:[%s2510 + $0x38] sm:$0xff]
      %v10770 = vld [vmem:[%s2510 + $0x40] sm:$0xff]
      %v10771 = vld [vmem:[%s2510 + $0x48] sm:$0xff]
      %v10772 = vld [vmem:[%s2510 + $0x50] sm:$0xff]
      %v10773 = vld [vmem:[%s2510 + $0x58] sm:$0xff]
      %v10774 = vld [vmem:[%s2510 + $0x60] sm:$0xff]
      %v10775 = vld [vmem:[%s2510 + $0x68] sm:$0xff]
      %v10776 = vld [vmem:[%s2510 + $0x70] sm:$0xff]
      %v10777 = vld [vmem:[%s2510 + $0x78] sm:$0xff]
      %v10778 = vld [vmem:[%s2510 + $0x80] sm:$0xff]
      %v10779 = vld [vmem:[%s2510 + $0x88] sm:$0xff]
      %v10780 = vld [vmem:[%s2510 + $0x90] sm:$0xff]
      %v10781 = vld [vmem:[%s2510 + $0x98] sm:$0xff]
      %v10782 = vld [vmem:[%s2510 + $0xa0] sm:$0xff]
      %v10783 = vld [vmem:[%s2510 + $0xa8] sm:$0xff]
      %v10784 = vld [vmem:[%s2510 + $0xb0] sm:$0xff]
      %v10785 = vld [vmem:[%s2510 + $0xb8] sm:$0xff]
      %v10786 = vld [vmem:[%s2510 + $0xc0] sm:$0xff]
      %v10787 = vld [vmem:[%s2510 + $0xc8] sm:$0xff]
      %v10788 = vld [vmem:[%s2510 + $0xd0] sm:$0xff]
      %v10789 = vld [vmem:[%s2510 + $0xd8] sm:$0xff]
      %v10790 = vld [vmem:[%s2510 + $0xe0] sm:$0xff]
      %v10791 = vld [vmem:[%s2510 + $0xe8] sm:$0xff]
      %v10792 = vld [vmem:[%s2510 + $0xf0] sm:$0xff]
      %v10793 = vld [vmem:[%s2510 + $0xf8] sm:$0xff]
      %v10795 = vunpack.c.l.b16 %v10761
      %v10796 = vunpack.c.h.b16 %v10761
      %v10797 = vpack.c.b16 %v10197, %v10795
      %v10798 = vpack.c.b16 %v10198, %v10796
      %v10799 = vrot.slane %v10797, 2
      %v10800 = vrot.slane %v10207, 2
      %v10801 = vsel %vm2548, %v10799, %v10800
      %v10802 = vrot.slane %v10798, 2
      %v10803 = vrot.slane %v10208, 2
      %v10804 = vsel %vm2548, %v10802, %v10803
      %v10805 = vrot.slane %v10482, 2
      %v10806 = vsel %vm2548, %v10800, %v10805
      %v10807 = vrot.slane %v10483, 2
      %v10808 = vsel %vm2548, %v10803, %v10807
      %v10845 = vunpack.c.l.b16 %v10762
      %v10846 = vunpack.c.h.b16 %v10762
      %v10847 = vunpack.c.l.b16 %v10763
      %v10848 = vunpack.c.h.b16 %v10763
      %v10849 = vunpack.c.l.b16 %v10764
      %v10850 = vunpack.c.h.b16 %v10764
      %v10851 = vunpack.c.l.b16 %v10765
      %v10852 = vunpack.c.h.b16 %v10765
      %v10853 = vunpack.c.l.b16 %v10766
      %v10854 = vunpack.c.h.b16 %v10766
      %v10855 = vunpack.c.l.b16 %v10767
      %v10856 = vunpack.c.h.b16 %v10767
      %v10857 = vunpack.c.l.b16 %v10768
      %v10858 = vunpack.c.h.b16 %v10768
      %v10859 = vunpack.c.l.b16 %v10769
      %v10860 = vunpack.c.h.b16 %v10769
      %v10861 = vunpack.c.l.b16 %v10770
      %v10862 = vunpack.c.h.b16 %v10770
      %v10863 = vunpack.c.l.b16 %v10771
      %v10864 = vunpack.c.h.b16 %v10771
      %v10865 = vunpack.c.l.b16 %v10772
      %v10866 = vunpack.c.h.b16 %v10772
      %v10867 = vunpack.c.l.b16 %v10773
      %v10868 = vunpack.c.h.b16 %v10773
      %v10869 = vunpack.c.l.b16 %v10774
      %v10870 = vunpack.c.h.b16 %v10774
      %v10871 = vunpack.c.l.b16 %v10775
      %v10872 = vunpack.c.h.b16 %v10775
      %v10873 = vunpack.c.l.b16 %v10776
      %v10874 = vunpack.c.h.b16 %v10776
      %v10875 = vunpack.c.l.b16 %v10777
      %v10876 = vunpack.c.h.b16 %v10777
      %v10877 = vunpack.c.l.b16 %v10778
      %v10878 = vunpack.c.h.b16 %v10778
      %v10879 = vunpack.c.l.b16 %v10779
      %v10880 = vunpack.c.h.b16 %v10779
      %v10881 = vunpack.c.l.b16 %v10780
      %v10882 = vunpack.c.h.b16 %v10780
      %v10883 = vunpack.c.l.b16 %v10781
      %v10884 = vunpack.c.h.b16 %v10781
      %v10885 = vunpack.c.l.b16 %v10782
      %v10886 = vunpack.c.h.b16 %v10782
      %v10887 = vunpack.c.l.b16 %v10783
      %v10888 = vunpack.c.h.b16 %v10783
      %v10889 = vunpack.c.l.b16 %v10784
      %v10890 = vunpack.c.h.b16 %v10784
      %v10891 = vunpack.c.l.b16 %v10785
      %v10892 = vunpack.c.h.b16 %v10785
      %v10893 = vunpack.c.l.b16 %v10786
      %v10894 = vunpack.c.h.b16 %v10786
      %v10895 = vunpack.c.l.b16 %v10787
      %v10896 = vunpack.c.h.b16 %v10787
      %v10897 = vunpack.c.l.b16 %v10788
      %v10898 = vunpack.c.h.b16 %v10788
      %v10899 = vunpack.c.l.b16 %v10789
      %v10900 = vunpack.c.h.b16 %v10789
      %v10901 = vunpack.c.l.b16 %v10790
      %v10902 = vunpack.c.h.b16 %v10790
      %v10903 = vunpack.c.l.b16 %v10791
      %v10904 = vunpack.c.h.b16 %v10791
      %v10905 = vunpack.c.l.b16 %v10792
      %v10906 = vunpack.c.h.b16 %v10792
      %v10907 = vunpack.c.l.b16 %v10793
      %v10908 = vunpack.c.h.b16 %v10793
      %v10909 = vpack.c.b16 %v10847, %v10845
      %v10910 = vpack.c.b16 %v10848, %v10846
      %v10911 = vpack.c.b16 %v10851, %v10849
      %v10912 = vpack.c.b16 %v10852, %v10850
      %v10913 = vpack.c.b16 %v10855, %v10853
      %v10914 = vpack.c.b16 %v10856, %v10854
      %v10915 = vpack.c.b16 %v10859, %v10857
      %v10916 = vpack.c.b16 %v10860, %v10858
      %v10917 = vpack.c.b16 %v10863, %v10861
      %v10918 = vpack.c.b16 %v10864, %v10862
      %v10919 = vpack.c.b16 %v10867, %v10865
      %v10920 = vpack.c.b16 %v10868, %v10866
      %v10921 = vpack.c.b16 %v10871, %v10869
      %v10922 = vpack.c.b16 %v10872, %v10870
      %v10923 = vpack.c.b16 %v10875, %v10873
      %v10924 = vpack.c.b16 %v10876, %v10874
      %v10925 = vpack.c.b16 %v10879, %v10877
      %v10926 = vpack.c.b16 %v10880, %v10878
      %v10927 = vpack.c.b16 %v10883, %v10881
      %v10928 = vpack.c.b16 %v10884, %v10882
      %v10929 = vpack.c.b16 %v10887, %v10885
      %v10930 = vpack.c.b16 %v10888, %v10886
      %v10931 = vpack.c.b16 %v10891, %v10889
      %v10932 = vpack.c.b16 %v10892, %v10890
      %v10933 = vpack.c.b16 %v10895, %v10893
      %v10934 = vpack.c.b16 %v10896, %v10894
      %v10935 = vpack.c.b16 %v10899, %v10897
      %v10936 = vpack.c.b16 %v10900, %v10898
      %v10937 = vpack.c.b16 %v10903, %v10901
      %v10938 = vpack.c.b16 %v10904, %v10902
      %v10939 = vpack.c.b16 %v10907, %v10905
      %v10940 = vpack.c.b16 %v10908, %v10906
      %10973 = vmatprep.subr.bf16.mxu0 %v10924
      %10974 = vmatpush1.bf16.msra.mxu0 %v10923
      %10975 = vmatprep.subr.bf16.mxu0 %v10922
      %10976 = vmatpush1.bf16.msra.mxu0 %v10921
      %10977 = vmatprep.subr.bf16.mxu0 %v10920
      %10978 = vmatpush1.bf16.msra.mxu0 %v10919
      %10979 = vmatprep.subr.bf16.mxu0 %v10918
      %10980 = vmatpush1.bf16.msra.mxu0 %v10917
      %10981 = vmatprep.subr.bf16.mxu0 %v10916
      %10982 = vmatpush1.bf16.msra.mxu0 %v10915
      %10983 = vmatprep.subr.bf16.mxu0 %v10914
      %10984 = vmatpush1.bf16.msra.mxu0 %v10913
      %10985 = vmatprep.subr.bf16.mxu0 %v10912
      %10986 = vmatpush1.bf16.msra.mxu0 %v10911
      %10987 = vmatprep.subr.bf16.mxu0 %v10910
      %10988 = vmatpush1.bf16.msra.mxu0 %v10909
      %10989 = vmatprep.subr.bf16.mxu0 %v10940
      %10990 = vmatpush2.bf16.msra.mxu0 %v10939
      %10991 = vmatprep.subr.bf16.mxu0 %v10938
      %10992 = vmatpush2.bf16.msra.mxu0 %v10937
      %10993 = vmatprep.subr.bf16.mxu0 %v10936
      %10994 = vmatpush2.bf16.msra.mxu0 %v10935
      %10995 = vmatprep.subr.bf16.mxu0 %v10934
      %10996 = vmatpush2.bf16.msra.mxu0 %v10933
      %10997 = vmatprep.subr.bf16.mxu0 %v10932
      %10998 = vmatpush2.bf16.msra.mxu0 %v10931
      %10999 = vmatprep.subr.bf16.mxu0 %v10930
      %11000 = vmatpush2.bf16.msra.mxu0 %v10929
      %11001 = vmatprep.subr.bf16.mxu0 %v10928
      %11002 = vmatpush2.bf16.msra.mxu0 %v10927
      %11003 = vmatprep.subr.bf16.mxu0 %v10926
      %11004 = vmatpush2.bf16.msra.mxu0 %v10925
      %11005 = vmatprep.mubr.bf16.mxu0 %v10804
      %11006 = vmatmul.mubr.bf16.gmra.mxu0 %v10801
      %v11007 = vpop.f32.mrf.mxu0
      %v11008 = vadd.f32 0.0, %v11007
      %v11009 = vpop.f32.mrf.mxu0
      %v11010 = vadd.f32 0.0, %v11009
      %v11011 = vpop.f32.mrf.mxu0
      %v11012 = vadd.f32 0.0, %v11011
      %v11013 = vpop.f32.mrf.mxu0
      %v11014 = vadd.f32 0.0, %v11013
      %11015 = vmatprep.mubr.bf16.mxu0 %v10808
      %11016 = vmatmul.mubr.bf16.gmra.mxu0 %v10806
      %v11017 = vpop.f32.mrf.mxu0
      %v11018 = vadd.f32 0.0, %v11017
      %v11019 = vpop.f32.mrf.mxu0
      %v11020 = vadd.f32 0.0, %v11019
      %v11021 = vpop.f32.mrf.mxu0
      %v11022 = vadd.f32 0.0, %v11021
      %v11023 = vpop.f32.mrf.mxu0
      %v11024 = vadd.f32 0.0, %v11023
      %11025 = vdwg.mxu0
      %v11026 = vadd.f32 %v10753, %v11008
      %v11027 = vadd.f32 %v10754, %v11010
      %v11028 = vadd.f32 %v10755, %v11012
      %v11029 = vadd.f32 %v10756, %v11014
      %v11030 = vadd.f32 %v10757, %v11018
      %v11031 = vadd.f32 %v10758, %v11020
      %v11032 = vadd.f32 %v10759, %v11022
      %v11033 = vadd.f32 %v10760, %v11024
      %v11034 = vld [vmem:[%s246 + $0x120] sm:$0xcc]
      %v11035 = vld [vmem:[%s246 + $0x128] sm:$0xff]
      %v11036 = vld [vmem:[%s246 + $0x130] sm:$0xff]
      %v11037 = vld [vmem:[%s246 + $0x138] sm:$0xff]
      %v11038 = vld [vmem:[%s246 + $0x140] sm:$0x33]
      %v11039 = vld [vmem:[%s2921] sm:$0xff]
      %v11040 = vld [vmem:[%s2921 + $0x8] sm:$0xff]
      %v11041 = vld [vmem:[%s2921 + $0x10] sm:$0xff]
      %v11042 = vld [vmem:[%s2921 + $0x18] sm:$0xff]
      %v11043 = vld [vmem:[%s2921 + $0x20] sm:$0xff]
      %v11044 = vld [vmem:[%s2921 + $0x28] sm:$0xff]
      %v11045 = vld [vmem:[%s2921 + $0x30] sm:$0xff]
      %v11046 = vld [vmem:[%s2921 + $0x38] sm:$0xff]
      %v11047 = vld [vmem:[%s2921 + $0x40] sm:$0xff]
      %v11048 = vld [vmem:[%s2921 + $0x48] sm:$0xff]
      %v11049 = vld [vmem:[%s2921 + $0x50] sm:$0xff]
      %v11050 = vld [vmem:[%s2921 + $0x58] sm:$0xff]
      %v11051 = vld [vmem:[%s2921 + $0x60] sm:$0xff]
      %v11052 = vld [vmem:[%s2921 + $0x68] sm:$0xff]
      %v11053 = vld [vmem:[%s2921 + $0x70] sm:$0xff]
      %v11054 = vld [vmem:[%s2921 + $0x78] sm:$0xff]
      %v11055 = vld [vmem:[%s2921 + $0x80] sm:$0xff]
      %v11056 = vld [vmem:[%s2921 + $0x88] sm:$0xff]
      %v11057 = vld [vmem:[%s2921 + $0x90] sm:$0xff]
      %v11058 = vld [vmem:[%s2921 + $0x98] sm:$0xff]
      %v11059 = vld [vmem:[%s2921 + $0xa0] sm:$0xff]
      %v11060 = vld [vmem:[%s2921 + $0xa8] sm:$0xff]
      %v11061 = vld [vmem:[%s2921 + $0xb0] sm:$0xff]
      %v11062 = vld [vmem:[%s2921 + $0xb8] sm:$0xff]
      %v11063 = vld [vmem:[%s2921 + $0xc0] sm:$0xff]
      %v11064 = vld [vmem:[%s2921 + $0xc8] sm:$0xff]
      %v11065 = vld [vmem:[%s2921 + $0xd0] sm:$0xff]
      %v11066 = vld [vmem:[%s2921 + $0xd8] sm:$0xff]
      %v11067 = vld [vmem:[%s2921 + $0xe0] sm:$0xff]
      %v11068 = vld [vmem:[%s2921 + $0xe8] sm:$0xff]
      %v11069 = vld [vmem:[%s2921 + $0xf0] sm:$0xff]
      %v11070 = vld [vmem:[%s2921 + $0xf8] sm:$0xff]
      %v11076 = vunpack.c.l.b16 %v11034
      %v11077 = vunpack.c.h.b16 %v11034
      %v11078 = vunpack.c.l.b16 %v11035
      %v11079 = vunpack.c.h.b16 %v11035
      %v11080 = vunpack.c.l.b16 %v11036
      %v11081 = vunpack.c.h.b16 %v11036
      %v11082 = vunpack.c.l.b16 %v11037
      %v11083 = vunpack.c.h.b16 %v11037
      %v11084 = vunpack.c.l.b16 %v11038
      %v11085 = vunpack.c.h.b16 %v11038
      %v11086 = vpack.c.b16 %v11078, %v11076
      %v11087 = vpack.c.b16 %v11079, %v11077
      %v11088 = vpack.c.b16 %v11082, %v11080
      %v11089 = vpack.c.b16 %v11083, %v11081
      %v11090 = vpack.c.b16 %v11084, %v11084
      %v11091 = vpack.c.b16 %v11085, %v11085
      %v11092 = vrot.slane %v11086, 2
      %v11093 = vrot.slane %v11088, 2
      %v11094 = vsel %vm2548, %v11092, %v11093
      %v11095 = vrot.slane %v11087, 2
      %v11096 = vrot.slane %v11089, 2
      %v11097 = vsel %vm2548, %v11095, %v11096
      %v11098 = vrot.slane %v11090, 2
      %v11099 = vsel %vm2548, %v11093, %v11098
      %v11100 = vrot.slane %v11091, 2
      %v11101 = vsel %vm2548, %v11096, %v11100
      %v11138 = vunpack.c.l.b16 %v11039
      %v11139 = vunpack.c.h.b16 %v11039
      %v11140 = vunpack.c.l.b16 %v11040
      %v11141 = vunpack.c.h.b16 %v11040
      %v11142 = vunpack.c.l.b16 %v11041
      %v11143 = vunpack.c.h.b16 %v11041
      %v11144 = vunpack.c.l.b16 %v11042
      %v11145 = vunpack.c.h.b16 %v11042
      %v11146 = vunpack.c.l.b16 %v11043
      %v11147 = vunpack.c.h.b16 %v11043
      %v11148 = vunpack.c.l.b16 %v11044
      %v11149 = vunpack.c.h.b16 %v11044
      %v11150 = vunpack.c.l.b16 %v11045
      %v11151 = vunpack.c.h.b16 %v11045
      %v11152 = vunpack.c.l.b16 %v11046
      %v11153 = vunpack.c.h.b16 %v11046
      %v11154 = vunpack.c.l.b16 %v11047
      %v11155 = vunpack.c.h.b16 %v11047
      %v11156 = vunpack.c.l.b16 %v11048
      %v11157 = vunpack.c.h.b16 %v11048
      %v11158 = vunpack.c.l.b16 %v11049
      %v11159 = vunpack.c.h.b16 %v11049
      %v11160 = vunpack.c.l.b16 %v11050
      %v11161 = vunpack.c.h.b16 %v11050
      %v11162 = vunpack.c.l.b16 %v11051
      %v11163 = vunpack.c.h.b16 %v11051
      %v11164 = vunpack.c.l.b16 %v11052
      %v11165 = vunpack.c.h.b16 %v11052
      %v11166 = vunpack.c.l.b16 %v11053
      %v11167 = vunpack.c.h.b16 %v11053
      %v11168 = vunpack.c.l.b16 %v11054
      %v11169 = vunpack.c.h.b16 %v11054
      %v11170 = vunpack.c.l.b16 %v11055
      %v11171 = vunpack.c.h.b16 %v11055
      %v11172 = vunpack.c.l.b16 %v11056
      %v11173 = vunpack.c.h.b16 %v11056
      %v11174 = vunpack.c.l.b16 %v11057
      %v11175 = vunpack.c.h.b16 %v11057
      %v11176 = vunpack.c.l.b16 %v11058
      %v11177 = vunpack.c.h.b16 %v11058
      %v11178 = vunpack.c.l.b16 %v11059
      %v11179 = vunpack.c.h.b16 %v11059
      %v11180 = vunpack.c.l.b16 %v11060
      %v11181 = vunpack.c.h.b16 %v11060
      %v11182 = vunpack.c.l.b16 %v11061
      %v11183 = vunpack.c.h.b16 %v11061
      %v11184 = vunpack.c.l.b16 %v11062
      %v11185 = vunpack.c.h.b16 %v11062
      %v11186 = vunpack.c.l.b16 %v11063
      %v11187 = vunpack.c.h.b16 %v11063
      %v11188 = vunpack.c.l.b16 %v11064
      %v11189 = vunpack.c.h.b16 %v11064
      %v11190 = vunpack.c.l.b16 %v11065
      %v11191 = vunpack.c.h.b16 %v11065
      %v11192 = vunpack.c.l.b16 %v11066
      %v11193 = vunpack.c.h.b16 %v11066
      %v11194 = vunpack.c.l.b16 %v11067
      %v11195 = vunpack.c.h.b16 %v11067
      %v11196 = vunpack.c.l.b16 %v11068
      %v11197 = vunpack.c.h.b16 %v11068
      %v11198 = vunpack.c.l.b16 %v11069
      %v11199 = vunpack.c.h.b16 %v11069
      %v11200 = vunpack.c.l.b16 %v11070
      %v11201 = vunpack.c.h.b16 %v11070
      %v11202 = vpack.c.b16 %v11140, %v11138
      %v11203 = vpack.c.b16 %v11141, %v11139
      %v11204 = vpack.c.b16 %v11144, %v11142
      %v11205 = vpack.c.b16 %v11145, %v11143
      %v11206 = vpack.c.b16 %v11148, %v11146
      %v11207 = vpack.c.b16 %v11149, %v11147
      %v11208 = vpack.c.b16 %v11152, %v11150
      %v11209 = vpack.c.b16 %v11153, %v11151
      %v11210 = vpack.c.b16 %v11156, %v11154
      %v11211 = vpack.c.b16 %v11157, %v11155
      %v11212 = vpack.c.b16 %v11160, %v11158
      %v11213 = vpack.c.b16 %v11161, %v11159
      %v11214 = vpack.c.b16 %v11164, %v11162
      %v11215 = vpack.c.b16 %v11165, %v11163
      %v11216 = vpack.c.b16 %v11168, %v11166
      %v11217 = vpack.c.b16 %v11169, %v11167
      %v11218 = vpack.c.b16 %v11172, %v11170
      %v11219 = vpack.c.b16 %v11173, %v11171
      %v11220 = vpack.c.b16 %v11176, %v11174
      %v11221 = vpack.c.b16 %v11177, %v11175
      %v11222 = vpack.c.b16 %v11180, %v11178
      %v11223 = vpack.c.b16 %v11181, %v11179
      %v11224 = vpack.c.b16 %v11184, %v11182
      %v11225 = vpack.c.b16 %v11185, %v11183
      %v11226 = vpack.c.b16 %v11188, %v11186
      %v11227 = vpack.c.b16 %v11189, %v11187
      %v11228 = vpack.c.b16 %v11192, %v11190
      %v11229 = vpack.c.b16 %v11193, %v11191
      %v11230 = vpack.c.b16 %v11196, %v11194
      %v11231 = vpack.c.b16 %v11197, %v11195
      %v11232 = vpack.c.b16 %v11200, %v11198
      %v11233 = vpack.c.b16 %v11201, %v11199
      %11266 = vmatprep.subr.bf16.mxu0 %v11217
      %11267 = vmatpush1.bf16.msra.mxu0 %v11216
      %11268 = vmatprep.subr.bf16.mxu0 %v11215
      %11269 = vmatpush1.bf16.msra.mxu0 %v11214
      %11270 = vmatprep.subr.bf16.mxu0 %v11213
      %11271 = vmatpush1.bf16.msra.mxu0 %v11212
      %11272 = vmatprep.subr.bf16.mxu0 %v11211
      %11273 = vmatpush1.bf16.msra.mxu0 %v11210
      %11274 = vmatprep.subr.bf16.mxu0 %v11209
      %11275 = vmatpush1.bf16.msra.mxu0 %v11208
      %11276 = vmatprep.subr.bf16.mxu0 %v11207
      %11277 = vmatpush1.bf16.msra.mxu0 %v11206
      %11278 = vmatprep.subr.bf16.mxu0 %v11205
      %11279 = vmatpush1.bf16.msra.mxu0 %v11204
      %11280 = vmatprep.subr.bf16.mxu0 %v11203
      %11281 = vmatpush1.bf16.msra.mxu0 %v11202
      %11282 = vmatprep.subr.bf16.mxu0 %v11233
      %11283 = vmatpush2.bf16.msra.mxu0 %v11232
      %11284 = vmatprep.subr.bf16.mxu0 %v11231
      %11285 = vmatpush2.bf16.msra.mxu0 %v11230
      %11286 = vmatprep.subr.bf16.mxu0 %v11229
      %11287 = vmatpush2.bf16.msra.mxu0 %v11228
      %11288 = vmatprep.subr.bf16.mxu0 %v11227
      %11289 = vmatpush2.bf16.msra.mxu0 %v11226
      %11290 = vmatprep.subr.bf16.mxu0 %v11225
      %11291 = vmatpush2.bf16.msra.mxu0 %v11224
      %11292 = vmatprep.subr.bf16.mxu0 %v11223
      %11293 = vmatpush2.bf16.msra.mxu0 %v11222
      %11294 = vmatprep.subr.bf16.mxu0 %v11221
      %11295 = vmatpush2.bf16.msra.mxu0 %v11220
      %11296 = vmatprep.subr.bf16.mxu0 %v11219
      %11297 = vmatpush2.bf16.msra.mxu0 %v11218
      %11298 = vmatprep.mubr.bf16.mxu0 %v11097
      %11299 = vmatmul.mubr.bf16.gmra.mxu0 %v11094
      %v11300 = vpop.f32.mrf.mxu0
      %v11301 = vadd.f32 0.0, %v11300
      %v11302 = vpop.f32.mrf.mxu0
      %v11303 = vadd.f32 0.0, %v11302
      %v11304 = vpop.f32.mrf.mxu0
      %v11305 = vadd.f32 0.0, %v11304
      %v11306 = vpop.f32.mrf.mxu0
      %v11307 = vadd.f32 0.0, %v11306
      %11308 = vmatprep.mubr.bf16.mxu0 %v11101
      %11309 = vmatmul.mubr.bf16.gmra.mxu0 %v11099
      %v11310 = vpop.f32.mrf.mxu0
      %v11311 = vadd.f32 0.0, %v11310
      %v11312 = vpop.f32.mrf.mxu0
      %v11313 = vadd.f32 0.0, %v11312
      %v11314 = vpop.f32.mrf.mxu0
      %v11315 = vadd.f32 0.0, %v11314
      %v11316 = vpop.f32.mrf.mxu0
      %v11317 = vadd.f32 0.0, %v11316
      %11318 = vdwg.mxu0
      %v11319 = vadd.f32 %v11026, %v11301
      %v11320 = vadd.f32 %v11027, %v11303
      %v11321 = vadd.f32 %v11028, %v11305
      %v11322 = vadd.f32 %v11029, %v11307
      %v11323 = vadd.f32 %v11030, %v11311
      %v11324 = vadd.f32 %v11031, %v11313
      %v11325 = vadd.f32 %v11032, %v11315
      %v11326 = vadd.f32 %v11033, %v11317
      %v11327 = vld [vmem:[%s246 + $0x140] sm:$0x77]
      %v11328 = vld [vmem:[%s3379] sm:$0xff]
      %v11329 = vld [vmem:[%s3379 + $0x8] sm:$0xff]
      %v11330 = vld [vmem:[%s3379 + $0x10] sm:$0xff]
      %v11331 = vld [vmem:[%s3379 + $0x18] sm:$0xff]
      %v11332 = vld [vmem:[%s3379 + $0x20] sm:$0xff]
      %v11333 = vld [vmem:[%s3379 + $0x28] sm:$0xff]
      %v11334 = vld [vmem:[%s3379 + $0x30] sm:$0xff]
      %v11335 = vld [vmem:[%s3379 + $0x38] sm:$0xff]
      %v11336 = vld [vmem:[%s3379 + $0x40] sm:$0xff]
      %v11337 = vld [vmem:[%s3379 + $0x48] sm:$0xff]
      %v11338 = vld [vmem:[%s3379 + $0x50] sm:$0xff]
      %v11339 = vld [vmem:[%s3379 + $0x58] sm:$0xff]
      %v11340 = vld [vmem:[%s3379 + $0x60] sm:$0xff]
      %v11341 = vld [vmem:[%s3379 + $0x68] sm:$0xff]
      %v11342 = vld [vmem:[%s3379 + $0x70] sm:$0xff]
      %v11343 = vld [vmem:[%s3379 + $0x78] sm:$0xff]
      %v11344 = vld [vmem:[%s3379 + $0x80] sm:$0xff]
      %v11345 = vld [vmem:[%s3379 + $0x88] sm:$0xff]
      %v11346 = vld [vmem:[%s3379 + $0x90] sm:$0xff]
      %v11347 = vld [vmem:[%s3379 + $0x98] sm:$0xff]
      %v11348 = vld [vmem:[%s3379 + $0xa0] sm:$0xff]
      %v11349 = vld [vmem:[%s3379 + $0xa8] sm:$0xff]
      %v11350 = vld [vmem:[%s3379 + $0xb0] sm:$0xff]
      %v11351 = vld [vmem:[%s3379 + $0xb8] sm:$0xff]
      %v11352 = vld [vmem:[%s3379 + $0xc0] sm:$0xff]
      %v11353 = vld [vmem:[%s3379 + $0xc8] sm:$0xff]
      %v11354 = vld [vmem:[%s3379 + $0xd0] sm:$0xff]
      %v11355 = vld [vmem:[%s3379 + $0xd8] sm:$0xff]
      %v11356 = vld [vmem:[%s3379 + $0xe0] sm:$0xff]
      %v11357 = vld [vmem:[%s3379 + $0xe8] sm:$0xff]
      %v11358 = vld [vmem:[%s3379 + $0xf0] sm:$0xff]
      %v11359 = vld [vmem:[%s3379 + $0xf8] sm:$0xff]
      %v11361 = vunpack.c.l.b16 %v11327
      %v11362 = vunpack.c.h.b16 %v11327
      %v11363 = vpack.c.b16 %v11361, %v11361
      %v11364 = vpack.c.b16 %v11362, %v11362
      %v11366 = vshrl.u32 %v11086, 16
      %v11368 = vrot.slane %v11366, 2
      %v11369 = vshll.u32 %v11086, 16
      %v11371 = vrot.slane %v11369, 3
      %v11372 = vor.u32 %v11368, %v11371
      %v11374 = vshrl.u32 %v11088, 16
      %v11376 = vrot.slane %v11374, 2
      %v11377 = vshll.u32 %v11088, 16
      %v11379 = vrot.slane %v11377, 3
      %v11380 = vor.u32 %v11376, %v11379
      %v11381 = vsel %vm3417, %v11372, %v11380
      %v11383 = vshrl.u32 %v11087, 16
      %v11385 = vrot.slane %v11383, 2
      %v11386 = vshll.u32 %v11087, 16
      %v11388 = vrot.slane %v11386, 3
      %v11389 = vor.u32 %v11385, %v11388
      %v11391 = vshrl.u32 %v11089, 16
      %v11393 = vrot.slane %v11391, 2
      %v11394 = vshll.u32 %v11089, 16
      %v11396 = vrot.slane %v11394, 3
      %v11397 = vor.u32 %v11393, %v11396
      %v11398 = vsel %vm3417, %v11389, %v11397
      %v11400 = vshrl.u32 %v11363, 16
      %v11402 = vrot.slane %v11400, 2
      %v11403 = vshll.u32 %v11363, 16
      %v11405 = vrot.slane %v11403, 3
      %v11406 = vor.u32 %v11402, %v11405
      %v11407 = vsel %vm3417, %v11380, %v11406
      %v11409 = vshrl.u32 %v11364, 16
      %v11411 = vrot.slane %v11409, 2
      %v11412 = vshll.u32 %v11364, 16
      %v11414 = vrot.slane %v11412, 3
      %v11415 = vor.u32 %v11411, %v11414
      %v11416 = vsel %vm3417, %v11397, %v11415
      %v11453 = vunpack.c.l.b16 %v11328
      %v11454 = vunpack.c.h.b16 %v11328
      %v11455 = vunpack.c.l.b16 %v11329
      %v11456 = vunpack.c.h.b16 %v11329
      %v11457 = vunpack.c.l.b16 %v11330
      %v11458 = vunpack.c.h.b16 %v11330
      %v11459 = vunpack.c.l.b16 %v11331
      %v11460 = vunpack.c.h.b16 %v11331
      %v11461 = vunpack.c.l.b16 %v11332
      %v11462 = vunpack.c.h.b16 %v11332
      %v11463 = vunpack.c.l.b16 %v11333
      %v11464 = vunpack.c.h.b16 %v11333
      %v11465 = vunpack.c.l.b16 %v11334
      %v11466 = vunpack.c.h.b16 %v11334
      %v11467 = vunpack.c.l.b16 %v11335
      %v11468 = vunpack.c.h.b16 %v11335
      %v11469 = vunpack.c.l.b16 %v11336
      %v11470 = vunpack.c.h.b16 %v11336
      %v11471 = vunpack.c.l.b16 %v11337
      %v11472 = vunpack.c.h.b16 %v11337
      %v11473 = vunpack.c.l.b16 %v11338
      %v11474 = vunpack.c.h.b16 %v11338
      %v11475 = vunpack.c.l.b16 %v11339
      %v11476 = vunpack.c.h.b16 %v11339
      %v11477 = vunpack.c.l.b16 %v11340
      %v11478 = vunpack.c.h.b16 %v11340
      %v11479 = vunpack.c.l.b16 %v11341
      %v11480 = vunpack.c.h.b16 %v11341
      %v11481 = vunpack.c.l.b16 %v11342
      %v11482 = vunpack.c.h.b16 %v11342
      %v11483 = vunpack.c.l.b16 %v11343
      %v11484 = vunpack.c.h.b16 %v11343
      %v11485 = vunpack.c.l.b16 %v11344
      %v11486 = vunpack.c.h.b16 %v11344
      %v11487 = vunpack.c.l.b16 %v11345
      %v11488 = vunpack.c.h.b16 %v11345
      %v11489 = vunpack.c.l.b16 %v11346
      %v11490 = vunpack.c.h.b16 %v11346
      %v11491 = vunpack.c.l.b16 %v11347
      %v11492 = vunpack.c.h.b16 %v11347
      %v11493 = vunpack.c.l.b16 %v11348
      %v11494 = vunpack.c.h.b16 %v11348
      %v11495 = vunpack.c.l.b16 %v11349
      %v11496 = vunpack.c.h.b16 %v11349
      %v11497 = vunpack.c.l.b16 %v11350
      %v11498 = vunpack.c.h.b16 %v11350
      %v11499 = vunpack.c.l.b16 %v11351
      %v11500 = vunpack.c.h.b16 %v11351
      %v11501 = vunpack.c.l.b16 %v11352
      %v11502 = vunpack.c.h.b16 %v11352
      %v11503 = vunpack.c.l.b16 %v11353
      %v11504 = vunpack.c.h.b16 %v11353
      %v11505 = vunpack.c.l.b16 %v11354
      %v11506 = vunpack.c.h.b16 %v11354
      %v11507 = vunpack.c.l.b16 %v11355
      %v11508 = vunpack.c.h.b16 %v11355
      %v11509 = vunpack.c.l.b16 %v11356
      %v11510 = vunpack.c.h.b16 %v11356
      %v11511 = vunpack.c.l.b16 %v11357
      %v11512 = vunpack.c.h.b16 %v11357
      %v11513 = vunpack.c.l.b16 %v11358
      %v11514 = vunpack.c.h.b16 %v11358
      %v11515 = vunpack.c.l.b16 %v11359
      %v11516 = vunpack.c.h.b16 %v11359
      %v11517 = vpack.c.b16 %v11455, %v11453
      %v11518 = vpack.c.b16 %v11456, %v11454
      %v11519 = vpack.c.b16 %v11459, %v11457
      %v11520 = vpack.c.b16 %v11460, %v11458
      %v11521 = vpack.c.b16 %v11463, %v11461
      %v11522 = vpack.c.b16 %v11464, %v11462
      %v11523 = vpack.c.b16 %v11467, %v11465
      %v11524 = vpack.c.b16 %v11468, %v11466
      %v11525 = vpack.c.b16 %v11471, %v11469
      %v11526 = vpack.c.b16 %v11472, %v11470
      %v11527 = vpack.c.b16 %v11475, %v11473
      %v11528 = vpack.c.b16 %v11476, %v11474
      %v11529 = vpack.c.b16 %v11479, %v11477
      %v11530 = vpack.c.b16 %v11480, %v11478
      %v11531 = vpack.c.b16 %v11483, %v11481
      %v11532 = vpack.c.b16 %v11484, %v11482
      %v11533 = vpack.c.b16 %v11487, %v11485
      %v11534 = vpack.c.b16 %v11488, %v11486
      %v11535 = vpack.c.b16 %v11491, %v11489
      %v11536 = vpack.c.b16 %v11492, %v11490
      %v11537 = vpack.c.b16 %v11495, %v11493
      %v11538 = vpack.c.b16 %v11496, %v11494
      %v11539 = vpack.c.b16 %v11499, %v11497
      %v11540 = vpack.c.b16 %v11500, %v11498
      %v11541 = vpack.c.b16 %v11503, %v11501
      %v11542 = vpack.c.b16 %v11504, %v11502
      %v11543 = vpack.c.b16 %v11507, %v11505
      %v11544 = vpack.c.b16 %v11508, %v11506
      %v11545 = vpack.c.b16 %v11511, %v11509
      %v11546 = vpack.c.b16 %v11512, %v11510
      %v11547 = vpack.c.b16 %v11515, %v11513
      %v11548 = vpack.c.b16 %v11516, %v11514
      %11581 = vmatprep.subr.bf16.mxu0 %v11532
      %11582 = vmatpush1.bf16.msra.mxu0 %v11531
      %11583 = vmatprep.subr.bf16.mxu0 %v11530
      %11584 = vmatpush1.bf16.msra.mxu0 %v11529
      %11585 = vmatprep.subr.bf16.mxu0 %v11528
      %11586 = vmatpush1.bf16.msra.mxu0 %v11527
      %11587 = vmatprep.subr.bf16.mxu0 %v11526
      %11588 = vmatpush1.bf16.msra.mxu0 %v11525
      %11589 = vmatprep.subr.bf16.mxu0 %v11524
      %11590 = vmatpush1.bf16.msra.mxu0 %v11523
      %11591 = vmatprep.subr.bf16.mxu0 %v11522
      %11592 = vmatpush1.bf16.msra.mxu0 %v11521
      %11593 = vmatprep.subr.bf16.mxu0 %v11520
      %11594 = vmatpush1.bf16.msra.mxu0 %v11519
      %11595 = vmatprep.subr.bf16.mxu0 %v11518
      %11596 = vmatpush1.bf16.msra.mxu0 %v11517
      %11597 = vmatprep.subr.bf16.mxu0 %v11548
      %11598 = vmatpush2.bf16.msra.mxu0 %v11547
      %11599 = vmatprep.subr.bf16.mxu0 %v11546
      %11600 = vmatpush2.bf16.msra.mxu0 %v11545
      %11601 = vmatprep.subr.bf16.mxu0 %v11544
      %11602 = vmatpush2.bf16.msra.mxu0 %v11543
      %11603 = vmatprep.subr.bf16.mxu0 %v11542
      %11604 = vmatpush2.bf16.msra.mxu0 %v11541
      %11605 = vmatprep.subr.bf16.mxu0 %v11540
      %11606 = vmatpush2.bf16.msra.mxu0 %v11539
      %11607 = vmatprep.subr.bf16.mxu0 %v11538
      %11608 = vmatpush2.bf16.msra.mxu0 %v11537
      %11609 = vmatprep.subr.bf16.mxu0 %v11536
      %11610 = vmatpush2.bf16.msra.mxu0 %v11535
      %11611 = vmatprep.subr.bf16.mxu0 %v11534
      %11612 = vmatpush2.bf16.msra.mxu0 %v11533
      %11613 = vmatprep.mubr.bf16.mxu0 %v11398
      %11614 = vmatmul.mubr.bf16.gmra.mxu0 %v11381
      %v11615 = vpop.f32.mrf.mxu0
      %v11616 = vadd.f32 0.0, %v11615
      %v11617 = vpop.f32.mrf.mxu0
      %v11618 = vadd.f32 0.0, %v11617
      %v11619 = vpop.f32.mrf.mxu0
      %v11620 = vadd.f32 0.0, %v11619
      %v11621 = vpop.f32.mrf.mxu0
      %v11622 = vadd.f32 0.0, %v11621
      %11623 = vmatprep.mubr.bf16.mxu0 %v11416
      %11624 = vmatmul.mubr.bf16.gmra.mxu0 %v11407
      %v11625 = vpop.f32.mrf.mxu0
      %v11626 = vadd.f32 0.0, %v11625
      %v11627 = vpop.f32.mrf.mxu0
      %v11628 = vadd.f32 0.0, %v11627
      %v11629 = vpop.f32.mrf.mxu0
      %v11630 = vadd.f32 0.0, %v11629
      %v11631 = vpop.f32.mrf.mxu0
      %v11632 = vadd.f32 0.0, %v11631
      %11633 = vdwg.mxu0
      %v11634 = vadd.f32 %v11319, %v11616
      %v11635 = vadd.f32 %v11320, %v11618
      %v11636 = vadd.f32 %v11321, %v11620
      %v11637 = vadd.f32 %v11322, %v11622
      %v11638 = vadd.f32 %v11323, %v11626
      %v11639 = vadd.f32 %v11324, %v11628
      %v11640 = vadd.f32 %v11325, %v11630
      %v11641 = vadd.f32 %v11326, %v11632
      %v11642 = vld [vmem:[%s246 + $0x120] sm:$0x88]
      %v11643 = vld [vmem:[%s3900] sm:$0xff]
      %v11644 = vld [vmem:[%s3900 + $0x8] sm:$0xff]
      %v11645 = vld [vmem:[%s3900 + $0x10] sm:$0xff]
      %v11646 = vld [vmem:[%s3900 + $0x18] sm:$0xff]
      %v11647 = vld [vmem:[%s3900 + $0x20] sm:$0xff]
      %v11648 = vld [vmem:[%s3900 + $0x28] sm:$0xff]
      %v11649 = vld [vmem:[%s3900 + $0x30] sm:$0xff]
      %v11650 = vld [vmem:[%s3900 + $0x38] sm:$0xff]
      %v11651 = vld [vmem:[%s3900 + $0x40] sm:$0xff]
      %v11652 = vld [vmem:[%s3900 + $0x48] sm:$0xff]
      %v11653 = vld [vmem:[%s3900 + $0x50] sm:$0xff]
      %v11654 = vld [vmem:[%s3900 + $0x58] sm:$0xff]
      %v11655 = vld [vmem:[%s3900 + $0x60] sm:$0xff]
      %v11656 = vld [vmem:[%s3900 + $0x68] sm:$0xff]
      %v11657 = vld [vmem:[%s3900 + $0x70] sm:$0xff]
      %v11658 = vld [vmem:[%s3900 + $0x78] sm:$0xff]
      %v11659 = vld [vmem:[%s3900 + $0x80] sm:$0xff]
      %v11660 = vld [vmem:[%s3900 + $0x88] sm:$0xff]
      %v11661 = vld [vmem:[%s3900 + $0x90] sm:$0xff]
      %v11662 = vld [vmem:[%s3900 + $0x98] sm:$0xff]
      %v11663 = vld [vmem:[%s3900 + $0xa0] sm:$0xff]
      %v11664 = vld [vmem:[%s3900 + $0xa8] sm:$0xff]
      %v11665 = vld [vmem:[%s3900 + $0xb0] sm:$0xff]
      %v11666 = vld [vmem:[%s3900 + $0xb8] sm:$0xff]
      %v11667 = vld [vmem:[%s3900 + $0xc0] sm:$0xff]
      %v11668 = vld [vmem:[%s3900 + $0xc8] sm:$0xff]
      %v11669 = vld [vmem:[%s3900 + $0xd0] sm:$0xff]
      %v11670 = vld [vmem:[%s3900 + $0xd8] sm:$0xff]
      %v11671 = vld [vmem:[%s3900 + $0xe0] sm:$0xff]
      %v11672 = vld [vmem:[%s3900 + $0xe8] sm:$0xff]
      %v11673 = vld [vmem:[%s3900 + $0xf0] sm:$0xff]
      %v11674 = vld [vmem:[%s3900 + $0xf8] sm:$0xff]
      %v11676 = vunpack.c.l.b16 %v11642
      %v11677 = vunpack.c.h.b16 %v11642
      %v11678 = vpack.c.b16 %v11078, %v11676
      %v11679 = vpack.c.b16 %v11079, %v11677
      %v11680 = vrot.slane %v11678, 3
      %v11681 = vrot.slane %v11088, 3
      %v11682 = vsel %vm3938, %v11680, %v11681
      %v11683 = vrot.slane %v11679, 3
      %v11684 = vrot.slane %v11089, 3
      %v11685 = vsel %vm3938, %v11683, %v11684
      %v11686 = vrot.slane %v11363, 3
      %v11687 = vsel %vm3938, %v11681, %v11686
      %v11688 = vrot.slane %v11364, 3
      %v11689 = vsel %vm3938, %v11684, %v11688
      %v11726 = vunpack.c.l.b16 %v11643
      %v11727 = vunpack.c.h.b16 %v11643
      %v11728 = vunpack.c.l.b16 %v11644
      %v11729 = vunpack.c.h.b16 %v11644
      %v11730 = vunpack.c.l.b16 %v11645
      %v11731 = vunpack.c.h.b16 %v11645
      %v11732 = vunpack.c.l.b16 %v11646
      %v11733 = vunpack.c.h.b16 %v11646
      %v11734 = vunpack.c.l.b16 %v11647
      %v11735 = vunpack.c.h.b16 %v11647
      %v11736 = vunpack.c.l.b16 %v11648
      %v11737 = vunpack.c.h.b16 %v11648
      %v11738 = vunpack.c.l.b16 %v11649
      %v11739 = vunpack.c.h.b16 %v11649
      %v11740 = vunpack.c.l.b16 %v11650
      %v11741 = vunpack.c.h.b16 %v11650
      %v11742 = vunpack.c.l.b16 %v11651
      %v11743 = vunpack.c.h.b16 %v11651
      %v11744 = vunpack.c.l.b16 %v11652
      %v11745 = vunpack.c.h.b16 %v11652
      %v11746 = vunpack.c.l.b16 %v11653
      %v11747 = vunpack.c.h.b16 %v11653
      %v11748 = vunpack.c.l.b16 %v11654
      %v11749 = vunpack.c.h.b16 %v11654
      %v11750 = vunpack.c.l.b16 %v11655
      %v11751 = vunpack.c.h.b16 %v11655
      %v11752 = vunpack.c.l.b16 %v11656
      %v11753 = vunpack.c.h.b16 %v11656
      %v11754 = vunpack.c.l.b16 %v11657
      %v11755 = vunpack.c.h.b16 %v11657
      %v11756 = vunpack.c.l.b16 %v11658
      %v11757 = vunpack.c.h.b16 %v11658
      %v11758 = vunpack.c.l.b16 %v11659
      %v11759 = vunpack.c.h.b16 %v11659
      %v11760 = vunpack.c.l.b16 %v11660
      %v11761 = vunpack.c.h.b16 %v11660
      %v11762 = vunpack.c.l.b16 %v11661
      %v11763 = vunpack.c.h.b16 %v11661
      %v11764 = vunpack.c.l.b16 %v11662
      %v11765 = vunpack.c.h.b16 %v11662
      %v11766 = vunpack.c.l.b16 %v11663
      %v11767 = vunpack.c.h.b16 %v11663
      %v11768 = vunpack.c.l.b16 %v11664
      %v11769 = vunpack.c.h.b16 %v11664
      %v11770 = vunpack.c.l.b16 %v11665
      %v11771 = vunpack.c.h.b16 %v11665
      %v11772 = vunpack.c.l.b16 %v11666
      %v11773 = vunpack.c.h.b16 %v11666
      %v11774 = vunpack.c.l.b16 %v11667
      %v11775 = vunpack.c.h.b16 %v11667
      %v11776 = vunpack.c.l.b16 %v11668
      %v11777 = vunpack.c.h.b16 %v11668
      %v11778 = vunpack.c.l.b16 %v11669
      %v11779 = vunpack.c.h.b16 %v11669
      %v11780 = vunpack.c.l.b16 %v11670
      %v11781 = vunpack.c.h.b16 %v11670
      %v11782 = vunpack.c.l.b16 %v11671
      %v11783 = vunpack.c.h.b16 %v11671
      %v11784 = vunpack.c.l.b16 %v11672
      %v11785 = vunpack.c.h.b16 %v11672
      %v11786 = vunpack.c.l.b16 %v11673
      %v11787 = vunpack.c.h.b16 %v11673
      %v11788 = vunpack.c.l.b16 %v11674
      %v11789 = vunpack.c.h.b16 %v11674
      %v11790 = vpack.c.b16 %v11728, %v11726
      %v11791 = vpack.c.b16 %v11729, %v11727
      %v11792 = vpack.c.b16 %v11732, %v11730
      %v11793 = vpack.c.b16 %v11733, %v11731
      %v11794 = vpack.c.b16 %v11736, %v11734
      %v11795 = vpack.c.b16 %v11737, %v11735
      %v11796 = vpack.c.b16 %v11740, %v11738
      %v11797 = vpack.c.b16 %v11741, %v11739
      %v11798 = vpack.c.b16 %v11744, %v11742
      %v11799 = vpack.c.b16 %v11745, %v11743
      %v11800 = vpack.c.b16 %v11748, %v11746
      %v11801 = vpack.c.b16 %v11749, %v11747
      %v11802 = vpack.c.b16 %v11752, %v11750
      %v11803 = vpack.c.b16 %v11753, %v11751
      %v11804 = vpack.c.b16 %v11756, %v11754
      %v11805 = vpack.c.b16 %v11757, %v11755
      %v11806 = vpack.c.b16 %v11760, %v11758
      %v11807 = vpack.c.b16 %v11761, %v11759
      %v11808 = vpack.c.b16 %v11764, %v11762
      %v11809 = vpack.c.b16 %v11765, %v11763
      %v11810 = vpack.c.b16 %v11768, %v11766
      %v11811 = vpack.c.b16 %v11769, %v11767
      %v11812 = vpack.c.b16 %v11772, %v11770
      %v11813 = vpack.c.b16 %v11773, %v11771
      %v11814 = vpack.c.b16 %v11776, %v11774
      %v11815 = vpack.c.b16 %v11777, %v11775
      %v11816 = vpack.c.b16 %v11780, %v11778
      %v11817 = vpack.c.b16 %v11781, %v11779
      %v11818 = vpack.c.b16 %v11784, %v11782
      %v11819 = vpack.c.b16 %v11785, %v11783
      %v11820 = vpack.c.b16 %v11788, %v11786
      %v11821 = vpack.c.b16 %v11789, %v11787
      %11854 = vmatprep.subr.bf16.mxu0 %v11805
      %11855 = vmatpush1.bf16.msra.mxu0 %v11804
      %11856 = vmatprep.subr.bf16.mxu0 %v11803
      %11857 = vmatpush1.bf16.msra.mxu0 %v11802
      %11858 = vmatprep.subr.bf16.mxu0 %v11801
      %11859 = vmatpush1.bf16.msra.mxu0 %v11800
      %11860 = vmatprep.subr.bf16.mxu0 %v11799
      %11861 = vmatpush1.bf16.msra.mxu0 %v11798
      %11862 = vmatprep.subr.bf16.mxu0 %v11797
      %11863 = vmatpush1.bf16.msra.mxu0 %v11796
      %11864 = vmatprep.subr.bf16.mxu0 %v11795
      %11865 = vmatpush1.bf16.msra.mxu0 %v11794
      %11866 = vmatprep.subr.bf16.mxu0 %v11793
      %11867 = vmatpush1.bf16.msra.mxu0 %v11792
      %11868 = vmatprep.subr.bf16.mxu0 %v11791
      %11869 = vmatpush1.bf16.msra.mxu0 %v11790
      %11870 = vmatprep.subr.bf16.mxu0 %v11821
      %11871 = vmatpush2.bf16.msra.mxu0 %v11820
      %11872 = vmatprep.subr.bf16.mxu0 %v11819
      %11873 = vmatpush2.bf16.msra.mxu0 %v11818
      %11874 = vmatprep.subr.bf16.mxu0 %v11817
      %11875 = vmatpush2.bf16.msra.mxu0 %v11816
      %11876 = vmatprep.subr.bf16.mxu0 %v11815
      %11877 = vmatpush2.bf16.msra.mxu0 %v11814
      %11878 = vmatprep.subr.bf16.mxu0 %v11813
      %11879 = vmatpush2.bf16.msra.mxu0 %v11812
      %11880 = vmatprep.subr.bf16.mxu0 %v11811
      %11881 = vmatpush2.bf16.msra.mxu0 %v11810
      %11882 = vmatprep.subr.bf16.mxu0 %v11809
      %11883 = vmatpush2.bf16.msra.mxu0 %v11808
      %11884 = vmatprep.subr.bf16.mxu0 %v11807
      %11885 = vmatpush2.bf16.msra.mxu0 %v11806
      %11886 = vmatprep.mubr.bf16.mxu0 %v11685
      %11887 = vmatmul.mubr.bf16.gmra.mxu0 %v11682
      %v11888 = vpop.f32.mrf.mxu0
      %v11889 = vadd.f32 0.0, %v11888
      %v11890 = vpop.f32.mrf.mxu0
      %v11891 = vadd.f32 0.0, %v11890
      %v11892 = vpop.f32.mrf.mxu0
      %v11893 = vadd.f32 0.0, %v11892
      %v11894 = vpop.f32.mrf.mxu0
      %v11895 = vadd.f32 0.0, %v11894
      %11896 = vmatprep.mubr.bf16.mxu0 %v11689
      %11897 = vmatmul.mubr.bf16.gmra.mxu0 %v11687
      %v11898 = vpop.f32.mrf.mxu0
      %v11899 = vadd.f32 0.0, %v11898
      %v11900 = vpop.f32.mrf.mxu0
      %v11901 = vadd.f32 0.0, %v11900
      %v11902 = vpop.f32.mrf.mxu0
      %v11903 = vadd.f32 0.0, %v11902
      %v11904 = vpop.f32.mrf.mxu0
      %v11905 = vadd.f32 0.0, %v11904
      %11906 = vdwg.mxu0
      %v11907 = vadd.f32 %v11634, %v11889
      %v11908 = vadd.f32 %v11635, %v11891
      %v11909 = vadd.f32 %v11636, %v11893
      %v11910 = vadd.f32 %v11637, %v11895
      %v11911 = vadd.f32 %v11638, %v11899
      %v11912 = vadd.f32 %v11639, %v11901
      %v11913 = vadd.f32 %v11640, %v11903
      %v11914 = vadd.f32 %v11641, %v11905
      %v11915 = vld [vmem:[%s2] sm:$0x3]
      %v11917 = vlaneseq
      %v11918 = vshrl.u32 %v11917, 7
      %v11919 = vsub.s32 0, %v11918
      %v11920 = vrot.slane %v11915, %v11919
      %v11921 = vlaneseq
      %v11922 = vshrl.u32 %v11921, 7
      %v11923 = vsub.s32 1, %v11922
      %v11924 = vrot.slane %v11915, %v11923
      %v11927 = vmul.f32 %v11907, %v11920
      %v11928 = vmul.f32 %v11908, %v11924
      %v11929 = vmul.f32 %v11909, %v11920
      %v11930 = vmul.f32 %v11910, %v11924
      %v11931 = vmul.f32 %v11911, %v11920
      %v11932 = vmul.f32 %v11912, %v11924
      %v11933 = vmul.f32 %v11913, %v11920
      %v11934 = vmul.f32 %v11914, %v11924
      %v11935 = vld [vmem:[%s3] sm:$0x3]
      %v11937 = vlaneseq
      %v11938 = vshrl.u32 %v11937, 7
      %v11939 = vsub.s32 0, %v11938
      %v11940 = vrot.slane %v11935, %v11939
      %v11941 = vlaneseq
      %v11942 = vshrl.u32 %v11941, 7
      %v11943 = vsub.s32 1, %v11942
      %v11944 = vrot.slane %v11935, %v11943
      %v11947 = vadd.f32 %v11927, %v11940
      %v11948 = vadd.f32 %v11928, %v11944
      %v11949 = vadd.f32 %v11929, %v11940
      %v11950 = vadd.f32 %v11930, %v11944
      %v11951 = vadd.f32 %v11931, %v11940
      %v11952 = vadd.f32 %v11932, %v11944
      %v11953 = vadd.f32 %v11933, %v11940
      %v11954 = vadd.f32 %v11934, %v11944
      %v11955 = vmax.f32 %v11947, 0.0
      %v11956 = vmax.f32 %v11948, 0.0
      %v11957 = vmax.f32 %v11949, 0.0
      %v11958 = vmax.f32 %v11950, 0.0
      %v11959 = vmax.f32 %v11951, 0.0
      %v11960 = vmax.f32 %v11952, 0.0
      %v11961 = vmax.f32 %v11953, 0.0
      %v11962 = vmax.f32 %v11954, 0.0
      %v11963 = vpack.c.bf16 %v11957, %v11955
      %v11964 = vpack.c.bf16 %v11958, %v11956
      %v11965 = vpack.c.bf16 %v11961, %v11959
      %v11966 = vpack.c.bf16 %v11962, %v11960
      %v11967 = vld [vmem:[%s4] sm:$0xf]
      %v11968 = vld [vmem:[%s4 + $0x4] sm:$0xf]
      %v11969 = vld [vmem:[%s4 + $0x8] sm:$0xf]
      %v11970 = vld [vmem:[%s4 + $0xc] sm:$0xf]
      %v11971 = vld [vmem:[%s4 + $0x10] sm:$0xf]
      %v11972 = vld [vmem:[%s4 + $0x14] sm:$0xf]
      %v11973 = vld [vmem:[%s4 + $0x18] sm:$0xf]
      %v11974 = vld [vmem:[%s4 + $0x1c] sm:$0xf]
      %v11975 = vld [vmem:[%s4 + $0x20] sm:$0xf]
      %v11976 = vld [vmem:[%s4 + $0x24] sm:$0xf]
      %v11977 = vld [vmem:[%s4 + $0x28] sm:$0xf]
      %v11978 = vld [vmem:[%s4 + $0x2c] sm:$0xf]
      %v11979 = vld [vmem:[%s4 + $0x30] sm:$0xf]
      %v11980 = vld [vmem:[%s4 + $0x34] sm:$0xf]
      %v11981 = vld [vmem:[%s4 + $0x38] sm:$0xf]
      %v11982 = vld [vmem:[%s4 + $0x3c] sm:$0xf]
      %v11983 = vld [vmem:[%s4 + $0x40] sm:$0xf]
      %v11984 = vld [vmem:[%s4 + $0x44] sm:$0xf]
      %v11985 = vld [vmem:[%s4 + $0x48] sm:$0xf]
      %v11986 = vld [vmem:[%s4 + $0x4c] sm:$0xf]
      %v11987 = vld [vmem:[%s4 + $0x50] sm:$0xf]
      %v11988 = vld [vmem:[%s4 + $0x54] sm:$0xf]
      %v11989 = vld [vmem:[%s4 + $0x58] sm:$0xf]
      %v11990 = vld [vmem:[%s4 + $0x5c] sm:$0xf]
      %v11991 = vld [vmem:[%s4 + $0x60] sm:$0xf]
      %v11992 = vld [vmem:[%s4 + $0x64] sm:$0xf]
      %v11993 = vld [vmem:[%s4 + $0x68] sm:$0xf]
      %v11994 = vld [vmem:[%s4 + $0x6c] sm:$0xf]
      %v11995 = vld [vmem:[%s4 + $0x70] sm:$0xf]
      %v11996 = vld [vmem:[%s4 + $0x74] sm:$0xf]
      %v11997 = vld [vmem:[%s4 + $0x78] sm:$0xf]
      %v11998 = vld [vmem:[%s4 + $0x7c] sm:$0xf]
      %v11999 = vld [vmem:[%s5] sm:$0x1]
      %v12001 = vlaneseq
      %v12002 = vshrl.u32 %v12001, 7
      %v12003 = vsub.s32 0, %v12002
      %v12004 = vrot.slane %v11999, %v12003
      %v12038 = vunpack.c.l.b16 %v11967
      %v12039 = vunpack.c.l.b16 %v11968
      %v12040 = vunpack.c.l.b16 %v11969
      %v12041 = vunpack.c.l.b16 %v11970
      %v12042 = vunpack.c.l.b16 %v11971
      %v12043 = vunpack.c.l.b16 %v11972
      %v12044 = vunpack.c.l.b16 %v11973
      %v12045 = vunpack.c.l.b16 %v11974
      %v12046 = vunpack.c.l.b16 %v11975
      %v12047 = vunpack.c.l.b16 %v11976
      %v12048 = vunpack.c.l.b16 %v11977
      %v12049 = vunpack.c.l.b16 %v11978
      %v12050 = vunpack.c.l.b16 %v11979
      %v12051 = vunpack.c.l.b16 %v11980
      %v12052 = vunpack.c.l.b16 %v11981
      %v12053 = vunpack.c.l.b16 %v11982
      %v12054 = vunpack.c.l.b16 %v11983
      %v12055 = vunpack.c.l.b16 %v11984
      %v12056 = vunpack.c.l.b16 %v11985
      %v12057 = vunpack.c.l.b16 %v11986
      %v12058 = vunpack.c.l.b16 %v11987
      %v12059 = vunpack.c.l.b16 %v11988
      %v12060 = vunpack.c.l.b16 %v11989
      %v12061 = vunpack.c.l.b16 %v11990
      %v12062 = vunpack.c.l.b16 %v11991
      %v12063 = vunpack.c.l.b16 %v11992
      %v12064 = vunpack.c.l.b16 %v11993
      %v12065 = vunpack.c.l.b16 %v11994
      %v12066 = vunpack.c.l.b16 %v11995
      %v12067 = vunpack.c.l.b16 %v11996
      %v12068 = vunpack.c.l.b16 %v11997
      %v12069 = vunpack.c.l.b16 %v11998
      %v12070 = vpack.c.b16 %v12039, %v12038
      %v12071 = vpack.c.b16 %v12041, %v12040
      %v12072 = vpack.c.b16 %v12043, %v12042
      %v12073 = vpack.c.b16 %v12045, %v12044
      %v12074 = vpack.c.b16 %v12047, %v12046
      %v12075 = vpack.c.b16 %v12049, %v12048
      %v12076 = vpack.c.b16 %v12051, %v12050
      %v12077 = vpack.c.b16 %v12053, %v12052
      %v12078 = vpack.c.b16 %v12055, %v12054
      %v12079 = vpack.c.b16 %v12057, %v12056
      %v12080 = vpack.c.b16 %v12059, %v12058
      %v12081 = vpack.c.b16 %v12061, %v12060
      %v12082 = vpack.c.b16 %v12063, %v12062
      %v12083 = vpack.c.b16 %v12065, %v12064
      %v12084 = vpack.c.b16 %v12067, %v12066
      %v12085 = vpack.c.b16 %v12069, %v12068
      %12102 = vmatprep.subr.bf16.mxu0 0
      %12103 = vmatpush1.bf16.msra.mxu0 %v12077
      %12104 = vmatprep.subr.bf16.mxu0 0
      %12105 = vmatpush1.bf16.msra.mxu0 %v12076
      %12106 = vmatprep.subr.bf16.mxu0 0
      %12107 = vmatpush1.bf16.msra.mxu0 %v12075
      %12108 = vmatprep.subr.bf16.mxu0 0
      %12109 = vmatpush1.bf16.msra.mxu0 %v12074
      %12110 = vmatprep.subr.bf16.mxu0 0
      %12111 = vmatpush1.bf16.msra.mxu0 %v12073
      %12112 = vmatprep.subr.bf16.mxu0 0
      %12113 = vmatpush1.bf16.msra.mxu0 %v12072
      %12114 = vmatprep.subr.bf16.mxu0 0
      %12115 = vmatpush1.bf16.msra.mxu0 %v12071
      %12116 = vmatprep.subr.bf16.mxu0 0
      %12117 = vmatpush1.bf16.msra.mxu0 %v12070
      %12118 = vmatprep.subr.bf16.mxu0 0
      %12119 = vmatpush2.bf16.msra.mxu0 %v12085
      %12120 = vmatprep.subr.bf16.mxu0 0
      %12121 = vmatpush2.bf16.msra.mxu0 %v12084
      %12122 = vmatprep.subr.bf16.mxu0 0
      %12123 = vmatpush2.bf16.msra.mxu0 %v12083
      %12124 = vmatprep.subr.bf16.mxu0 0
      %12125 = vmatpush2.bf16.msra.mxu0 %v12082
      %12126 = vmatprep.subr.bf16.mxu0 0
      %12127 = vmatpush2.bf16.msra.mxu0 %v12081
      %12128 = vmatprep.subr.bf16.mxu0 0
      %12129 = vmatpush2.bf16.msra.mxu0 %v12080
      %12130 = vmatprep.subr.bf16.mxu0 0
      %12131 = vmatpush2.bf16.msra.mxu0 %v12079
      %12132 = vmatprep.subr.bf16.mxu0 0
      %12133 = vmatpush2.bf16.msra.mxu0 %v12078
      %12134 = vmatprep.mubr.bf16.mxu0 %v11964
      %12135 = vmatmul.mubr.bf16.gmra.mxu0 %v11963
      %v12136 = vpop.f32.mrf.mxu0
      %v12137 = vadd.f32 %v12004, %v12136
      %v12138 = vpop.f32.mrf.mxu0
      %v12139 = vpop.f32.mrf.mxu0
      %v12140 = vadd.f32 %v12004, %v12139
      %v12141 = vpop.f32.mrf.mxu0
      %12142 = vmatprep.mubr.bf16.mxu0 %v11966
      %12143 = vmatmul.mubr.bf16.gmra.mxu0 %v11965
      %v12144 = vpop.f32.mrf.mxu0
      %v12145 = vadd.f32 %v12004, %v12144
      %v12146 = vpop.f32.mrf.mxu0
      %v12147 = vpop.f32.mrf.mxu0
      %v12148 = vadd.f32 %v12004, %v12147
      %v12149 = vpop.f32.mrf.mxu0
      %12150 = vdwg.mxu0
      %v12151 = vxor.u32 %v12137, 2147483648
      %v12152 = vxor.u32 %v12140, 2147483648
      %v12153 = vxor.u32 %v12145, 2147483648
      %v12154 = vxor.u32 %v12148, 2147483648
      %v12155 = vmul.f32 %v12151, 1.442695
      %v12156 = vpow.pop %v12155
      %v12157 = vmul.f32 %v12152, 1.442695
      %v12158 = vpow.pop %v12157
      %v12159 = vmul.f32 %v12153, 1.442695
      %v12160 = vpow.pop %v12159
      %v12161 = vmul.f32 %v12154, 1.442695
      %v12162 = vpow.pop %v12161
      %v12163 = vadd.f32 %v12156, 1.0
      %v12164 = vadd.f32 %v12158, 1.0
      %v12165 = vadd.f32 %v12160, 1.0
      %v12166 = vadd.f32 %v12162, 1.0
      %v12167 = vrcp.pop %v12163
      %v12168 = vmul.f32 1.0, %v12167
      %v12169 = vrcp.pop %v12164
      %v12170 = vmul.f32 1.0, %v12169
      %v12171 = vrcp.pop %v12165
      %v12172 = vmul.f32 1.0, %v12171
      %v12173 = vrcp.pop %v12166
      %v12174 = vmul.f32 1.0, %v12173
      %v12175 = vsel %vm4664, %v12168, %v12137
      %v12176 = vsel %vm4664, %v12170, %v12140
      %v12177 = vsel %vm4664, %v12172, %v12145
      %v12178 = vsel %vm4664, %v12174, %v12148
      %12179 = vst [vmem:[%s251 + $0x100] sm:$0xff] %v12175
      %12180 = vst [vmem:[%s251 + $0x108] sm:$0xff] %v12176
      %12181 = vst [vmem:[%s251 + $0x110] sm:$0xff] %v12177
      %12182 = vst [vmem:[%s251 + $0x118] sm:$0xff] %v12178
      %p12183 = scmp.lt.s32.totalorder %s17, 3
      %s12184 = scalar_select %p12183, %s17, 3
      %s12185 = smul.addr %s12184, 36
      %s12186 = smul.addr %s12185, 8
      %s12187 = scalar_lea.vmem %s6, %s12186
      // Predicated region
      $region45: #{_rpn_forward_impl.1} parent=43 // pred_check
        %p12188 = pneg %p166
      $region46: #{_rpn_forward_impl.1} parent=43 // pred_check_branch
        %12190 = sbr.rel (%p12188) target = $region48
      $region47: #{_rpn_forward_impl.1} parent=43 // pred_region
        _
      $region48: #{_rpn_forward_impl.1} parent=43 // pred_fallthru
        _
    $region44: #{_rpn_forward_impl.1} parent=5 // pred_fallthru
      _
    %p12191 = scmp.le.s32.totalorder 2, %s12
    // Predicated region
    $region49: #{_rpn_forward_impl.1} parent=5 // pred_check
      %p12192 = pneg %p12191
    $region50: #{_rpn_forward_impl.1} parent=5 // pred_check_branch
      %12194 = sbr.rel (%p12192) target = $region52
    $region51: #{_rpn_forward_impl.1} parent=5 // pred_region
      %s12195 = ssub.s32 %s12, 2
      // Predicated region
      $region53: #{_rpn_forward_impl.1} parent=51 // pred_check
        %p12196 = pneg %p172
      $region54: #{_rpn_forward_impl.1} parent=51 // pred_check_branch
        %12198 = sbr.rel (%p12196) target = $region56
      $region55: #{_rpn_forward_impl.1} parent=51 // pred_region
        %p12199 = scmp.lt.s32.totalorder %s18, 3
        %s12200 = scalar_select %p12199, %s18, 3
        %s12201 = smul.addr %s12200, 36
        %s12202 = smul.addr %s12201, 8
        %s12203 = scalar_lea.vmem %s6, %s12202
      $region56: #{_rpn_forward_impl.1} parent=51 // pred_fallthru
        _
    $region52: #{_rpn_forward_impl.1} parent=5 // pred_fallthru
      _
  $region6: #{_rpn_forward_impl.1} parent=0 // loop_footer
    %s16 = sadd.s32 1, %s12
  $region7: #{_rpn_forward_impl.1} parent=0 // loop_footer_branch
    %11 = sbr.rel target = $region3
  $region8: #{_rpn_forward_impl.1} parent=0 // loop_exit
    _

</llo_original>
